<compile_context>
chip_gen: v7x
topology: tpu7x:2x2x1
jax: 0.10.0
libtpu: 0.0.40
codegen_flags: <defaults>
</compile_context>

<pallas_src>
import math
from functools import lru_cache, partial

import numpy as np
import jax
import jax.numpy as jnp
from jax.experimental import pallas as pl
from jax.experimental.pallas import tpu as pltpu


def _round_up(x, m):
    return ((x + m - 1) // m) * m


def _vmem_limit(est_bytes):
    # Explicit scoped-VMEM budget: ~2x the estimated live tile bytes (double
    # buffering) plus headroom, clamped below v7x's 64 MiB physical VMEM.
    return int(min(max(2 * est_bytes + (1 << 20), 4 << 20), 56 << 20))


# ----------------------------- Pallas kernels ------------------------------

@lru_cache(maxsize=None)
def _qkv_call(M_pad, K, D, TM):
    """Fused Q/K/V projection: x read from HBM once per row tile, three resident
    bf16 weights, f32 accumulation, three bf16 outputs."""
    def kernel(x_ref, wq_ref, wk_ref, wv_ref, bq_ref, bk_ref, bv_ref,
               q_ref, k_ref, v_ref):
        x = x_ref[...]                                           # (TM, K) bf16
        for w_ref, b_ref, o_ref in ((wq_ref, bq_ref, q_ref),
                                    (wk_ref, bk_ref, k_ref),
                                    (wv_ref, bv_ref, v_ref)):
            acc = jnp.dot(x, w_ref[...], preferred_element_type=jnp.float32)
            o_ref[...] = (acc + b_ref[...]).astype(jnp.bfloat16)

    est = 2 * TM * K * 2 + 3 * K * D * 2 + 3 * D * 4 + 3 * 2 * TM * D * 2
    return pl.pallas_call(
        kernel,
        grid=(M_pad // TM,),
        out_shape=[jax.ShapeDtypeStruct((M_pad, D), jnp.bfloat16)] * 3,
        in_specs=[pl.BlockSpec((TM, K), lambda i: (i, 0))]
                 + [pl.BlockSpec((K, D), lambda i: (0, 0))] * 3
                 + [pl.BlockSpec((1, D), lambda i: (0, 0))] * 3,
        out_specs=[pl.BlockSpec((TM, D), lambda i: (i, 0))] * 3,
        compiler_params=pltpu.CompilerParams(
            dimension_semantics=("parallel",), vmem_limit_bytes=_vmem_limit(est)),
    )


def pallas_qkv(x, wq, wk, wv, bq, bk, bv):
    M, K = x.shape
    D = wq.shape[1]
    TM = min(512, _round_up(M, 8))
    M_pad = _round_up(M, TM)
    if M_pad != M:
        x = jnp.pad(x, ((0, M_pad - M), (0, 0)))
    q, k, v = _qkv_call(M_pad, K, D, TM)(x, wq, wk, wv, bq, bk, bv)
    return q[:M], k[:M], v[:M]


@lru_cache(maxsize=None)
def _linear_call(M_pad, K, N_pad, TM, relu):
    """Row-tiled matmul + bias (+ReLU). bf16 in/out, f32 accumulation."""
    def kernel(x_ref, w_ref, b_ref, o_ref):
        acc = jnp.dot(x_ref[...], w_ref[...], preferred_element_type=jnp.float32)
        acc = acc + b_ref[...]
        if relu:
            acc = jnp.maximum(acc, 0.0)
        o_ref[...] = acc.astype(jnp.bfloat16)

    est = 2 * TM * K * 2 + K * N_pad * 2 + N_pad * 4 + 2 * TM * N_pad * 2
    return pl.pallas_call(
        kernel,
        grid=(M_pad // TM,),
        out_shape=jax.ShapeDtypeStruct((M_pad, N_pad), jnp.bfloat16),
        in_specs=[pl.BlockSpec((TM, K), lambda i: (i, 0)),
                  pl.BlockSpec((K, N_pad), lambda i: (0, 0)),
                  pl.BlockSpec((1, N_pad), lambda i: (0, 0))],
        out_specs=pl.BlockSpec((TM, N_pad), lambda i: (i, 0)),
        compiler_params=pltpu.CompilerParams(
            dimension_semantics=("parallel",), vmem_limit_bytes=_vmem_limit(est)),
    )


def pallas_linear(x, w, b, n_out, relu=False):
    """x:[M,K] bf16; w:[K,N_pad] bf16 (pre-padded at init); b:[1,N_pad] f32."""
    M, K = x.shape
    N_pad = w.shape[1]
    TM = min(512, _round_up(M, 8))
    M_pad = _round_up(M, TM)
    if M_pad != M:
        x = jnp.pad(x, ((0, M_pad - M), (0, 0)))
    y = _linear_call(M_pad, K, N_pad, TM, bool(relu))(x, w, b)
    return y[:M, :n_out]


@lru_cache(maxsize=None)
def _linear_res_ln_call(M_pad, K, D, TM):
    """Row-tiled matmul + bias + residual + LayerNorm epilogue (eps=1e-5)."""
    def kernel(x_ref, w_ref, b_ref, r_ref, g_ref, bb_ref, o_ref):
        y = jnp.dot(x_ref[...], w_ref[...], preferred_element_type=jnp.float32)
        y = y + b_ref[...] + r_ref[...].astype(jnp.float32)
        mean = jnp.mean(y, axis=-1, keepdims=True)
        c = y - mean
        var = jnp.mean(c * c, axis=-1, keepdims=True)
        o_ref[...] = (c * jax.lax.rsqrt(var + 1e-5) * g_ref[...]
                      + bb_ref[...]).astype(jnp.bfloat16)

    est = 2 * TM * K * 2 + K * D * 2 + 3 * D * 4 + 2 * TM * D * 2 + 2 * TM * D * 2
    return pl.pallas_call(
        kernel,
        grid=(M_pad // TM,),
        out_shape=jax.ShapeDtypeStruct((M_pad, D), jnp.bfloat16),
        in_specs=[pl.BlockSpec((TM, K), lambda i: (i, 0)),
                  pl.BlockSpec((K, D), lambda i: (0, 0)),
                  pl.BlockSpec((1, D), lambda i: (0, 0)),
                  pl.BlockSpec((TM, D), lambda i: (i, 0)),
                  pl.BlockSpec((1, D), lambda i: (0, 0)),
                  pl.BlockSpec((1, D), lambda i: (0, 0))],
        out_specs=pl.BlockSpec((TM, D), lambda i: (i, 0)),
        compiler_params=pltpu.CompilerParams(
            dimension_semantics=("parallel",), vmem_limit_bytes=_vmem_limit(est)),
    )


def pallas_linear_res_ln(x, w, b, residual, gamma, beta):
    M, K = x.shape
    D = w.shape[1]
    TM = min(512, _round_up(M, 8))
    M_pad = _round_up(M, TM)
    if M_pad != M:
        x = jnp.pad(x, ((0, M_pad - M), (0, 0)))
        residual = jnp.pad(residual, ((0, M_pad - M), (0, 0)))
    return _linear_res_ln_call(M_pad, K, D, TM)(x, w, b, residual, gamma, beta)[:M]


@lru_cache(maxsize=None)
def _layernorm_call(M_pad, D, TM):
    def kernel(x_ref, g_ref, b_ref, o_ref):
        xv = x_ref[...].astype(jnp.float32)
        mean = jnp.mean(xv, axis=-1, keepdims=True)
        c = xv - mean
        var = jnp.mean(c * c, axis=-1, keepdims=True)
        o_ref[...] = (c * jax.lax.rsqrt(var + 1e-5) * g_ref[...]
                      + b_ref[...]).astype(jnp.bfloat16)

    est = 2 * TM * D * 2 + 2 * D * 4 + 2 * TM * D * 2
    return pl.pallas_call(
        kernel,
        grid=(M_pad // TM,),
        out_shape=jax.ShapeDtypeStruct((M_pad, D), jnp.bfloat16),
        in_specs=[pl.BlockSpec((TM, D), lambda i: (i, 0)),
                  pl.BlockSpec((1, D), lambda i: (0, 0)),
                  pl.BlockSpec((1, D), lambda i: (0, 0))],
        out_specs=pl.BlockSpec((TM, D), lambda i: (i, 0)),
        compiler_params=pltpu.CompilerParams(
            dimension_semantics=("parallel",), vmem_limit_bytes=_vmem_limit(est)),
    )


def pallas_layernorm(x, gamma, beta):
    lead = x.shape[:-1]
    D = x.shape[-1]
    M = int(np.prod(lead))
    TM = min(512, _round_up(M, 8))
    M_pad = _round_up(M, TM)
    xp = x.reshape(M, D)
    if M_pad != M:
        xp = jnp.pad(xp, ((0, M_pad - M), (0, 0)))
    y = _layernorm_call(M_pad, D, TM)(xp, gamma, beta)
    return y[:M].reshape(*lead, D)


@lru_cache(maxsize=None)
def _attention_call(B, H, T, D):
    """All heads of one batch element per grid step.  q/k/v/out stay in the
    [B, T, D] layout produced/consumed by the projection kernels (no XLA
    transposes); heads are static lane slices of the refs."""
    dh = D // H
    scale = 1.0 / math.sqrt(dh)

    def kernel(q_ref, k_ref, v_ref, m_ref, o_ref):
        bias = m_ref[0]                                     # (1, T) f32 key-padding bias
        outs = []
        for h in range(H):
            lo, hi = h * dh, (h + 1) * dh
            qh = q_ref[0, :, lo:hi]                         # (T, dh) bf16 static ref slice
            kh = k_ref[0, :, lo:hi]
            vh = v_ref[0, :, lo:hi]
            s = jax.lax.dot_general(qh, kh, (((1,), (1,)), ((), ())),
                                    preferred_element_type=jnp.float32)
            s = s * scale + bias
            s = s - jnp.max(s, axis=-1, keepdims=True)
            p = jnp.exp(s)
            # approx reciprocal (~2^-12 rel err) runs on the EUP slot
            p = p * pl.reciprocal(jnp.sum(p, axis=-1, keepdims=True), approx=True)
            outs.append(jnp.dot(p.astype(jnp.bfloat16), vh,
                                preferred_element_type=jnp.float32))
        o_ref[0] = jnp.concatenate(outs, axis=-1).astype(jnp.bfloat16)

    # TODO(synk): for very long post-LR sequences on v7x switch to a key-tiled
    # (flash-style) online softmax so the (T, T) scores never materialize.
    est = 2 * (3 * T * D * 2 + T * 4 + T * D * 2) + H * T * T * 4
    return pl.pallas_call(
        kernel,
        grid=(B,),
        out_shape=jax.ShapeDtypeStruct((B, T, D), jnp.bfloat16),
        in_specs=[pl.BlockSpec((1, T, D), lambda b: (b, 0, 0))] * 3
                 + [pl.BlockSpec((1, 1, T), lambda b: (b, 0, 0))],
        out_specs=pl.BlockSpec((1, T, D), lambda b: (b, 0, 0)),
        compiler_params=pltpu.CompilerParams(
            dimension_semantics=("parallel",), vmem_limit_bytes=_vmem_limit(est)),
    )


def pallas_attention(q, k, v, mask_bias, heads):
    B, T, D = q.shape
    return _attention_call(B, heads, T, D)(q, k, v, mask_bias)


@lru_cache(maxsize=None)
def _conv_call(B, T, Cin, Cout, K, relu, fuse_ln):
    """'Same' Conv1d over time (channels-last): K accumulated tap matmuls with
    static-offset ref loads (no value sublane shifts), optional ReLU or fused
    residual + LayerNorm epilogue. bf16 in/out, f32 accumulation."""
    def kernel(x_ref, w_ref, b_ref, *rest):
        if fuse_ln:
            r_ref, g_ref, bb_ref, o_ref = rest
        else:
            (o_ref,) = rest
        acc = None
        for k in range(K):
            xk = x_ref[0, k:k + T, :]                       # static-offset ref load
            wk = w_ref[k]
            if Cin == 1:
                tap = xk.astype(jnp.float32) * wk.astype(jnp.float32)  # (T,1)*(1,Cout), VPU
            else:
                tap = jnp.dot(xk, wk, preferred_element_type=jnp.float32)
            acc = tap if acc is None else acc + tap
        acc = acc + b_ref[...]
        if relu:
            acc = jnp.maximum(acc, 0.0)
        if fuse_ln:
            y = acc + r_ref[0].astype(jnp.float32)
            mean = jnp.mean(y, axis=-1, keepdims=True)
            c = y - mean
            var = jnp.mean(c * c, axis=-1, keepdims=True)
            o_ref[0] = (c * jax.lax.rsqrt(var + 1e-5) * g_ref[...]
                        + bb_ref[...]).astype(jnp.bfloat16)
        else:
            o_ref[0] = acc.astype(jnp.bfloat16)

    in_specs = [pl.BlockSpec((1, T + K - 1, Cin), lambda b: (b, 0, 0)),
                pl.BlockSpec((K, Cin, Cout), lambda b: (0, 0, 0)),
                pl.BlockSpec((1, Cout), lambda b: (0, 0))]
    est = 2 * (T + K - 1) * Cin * 2 + K * Cin * Cout * 2 + Cout * 4 + 2 * T * Cout * 2
    if fuse_ln:
        in_specs += [pl.BlockSpec((1, T, Cout), lambda b: (b, 0, 0)),
                     pl.BlockSpec((1, Cout), lambda b: (0, 0)),
                     pl.BlockSpec((1, Cout), lambda b: (0, 0))]
        est += 2 * T * Cout * 2 + 2 * Cout * 4
    # TODO(synk): for very long post-LR sequences tile T with a (K-1)-row halo
    # (grid=(B, T//TT)) so v7x's 64 MiB VMEM is never the limit.
    return pl.pallas_call(
        kernel,
        grid=(B,),
        out_shape=jax.ShapeDtypeStruct((B, T, Cout), jnp.bfloat16),
        in_specs=in_specs,
        out_specs=pl.BlockSpec((1, T, Cout), lambda b: (b, 0, 0)),
        compiler_params=pltpu.CompilerParams(
            dimension_semantics=("parallel",), vmem_limit_bytes=_vmem_limit(est)),
    )


def pallas_conv1d(x, w, b, kernel_size, relu=False, residual=None, ln_g=None, ln_b=None):
    """x:[B,T,Cin] bf16; w:[K,Cin,Cout] bf16 (w[k,ci,co]==torch_w[co,ci,k]); 'same' pad."""
    B, T, Cin = x.shape
    K = kernel_size
    Cout = w.shape[-1]
    pad = K // 2
    if pad:
        x = jnp.pad(x, ((0, 0), (pad, pad), (0, 0)))
    fuse_ln = residual is not None
    args = [x, w, b]
    if fuse_ln:
        args += [residual, ln_g, ln_b]
    return _conv_call(B, T, Cin, Cout, K, bool(relu), fuse_ln)(*args)


# ------------------------------- model glue --------------------------------

def fft_block(p, x, mask_bias, heads):
    B, T, d = x.shape
    x2 = x.reshape(B * T, d)

    # Fused Q/K/V projection; attention consumes/produces [B, T, d] so no
    # XLA transposes are needed anywhere in the block.
    q, k, v = pallas_qkv(x2, p['wq'], p['wk'], p['wv'], p['bq'], p['bk'], p['bv'])
    attn = pallas_attention(q.reshape(B, T, d), k.reshape(B, T, d),
                            v.reshape(B, T, d), mask_bias, heads)

    # out projection + residual + LayerNorm fused in the kernel epilogue
    x2 = pallas_linear_res_ln(attn.reshape(B * T, d), p['wo'], p['bo'],
                              x2, p['n1_g'], p['n1_b'])
    x = x2.reshape(B, T, d)

    # FFN: conv1 + ReLU, then conv2 with fused residual + LayerNorm
    h = pallas_conv1d(x, p['c1_w'], p['c1_b'], p['k1'], relu=True)
    x = pallas_conv1d(h, p['c2_w'], p['c2_b'], p['k2'],
                      residual=x, ln_g=p['n2_g'], ln_b=p['n2_b'])
    return x


def forward_transformer(p, x, src_pad_mask):
    # x: [B, T, d]; src_pad_mask: [B, T] bool (True = padded key) or None
    B, T, _ = x.shape
    x = (x.astype(jnp.float32) + p['pe'][:T][None, :, :]).astype(jnp.bfloat16)
    if src_pad_mask is None:
        mask_bias = jnp.zeros((B, 1, T), jnp.float32)
    else:
        mask_bias = jnp.where(src_pad_mask, -1e9, 0.0).astype(jnp.float32)[:, None, :]
    for lp in p['layers']:
        x = fft_block(lp, x, mask_bias, p['heads'])
    return pallas_layernorm(x, p['norm_g'], p['norm_b'])


def series_predictor(p, x_tok, src_pad_mask=None, alpha=1.0):
    x = jnp.take(p['embedding'], x_tok, axis=0)
    x = forward_transformer(p['transformer'], x, src_pad_mask)
    B, T, d = x.shape
    y = pallas_linear(x.reshape(B * T, d), p['lin_w'], p['lin_b'], 1).reshape(B, T, 1)
    return y / alpha


def length_regulator(x, dur, t_pad):
    # x: [B, T, D] bf16, dur: [B, T] int -> [B, t_pad, D] (zeros past each total)
    dur = jnp.maximum(dur.astype(jnp.int32), 0)
    csum = jnp.cumsum(dur, axis=1)
    positions = jnp.arange(t_pad)
    idx = jnp.sum(csum[:, None, :] <= positions[None, :, None], axis=-1)
    idx = jnp.minimum(idx, x.shape[1] - 1)
    out = jax.vmap(lambda xb, ib: xb[ib])(x, idx)
    valid = positions[None, :] < csum[:, -1][:, None]
    return jnp.where(valid[:, :, None], out, 0).astype(x.dtype)


def pad_mel(x, max_len, pad_value):
    x = x[:, :, :max_len]
    if x.shape[2] < max_len:
        x = jnp.pad(x, ((0, 0), (0, 0), (0, max_len - x.shape[2])),
                    constant_values=pad_value)
    return x


def make_fast_pitch_forward(params):
    """Returns forward(batch).  The length-regulator output length is derived on
    host from the *input* durations and bucketed (multiple of 32); the whole
    forward then runs as a single jitted program per bucket (no device->host
    sync of computed values, stable kernel shapes across calls)."""
    # TODO(synk): the 3 series predictors (identical shapes) could be stacked
    # into one set of kernel calls; kept separate for clarity.

    @partial(jax.jit, static_argnames=('t_exp', 't_pad', 'max_len'))
    def _fwd(x_tok, dur, mel_lens, pitch, energy, *, t_exp, t_pad, max_len):
        pitch = pitch[:, :, None].astype(jnp.bfloat16)        # [B, T, 1]
        energy = energy[:, :, None].astype(jnp.bfloat16)
        len_mask = (x_tok == 0)                               # make_token_len_mask

        dur_hat = series_predictor(params['dur_pred'], x_tok, len_mask)[..., 0]
        pitch_hat = jnp.transpose(
            series_predictor(params['pitch_pred'], x_tok, len_mask), (0, 2, 1))
        energy_hat = jnp.transpose(
            series_predictor(params['energy_pred'], x_tok, len_mask), (0, 2, 1))

        x = jnp.take(params['embedding'], x_tok, axis=0)
        x = forward_transformer(params['prenet'], x, len_mask)            # bf16

        pitch_proj = pallas_conv1d(pitch, params['pitch_proj_w'], params['pitch_proj_b'], 3)
        x = x + pitch_proj * params['pitch_strength']
        energy_proj = pallas_conv1d(energy, params['energy_proj_w'], params['energy_proj_b'], 3)
        x = x + energy_proj * params['energy_strength']

        x = length_regulator(x, dur, t_pad)
        post_mask = jnp.arange(t_pad)[None, :] >= mel_lens[:, None]
        x = forward_transformer(params['postnet'], x, post_mask)

        B, Te, d = x.shape
        mel_lin = pallas_linear(x.reshape(B * Te, d), params['lin_w'], params['lin_b'],
                                params['n_mels'])
        mel_lin = mel_lin.reshape(B, Te, params['n_mels']).astype(jnp.float32)
        mel_out = jnp.transpose(mel_lin, (0, 2, 1))[:, :, :t_exp]          # [B, n_mels, T_exp]
        mel_out = pad_mel(mel_out, max_len, params['padding_value'])
        # mel and mel_post are identical in the reference forward; reuse the tensor.
        return {'mel': mel_out, 'mel_post': mel_out,
                'dur': dur_hat.astype(jnp.float32),
                'pitch': pitch_hat.astype(jnp.float32),
                'energy': energy_hat.astype(jnp.float32)}

    def forward(batch):
        dur_np = np.asarray(jax.device_get(batch['dur'])).clip(min=0)
        t_exp = max(int(dur_np.sum(axis=1).max()), 1)
        t_pad = _round_up(t_exp, 32)
        max_len = int(batch['mel'].shape[2])
        return _fwd(batch['x'], jnp.asarray(batch['dur']), jnp.asarray(batch['mel_len']),
                    batch['pitch'], batch['energy'],
                    t_exp=t_exp, t_pad=t_pad, max_len=max_len)

    return forward


# ----------------------------- parameter init ------------------------------

class KeyGen:
    def __init__(self, key):
        self._key = key

    def __call__(self):
        self._key, sub = jax.random.split(self._key)
        return sub


def _w(kg, shape, scale=0.02, dtype=jnp.float32):
    return (scale * jax.random.normal(kg(), shape, dtype=jnp.float32)).astype(dtype)


def _linear_head_params(kg, K, N):
    """Head weights pre-cast to bf16 and pre-padded to a lane-dense (128) width."""
    n_pad = _round_up(N, 128)
    w = jnp.zeros((K, n_pad), jnp.float32).at[:, :N].set(_w(kg, (K, N)))
    return w.astype(jnp.bfloat16), jnp.zeros((1, n_pad), jnp.float32)


def sinusoidal_pe(max_len, d_model):
    position = np.arange(max_len, dtype=np.float32)[:, None]
    div_term = np.exp(np.arange(0, d_model, 2, dtype=np.float32)
                      * (-math.log(10000.0) / d_model))
    pe = np.zeros((max_len, d_model), dtype=np.float32)
    pe[:, 0::2] = np.sin(position * div_term)
    pe[:, 1::2] = np.cos(position * div_term)
    return jnp.asarray(pe)


def init_forward_transformer(kg, d_model, d_fft, heads, layers, k1, k2, max_len=2048):
    p = {'heads': heads,
         'pe': sinusoidal_pe(max_len, d_model),
         'norm_g': jnp.ones((1, d_model), jnp.float32),
         'norm_b': jnp.zeros((1, d_model), jnp.float32),
         'layers': []}
    for _ in range(layers):
        lp = {'wq': _w(kg, (d_model, d_model), dtype=jnp.bfloat16),
              'wk': _w(kg, (d_model, d_model), dtype=jnp.bfloat16),
              'wv': _w(kg, (d_model, d_model), dtype=jnp.bfloat16),
              'bq': jnp.zeros((1, d_model), jnp.float32),
              'bk': jnp.zeros((1, d_model), jnp.float32),
              'bv': jnp.zeros((1, d_model), jnp.float32),
              'wo': _w(kg, (d_model, d_model), dtype=jnp.bfloat16),
              'bo': jnp.zeros((1, d_model), jnp.float32),
              # conv weights laid out [K, Cin, Cout] (== torch [Cout, Cin, K] permuted)
              'c1_w': _w(kg, (k1, d_model, d_fft), dtype=jnp.bfloat16),
              'c1_b': jnp.zeros((1, d_fft), jnp.float32),
              'c2_w': _w(kg, (k2, d_fft, d_model), dtype=jnp.bfloat16),
              'c2_b': jnp.zeros((1, d_model), jnp.float32),
              'n1_g': jnp.ones((1, d_model), jnp.float32),
              'n1_b': jnp.zeros((1, d_model), jnp.float32),
              'n2_g': jnp.ones((1, d_model), jnp.float32),
              'n2_b': jnp.zeros((1, d_model), jnp.float32),
              'k1': k1, 'k2': k2}
        p['layers'].append(lp)
    return p


def init_series_predictor(kg, num_chars, d_model, n_heads, d_fft, layers, k1, k2):
    lin_w, lin_b = _linear_head_params(kg, d_model, 1)
    return {'embedding': _w(kg, (num_chars, d_model), scale=1.0),
            'transformer': init_forward_transformer(kg, d_model, d_fft, n_heads,
                                                    layers, k1, k2),
            'lin_w': lin_w, 'lin_b': lin_b}


def init_fast_pitch(key, cfg):
    kg = KeyGen(key)
    d_model = cfg['d_model']
    lin_w, lin_b = _linear_head_params(kg, d_model, cfg['n_mels'])
    return {
        'dur_pred': init_series_predictor(kg, cfg['num_chars'], cfg['durpred_d_model'],
                                          cfg['durpred_n_heads'], cfg['durpred_d_fft'],
                                          cfg['durpred_layers'], cfg['conv1_kernel'],
                                          cfg['conv2_kernel']),
        'pitch_pred': init_series_predictor(kg, cfg['num_chars'], cfg['pitch_d_model'],
                                            cfg['pitch_n_heads'], cfg['pitch_d_fft'],
                                            cfg['pitch_layers'], cfg['conv1_kernel'],
                                            cfg['conv2_kernel']),
        'energy_pred': init_series_predictor(kg, cfg['num_chars'], cfg['energy_d_model'],
                                             cfg['energy_n_heads'], cfg['energy_d_fft'],
                                             cfg['energy_layers'], cfg['conv1_kernel'],
                                             cfg['conv2_kernel']),
        'embedding': _w(kg, (cfg['num_chars'], d_model), scale=1.0),
        'prenet': init_forward_transformer(kg, d_model, cfg['prenet_fft'], cfg['prenet_heads'],
                                           cfg['prenet_layers'], cfg['conv1_kernel'],
                                           cfg['conv2_kernel']),
        'postnet': init_forward_transformer(kg, d_model, cfg['postnet_fft'], cfg['postnet_heads'],
                                            cfg['postnet_layers'], cfg['conv1_kernel'],
                                            cfg['conv2_kernel']),
        'lin_w': lin_w, 'lin_b': lin_b, 'n_mels': cfg['n_mels'],
        'pitch_proj_w': _w(kg, (3, 1, d_model), dtype=jnp.bfloat16),  # Conv1d(1, d, 3, pad=1)
        'pitch_proj_b': jnp.zeros((1, d_model), jnp.float32),
        'energy_proj_w': _w(kg, (3, 1, d_model), dtype=jnp.bfloat16),
        'energy_proj_b': jnp.zeros((1, d_model), jnp.float32),
        'pitch_strength': cfg['pitch_strength'],
        'energy_strength': cfg['energy_strength'],
        'padding_value': cfg['padding_value'],
    }
    # TODO(synk): training-only step counter buffer and dropout are omitted
    # (inference semantics).


# ---------------------------------- main -----------------------------------

if __name__ == "__main__":
    cfg = dict(num_chars=32, d_model=32, conv1_kernel=3, conv2_kernel=1,
               durpred_d_model=16, durpred_n_heads=2, durpred_layers=1, durpred_d_fft=32,
               pitch_d_model=16, pitch_n_heads=2, pitch_layers=1, pitch_d_fft=32,
               energy_d_model=16, energy_n_heads=2, energy_layers=1, energy_d_fft=32,
               prenet_layers=1, prenet_heads=2, prenet_fft=64,
               postnet_layers=1, postnet_heads=2, postnet_fft=64,
               n_mels=16, pitch_strength=3.0, energy_strength=1.0,
               padding_value=-11.5129)

    B, T, T_mel = 2, 8, 20
    root = jax.random.PRNGKey(0)
    k_par, k_tok, k_dur, k_pitch, k_energy, k_mel = jax.random.split(root, 6)

    params = init_fast_pitch(k_par, cfg)
    forward = make_fast_pitch_forward(params)

    x_tok = jax.random.randint(k_tok, (B, T), 1, cfg['num_chars'], dtype=jnp.int32)
    x_tok = x_tok.at[0, 6:].set(0)           # padding tokens (id 0) on item 0
    dur = jax.random.randint(k_dur, (B, T), 1, 4, dtype=jnp.int32)
    mel_len = np.asarray(jax.device_get(jnp.sum(dur, axis=1)))
    pitch = jax.random.normal(k_pitch, (B, T), dtype=jnp.float32)
    energy = jax.random.normal(k_energy, (B, T), dtype=jnp.float32)
    mel = jax.random.normal(k_mel, (B, cfg['n_mels'], T_mel), dtype=jnp.float32)

    batch = {'x': x_tok, 'mel': mel, 'dur': dur, 'mel_len': mel_len,
             'pitch': pitch, 'energy': energy}

    out = forward(batch)
    out = jax.tree_util.tree_map(jax.block_until_ready, out)

    assert out['mel'].shape == (B, cfg['n_mels'], T_mel)
    assert out['mel_post'].shape == (B, cfg['n_mels'], T_mel)
    assert out['dur'].shape == (B, T)
    assert out['pitch'].shape == (B, 1, T)
    assert out['energy'].shape == (B, 1, T)
    assert all(bool(jnp.all(jnp.isfinite(v))) for v in out.values())
    print("KERNEL_OK")
</pallas_src>

<mosaic_0001>
module attributes {stable_mosaic.version = 11 : i64} {
  func.func @kernel(%arg0: i32, %arg1: memref<1x10x1xbf16, #tpu.memory_space<vmem>>, %arg2: memref<3x1x32xbf16, #tpu.memory_space<vmem>>, %arg3: memref<1x32xf32, #tpu.memory_space<vmem>>, %arg4: memref<1x8x32xbf16, #tpu.memory_space<vmem>>) attributes {dimension_semantics = [#tpu.dimension_semantics<parallel>], iteration_bounds = array<i64: 2>, scalar_prefetch = 0 : i64, scratch_operands = 0 : i64, tpu.core_type = #tpu.core_type<tc>, window_params = [{transform_indices = @transform_0, window_bounds = array<i64: 1, 10, 1>}, {pipeline_mode = #tpu.pipeline_mode<synchronous>, transform_indices = @transform_1, window_bounds = array<i64: 3, 1, 32>}, {pipeline_mode = #tpu.pipeline_mode<synchronous>, transform_indices = @transform_2, window_bounds = array<i64: 1, 32>}, {transform_indices = @transform_3, window_bounds = array<i64: 1, 8, 32>}]} {
    %c0 = arith.constant 0 : index
    %c0_0 = arith.constant 0 : index
    %c0_1 = arith.constant 0 : index
    %0 = vector.load %arg1[%c0, %c0_0, %c0_1] : memref<1x10x1xbf16, #tpu.memory_space<vmem>>, vector<1x8x1xbf16>
    %1 = vector.shape_cast %0 : vector<1x8x1xbf16> to vector<8x1xbf16>
    %c0_2 = arith.constant 0 : index
    %c0_3 = arith.constant 0 : index
    %c0_4 = arith.constant 0 : index
    %2 = vector.load %arg2[%c0_2, %c0_3, %c0_4] : memref<3x1x32xbf16, #tpu.memory_space<vmem>>, vector<1x1x32xbf16>
    %3 = vector.shape_cast %2 : vector<1x1x32xbf16> to vector<1x32xbf16>
    %4 = arith.extf %1 : vector<8x1xbf16> to vector<8x1xf32>
    %5 = arith.extf %3 : vector<1x32xbf16> to vector<1x32xf32>
    %6 = vector.broadcast %4 : vector<8x1xf32> to vector<8x32xf32>
    %7 = vector.broadcast %5 : vector<1x32xf32> to vector<8x32xf32>
    %8 = arith.mulf %6, %7 : vector<8x32xf32>
    %c0_5 = arith.constant 0 : index
    %c1 = arith.constant 1 : index
    %c0_6 = arith.constant 0 : index
    %9 = vector.load %arg1[%c0_5, %c1, %c0_6] : memref<1x10x1xbf16, #tpu.memory_space<vmem>>, vector<1x8x1xbf16>
    %10 = vector.shape_cast %9 : vector<1x8x1xbf16> to vector<8x1xbf16>
    %c1_7 = arith.constant 1 : index
    %c0_8 = arith.constant 0 : index
    %c0_9 = arith.constant 0 : index
    %11 = vector.load %arg2[%c1_7, %c0_8, %c0_9] : memref<3x1x32xbf16, #tpu.memory_space<vmem>>, vector<1x1x32xbf16>
    %12 = vector.shape_cast %11 : vector<1x1x32xbf16> to vector<1x32xbf16>
    %13 = arith.extf %10 : vector<8x1xbf16> to vector<8x1xf32>
    %14 = arith.extf %12 : vector<1x32xbf16> to vector<1x32xf32>
    %15 = vector.broadcast %13 : vector<8x1xf32> to vector<8x32xf32>
    %16 = vector.broadcast %14 : vector<1x32xf32> to vector<8x32xf32>
    %17 = arith.mulf %15, %16 : vector<8x32xf32>
    %18 = arith.addf %8, %17 : vector<8x32xf32>
    %c0_10 = arith.constant 0 : index
    %c2 = arith.constant 2 : index
    %c0_11 = arith.constant 0 : index
    %19 = vector.load %arg1[%c0_10, %c2, %c0_11] : memref<1x10x1xbf16, #tpu.memory_space<vmem>>, vector<1x8x1xbf16>
    %20 = vector.shape_cast %19 : vector<1x8x1xbf16> to vector<8x1xbf16>
    %c2_12 = arith.constant 2 : index
    %c0_13 = arith.constant 0 : index
    %c0_14 = arith.constant 0 : index
    %21 = vector.load %arg2[%c2_12, %c0_13, %c0_14] : memref<3x1x32xbf16, #tpu.memory_space<vmem>>, vector<1x1x32xbf16>
    %22 = vector.shape_cast %21 : vector<1x1x32xbf16> to vector<1x32xbf16>
    %23 = arith.extf %20 : vector<8x1xbf16> to vector<8x1xf32>
    %24 = arith.extf %22 : vector<1x32xbf16> to vector<1x32xf32>
    %25 = vector.broadcast %23 : vector<8x1xf32> to vector<8x32xf32>
    %26 = vector.broadcast %24 : vector<1x32xf32> to vector<8x32xf32>
    %27 = arith.mulf %25, %26 : vector<8x32xf32>
    %28 = arith.addf %18, %27 : vector<8x32xf32>
    %c0_15 = arith.constant 0 : index
    %c0_16 = arith.constant 0 : index
    %29 = vector.load %arg3[%c0_15, %c0_16] : memref<1x32xf32, #tpu.memory_space<vmem>>, vector<1x32xf32>
    %30 = vector.broadcast %29 : vector<1x32xf32> to vector<8x32xf32>
    %31 = arith.addf %28, %30 : vector<8x32xf32>
    %32 = arith.truncf %31 : vector<8x32xf32> to vector<8x32xbf16>
    %c0_17 = arith.constant 0 : index
    %c0_18 = arith.constant 0 : index
    %c0_19 = arith.constant 0 : index
    %33 = vector.load %arg4[%c0_17, %c0_18, %c0_19] : memref<1x8x32xbf16, #tpu.memory_space<vmem>>, vector<1x8x32xbf16>
    %34 = vector.shape_cast %33 : vector<1x8x32xbf16> to vector<8x32xbf16>
    %35 = vector.shape_cast %32 : vector<8x32xbf16> to vector<1x8x32xbf16>
    tpu.vector_store %arg4[%c0_17, %c0_18, %c0_19], %35 {strides = array<i32>} : memref<1x8x32xbf16, #tpu.memory_space<vmem>>, vector<1x8x32xbf16>,
    return
  }
  func.func @transform_0(%arg0: i32) -> (i32, i32, i32) {
    %c0_i32 = arith.constant 0 : i32
    %c0_i32_0 = arith.constant 0 : i32
    %c0_i32_1 = arith.constant 0 : i32
    return %arg0, %c0_i32, %c0_i32_0 : i32, i32, i32
  }
  func.func @transform_1(%arg0: i32) -> (i32, i32, i32) {
    %c0_i32 = arith.constant 0 : i32
    %c0_i32_0 = arith.constant 0 : i32
    %c0_i32_1 = arith.constant 0 : i32
    %c0_i32_2 = arith.constant 0 : i32
    return %c0_i32, %c0_i32_0, %c0_i32_1 : i32, i32, i32
  }
  func.func @transform_2(%arg0: i32) -> (i32, i32) {
    %c0_i32 = arith.constant 0 : i32
    %c0_i32_0 = arith.constant 0 : i32
    %c0_i32_1 = arith.constant 0 : i32
    return %c0_i32, %c0_i32_0 : i32, i32
  }
  func.func @transform_3(%arg0: i32) -> (i32, i32, i32) {
    %c0_i32 = arith.constant 0 : i32
    %c0_i32_0 = arith.constant 0 : i32
    %c0_i32_1 = arith.constant 0 : i32
    return %arg0, %c0_i32, %c0_i32_0 : i32, i32, i32
  }
}

module attributes {stable_mosaic.version = 11 : i64} {
  func.func @kernel(%arg0: i32, %arg1: memref<16x16xbf16, #tpu.memory_space<vmem>>, %arg2: memref<16x16xbf16, #tpu.memory_space<vmem>>, %arg3: memref<1x16xf32, #tpu.memory_space<vmem>>, %arg4: memref<16x16xbf16, #tpu.memory_space<vmem>>, %arg5: memref<1x16xf32, #tpu.memory_space<vmem>>, %arg6: memref<1x16xf32, #tpu.memory_space<vmem>>, %arg7: memref<16x16xbf16, #tpu.memory_space<vmem>>) attributes {dimension_semantics = [#tpu.dimension_semantics<parallel>], iteration_bounds = array<i64: 1>, scalar_prefetch = 0 : i64, scratch_operands = 0 : i64, tpu.core_type = #tpu.core_type<tc>, window_params = [{transform_indices = @transform_0, window_bounds = array<i64: 16, 16>}, {pipeline_mode = #tpu.pipeline_mode<synchronous>, transform_indices = @transform_1, window_bounds = array<i64: 16, 16>}, {pipeline_mode = #tpu.pipeline_mode<synchronous>, transform_indices = @transform_2, window_bounds = array<i64: 1, 16>}, {transform_indices = @transform_3, window_bounds = array<i64: 16, 16>}, {pipeline_mode = #tpu.pipeline_mode<synchronous>, transform_indices = @transform_4, window_bounds = array<i64: 1, 16>}, {pipeline_mode = #tpu.pipeline_mode<synchronous>, transform_indices = @transform_5, window_bounds = array<i64: 1, 16>}, {transform_indices = @transform_6, window_bounds = array<i64: 16, 16>}]} {
    %c0 = arith.constant 0 : index
    %c0_0 = arith.constant 0 : index
    %0 = vector.load %arg1[%c0, %c0_0] : memref<16x16xbf16, #tpu.memory_space<vmem>>, vector<16x16xbf16>
    %c0_1 = arith.constant 0 : index
    %c0_2 = arith.constant 0 : index
    %1 = vector.load %arg2[%c0_1, %c0_2] : memref<16x16xbf16, #tpu.memory_space<vmem>>, vector<16x16xbf16>
    %cst = arith.constant dense<0.000000e+00> : vector<16x16xf32>
    %2 = tpu.matmul %0, %1, %cst {dimension_numbers = #tpu.dot_dimension_numbers<[1], [0], [0], [1], [0, 0, 1, 1], [], []>} : vector<16x16xbf16>, vector<16x16xbf16>, vector<16x16xf32> -> vector<16x16xf32>
    %c0_3 = arith.constant 0 : index
    %c0_4 = arith.constant 0 : index
    %3 = vector.load %arg3[%c0_3, %c0_4] : memref<1x16xf32, #tpu.memory_space<vmem>>, vector<1x16xf32>
    %4 = vector.broadcast %3 : vector<1x16xf32> to vector<16x16xf32>
    %5 = arith.addf %2, %4 : vector<16x16xf32>
    %c0_5 = arith.constant 0 : index
    %c0_6 = arith.constant 0 : index
    %6 = vector.load %arg4[%c0_5, %c0_6] : memref<16x16xbf16, #tpu.memory_space<vmem>>, vector<16x16xbf16>
    %7 = arith.extf %6 : vector<16x16xbf16> to vector<16x16xf32>
    %8 = arith.addf %5, %7 : vector<16x16xf32>
    %cst_7 = arith.constant dense<0.000000e+00> : vector<16xf32>
    %9 = vector.multi_reduction <add>, %8, %cst_7 [1] : vector<16x16xf32> to vector<16xf32>
    %10 = vector.shape_cast %9 : vector<16xf32> to vector<16x1xf32>
    %cst_8 = arith.constant 1.600000e+01 : f32
    %11 = vector.broadcast %cst_8 : f32 to vector<16x1xf32>
    %12 = arith.divf %10, %11 : vector<16x1xf32>
    %13 = vector.broadcast %12 : vector<16x1xf32> to vector<16x16xf32>
    %14 = arith.subf %8, %13 : vector<16x16xf32>
    %15 = arith.mulf %14, %14 : vector<16x16xf32>
    %cst_9 = arith.constant dense<0.000000e+00> : vector<16xf32>
    %16 = vector.multi_reduction <add>, %15, %cst_9 [1] : vector<16x16xf32> to vector<16xf32>
    %17 = vector.shape_cast %16 : vector<16xf32> to vector<16x1xf32>
    %cst_10 = arith.constant 1.600000e+01 : f32
    %18 = vector.broadcast %cst_10 : f32 to vector<16x1xf32>
    %19 = arith.divf %17, %18 : vector<16x1xf32>
    %cst_11 = arith.constant 9.99999974E-6 : f32
    %20 = vector.broadcast %cst_11 : f32 to vector<16x1xf32>
    %21 = arith.addf %19, %20 : vector<16x1xf32>
    %22 = math.rsqrt %21 : vector<16x1xf32>
    %23 = vector.broadcast %22 : vector<16x1xf32> to vector<16x16xf32>
    %24 = arith.mulf %14, %23 : vector<16x16xf32>
    %c0_12 = arith.constant 0 : index
    %c0_13 = arith.constant 0 : index
    %25 = vector.load %arg5[%c0_12, %c0_13] : memref<1x16xf32, #tpu.memory_space<vmem>>, vector<1x16xf32>
    %26 = vector.broadcast %25 : vector<1x16xf32> to vector<16x16xf32>
    %27 = arith.mulf %24, %26 : vector<16x16xf32>
    %c0_14 = arith.constant 0 : index
    %c0_15 = arith.constant 0 : index
    %28 = vector.load %arg6[%c0_14, %c0_15] : memref<1x16xf32, #tpu.memory_space<vmem>>, vector<1x16xf32>
    %29 = vector.broadcast %28 : vector<1x16xf32> to vector<16x16xf32>
    %30 = arith.addf %27, %29 : vector<16x16xf32>
    %31 = arith.truncf %30 : vector<16x16xf32> to vector<16x16xbf16>
    %c0_16 = arith.constant 0 : index
    %c0_17 = arith.constant 0 : index
    %32 = vector.load %arg7[%c0_16, %c0_17] : memref<16x16xbf16, #tpu.memory_space<vmem>>, vector<16x16xbf16>
    tpu.vector_store %arg7[%c0_16, %c0_17], %31 {strides = array<i32>} : memref<16x16xbf16, #tpu.memory_space<vmem>>, vector<16x16xbf16>,
    return
  }
  func.func @transform_0(%arg0: i32) -> (i32, i32) {
    %c0_i32 = arith.constant 0 : i32
    %c0_i32_0 = arith.constant 0 : i32
    return %arg0, %c0_i32 : i32, i32
  }
  func.func @transform_1(%arg0: i32) -> (i32, i32) {
    %c0_i32 = arith.constant 0 : i32
    %c0_i32_0 = arith.constant 0 : i32
    %c0_i32_1 = arith.constant 0 : i32
    return %c0_i32, %c0_i32_0 : i32, i32
  }
  func.func @transform_2(%arg0: i32) -> (i32, i32) {
    %c0_i32 = arith.constant 0 : i32
    %c0_i32_0 = arith.constant 0 : i32
    %c0_i32_1 = arith.constant 0 : i32
    return %c0_i32, %c0_i32_0 : i32, i32
  }
  func.func @transform_3(%arg0: i32) -> (i32, i32) {
    %c0_i32 = arith.constant 0 : i32
    %c0_i32_0 = arith.constant 0 : i32
    return %arg0, %c0_i32 : i32, i32
  }
  func.func @transform_4(%arg0: i32) -> (i32, i32) {
    %c0_i32 = arith.constant 0 : i32
    %c0_i32_0 = arith.constant 0 : i32
    %c0_i32_1 = arith.constant 0 : i32
    return %c0_i32, %c0_i32_0 : i32, i32
  }
  func.func @transform_5(%arg0: i32) -> (i32, i32) {
    %c0_i32 = arith.constant 0 : i32
    %c0_i32_0 = arith.constant 0 : i32
    %c0_i32_1 = arith.constant 0 : i32
    return %c0_i32, %c0_i32_0 : i32, i32
  }
  func.func @transform_6(%arg0: i32) -> (i32, i32) {
    %c0_i32 = arith.constant 0 : i32
    %c0_i32_0 = arith.constant 0 : i32
    return %arg0, %c0_i32 : i32, i32
  }
}

module attributes {stable_mosaic.version = 11 : i64} {
  func.func @kernel(%arg0: i32, %arg1: memref<16x16xbf16, #tpu.memory_space<vmem>>, %arg2: memref<16x16xbf16, #tpu.memory_space<vmem>>, %arg3: memref<16x16xbf16, #tpu.memory_space<vmem>>, %arg4: memref<16x16xbf16, #tpu.memory_space<vmem>>, %arg5: memref<1x16xf32, #tpu.memory_space<vmem>>, %arg6: memref<1x16xf32, #tpu.memory_space<vmem>>, %arg7: memref<1x16xf32, #tpu.memory_space<vmem>>, %arg8: memref<16x16xbf16, #tpu.memory_space<vmem>>, %arg9: memref<16x16xbf16, #tpu.memory_space<vmem>>, %arg10: memref<16x16xbf16, #tpu.memory_space<vmem>>) attributes {dimension_semantics = [#tpu.dimension_semantics<parallel>], iteration_bounds = array<i64: 1>, scalar_prefetch = 0 : i64, scratch_operands = 0 : i64, tpu.core_type = #tpu.core_type<tc>, window_params = [{transform_indices = @transform_0, window_bounds = array<i64: 16, 16>}, {pipeline_mode = #tpu.pipeline_mode<synchronous>, transform_indices = @transform_1, window_bounds = array<i64: 16, 16>}, {pipeline_mode = #tpu.pipeline_mode<synchronous>, transform_indices = @transform_2, window_bounds = array<i64: 16, 16>}, {pipeline_mode = #tpu.pipeline_mode<synchronous>, transform_indices = @transform_3, window_bounds = array<i64: 16, 16>}, {pipeline_mode = #tpu.pipeline_mode<synchronous>, transform_indices = @transform_4, window_bounds = array<i64: 1, 16>}, {pipeline_mode = #tpu.pipeline_mode<synchronous>, transform_indices = @transform_5, window_bounds = array<i64: 1, 16>}, {pipeline_mode = #tpu.pipeline_mode<synchronous>, transform_indices = @transform_6, window_bounds = array<i64: 1, 16>}, {transform_indices = @transform_7, window_bounds = array<i64: 16, 16>}, {transform_indices = @transform_8, window_bounds = array<i64: 16, 16>}, {transform_indices = @transform_9, window_bounds = array<i64: 16, 16>}]} {
    %c0 = arith.constant 0 : index
    %c0_0 = arith.constant 0 : index
    %0 = vector.load %arg1[%c0, %c0_0] : memref<16x16xbf16, #tpu.memory_space<vmem>>, vector<16x16xbf16>
    %c0_1 = arith.constant 0 : index
    %c0_2 = arith.constant 0 : index
    %1 = vector.load %arg2[%c0_1, %c0_2] : memref<16x16xbf16, #tpu.memory_space<vmem>>, vector<16x16xbf16>
    %cst = arith.constant dense<0.000000e+00> : vector<16x16xf32>
    %2 = tpu.matmul %0, %1, %cst {dimension_numbers = #tpu.dot_dimension_numbers<[1], [0], [0], [1], [0, 0, 1, 1], [], []>} : vector<16x16xbf16>, vector<16x16xbf16>, vector<16x16xf32> -> vector<16x16xf32>
    %c0_3 = arith.constant 0 : index
    %c0_4 = arith.constant 0 : index
    %3 = vector.load %arg5[%c0_3, %c0_4] : memref<1x16xf32, #tpu.memory_space<vmem>>, vector<1x16xf32>
    %4 = vector.broadcast %3 : vector<1x16xf32> to vector<16x16xf32>
    %5 = arith.addf %2, %4 : vector<16x16xf32>
    %6 = arith.truncf %5 : vector<16x16xf32> to vector<16x16xbf16>
    %c0_5 = arith.constant 0 : index
    %c0_6 = arith.constant 0 : index
    %7 = vector.load %arg8[%c0_5, %c0_6] : memref<16x16xbf16, #tpu.memory_space<vmem>>, vector<16x16xbf16>
    tpu.vector_store %arg8[%c0_5, %c0_6], %6 {strides = array<i32>} : memref<16x16xbf16, #tpu.memory_space<vmem>>, vector<16x16xbf16>,
    %c0_7 = arith.constant 0 : index
    %c0_8 = arith.constant 0 : index
    %8 = vector.load %arg3[%c0_7, %c0_8] : memref<16x16xbf16, #tpu.memory_space<vmem>>, vector<16x16xbf16>
    %cst_9 = arith.constant dense<0.000000e+00> : vector<16x16xf32>
    %9 = tpu.matmul %0, %8, %cst_9 {dimension_numbers = #tpu.dot_dimension_numbers<[1], [0], [0], [1], [0, 0, 1, 1], [], []>} : vector<16x16xbf16>, vector<16x16xbf16>, vector<16x16xf32> -> vector<16x16xf32>
    %c0_10 = arith.constant 0 : index
    %c0_11 = arith.constant 0 : index
    %10 = vector.load %arg6[%c0_10, %c0_11] : memref<1x16xf32, #tpu.memory_space<vmem>>, vector<1x16xf32>
    %11 = vector.broadcast %10 : vector<1x16xf32> to vector<16x16xf32>
    %12 = arith.addf %9, %11 : vector<16x16xf32>
    %13 = arith.truncf %12 : vector<16x16xf32> to vector<16x16xbf16>
    %c0_12 = arith.constant 0 : index
    %c0_13 = arith.constant 0 : index
    %14 = vector.load %arg9[%c0_12, %c0_13] : memref<16x16xbf16, #tpu.memory_space<vmem>>, vector<16x16xbf16>
    tpu.vector_store %arg9[%c0_12, %c0_13], %13 {strides = array<i32>} : memref<16x16xbf16, #tpu.memory_space<vmem>>, vector<16x16xbf16>,
    %c0_14 = arith.constant 0 : index
    %c0_15 = arith.constant 0 : index
    %15 = vector.load %arg4[%c0_14, %c0_15] : memref<16x16xbf16, #tpu.memory_space<vmem>>, vector<16x16xbf16>
    %cst_16 = arith.constant dense<0.000000e+00> : vector<16x16xf32>
    %16 = tpu.matmul %0, %15, %cst_16 {dimension_numbers = #tpu.dot_dimension_numbers<[1], [0], [0], [1], [0, 0, 1, 1], [], []>} : vector<16x16xbf16>, vector<16x16xbf16>, vector<16x16xf32> -> vector<16x16xf32>
    %c0_17 = arith.constant 0 : index
    %c0_18 = arith.constant 0 : index
    %17 = vector.load %arg7[%c0_17, %c0_18] : memref<1x16xf32, #tpu.memory_space<vmem>>, vector<1x16xf32>
    %18 = vector.broadcast %17 : vector<1x16xf32> to vector<16x16xf32>
    %19 = arith.addf %16, %18 : vector<16x16xf32>
    %20 = arith.truncf %19 : vector<16x16xf32> to vector<16x16xbf16>
    %c0_19 = arith.constant 0 : index
    %c0_20 = arith.constant 0 : index
    %21 = vector.load %arg10[%c0_19, %c0_20] : memref<16x16xbf16, #tpu.memory_space<vmem>>, vector<16x16xbf16>
    tpu.vector_store %arg10[%c0_19, %c0_20], %20 {strides = array<i32>} : memref<16x16xbf16, #tpu.memory_space<vmem>>, vector<16x16xbf16>,
    return
  }
  func.func @transform_0(%arg0: i32) -> (i32, i32) {
    %c0_i32 = arith.constant 0 : i32
    %c0_i32_0 = arith.constant 0 : i32
    return %arg0, %c0_i32 : i32, i32
  }
  func.func @transform_1(%arg0: i32) -> (i32, i32) {
    %c0_i32 = arith.constant 0 : i32
    %c0_i32_0 = arith.constant 0 : i32
    %c0_i32_1 = arith.constant 0 : i32
    return %c0_i32, %c0_i32_0 : i32, i32
  }
  func.func @transform_2(%arg0: i32) -> (i32, i32) {
    %c0_i32 = arith.constant 0 : i32
    %c0_i32_0 = arith.constant 0 : i32
    %c0_i32_1 = arith.constant 0 : i32
    return %c0_i32, %c0_i32_0 : i32, i32
  }
  func.func @transform_3(%arg0: i32) -> (i32, i32) {
    %c0_i32 = arith.constant 0 : i32
    %c0_i32_0 = arith.constant 0 : i32
    %c0_i32_1 = arith.constant 0 : i32
    return %c0_i32, %c0_i32_0 : i32, i32
  }
  func.func @transform_4(%arg0: i32) -> (i32, i32) {
    %c0_i32 = arith.constant 0 : i32
    %c0_i32_0 = arith.constant 0 : i32
    %c0_i32_1 = arith.constant 0 : i32
    return %c0_i32, %c0_i32_0 : i32, i32
  }
  func.func @transform_5(%arg0: i32) -> (i32, i32) {
    %c0_i32 = arith.constant 0 : i32
    %c0_i32_0 = arith.constant 0 : i32
    %c0_i32_1 = arith.constant 0 : i32
    return %c0_i32, %c0_i32_0 : i32, i32
  }
  func.func @transform_6(%arg0: i32) -> (i32, i32) {
    %c0_i32 = arith.constant 0 : i32
    %c0_i32_0 = arith.constant 0 : i32
    %c0_i32_1 = arith.constant 0 : i32
    return %c0_i32, %c0_i32_0 : i32, i32
  }
  func.func @transform_7(%arg0: i32) -> (i32, i32) {
    %c0_i32 = arith.constant 0 : i32
    %c0_i32_0 = arith.constant 0 : i32
    return %arg0, %c0_i32 : i32, i32
  }
  func.func @transform_8(%arg0: i32) -> (i32, i32) {
    %c0_i32 = arith.constant 0 : i32
    %c0_i32_0 = arith.constant 0 : i32
    return %arg0, %c0_i32 : i32, i32
  }
  func.func @transform_9(%arg0: i32) -> (i32, i32) {
    %c0_i32 = arith.constant 0 : i32
    %c0_i32_0 = arith.constant 0 : i32
    return %arg0, %c0_i32 : i32, i32
  }
}

module attributes {stable_mosaic.version = 11 : i64} {
  func.func @kernel(%arg0: i32, %arg1: memref<1x8x16xbf16, #tpu.memory_space<vmem>>, %arg2: memref<1x8x16xbf16, #tpu.memory_space<vmem>>, %arg3: memref<1x8x16xbf16, #tpu.memory_space<vmem>>, %arg4: memref<1x1x8xf32, #tpu.memory_space<vmem>>, %arg5: memref<1x8x16xbf16, #tpu.memory_space<vmem>>) attributes {dimension_semantics = [#tpu.dimension_semantics<parallel>], iteration_bounds = array<i64: 2>, scalar_prefetch = 0 : i64, scratch_operands = 0 : i64, tpu.core_type = #tpu.core_type<tc>, window_params = [{transform_indices = @transform_0, window_bounds = array<i64: 1, 8, 16>}, {transform_indices = @transform_1, window_bounds = array<i64: 1, 8, 16>}, {transform_indices = @transform_2, window_bounds = array<i64: 1, 8, 16>}, {transform_indices = @transform_3, window_bounds = array<i64: 1, 1, 8>}, {transform_indices = @transform_4, window_bounds = array<i64: 1, 8, 16>}]} {
    %c0 = arith.constant 0 : index
    %c0_0 = arith.constant 0 : index
    %c0_1 = arith.constant 0 : index
    %0 = vector.load %arg4[%c0, %c0_0, %c0_1] : memref<1x1x8xf32, #tpu.memory_space<vmem>>, vector<1x1x8xf32>
    %1 = vector.shape_cast %0 : vector<1x1x8xf32> to vector<1x8xf32>
    %c0_2 = arith.constant 0 : index
    %c0_3 = arith.constant 0 : index
    %c0_4 = arith.constant 0 : index
    %2 = vector.load %arg1[%c0_2, %c0_3, %c0_4] : memref<1x8x16xbf16, #tpu.memory_space<vmem>>, vector<1x8x8xbf16>
    %3 = vector.shape_cast %2 : vector<1x8x8xbf16> to vector<8x8xbf16>
    %c0_5 = arith.constant 0 : index
    %c0_6 = arith.constant 0 : index
    %c0_7 = arith.constant 0 : index
    %4 = vector.load %arg2[%c0_5, %c0_6, %c0_7] : memref<1x8x16xbf16, #tpu.memory_space<vmem>>, vector<1x8x8xbf16>
    %5 = vector.shape_cast %4 : vector<1x8x8xbf16> to vector<8x8xbf16>
    %c0_8 = arith.constant 0 : index
    %c0_9 = arith.constant 0 : index
    %c0_10 = arith.constant 0 : index
    %6 = vector.load %arg3[%c0_8, %c0_9, %c0_10] : memref<1x8x16xbf16, #tpu.memory_space<vmem>>, vector<1x8x8xbf16>
    %7 = vector.shape_cast %6 : vector<1x8x8xbf16> to vector<8x8xbf16>
    %cst = arith.constant dense<0.000000e+00> : vector<8x8xf32>
    %8 = tpu.matmul %3, %5, %cst {dimension_numbers = #tpu.dot_dimension_numbers<[1], [1], [0], [0], [0, 0, 1, 0], [], []>} : vector<8x8xbf16>, vector<8x8xbf16>, vector<8x8xf32> -> vector<8x8xf32>
    %cst_11 = arith.constant 0.353553385 : f32
    %9 = vector.broadcast %cst_11 : f32 to vector<8x8xf32>
    %10 = arith.mulf %8, %9 : vector<8x8xf32>
    %11 = vector.broadcast %1 : vector<1x8xf32> to vector<8x8xf32>
    %12 = arith.addf %10, %11 : vector<8x8xf32>
    %cst_12 = arith.constant dense<0xFF800000> : vector<8xf32>
    %13 = vector.multi_reduction <maximumf>, %12, %cst_12 [1] : vector<8x8xf32> to vector<8xf32>
    %14 = vector.shape_cast %13 : vector<8xf32> to vector<8x1xf32>
    %15 = vector.broadcast %14 : vector<8x1xf32> to vector<8x8xf32>
    %16 = arith.subf %12, %15 : vector<8x8xf32>
    %17 = math.exp %16 : vector<8x8xf32>
    %cst_13 = arith.constant dense<0.000000e+00> : vector<8xf32>
    %18 = vector.multi_reduction <add>, %17, %cst_13 [1] : vector<8x8xf32> to vector<8xf32>
    %19 = vector.shape_cast %18 : vector<8xf32> to vector<8x1xf32>
    %20 = tpu.reciprocal %19 {approx = true} : vector<8x1xf32> -> vector<8x1xf32>
    %21 = vector.broadcast %20 : vector<8x1xf32> to vector<8x8xf32>
    %22 = arith.mulf %17, %21 : vector<8x8xf32>
    %23 = arith.truncf %22 : vector<8x8xf32> to vector<8x8xbf16>
    %cst_14 = arith.constant dense<0.000000e+00> : vector<8x8xf32>
    %24 = tpu.matmul %23, %7, %cst_14 {dimension_numbers = #tpu.dot_dimension_numbers<[1], [0], [0], [1], [0, 0, 1, 1], [], []>} : vector<8x8xbf16>, vector<8x8xbf16>, vector<8x8xf32> -> vector<8x8xf32>
    %c0_15 = arith.constant 0 : index
    %c0_16 = arith.constant 0 : index
    %c8 = arith.constant 8 : index
    %25 = vector.load %arg1[%c0_15, %c0_16, %c8] : memref<1x8x16xbf16, #tpu.memory_space<vmem>>, vector<1x8x8xbf16>
    %26 = vector.shape_cast %25 : vector<1x8x8xbf16> to vector<8x8xbf16>
    %c0_17 = arith.constant 0 : index
    %c0_18 = arith.constant 0 : index
    %c8_19 = arith.constant 8 : index
    %27 = vector.load %arg2[%c0_17, %c0_18, %c8_19] : memref<1x8x16xbf16, #tpu.memory_space<vmem>>, vector<1x8x8xbf16>
    %28 = vector.shape_cast %27 : vector<1x8x8xbf16> to vector<8x8xbf16>
    %c0_20 = arith.constant 0 : index
    %c0_21 = arith.constant 0 : index
    %c8_22 = arith.constant 8 : index
    %29 = vector.load %arg3[%c0_20, %c0_21, %c8_22] : memref<1x8x16xbf16, #tpu.memory_space<vmem>>, vector<1x8x8xbf16>
    %30 = vector.shape_cast %29 : vector<1x8x8xbf16> to vector<8x8xbf16>
    %cst_23 = arith.constant dense<0.000000e+00> : vector<8x8xf32>
    %31 = tpu.matmul %26, %28, %cst_23 {dimension_numbers = #tpu.dot_dimension_numbers<[1], [1], [0], [0], [0, 0, 1, 0], [], []>} : vector<8x8xbf16>, vector<8x8xbf16>, vector<8x8xf32> -> vector<8x8xf32>
    %cst_24 = arith.constant 0.353553385 : f32
    %32 = vector.broadcast %cst_24 : f32 to vector<8x8xf32>
    %33 = arith.mulf %31, %32 : vector<8x8xf32>
    %34 = vector.broadcast %1 : vector<1x8xf32> to vector<8x8xf32>
    %35 = arith.addf %33, %34 : vector<8x8xf32>
    %cst_25 = arith.constant dense<0xFF800000> : vector<8xf32>
    %36 = vector.multi_reduction <maximumf>, %35, %cst_25 [1] : vector<8x8xf32> to vector<8xf32>
    %37 = vector.shape_cast %36 : vector<8xf32> to vector<8x1xf32>
    %38 = vector.broadcast %37 : vector<8x1xf32> to vector<8x8xf32>
    %39 = arith.subf %35, %38 : vector<8x8xf32>
    %40 = math.exp %39 : vector<8x8xf32>
    %cst_26 = arith.constant dense<0.000000e+00> : vector<8xf32>
    %41 = vector.multi_reduction <add>, %40, %cst_26 [1] : vector<8x8xf32> to vector<8xf32>
    %42 = vector.shape_cast %41 : vector<8xf32> to vector<8x1xf32>
    %43 = tpu.reciprocal %42 {approx = true} : vector<8x1xf32> -> vector<8x1xf32>
    %44 = vector.broadcast %43 : vector<8x1xf32> to vector<8x8xf32>
    %45 = arith.mulf %40, %44 : vector<8x8xf32>
    %46 = arith.truncf %45 : vector<8x8xf32> to vector<8x8xbf16>
    %cst_27 = arith.constant dense<0.000000e+00> : vector<8x8xf32>
    %47 = tpu.matmul %46, %30, %cst_27 {dimension_numbers = #tpu.dot_dimension_numbers<[1], [0], [0], [1], [0, 0, 1, 1], [], []>} : vector<8x8xbf16>, vector<8x8xbf16>, vector<8x8xf32> -> vector<8x8xf32>
    %48 = tpu.concatenate %24, %47 in 1 : vector<8x8xf32>, vector<8x8xf32> -> vector<8x16xf32>
    %49 = arith.truncf %48 : vector<8x16xf32> to vector<8x16xbf16>
    %c0_28 = arith.constant 0 : index
    %c0_29 = arith.constant 0 : index
    %c0_30 = arith.constant 0 : index
    %50 = vector.load %arg5[%c0_28, %c0_29, %c0_30] : memref<1x8x16xbf16, #tpu.memory_space<vmem>>, vector<1x8x16xbf16>
    %51 = vector.shape_cast %50 : vector<1x8x16xbf16> to vector<8x16xbf16>
    %52 = vector.shape_cast %49 : vector<8x16xbf16> to vector<1x8x16xbf16>
    tpu.vector_store %arg5[%c0_28, %c0_29, %c0_30], %52 {strides = array<i32>} : memref<1x8x16xbf16, #tpu.memory_space<vmem>>, vector<1x8x16xbf16>,
    return
  }
  func.func @transform_0(%arg0: i32) -> (i32, i32, i32) {
    %c0_i32 = arith.constant 0 : i32
    %c0_i32_0 = arith.constant 0 : i32
    %c0_i32_1 = arith.constant 0 : i32
    return %arg0, %c0_i32, %c0_i32_0 : i32, i32, i32
  }
  func.func @transform_1(%arg0: i32) -> (i32, i32, i32) {
    %c0_i32 = arith.constant 0 : i32
    %c0_i32_0 = arith.constant 0 : i32
    %c0_i32_1 = arith.constant 0 : i32
    return %arg0, %c0_i32, %c0_i32_0 : i32, i32, i32
  }
  func.func @transform_2(%arg0: i32) -> (i32, i32, i32) {
    %c0_i32 = arith.constant 0 : i32
    %c0_i32_0 = arith.constant 0 : i32
    %c0_i32_1 = arith.constant 0 : i32
    return %arg0, %c0_i32, %c0_i32_0 : i32, i32, i32
  }
  func.func @transform_3(%arg0: i32) -> (i32, i32, i32) {
    %c0_i32 = arith.constant 0 : i32
    %c0_i32_0 = arith.constant 0 : i32
    %c0_i32_1 = arith.constant 0 : i32
    return %arg0, %c0_i32, %c0_i32_0 : i32, i32, i32
  }
  func.func @transform_4(%arg0: i32) -> (i32, i32, i32) {
    %c0_i32 = arith.constant 0 : i32
    %c0_i32_0 = arith.constant 0 : i32
    %c0_i32_1 = arith.constant 0 : i32
    return %arg0, %c0_i32, %c0_i32_0 : i32, i32, i32
  }
}

module attributes {stable_mosaic.version = 11 : i64} {
  func.func @kernel(%arg0: i32, %arg1: memref<1x8x32xbf16, #tpu.memory_space<vmem>>, %arg2: memref<1x32x16xbf16, #tpu.memory_space<vmem>>, %arg3: memref<1x16xf32, #tpu.memory_space<vmem>>, %arg4: memref<1x8x16xbf16, #tpu.memory_space<vmem>>, %arg5: memref<1x16xf32, #tpu.memory_space<vmem>>, %arg6: memref<1x16xf32, #tpu.memory_space<vmem>>, %arg7: memref<1x8x16xbf16, #tpu.memory_space<vmem>>) attributes {dimension_semantics = [#tpu.dimension_semantics<parallel>], iteration_bounds = array<i64: 2>, scalar_prefetch = 0 : i64, scratch_operands = 0 : i64, tpu.core_type = #tpu.core_type<tc>, window_params = [{transform_indices = @transform_0, window_bounds = array<i64: 1, 8, 32>}, {pipeline_mode = #tpu.pipeline_mode<synchronous>, transform_indices = @transform_1, window_bounds = array<i64: 1, 32, 16>}, {pipeline_mode = #tpu.pipeline_mode<synchronous>, transform_indices = @transform_2, window_bounds = array<i64: 1, 16>}, {transform_indices = @transform_3, window_bounds = array<i64: 1, 8, 16>}, {pipeline_mode = #tpu.pipeline_mode<synchronous>, transform_indices = @transform_4, window_bounds = array<i64: 1, 16>}, {pipeline_mode = #tpu.pipeline_mode<synchronous>, transform_indices = @transform_5, window_bounds = array<i64: 1, 16>}, {transform_indices = @transform_6, window_bounds = array<i64: 1, 8, 16>}]} {
    %c0 = arith.constant 0 : index
    %c0_0 = arith.constant 0 : index
    %c0_1 = arith.constant 0 : index
    %0 = vector.load %arg1[%c0, %c0_0, %c0_1] : memref<1x8x32xbf16, #tpu.memory_space<vmem>>, vector<1x8x32xbf16>
    %1 = vector.shape_cast %0 : vector<1x8x32xbf16> to vector<8x32xbf16>
    %c0_2 = arith.constant 0 : index
    %c0_3 = arith.constant 0 : index
    %c0_4 = arith.constant 0 : index
    %2 = vector.load %arg2[%c0_2, %c0_3, %c0_4] : memref<1x32x16xbf16, #tpu.memory_space<vmem>>, vector<1x32x16xbf16>
    %3 = vector.shape_cast %2 : vector<1x32x16xbf16> to vector<32x16xbf16>
    %cst = arith.constant dense<0.000000e+00> : vector<8x16xf32>
    %4 = tpu.matmul %1, %3, %cst {dimension_numbers = #tpu.dot_dimension_numbers<[1], [0], [0], [1], [0, 0, 1, 1], [], []>} : vector<8x32xbf16>, vector<32x16xbf16>, vector<8x16xf32> -> vector<8x16xf32>
    %c0_5 = arith.constant 0 : index
    %c0_6 = arith.constant 0 : index
    %5 = vector.load %arg3[%c0_5, %c0_6] : memref<1x16xf32, #tpu.memory_space<vmem>>, vector<1x16xf32>
    %6 = vector.broadcast %5 : vector<1x16xf32> to vector<8x16xf32>
    %7 = arith.addf %4, %6 : vector<8x16xf32>
    %c0_7 = arith.constant 0 : index
    %c0_8 = arith.constant 0 : index
    %c0_9 = arith.constant 0 : index
    %8 = vector.load %arg4[%c0_7, %c0_8, %c0_9] : memref<1x8x16xbf16, #tpu.memory_space<vmem>>, vector<1x8x16xbf16>
    %9 = vector.shape_cast %8 : vector<1x8x16xbf16> to vector<8x16xbf16>
    %10 = arith.extf %9 : vector<8x16xbf16> to vector<8x16xf32>
    %11 = arith.addf %7, %10 : vector<8x16xf32>
    %cst_10 = arith.constant dense<0.000000e+00> : vector<8xf32>
    %12 = vector.multi_reduction <add>, %11, %cst_10 [1] : vector<8x16xf32> to vector<8xf32>
    %13 = vector.shape_cast %12 : vector<8xf32> to vector<8x1xf32>
    %cst_11 = arith.constant 1.600000e+01 : f32
    %14 = vector.broadcast %cst_11 : f32 to vector<8x1xf32>
    %15 = arith.divf %13, %14 : vector<8x1xf32>
    %16 = vector.broadcast %15 : vector<8x1xf32> to vector<8x16xf32>
    %17 = arith.subf %11, %16 : vector<8x16xf32>
    %18 = arith.mulf %17, %17 : vector<8x16xf32>
    %cst_12 = arith.constant dense<0.000000e+00> : vector<8xf32>
    %19 = vector.multi_reduction <add>, %18, %cst_12 [1] : vector<8x16xf32> to vector<8xf32>
    %20 = vector.shape_cast %19 : vector<8xf32> to vector<8x1xf32>
    %cst_13 = arith.constant 1.600000e+01 : f32
    %21 = vector.broadcast %cst_13 : f32 to vector<8x1xf32>
    %22 = arith.divf %20, %21 : vector<8x1xf32>
    %cst_14 = arith.constant 9.99999974E-6 : f32
    %23 = vector.broadcast %cst_14 : f32 to vector<8x1xf32>
    %24 = arith.addf %22, %23 : vector<8x1xf32>
    %25 = math.rsqrt %24 : vector<8x1xf32>
    %26 = vector.broadcast %25 : vector<8x1xf32> to vector<8x16xf32>
    %27 = arith.mulf %17, %26 : vector<8x16xf32>
    %c0_15 = arith.constant 0 : index
    %c0_16 = arith.constant 0 : index
    %28 = vector.load %arg5[%c0_15, %c0_16] : memref<1x16xf32, #tpu.memory_space<vmem>>, vector<1x16xf32>
    %29 = vector.broadcast %28 : vector<1x16xf32> to vector<8x16xf32>
    %30 = arith.mulf %27, %29 : vector<8x16xf32>
    %c0_17 = arith.constant 0 : index
    %c0_18 = arith.constant 0 : index
    %31 = vector.load %arg6[%c0_17, %c0_18] : memref<1x16xf32, #tpu.memory_space<vmem>>, vector<1x16xf32>
    %32 = vector.broadcast %31 : vector<1x16xf32> to vector<8x16xf32>
    %33 = arith.addf %30, %32 : vector<8x16xf32>
    %34 = arith.truncf %33 : vector<8x16xf32> to vector<8x16xbf16>
    %c0_19 = arith.constant 0 : index
    %c0_20 = arith.constant 0 : index
    %c0_21 = arith.constant 0 : index
    %35 = vector.load %arg7[%c0_19, %c0_20, %c0_21] : memref<1x8x16xbf16, #tpu.memory_space<vmem>>, vector<1x8x16xbf16>
    %36 = vector.shape_cast %35 : vector<1x8x16xbf16> to vector<8x16xbf16>
    %37 = vector.shape_cast %34 : vector<8x16xbf16> to vector<1x8x16xbf16>
    tpu.vector_store %arg7[%c0_19, %c0_20, %c0_21], %37 {strides = array<i32>} : memref<1x8x16xbf16, #tpu.memory_space<vmem>>, vector<1x8x16xbf16>,
    return
  }
  func.func @transform_0(%arg0: i32) -> (i32, i32, i32) {
    %c0_i32 = arith.constant 0 : i32
    %c0_i32_0 = arith.constant 0 : i32
    %c0_i32_1 = arith.constant 0 : i32
    return %arg0, %c0_i32, %c0_i32_0 : i32, i32, i32
  }
  func.func @transform_1(%arg0: i32) -> (i32, i32, i32) {
    %c0_i32 = arith.constant 0 : i32
    %c0_i32_0 = arith.constant 0 : i32
    %c0_i32_1 = arith.constant 0 : i32
    %c0_i32_2 = arith.constant 0 : i32
    return %c0_i32, %c0_i32_0, %c0_i32_1 : i32, i32, i32
  }
  func.func @transform_2(%arg0: i32) -> (i32, i32) {
    %c0_i32 = arith.constant 0 : i32
    %c0_i32_0 = arith.constant 0 : i32
    %c0_i32_1 = arith.constant 0 : i32
    return %c0_i32, %c0_i32_0 : i32, i32
  }
  func.func @transform_3(%arg0: i32) -> (i32, i32, i32) {
    %c0_i32 = arith.constant 0 : i32
    %c0_i32_0 = arith.constant 0 : i32
    %c0_i32_1 = arith.constant 0 : i32
    return %arg0, %c0_i32, %c0_i32_0 : i32, i32, i32
  }
  func.func @transform_4(%arg0: i32) -> (i32, i32) {
    %c0_i32 = arith.constant 0 : i32
    %c0_i32_0 = arith.constant 0 : i32
    %c0_i32_1 = arith.constant 0 : i32
    return %c0_i32, %c0_i32_0 : i32, i32
  }
  func.func @transform_5(%arg0: i32) -> (i32, i32) {
    %c0_i32 = arith.constant 0 : i32
    %c0_i32_0 = arith.constant 0 : i32
    %c0_i32_1 = arith.constant 0 : i32
    return %c0_i32, %c0_i32_0 : i32, i32
  }
  func.func @transform_6(%arg0: i32) -> (i32, i32, i32) {
    %c0_i32 = arith.constant 0 : i32
    %c0_i32_0 = arith.constant 0 : i32
    %c0_i32_1 = arith.constant 0 : i32
    return %arg0, %c0_i32, %c0_i32_0 : i32, i32, i32
  }
}

module attributes {stable_mosaic.version = 11 : i64} {
  func.func @kernel(%arg0: i32, %arg1: memref<1x10x16xbf16, #tpu.memory_space<vmem>>, %arg2: memref<3x16x32xbf16, #tpu.memory_space<vmem>>, %arg3: memref<1x32xf32, #tpu.memory_space<vmem>>, %arg4: memref<1x8x32xbf16, #tpu.memory_space<vmem>>) attributes {dimension_semantics = [#tpu.dimension_semantics<parallel>], iteration_bounds = array<i64: 2>, scalar_prefetch = 0 : i64, scratch_operands = 0 : i64, tpu.core_type = #tpu.core_type<tc>, window_params = [{transform_indices = @transform_0, window_bounds = array<i64: 1, 10, 16>}, {pipeline_mode = #tpu.pipeline_mode<synchronous>, transform_indices = @transform_1, window_bounds = array<i64: 3, 16, 32>}, {pipeline_mode = #tpu.pipeline_mode<synchronous>, transform_indices = @transform_2, window_bounds = array<i64: 1, 32>}, {transform_indices = @transform_3, window_bounds = array<i64: 1, 8, 32>}]} {
    %c0 = arith.constant 0 : index
    %c0_0 = arith.constant 0 : index
    %c0_1 = arith.constant 0 : index
    %0 = vector.load %arg1[%c0, %c0_0, %c0_1] : memref<1x10x16xbf16, #tpu.memory_space<vmem>>, vector<1x8x16xbf16>
    %1 = vector.shape_cast %0 : vector<1x8x16xbf16> to vector<8x16xbf16>
    %c0_2 = arith.constant 0 : index
    %c0_3 = arith.constant 0 : index
    %c0_4 = arith.constant 0 : index
    %2 = vector.load %arg2[%c0_2, %c0_3, %c0_4] : memref<3x16x32xbf16, #tpu.memory_space<vmem>>, vector<1x16x32xbf16>
    %3 = vector.shape_cast %2 : vector<1x16x32xbf16> to vector<16x32xbf16>
    %cst = arith.constant dense<0.000000e+00> : vector<8x32xf32>
    %4 = tpu.matmul %1, %3, %cst {dimension_numbers = #tpu.dot_dimension_numbers<[1], [0], [0], [1], [0, 0, 1, 1], [], []>} : vector<8x16xbf16>, vector<16x32xbf16>, vector<8x32xf32> -> vector<8x32xf32>
    %c0_5 = arith.constant 0 : index
    %c1 = arith.constant 1 : index
    %c0_6 = arith.constant 0 : index
    %5 = vector.load %arg1[%c0_5, %c1, %c0_6] : memref<1x10x16xbf16, #tpu.memory_space<vmem>>, vector<1x8x16xbf16>
    %6 = vector.shape_cast %5 : vector<1x8x16xbf16> to vector<8x16xbf16>
    %c1_7 = arith.constant 1 : index
    %c0_8 = arith.constant 0 : index
    %c0_9 = arith.constant 0 : index
    %7 = vector.load %arg2[%c1_7, %c0_8, %c0_9] : memref<3x16x32xbf16, #tpu.memory_space<vmem>>, vector<1x16x32xbf16>
    %8 = vector.shape_cast %7 : vector<1x16x32xbf16> to vector<16x32xbf16>
    %cst_10 = arith.constant dense<0.000000e+00> : vector<8x32xf32>
    %9 = tpu.matmul %6, %8, %cst_10 {dimension_numbers = #tpu.dot_dimension_numbers<[1], [0], [0], [1], [0, 0, 1, 1], [], []>} : vector<8x16xbf16>, vector<16x32xbf16>, vector<8x32xf32> -> vector<8x32xf32>
    %10 = arith.addf %4, %9 : vector<8x32xf32>
    %c0_11 = arith.constant 0 : index
    %c2 = arith.constant 2 : index
    %c0_12 = arith.constant 0 : index
    %11 = vector.load %arg1[%c0_11, %c2, %c0_12] : memref<1x10x16xbf16, #tpu.memory_space<vmem>>, vector<1x8x16xbf16>
    %12 = vector.shape_cast %11 : vector<1x8x16xbf16> to vector<8x16xbf16>
    %c2_13 = arith.constant 2 : index
    %c0_14 = arith.constant 0 : index
    %c0_15 = arith.constant 0 : index
    %13 = vector.load %arg2[%c2_13, %c0_14, %c0_15] : memref<3x16x32xbf16, #tpu.memory_space<vmem>>, vector<1x16x32xbf16>
    %14 = vector.shape_cast %13 : vector<1x16x32xbf16> to vector<16x32xbf16>
    %cst_16 = arith.constant dense<0.000000e+00> : vector<8x32xf32>
    %15 = tpu.matmul %12, %14, %cst_16 {dimension_numbers = #tpu.dot_dimension_numbers<[1], [0], [0], [1], [0, 0, 1, 1], [], []>} : vector<8x16xbf16>, vector<16x32xbf16>, vector<8x32xf32> -> vector<8x32xf32>
    %16 = arith.addf %10, %15 : vector<8x32xf32>
    %c0_17 = arith.constant 0 : index
    %c0_18 = arith.constant 0 : index
    %17 = vector.load %arg3[%c0_17, %c0_18] : memref<1x32xf32, #tpu.memory_space<vmem>>, vector<1x32xf32>
    %18 = vector.broadcast %17 : vector<1x32xf32> to vector<8x32xf32>
    %19 = arith.addf %16, %18 : vector<8x32xf32>
    %cst_19 = arith.constant 0.000000e+00 : f32
    %20 = vector.broadcast %cst_19 : f32 to vector<8x32xf32>
    %21 = arith.maximumf %19, %20 : vector<8x32xf32>
    %22 = arith.truncf %21 : vector<8x32xf32> to vector<8x32xbf16>
    %c0_20 = arith.constant 0 : index
    %c0_21 = arith.constant 0 : index
    %c0_22 = arith.constant 0 : index
    %23 = vector.load %arg4[%c0_20, %c0_21, %c0_22] : memref<1x8x32xbf16, #tpu.memory_space<vmem>>, vector<1x8x32xbf16>
    %24 = vector.shape_cast %23 : vector<1x8x32xbf16> to vector<8x32xbf16>
    %25 = vector.shape_cast %22 : vector<8x32xbf16> to vector<1x8x32xbf16>
    tpu.vector_store %arg4[%c0_20, %c0_21, %c0_22], %25 {strides = array<i32>} : memref<1x8x32xbf16, #tpu.memory_space<vmem>>, vector<1x8x32xbf16>,
    return
  }
  func.func @transform_0(%arg0: i32) -> (i32, i32, i32) {
    %c0_i32 = arith.constant 0 : i32
    %c0_i32_0 = arith.constant 0 : i32
    %c0_i32_1 = arith.constant 0 : i32
    return %arg0, %c0_i32, %c0_i32_0 : i32, i32, i32
  }
  func.func @transform_1(%arg0: i32) -> (i32, i32, i32) {
    %c0_i32 = arith.constant 0 : i32
    %c0_i32_0 = arith.constant 0 : i32
    %c0_i32_1 = arith.constant 0 : i32
    %c0_i32_2 = arith.constant 0 : i32
    return %c0_i32, %c0_i32_0, %c0_i32_1 : i32, i32, i32
  }
  func.func @transform_2(%arg0: i32) -> (i32, i32) {
    %c0_i32 = arith.constant 0 : i32
    %c0_i32_0 = arith.constant 0 : i32
    %c0_i32_1 = arith.constant 0 : i32
    return %c0_i32, %c0_i32_0 : i32, i32
  }
  func.func @transform_3(%arg0: i32) -> (i32, i32, i32) {
    %c0_i32 = arith.constant 0 : i32
    %c0_i32_0 = arith.constant 0 : i32
    %c0_i32_1 = arith.constant 0 : i32
    return %arg0, %c0_i32, %c0_i32_0 : i32, i32, i32
  }
}

module attributes {stable_mosaic.version = 11 : i64} {
  func.func @kernel(%arg0: i32, %arg1: memref<16x16xbf16, #tpu.memory_space<vmem>>, %arg2: memref<16x128xbf16, #tpu.memory_space<vmem>>, %arg3: memref<1x128xf32, #tpu.memory_space<vmem>>, %arg4: memref<16x128xbf16, #tpu.memory_space<vmem>>) attributes {dimension_semantics = [#tpu.dimension_semantics<parallel>], iteration_bounds = array<i64: 1>, scalar_prefetch = 0 : i64, scratch_operands = 0 : i64, tpu.core_type = #tpu.core_type<tc>, window_params = [{transform_indices = @transform_0, window_bounds = array<i64: 16, 16>}, {pipeline_mode = #tpu.pipeline_mode<synchronous>, transform_indices = @transform_1, window_bounds = array<i64: 16, 128>}, {pipeline_mode = #tpu.pipeline_mode<synchronous>, transform_indices = @transform_2, window_bounds = array<i64: 1, 128>}, {transform_indices = @transform_3, window_bounds = array<i64: 16, 128>}]} {
    %c0 = arith.constant 0 : index
    %c0_0 = arith.constant 0 : index
    %0 = vector.load %arg1[%c0, %c0_0] : memref<16x16xbf16, #tpu.memory_space<vmem>>, vector<16x16xbf16>
    %c0_1 = arith.constant 0 : index
    %c0_2 = arith.constant 0 : index
    %1 = vector.load %arg2[%c0_1, %c0_2] : memref<16x128xbf16, #tpu.memory_space<vmem>>, vector<16x128xbf16>
    %cst = arith.constant dense<0.000000e+00> : vector<16x128xf32>
    %2 = tpu.matmul %0, %1, %cst {dimension_numbers = #tpu.dot_dimension_numbers<[1], [0], [0], [1], [0, 0, 1, 1], [], []>} : vector<16x16xbf16>, vector<16x128xbf16>, vector<16x128xf32> -> vector<16x128xf32>
    %c0_3 = arith.constant 0 : index
    %c0_4 = arith.constant 0 : index
    %3 = vector.load %arg3[%c0_3, %c0_4] : memref<1x128xf32, #tpu.memory_space<vmem>>, vector<1x128xf32>
    %4 = vector.broadcast %3 : vector<1x128xf32> to vector<16x128xf32>
    %5 = arith.addf %2, %4 : vector<16x128xf32>
    %6 = arith.truncf %5 : vector<16x128xf32> to vector<16x128xbf16>
    %c0_5 = arith.constant 0 : index
    %c0_6 = arith.constant 0 : index
    %7 = vector.load %arg4[%c0_5, %c0_6] : memref<16x128xbf16, #tpu.memory_space<vmem>>, vector<16x128xbf16>
    tpu.vector_store %arg4[%c0_5, %c0_6], %6 {strides = array<i32>} : memref<16x128xbf16, #tpu.memory_space<vmem>>, vector<16x128xbf16>,
    return
  }
  func.func @transform_0(%arg0: i32) -> (i32, i32) {
    %c0_i32 = arith.constant 0 : i32
    %c0_i32_0 = arith.constant 0 : i32
    return %arg0, %c0_i32 : i32, i32
  }
  func.func @transform_1(%arg0: i32) -> (i32, i32) {
    %c0_i32 = arith.constant 0 : i32
    %c0_i32_0 = arith.constant 0 : i32
    %c0_i32_1 = arith.constant 0 : i32
    return %c0_i32, %c0_i32_0 : i32, i32
  }
  func.func @transform_2(%arg0: i32) -> (i32, i32) {
    %c0_i32 = arith.constant 0 : i32
    %c0_i32_0 = arith.constant 0 : i32
    %c0_i32_1 = arith.constant 0 : i32
    return %c0_i32, %c0_i32_0 : i32, i32
  }
  func.func @transform_3(%arg0: i32) -> (i32, i32) {
    %c0_i32 = arith.constant 0 : i32
    %c0_i32_0 = arith.constant 0 : i32
    return %arg0, %c0_i32 : i32, i32
  }
}

module attributes {stable_mosaic.version = 11 : i64} {
  func.func @kernel(%arg0: i32, %arg1: memref<16x16xbf16, #tpu.memory_space<vmem>>, %arg2: memref<1x16xf32, #tpu.memory_space<vmem>>, %arg3: memref<1x16xf32, #tpu.memory_space<vmem>>, %arg4: memref<16x16xbf16, #tpu.memory_space<vmem>>) attributes {dimension_semantics = [#tpu.dimension_semantics<parallel>], iteration_bounds = array<i64: 1>, scalar_prefetch = 0 : i64, scratch_operands = 0 : i64, tpu.core_type = #tpu.core_type<tc>, window_params = [{transform_indices = @transform_0, window_bounds = array<i64: 16, 16>}, {pipeline_mode = #tpu.pipeline_mode<synchronous>, transform_indices = @transform_1, window_bounds = array<i64: 1, 16>}, {pipeline_mode = #tpu.pipeline_mode<synchronous>, transform_indices = @transform_2, window_bounds = array<i64: 1, 16>}, {transform_indices = @transform_3, window_bounds = array<i64: 16, 16>}]} {
    %c0 = arith.constant 0 : index
    %c0_0 = arith.constant 0 : index
    %0 = vector.load %arg1[%c0, %c0_0] : memref<16x16xbf16, #tpu.memory_space<vmem>>, vector<16x16xbf16>
    %1 = arith.extf %0 : vector<16x16xbf16> to vector<16x16xf32>
    %cst = arith.constant dense<0.000000e+00> : vector<16xf32>
    %2 = vector.multi_reduction <add>, %1, %cst [1] : vector<16x16xf32> to vector<16xf32>
    %3 = vector.shape_cast %2 : vector<16xf32> to vector<16x1xf32>
    %cst_1 = arith.constant 1.600000e+01 : f32
    %4 = vector.broadcast %cst_1 : f32 to vector<16x1xf32>
    %5 = arith.divf %3, %4 : vector<16x1xf32>
    %6 = vector.broadcast %5 : vector<16x1xf32> to vector<16x16xf32>
    %7 = arith.subf %1, %6 : vector<16x16xf32>
    %8 = arith.mulf %7, %7 : vector<16x16xf32>
    %cst_2 = arith.constant dense<0.000000e+00> : vector<16xf32>
    %9 = vector.multi_reduction <add>, %8, %cst_2 [1] : vector<16x16xf32> to vector<16xf32>
    %10 = vector.shape_cast %9 : vector<16xf32> to vector<16x1xf32>
    %cst_3 = arith.constant 1.600000e+01 : f32
    %11 = vector.broadcast %cst_3 : f32 to vector<16x1xf32>
    %12 = arith.divf %10, %11 : vector<16x1xf32>
    %cst_4 = arith.constant 9.99999974E-6 : f32
    %13 = vector.broadcast %cst_4 : f32 to vector<16x1xf32>
    %14 = arith.addf %12, %13 : vector<16x1xf32>
    %15 = math.rsqrt %14 : vector<16x1xf32>
    %16 = vector.broadcast %15 : vector<16x1xf32> to vector<16x16xf32>
    %17 = arith.mulf %7, %16 : vector<16x16xf32>
    %c0_5 = arith.constant 0 : index
    %c0_6 = arith.constant 0 : index
    %18 = vector.load %arg2[%c0_5, %c0_6] : memref<1x16xf32, #tpu.memory_space<vmem>>, vector<1x16xf32>
    %19 = vector.broadcast %18 : vector<1x16xf32> to vector<16x16xf32>
    %20 = arith.mulf %17, %19 : vector<16x16xf32>
    %c0_7 = arith.constant 0 : index
    %c0_8 = arith.constant 0 : index
    %21 = vector.load %arg3[%c0_7, %c0_8] : memref<1x16xf32, #tpu.memory_space<vmem>>, vector<1x16xf32>
    %22 = vector.broadcast %21 : vector<1x16xf32> to vector<16x16xf32>
    %23 = arith.addf %20, %22 : vector<16x16xf32>
    %24 = arith.truncf %23 : vector<16x16xf32> to vector<16x16xbf16>
    %c0_9 = arith.constant 0 : index
    %c0_10 = arith.constant 0 : index
    %25 = vector.load %arg4[%c0_9, %c0_10] : memref<16x16xbf16, #tpu.memory_space<vmem>>, vector<16x16xbf16>
    tpu.vector_store %arg4[%c0_9, %c0_10], %24 {strides = array<i32>} : memref<16x16xbf16, #tpu.memory_space<vmem>>, vector<16x16xbf16>,
    return
  }
  func.func @transform_0(%arg0: i32) -> (i32, i32) {
    %c0_i32 = arith.constant 0 : i32
    %c0_i32_0 = arith.constant 0 : i32
    return %arg0, %c0_i32 : i32, i32
  }
  func.func @transform_1(%arg0: i32) -> (i32, i32) {
    %c0_i32 = arith.constant 0 : i32
    %c0_i32_0 = arith.constant 0 : i32
    %c0_i32_1 = arith.constant 0 : i32
    return %c0_i32, %c0_i32_0 : i32, i32
  }
  func.func @transform_2(%arg0: i32) -> (i32, i32) {
    %c0_i32 = arith.constant 0 : i32
    %c0_i32_0 = arith.constant 0 : i32
    %c0_i32_1 = arith.constant 0 : i32
    return %c0_i32, %c0_i32_0 : i32, i32
  }
  func.func @transform_3(%arg0: i32) -> (i32, i32) {
    %c0_i32 = arith.constant 0 : i32
    %c0_i32_0 = arith.constant 0 : i32
    return %arg0, %c0_i32 : i32, i32
  }
}

module attributes {stable_mosaic.version = 11 : i64} {
  func.func @kernel(%arg0: i32, %arg1: memref<1x8x32xbf16, #tpu.memory_space<vmem>>, %arg2: memref<1x8x32xbf16, #tpu.memory_space<vmem>>, %arg3: memref<1x8x32xbf16, #tpu.memory_space<vmem>>, %arg4: memref<1x1x8xf32, #tpu.memory_space<vmem>>, %arg5: memref<1x8x32xbf16, #tpu.memory_space<vmem>>) attributes {dimension_semantics = [#tpu.dimension_semantics<parallel>], iteration_bounds = array<i64: 2>, scalar_prefetch = 0 : i64, scratch_operands = 0 : i64, tpu.core_type = #tpu.core_type<tc>, window_params = [{transform_indices = @transform_0, window_bounds = array<i64: 1, 8, 32>}, {transform_indices = @transform_1, window_bounds = array<i64: 1, 8, 32>}, {transform_indices = @transform_2, window_bounds = array<i64: 1, 8, 32>}, {transform_indices = @transform_3, window_bounds = array<i64: 1, 1, 8>}, {transform_indices = @transform_4, window_bounds = array<i64: 1, 8, 32>}]} {
    %c0 = arith.constant 0 : index
    %c0_0 = arith.constant 0 : index
    %c0_1 = arith.constant 0 : index
    %0 = vector.load %arg4[%c0, %c0_0, %c0_1] : memref<1x1x8xf32, #tpu.memory_space<vmem>>, vector<1x1x8xf32>
    %1 = vector.shape_cast %0 : vector<1x1x8xf32> to vector<1x8xf32>
    %c0_2 = arith.constant 0 : index
    %c0_3 = arith.constant 0 : index
    %c0_4 = arith.constant 0 : index
    %2 = vector.load %arg1[%c0_2, %c0_3, %c0_4] : memref<1x8x32xbf16, #tpu.memory_space<vmem>>, vector<1x8x16xbf16>
    %3 = vector.shape_cast %2 : vector<1x8x16xbf16> to vector<8x16xbf16>
    %c0_5 = arith.constant 0 : index
    %c0_6 = arith.constant 0 : index
    %c0_7 = arith.constant 0 : index
    %4 = vector.load %arg2[%c0_5, %c0_6, %c0_7] : memref<1x8x32xbf16, #tpu.memory_space<vmem>>, vector<1x8x16xbf16>
    %5 = vector.shape_cast %4 : vector<1x8x16xbf16> to vector<8x16xbf16>
    %c0_8 = arith.constant 0 : index
    %c0_9 = arith.constant 0 : index
    %c0_10 = arith.constant 0 : index
    %6 = vector.load %arg3[%c0_8, %c0_9, %c0_10] : memref<1x8x32xbf16, #tpu.memory_space<vmem>>, vector<1x8x16xbf16>
    %7 = vector.shape_cast %6 : vector<1x8x16xbf16> to vector<8x16xbf16>
    %cst = arith.constant dense<0.000000e+00> : vector<8x8xf32>
    %8 = tpu.matmul %3, %5, %cst {dimension_numbers = #tpu.dot_dimension_numbers<[1], [1], [0], [0], [0, 0, 1, 0], [], []>} : vector<8x16xbf16>, vector<8x16xbf16>, vector<8x8xf32> -> vector<8x8xf32>
    %cst_11 = arith.constant 2.500000e-01 : f32
    %9 = vector.broadcast %cst_11 : f32 to vector<8x8xf32>
    %10 = arith.mulf %8, %9 : vector<8x8xf32>
    %11 = vector.broadcast %1 : vector<1x8xf32> to vector<8x8xf32>
    %12 = arith.addf %10, %11 : vector<8x8xf32>
    %cst_12 = arith.constant dense<0xFF800000> : vector<8xf32>
    %13 = vector.multi_reduction <maximumf>, %12, %cst_12 [1] : vector<8x8xf32> to vector<8xf32>
    %14 = vector.shape_cast %13 : vector<8xf32> to vector<8x1xf32>
    %15 = vector.broadcast %14 : vector<8x1xf32> to vector<8x8xf32>
    %16 = arith.subf %12, %15 : vector<8x8xf32>
    %17 = math.exp %16 : vector<8x8xf32>
    %cst_13 = arith.constant dense<0.000000e+00> : vector<8xf32>
    %18 = vector.multi_reduction <add>, %17, %cst_13 [1] : vector<8x8xf32> to vector<8xf32>
    %19 = vector.shape_cast %18 : vector<8xf32> to vector<8x1xf32>
    %20 = tpu.reciprocal %19 {approx = true} : vector<8x1xf32> -> vector<8x1xf32>
    %21 = vector.broadcast %20 : vector<8x1xf32> to vector<8x8xf32>
    %22 = arith.mulf %17, %21 : vector<8x8xf32>
    %23 = arith.truncf %22 : vector<8x8xf32> to vector<8x8xbf16>
    %cst_14 = arith.constant dense<0.000000e+00> : vector<8x16xf32>
    %24 = tpu.matmul %23, %7, %cst_14 {dimension_numbers = #tpu.dot_dimension_numbers<[1], [0], [0], [1], [0, 0, 1, 1], [], []>} : vector<8x8xbf16>, vector<8x16xbf16>, vector<8x16xf32> -> vector<8x16xf32>
    %c0_15 = arith.constant 0 : index
    %c0_16 = arith.constant 0 : index
    %c16 = arith.constant 16 : index
    %25 = vector.load %arg1[%c0_15, %c0_16, %c16] : memref<1x8x32xbf16, #tpu.memory_space<vmem>>, vector<1x8x16xbf16>
    %26 = vector.shape_cast %25 : vector<1x8x16xbf16> to vector<8x16xbf16>
    %c0_17 = arith.constant 0 : index
    %c0_18 = arith.constant 0 : index
    %c16_19 = arith.constant 16 : index
    %27 = vector.load %arg2[%c0_17, %c0_18, %c16_19] : memref<1x8x32xbf16, #tpu.memory_space<vmem>>, vector<1x8x16xbf16>
    %28 = vector.shape_cast %27 : vector<1x8x16xbf16> to vector<8x16xbf16>
    %c0_20 = arith.constant 0 : index
    %c0_21 = arith.constant 0 : index
    %c16_22 = arith.constant 16 : index
    %29 = vector.load %arg3[%c0_20, %c0_21, %c16_22] : memref<1x8x32xbf16, #tpu.memory_space<vmem>>, vector<1x8x16xbf16>
    %30 = vector.shape_cast %29 : vector<1x8x16xbf16> to vector<8x16xbf16>
    %cst_23 = arith.constant dense<0.000000e+00> : vector<8x8xf32>
    %31 = tpu.matmul %26, %28, %cst_23 {dimension_numbers = #tpu.dot_dimension_numbers<[1], [1], [0], [0], [0, 0, 1, 0], [], []>} : vector<8x16xbf16>, vector<8x16xbf16>, vector<8x8xf32> -> vector<8x8xf32>
    %cst_24 = arith.constant 2.500000e-01 : f32
    %32 = vector.broadcast %cst_24 : f32 to vector<8x8xf32>
    %33 = arith.mulf %31, %32 : vector<8x8xf32>
    %34 = vector.broadcast %1 : vector<1x8xf32> to vector<8x8xf32>
    %35 = arith.addf %33, %34 : vector<8x8xf32>
    %cst_25 = arith.constant dense<0xFF800000> : vector<8xf32>
    %36 = vector.multi_reduction <maximumf>, %35, %cst_25 [1] : vector<8x8xf32> to vector<8xf32>
    %37 = vector.shape_cast %36 : vector<8xf32> to vector<8x1xf32>
    %38 = vector.broadcast %37 : vector<8x1xf32> to vector<8x8xf32>
    %39 = arith.subf %35, %38 : vector<8x8xf32>
    %40 = math.exp %39 : vector<8x8xf32>
    %cst_26 = arith.constant dense<0.000000e+00> : vector<8xf32>
    %41 = vector.multi_reduction <add>, %40, %cst_26 [1] : vector<8x8xf32> to vector<8xf32>
    %42 = vector.shape_cast %41 : vector<8xf32> to vector<8x1xf32>
    %43 = tpu.reciprocal %42 {approx = true} : vector<8x1xf32> -> vector<8x1xf32>
    %44 = vector.broadcast %43 : vector<8x1xf32> to vector<8x8xf32>
    %45 = arith.mulf %40, %44 : vector<8x8xf32>
    %46 = arith.truncf %45 : vector<8x8xf32> to vector<8x8xbf16>
    %cst_27 = arith.constant dense<0.000000e+00> : vector<8x16xf32>
    %47 = tpu.matmul %46, %30, %cst_27 {dimension_numbers = #tpu.dot_dimension_numbers<[1], [0], [0], [1], [0, 0, 1, 1], [], []>} : vector<8x8xbf16>, vector<8x16xbf16>, vector<8x16xf32> -> vector<8x16xf32>
    %48 = tpu.concatenate %24, %47 in 1 : vector<8x16xf32>, vector<8x16xf32> -> vector<8x32xf32>
    %49 = arith.truncf %48 : vector<8x32xf32> to vector<8x32xbf16>
    %c0_28 = arith.constant 0 : index
    %c0_29 = arith.constant 0 : index
    %c0_30 = arith.constant 0 : index
    %50 = vector.load %arg5[%c0_28, %c0_29, %c0_30] : memref<1x8x32xbf16, #tpu.memory_space<vmem>>, vector<1x8x32xbf16>
    %51 = vector.shape_cast %50 : vector<1x8x32xbf16> to vector<8x32xbf16>
    %52 = vector.shape_cast %49 : vector<8x32xbf16> to vector<1x8x32xbf16>
    tpu.vector_store %arg5[%c0_28, %c0_29, %c0_30], %52 {strides = array<i32>} : memref<1x8x32xbf16, #tpu.memory_space<vmem>>, vector<1x8x32xbf16>,
    return
  }
  func.func @transform_0(%arg0: i32) -> (i32, i32, i32) {
    %c0_i32 = arith.constant 0 : i32
    %c0_i32_0 = arith.constant 0 : i32
    %c0_i32_1 = arith.constant 0 : i32
    return %arg0, %c0_i32, %c0_i32_0 : i32, i32, i32
  }
  func.func @transform_1(%arg0: i32) -> (i32, i32, i32) {
    %c0_i32 = arith.constant 0 : i32
    %c0_i32_0 = arith.constant 0 : i32
    %c0_i32_1 = arith.constant 0 : i32
    return %arg0, %c0_i32, %c0_i32_0 : i32, i32, i32
  }
  func.func @transform_2(%arg0: i32) -> (i32, i32, i32) {
    %c0_i32 = arith.constant 0 : i32
    %c0_i32_0 = arith.constant 0 : i32
    %c0_i32_1 = arith.constant 0 : i32
    return %arg0, %c0_i32, %c0_i32_0 : i32, i32, i32
  }
  func.func @transform_3(%arg0: i32) -> (i32, i32, i32) {
    %c0_i32 = arith.constant 0 : i32
    %c0_i32_0 = arith.constant 0 : i32
    %c0_i32_1 = arith.constant 0 : i32
    return %arg0, %c0_i32, %c0_i32_0 : i32, i32, i32
  }
  func.func @transform_4(%arg0: i32) -> (i32, i32, i32) {
    %c0_i32 = arith.constant 0 : i32
    %c0_i32_0 = arith.constant 0 : i32
    %c0_i32_1 = arith.constant 0 : i32
    return %arg0, %c0_i32, %c0_i32_0 : i32, i32, i32
  }
}

module attributes {stable_mosaic.version = 11 : i64} {
  func.func @kernel(%arg0: i32, %arg1: memref<16x32xbf16, #tpu.memory_space<vmem>>, %arg2: memref<32x32xbf16, #tpu.memory_space<vmem>>, %arg3: memref<32x32xbf16, #tpu.memory_space<vmem>>, %arg4: memref<32x32xbf16, #tpu.memory_space<vmem>>, %arg5: memref<1x32xf32, #tpu.memory_space<vmem>>, %arg6: memref<1x32xf32, #tpu.memory_space<vmem>>, %arg7: memref<1x32xf32, #tpu.memory_space<vmem>>, %arg8: memref<16x32xbf16, #tpu.memory_space<vmem>>, %arg9: memref<16x32xbf16, #tpu.memory_space<vmem>>, %arg10: memref<16x32xbf16, #tpu.memory_space<vmem>>) attributes {dimension_semantics = [#tpu.dimension_semantics<parallel>], iteration_bounds = array<i64: 1>, scalar_prefetch = 0 : i64, scratch_operands = 0 : i64, tpu.core_type = #tpu.core_type<tc>, window_params = [{transform_indices = @transform_0, window_bounds = array<i64: 16, 32>}, {pipeline_mode = #tpu.pipeline_mode<synchronous>, transform_indices = @transform_1, window_bounds = array<i64: 32, 32>}, {pipeline_mode = #tpu.pipeline_mode<synchronous>, transform_indices = @transform_2, window_bounds = array<i64: 32, 32>}, {pipeline_mode = #tpu.pipeline_mode<synchronous>, transform_indices = @transform_3, window_bounds = array<i64: 32, 32>}, {pipeline_mode = #tpu.pipeline_mode<synchronous>, transform_indices = @transform_4, window_bounds = array<i64: 1, 32>}, {pipeline_mode = #tpu.pipeline_mode<synchronous>, transform_indices = @transform_5, window_bounds = array<i64: 1, 32>}, {pipeline_mode = #tpu.pipeline_mode<synchronous>, transform_indices = @transform_6, window_bounds = array<i64: 1, 32>}, {transform_indices = @transform_7, window_bounds = array<i64: 16, 32>}, {transform_indices = @transform_8, window_bounds = array<i64: 16, 32>}, {transform_indices = @transform_9, window_bounds = array<i64: 16, 32>}]} {
    %c0 = arith.constant 0 : index
    %c0_0 = arith.constant 0 : index
    %0 = vector.load %arg1[%c0, %c0_0] : memref<16x32xbf16, #tpu.memory_space<vmem>>, vector<16x32xbf16>
    %c0_1 = arith.constant 0 : index
    %c0_2 = arith.constant 0 : index
    %1 = vector.load %arg2[%c0_1, %c0_2] : memref<32x32xbf16, #tpu.memory_space<vmem>>, vector<32x32xbf16>
    %cst = arith.constant dense<0.000000e+00> : vector<16x32xf32>
    %2 = tpu.matmul %0, %1, %cst {dimension_numbers = #tpu.dot_dimension_numbers<[1], [0], [0], [1], [0, 0, 1, 1], [], []>} : vector<16x32xbf16>, vector<32x32xbf16>, vector<16x32xf32> -> vector<16x32xf32>
    %c0_3 = arith.constant 0 : index
    %c0_4 = arith.constant 0 : index
    %3 = vector.load %arg5[%c0_3, %c0_4] : memref<1x32xf32, #tpu.memory_space<vmem>>, vector<1x32xf32>
    %4 = vector.broadcast %3 : vector<1x32xf32> to vector<16x32xf32>
    %5 = arith.addf %2, %4 : vector<16x32xf32>
    %6 = arith.truncf %5 : vector<16x32xf32> to vector<16x32xbf16>
    %c0_5 = arith.constant 0 : index
    %c0_6 = arith.constant 0 : index
    %7 = vector.load %arg8[%c0_5, %c0_6] : memref<16x32xbf16, #tpu.memory_space<vmem>>, vector<16x32xbf16>
    tpu.vector_store %arg8[%c0_5, %c0_6], %6 {strides = array<i32>} : memref<16x32xbf16, #tpu.memory_space<vmem>>, vector<16x32xbf16>,
    %c0_7 = arith.constant 0 : index
    %c0_8 = arith.constant 0 : index
    %8 = vector.load %arg3[%c0_7, %c0_8] : memref<32x32xbf16, #tpu.memory_space<vmem>>, vector<32x32xbf16>
    %cst_9 = arith.constant dense<0.000000e+00> : vector<16x32xf32>
    %9 = tpu.matmul %0, %8, %cst_9 {dimension_numbers = #tpu.dot_dimension_numbers<[1], [0], [0], [1], [0, 0, 1, 1], [], []>} : vector<16x32xbf16>, vector<32x32xbf16>, vector<16x32xf32> -> vector<16x32xf32>
    %c0_10 = arith.constant 0 : index
    %c0_11 = arith.constant 0 : index
    %10 = vector.load %arg6[%c0_10, %c0_11] : memref<1x32xf32, #tpu.memory_space<vmem>>, vector<1x32xf32>
    %11 = vector.broadcast %10 : vector<1x32xf32> to vector<16x32xf32>
    %12 = arith.addf %9, %11 : vector<16x32xf32>
    %13 = arith.truncf %12 : vector<16x32xf32> to vector<16x32xbf16>
    %c0_12 = arith.constant 0 : index
    %c0_13 = arith.constant 0 : index
    %14 = vector.load %arg9[%c0_12, %c0_13] : memref<16x32xbf16, #tpu.memory_space<vmem>>, vector<16x32xbf16>
    tpu.vector_store %arg9[%c0_12, %c0_13], %13 {strides = array<i32>} : memref<16x32xbf16, #tpu.memory_space<vmem>>, vector<16x32xbf16>,
    %c0_14 = arith.constant 0 : index
    %c0_15 = arith.constant 0 : index
    %15 = vector.load %arg4[%c0_14, %c0_15] : memref<32x32xbf16, #tpu.memory_space<vmem>>, vector<32x32xbf16>
    %cst_16 = arith.constant dense<0.000000e+00> : vector<16x32xf32>
    %16 = tpu.matmul %0, %15, %cst_16 {dimension_numbers = #tpu.dot_dimension_numbers<[1], [0], [0], [1], [0, 0, 1, 1], [], []>} : vector<16x32xbf16>, vector<32x32xbf16>, vector<16x32xf32> -> vector<16x32xf32>
    %c0_17 = arith.constant 0 : index
    %c0_18 = arith.constant 0 : index
    %17 = vector.load %arg7[%c0_17, %c0_18] : memref<1x32xf32, #tpu.memory_space<vmem>>, vector<1x32xf32>
    %18 = vector.broadcast %17 : vector<1x32xf32> to vector<16x32xf32>
    %19 = arith.addf %16, %18 : vector<16x32xf32>
    %20 = arith.truncf %19 : vector<16x32xf32> to vector<16x32xbf16>
    %c0_19 = arith.constant 0 : index
    %c0_20 = arith.constant 0 : index
    %21 = vector.load %arg10[%c0_19, %c0_20] : memref<16x32xbf16, #tpu.memory_space<vmem>>, vector<16x32xbf16>
    tpu.vector_store %arg10[%c0_19, %c0_20], %20 {strides = array<i32>} : memref<16x32xbf16, #tpu.memory_space<vmem>>, vector<16x32xbf16>,
    return
  }
  func.func @transform_0(%arg0: i32) -> (i32, i32) {
    %c0_i32 = arith.constant 0 : i32
    %c0_i32_0 = arith.constant 0 : i32
    return %arg0, %c0_i32 : i32, i32
  }
  func.func @transform_1(%arg0: i32) -> (i32, i32) {
    %c0_i32 = arith.constant 0 : i32
    %c0_i32_0 = arith.constant 0 : i32
    %c0_i32_1 = arith.constant 0 : i32
    return %c0_i32, %c0_i32_0 : i32, i32
  }
  func.func @transform_2(%arg0: i32) -> (i32, i32) {
    %c0_i32 = arith.constant 0 : i32
    %c0_i32_0 = arith.constant 0 : i32
    %c0_i32_1 = arith.constant 0 : i32
    return %c0_i32, %c0_i32_0 : i32, i32
  }
  func.func @transform_3(%arg0: i32) -> (i32, i32) {
    %c0_i32 = arith.constant 0 : i32
    %c0_i32_0 = arith.constant 0 : i32
    %c0_i32_1 = arith.constant 0 : i32
    return %c0_i32, %c0_i32_0 : i32, i32
  }
  func.func @transform_4(%arg0: i32) -> (i32, i32) {
    %c0_i32 = arith.constant 0 : i32
    %c0_i32_0 = arith.constant 0 : i32
    %c0_i32_1 = arith.constant 0 : i32
    return %c0_i32, %c0_i32_0 : i32, i32
  }
  func.func @transform_5(%arg0: i32) -> (i32, i32) {
    %c0_i32 = arith.constant 0 : i32
    %c0_i32_0 = arith.constant 0 : i32
    %c0_i32_1 = arith.constant 0 : i32
    return %c0_i32, %c0_i32_0 : i32, i32
  }
  func.func @transform_6(%arg0: i32) -> (i32, i32) {
    %c0_i32 = arith.constant 0 : i32
    %c0_i32_0 = arith.constant 0 : i32
    %c0_i32_1 = arith.constant 0 : i32
    return %c0_i32, %c0_i32_0 : i32, i32
  }
  func.func @transform_7(%arg0: i32) -> (i32, i32) {
    %c0_i32 = arith.constant 0 : i32
    %c0_i32_0 = arith.constant 0 : i32
    return %arg0, %c0_i32 : i32, i32
  }
  func.func @transform_8(%arg0: i32) -> (i32, i32) {
    %c0_i32 = arith.constant 0 : i32
    %c0_i32_0 = arith.constant 0 : i32
    return %arg0, %c0_i32 : i32, i32
  }
  func.func @transform_9(%arg0: i32) -> (i32, i32) {
    %c0_i32 = arith.constant 0 : i32
    %c0_i32_0 = arith.constant 0 : i32
    return %arg0, %c0_i32 : i32, i32
  }
}

module attributes {stable_mosaic.version = 11 : i64} {
  func.func @kernel(%arg0: i32, %arg1: memref<16x32xbf16, #tpu.memory_space<vmem>>, %arg2: memref<32x32xbf16, #tpu.memory_space<vmem>>, %arg3: memref<1x32xf32, #tpu.memory_space<vmem>>, %arg4: memref<16x32xbf16, #tpu.memory_space<vmem>>, %arg5: memref<1x32xf32, #tpu.memory_space<vmem>>, %arg6: memref<1x32xf32, #tpu.memory_space<vmem>>, %arg7: memref<16x32xbf16, #tpu.memory_space<vmem>>) attributes {dimension_semantics = [#tpu.dimension_semantics<parallel>], iteration_bounds = array<i64: 1>, scalar_prefetch = 0 : i64, scratch_operands = 0 : i64, tpu.core_type = #tpu.core_type<tc>, window_params = [{transform_indices = @transform_0, window_bounds = array<i64: 16, 32>}, {pipeline_mode = #tpu.pipeline_mode<synchronous>, transform_indices = @transform_1, window_bounds = array<i64: 32, 32>}, {pipeline_mode = #tpu.pipeline_mode<synchronous>, transform_indices = @transform_2, window_bounds = array<i64: 1, 32>}, {transform_indices = @transform_3, window_bounds = array<i64: 16, 32>}, {pipeline_mode = #tpu.pipeline_mode<synchronous>, transform_indices = @transform_4, window_bounds = array<i64: 1, 32>}, {pipeline_mode = #tpu.pipeline_mode<synchronous>, transform_indices = @transform_5, window_bounds = array<i64: 1, 32>}, {transform_indices = @transform_6, window_bounds = array<i64: 16, 32>}]} {
    %c0 = arith.constant 0 : index
    %c0_0 = arith.constant 0 : index
    %0 = vector.load %arg1[%c0, %c0_0] : memref<16x32xbf16, #tpu.memory_space<vmem>>, vector<16x32xbf16>
    %c0_1 = arith.constant 0 : index
    %c0_2 = arith.constant 0 : index
    %1 = vector.load %arg2[%c0_1, %c0_2] : memref<32x32xbf16, #tpu.memory_space<vmem>>, vector<32x32xbf16>
    %cst = arith.constant dense<0.000000e+00> : vector<16x32xf32>
    %2 = tpu.matmul %0, %1, %cst {dimension_numbers = #tpu.dot_dimension_numbers<[1], [0], [0], [1], [0, 0, 1, 1], [], []>} : vector<16x32xbf16>, vector<32x32xbf16>, vector<16x32xf32> -> vector<16x32xf32>
    %c0_3 = arith.constant 0 : index
    %c0_4 = arith.constant 0 : index
    %3 = vector.load %arg3[%c0_3, %c0_4] : memref<1x32xf32, #tpu.memory_space<vmem>>, vector<1x32xf32>
    %4 = vector.broadcast %3 : vector<1x32xf32> to vector<16x32xf32>
    %5 = arith.addf %2, %4 : vector<16x32xf32>
    %c0_5 = arith.constant 0 : index
    %c0_6 = arith.constant 0 : index
    %6 = vector.load %arg4[%c0_5, %c0_6] : memref<16x32xbf16, #tpu.memory_space<vmem>>, vector<16x32xbf16>
    %7 = arith.extf %6 : vector<16x32xbf16> to vector<16x32xf32>
    %8 = arith.addf %5, %7 : vector<16x32xf32>
    %cst_7 = arith.constant dense<0.000000e+00> : vector<16xf32>
    %9 = vector.multi_reduction <add>, %8, %cst_7 [1] : vector<16x32xf32> to vector<16xf32>
    %10 = vector.shape_cast %9 : vector<16xf32> to vector<16x1xf32>
    %cst_8 = arith.constant 3.200000e+01 : f32
    %11 = vector.broadcast %cst_8 : f32 to vector<16x1xf32>
    %12 = arith.divf %10, %11 : vector<16x1xf32>
    %13 = vector.broadcast %12 : vector<16x1xf32> to vector<16x32xf32>
    %14 = arith.subf %8, %13 : vector<16x32xf32>
    %15 = arith.mulf %14, %14 : vector<16x32xf32>
    %cst_9 = arith.constant dense<0.000000e+00> : vector<16xf32>
    %16 = vector.multi_reduction <add>, %15, %cst_9 [1] : vector<16x32xf32> to vector<16xf32>
    %17 = vector.shape_cast %16 : vector<16xf32> to vector<16x1xf32>
    %cst_10 = arith.constant 3.200000e+01 : f32
    %18 = vector.broadcast %cst_10 : f32 to vector<16x1xf32>
    %19 = arith.divf %17, %18 : vector<16x1xf32>
    %cst_11 = arith.constant 9.99999974E-6 : f32
    %20 = vector.broadcast %cst_11 : f32 to vector<16x1xf32>
    %21 = arith.addf %19, %20 : vector<16x1xf32>
    %22 = math.rsqrt %21 : vector<16x1xf32>
    %23 = vector.broadcast %22 : vector<16x1xf32> to vector<16x32xf32>
    %24 = arith.mulf %14, %23 : vector<16x32xf32>
    %c0_12 = arith.constant 0 : index
    %c0_13 = arith.constant 0 : index
    %25 = vector.load %arg5[%c0_12, %c0_13] : memref<1x32xf32, #tpu.memory_space<vmem>>, vector<1x32xf32>
    %26 = vector.broadcast %25 : vector<1x32xf32> to vector<16x32xf32>
    %27 = arith.mulf %24, %26 : vector<16x32xf32>
    %c0_14 = arith.constant 0 : index
    %c0_15 = arith.constant 0 : index
    %28 = vector.load %arg6[%c0_14, %c0_15] : memref<1x32xf32, #tpu.memory_space<vmem>>, vector<1x32xf32>
    %29 = vector.broadcast %28 : vector<1x32xf32> to vector<16x32xf32>
    %30 = arith.addf %27, %29 : vector<16x32xf32>
    %31 = arith.truncf %30 : vector<16x32xf32> to vector<16x32xbf16>
    %c0_16 = arith.constant 0 : index
    %c0_17 = arith.constant 0 : index
    %32 = vector.load %arg7[%c0_16, %c0_17] : memref<16x32xbf16, #tpu.memory_space<vmem>>, vector<16x32xbf16>
    tpu.vector_store %arg7[%c0_16, %c0_17], %31 {strides = array<i32>} : memref<16x32xbf16, #tpu.memory_space<vmem>>, vector<16x32xbf16>,
    return
  }
  func.func @transform_0(%arg0: i32) -> (i32, i32) {
    %c0_i32 = arith.constant 0 : i32
    %c0_i32_0 = arith.constant 0 : i32
    return %arg0, %c0_i32 : i32, i32
  }
  func.func @transform_1(%arg0: i32) -> (i32, i32) {
    %c0_i32 = arith.constant 0 : i32
    %c0_i32_0 = arith.constant 0 : i32
    %c0_i32_1 = arith.constant 0 : i32
    return %c0_i32, %c0_i32_0 : i32, i32
  }
  func.func @transform_2(%arg0: i32) -> (i32, i32) {
    %c0_i32 = arith.constant 0 : i32
    %c0_i32_0 = arith.constant 0 : i32
    %c0_i32_1 = arith.constant 0 : i32
    return %c0_i32, %c0_i32_0 : i32, i32
  }
  func.func @transform_3(%arg0: i32) -> (i32, i32) {
    %c0_i32 = arith.constant 0 : i32
    %c0_i32_0 = arith.constant 0 : i32
    return %arg0, %c0_i32 : i32, i32
  }
  func.func @transform_4(%arg0: i32) -> (i32, i32) {
    %c0_i32 = arith.constant 0 : i32
    %c0_i32_0 = arith.constant 0 : i32
    %c0_i32_1 = arith.constant 0 : i32
    return %c0_i32, %c0_i32_0 : i32, i32
  }
  func.func @transform_5(%arg0: i32) -> (i32, i32) {
    %c0_i32 = arith.constant 0 : i32
    %c0_i32_0 = arith.constant 0 : i32
    %c0_i32_1 = arith.constant 0 : i32
    return %c0_i32, %c0_i32_0 : i32, i32
  }
  func.func @transform_6(%arg0: i32) -> (i32, i32) {
    %c0_i32 = arith.constant 0 : i32
    %c0_i32_0 = arith.constant 0 : i32
    return %arg0, %c0_i32 : i32, i32
  }
}

module attributes {stable_mosaic.version = 11 : i64} {
  func.func @kernel(%arg0: i32, %arg1: memref<1x10x32xbf16, #tpu.memory_space<vmem>>, %arg2: memref<3x32x64xbf16, #tpu.memory_space<vmem>>, %arg3: memref<1x64xf32, #tpu.memory_space<vmem>>, %arg4: memref<1x8x64xbf16, #tpu.memory_space<vmem>>) attributes {dimension_semantics = [#tpu.dimension_semantics<parallel>], iteration_bounds = array<i64: 2>, scalar_prefetch = 0 : i64, scratch_operands = 0 : i64, tpu.core_type = #tpu.core_type<tc>, window_params = [{transform_indices = @transform_0, window_bounds = array<i64: 1, 10, 32>}, {pipeline_mode = #tpu.pipeline_mode<synchronous>, transform_indices = @transform_1, window_bounds = array<i64: 3, 32, 64>}, {pipeline_mode = #tpu.pipeline_mode<synchronous>, transform_indices = @transform_2, window_bounds = array<i64: 1, 64>}, {transform_indices = @transform_3, window_bounds = array<i64: 1, 8, 64>}]} {
    %c0 = arith.constant 0 : index
    %c0_0 = arith.constant 0 : index
    %c0_1 = arith.constant 0 : index
    %0 = vector.load %arg1[%c0, %c0_0, %c0_1] : memref<1x10x32xbf16, #tpu.memory_space<vmem>>, vector<1x8x32xbf16>
    %1 = vector.shape_cast %0 : vector<1x8x32xbf16> to vector<8x32xbf16>
    %c0_2 = arith.constant 0 : index
    %c0_3 = arith.constant 0 : index
    %c0_4 = arith.constant 0 : index
    %2 = vector.load %arg2[%c0_2, %c0_3, %c0_4] : memref<3x32x64xbf16, #tpu.memory_space<vmem>>, vector<1x32x64xbf16>
    %3 = vector.shape_cast %2 : vector<1x32x64xbf16> to vector<32x64xbf16>
    %cst = arith.constant dense<0.000000e+00> : vector<8x64xf32>
    %4 = tpu.matmul %1, %3, %cst {dimension_numbers = #tpu.dot_dimension_numbers<[1], [0], [0], [1], [0, 0, 1, 1], [], []>} : vector<8x32xbf16>, vector<32x64xbf16>, vector<8x64xf32> -> vector<8x64xf32>
    %c0_5 = arith.constant 0 : index
    %c1 = arith.constant 1 : index
    %c0_6 = arith.constant 0 : index
    %5 = vector.load %arg1[%c0_5, %c1, %c0_6] : memref<1x10x32xbf16, #tpu.memory_space<vmem>>, vector<1x8x32xbf16>
    %6 = vector.shape_cast %5 : vector<1x8x32xbf16> to vector<8x32xbf16>
    %c1_7 = arith.constant 1 : index
    %c0_8 = arith.constant 0 : index
    %c0_9 = arith.constant 0 : index
    %7 = vector.load %arg2[%c1_7, %c0_8, %c0_9] : memref<3x32x64xbf16, #tpu.memory_space<vmem>>, vector<1x32x64xbf16>
    %8 = vector.shape_cast %7 : vector<1x32x64xbf16> to vector<32x64xbf16>
    %cst_10 = arith.constant dense<0.000000e+00> : vector<8x64xf32>
    %9 = tpu.matmul %6, %8, %cst_10 {dimension_numbers = #tpu.dot_dimension_numbers<[1], [0], [0], [1], [0, 0, 1, 1], [], []>} : vector<8x32xbf16>, vector<32x64xbf16>, vector<8x64xf32> -> vector<8x64xf32>
    %10 = arith.addf %4, %9 : vector<8x64xf32>
    %c0_11 = arith.constant 0 : index
    %c2 = arith.constant 2 : index
    %c0_12 = arith.constant 0 : index
    %11 = vector.load %arg1[%c0_11, %c2, %c0_12] : memref<1x10x32xbf16, #tpu.memory_space<vmem>>, vector<1x8x32xbf16>
    %12 = vector.shape_cast %11 : vector<1x8x32xbf16> to vector<8x32xbf16>
    %c2_13 = arith.constant 2 : index
    %c0_14 = arith.constant 0 : index
    %c0_15 = arith.constant 0 : index
    %13 = vector.load %arg2[%c2_13, %c0_14, %c0_15] : memref<3x32x64xbf16, #tpu.memory_space<vmem>>, vector<1x32x64xbf16>
    %14 = vector.shape_cast %13 : vector<1x32x64xbf16> to vector<32x64xbf16>
    %cst_16 = arith.constant dense<0.000000e+00> : vector<8x64xf32>
    %15 = tpu.matmul %12, %14, %cst_16 {dimension_numbers = #tpu.dot_dimension_numbers<[1], [0], [0], [1], [0, 0, 1, 1], [], []>} : vector<8x32xbf16>, vector<32x64xbf16>, vector<8x64xf32> -> vector<8x64xf32>
    %16 = arith.addf %10, %15 : vector<8x64xf32>
    %c0_17 = arith.constant 0 : index
    %c0_18 = arith.constant 0 : index
    %17 = vector.load %arg3[%c0_17, %c0_18] : memref<1x64xf32, #tpu.memory_space<vmem>>, vector<1x64xf32>
    %18 = vector.broadcast %17 : vector<1x64xf32> to vector<8x64xf32>
    %19 = arith.addf %16, %18 : vector<8x64xf32>
    %cst_19 = arith.constant 0.000000e+00 : f32
    %20 = vector.broadcast %cst_19 : f32 to vector<8x64xf32>
    %21 = arith.maximumf %19, %20 : vector<8x64xf32>
    %22 = arith.truncf %21 : vector<8x64xf32> to vector<8x64xbf16>
    %c0_20 = arith.constant 0 : index
    %c0_21 = arith.constant 0 : index
    %c0_22 = arith.constant 0 : index
    %23 = vector.load %arg4[%c0_20, %c0_21, %c0_22] : memref<1x8x64xbf16, #tpu.memory_space<vmem>>, vector<1x8x64xbf16>
    %24 = vector.shape_cast %23 : vector<1x8x64xbf16> to vector<8x64xbf16>
    %25 = vector.shape_cast %22 : vector<8x64xbf16> to vector<1x8x64xbf16>
    tpu.vector_store %arg4[%c0_20, %c0_21, %c0_22], %25 {strides = array<i32>} : memref<1x8x64xbf16, #tpu.memory_space<vmem>>, vector<1x8x64xbf16>,
    return
  }
  func.func @transform_0(%arg0: i32) -> (i32, i32, i32) {
    %c0_i32 = arith.constant 0 : i32
    %c0_i32_0 = arith.constant 0 : i32
    %c0_i32_1 = arith.constant 0 : i32
    return %arg0, %c0_i32, %c0_i32_0 : i32, i32, i32
  }
  func.func @transform_1(%arg0: i32) -> (i32, i32, i32) {
    %c0_i32 = arith.constant 0 : i32
    %c0_i32_0 = arith.constant 0 : i32
    %c0_i32_1 = arith.constant 0 : i32
    %c0_i32_2 = arith.constant 0 : i32
    return %c0_i32, %c0_i32_0, %c0_i32_1 : i32, i32, i32
  }
  func.func @transform_2(%arg0: i32) -> (i32, i32) {
    %c0_i32 = arith.constant 0 : i32
    %c0_i32_0 = arith.constant 0 : i32
    %c0_i32_1 = arith.constant 0 : i32
    return %c0_i32, %c0_i32_0 : i32, i32
  }
  func.func @transform_3(%arg0: i32) -> (i32, i32, i32) {
    %c0_i32 = arith.constant 0 : i32
    %c0_i32_0 = arith.constant 0 : i32
    %c0_i32_1 = arith.constant 0 : i32
    return %arg0, %c0_i32, %c0_i32_0 : i32, i32, i32
  }
}

module attributes {stable_mosaic.version = 11 : i64} {
  func.func @kernel(%arg0: i32, %arg1: memref<16x32xbf16, #tpu.memory_space<vmem>>, %arg2: memref<1x32xf32, #tpu.memory_space<vmem>>, %arg3: memref<1x32xf32, #tpu.memory_space<vmem>>, %arg4: memref<16x32xbf16, #tpu.memory_space<vmem>>) attributes {dimension_semantics = [#tpu.dimension_semantics<parallel>], iteration_bounds = array<i64: 1>, scalar_prefetch = 0 : i64, scratch_operands = 0 : i64, tpu.core_type = #tpu.core_type<tc>, window_params = [{transform_indices = @transform_0, window_bounds = array<i64: 16, 32>}, {pipeline_mode = #tpu.pipeline_mode<synchronous>, transform_indices = @transform_1, window_bounds = array<i64: 1, 32>}, {pipeline_mode = #tpu.pipeline_mode<synchronous>, transform_indices = @transform_2, window_bounds = array<i64: 1, 32>}, {transform_indices = @transform_3, window_bounds = array<i64: 16, 32>}]} {
    %c0 = arith.constant 0 : index
    %c0_0 = arith.constant 0 : index
    %0 = vector.load %arg1[%c0, %c0_0] : memref<16x32xbf16, #tpu.memory_space<vmem>>, vector<16x32xbf16>
    %1 = arith.extf %0 : vector<16x32xbf16> to vector<16x32xf32>
    %cst = arith.constant dense<0.000000e+00> : vector<16xf32>
    %2 = vector.multi_reduction <add>, %1, %cst [1] : vector<16x32xf32> to vector<16xf32>
    %3 = vector.shape_cast %2 : vector<16xf32> to vector<16x1xf32>
    %cst_1 = arith.constant 3.200000e+01 : f32
    %4 = vector.broadcast %cst_1 : f32 to vector<16x1xf32>
    %5 = arith.divf %3, %4 : vector<16x1xf32>
    %6 = vector.broadcast %5 : vector<16x1xf32> to vector<16x32xf32>
    %7 = arith.subf %1, %6 : vector<16x32xf32>
    %8 = arith.mulf %7, %7 : vector<16x32xf32>
    %cst_2 = arith.constant dense<0.000000e+00> : vector<16xf32>
    %9 = vector.multi_reduction <add>, %8, %cst_2 [1] : vector<16x32xf32> to vector<16xf32>
    %10 = vector.shape_cast %9 : vector<16xf32> to vector<16x1xf32>
    %cst_3 = arith.constant 3.200000e+01 : f32
    %11 = vector.broadcast %cst_3 : f32 to vector<16x1xf32>
    %12 = arith.divf %10, %11 : vector<16x1xf32>
    %cst_4 = arith.constant 9.99999974E-6 : f32
    %13 = vector.broadcast %cst_4 : f32 to vector<16x1xf32>
    %14 = arith.addf %12, %13 : vector<16x1xf32>
    %15 = math.rsqrt %14 : vector<16x1xf32>
    %16 = vector.broadcast %15 : vector<16x1xf32> to vector<16x32xf32>
    %17 = arith.mulf %7, %16 : vector<16x32xf32>
    %c0_5 = arith.constant 0 : index
    %c0_6 = arith.constant 0 : index
    %18 = vector.load %arg2[%c0_5, %c0_6] : memref<1x32xf32, #tpu.memory_space<vmem>>, vector<1x32xf32>
    %19 = vector.broadcast %18 : vector<1x32xf32> to vector<16x32xf32>
    %20 = arith.mulf %17, %19 : vector<16x32xf32>
    %c0_7 = arith.constant 0 : index
    %c0_8 = arith.constant 0 : index
    %21 = vector.load %arg3[%c0_7, %c0_8] : memref<1x32xf32, #tpu.memory_space<vmem>>, vector<1x32xf32>
    %22 = vector.broadcast %21 : vector<1x32xf32> to vector<16x32xf32>
    %23 = arith.addf %20, %22 : vector<16x32xf32>
    %24 = arith.truncf %23 : vector<16x32xf32> to vector<16x32xbf16>
    %c0_9 = arith.constant 0 : index
    %c0_10 = arith.constant 0 : index
    %25 = vector.load %arg4[%c0_9, %c0_10] : memref<16x32xbf16, #tpu.memory_space<vmem>>, vector<16x32xbf16>
    tpu.vector_store %arg4[%c0_9, %c0_10], %24 {strides = array<i32>} : memref<16x32xbf16, #tpu.memory_space<vmem>>, vector<16x32xbf16>,
    return
  }
  func.func @transform_0(%arg0: i32) -> (i32, i32) {
    %c0_i32 = arith.constant 0 : i32
    %c0_i32_0 = arith.constant 0 : i32
    return %arg0, %c0_i32 : i32, i32
  }
  func.func @transform_1(%arg0: i32) -> (i32, i32) {
    %c0_i32 = arith.constant 0 : i32
    %c0_i32_0 = arith.constant 0 : i32
    %c0_i32_1 = arith.constant 0 : i32
    return %c0_i32, %c0_i32_0 : i32, i32
  }
  func.func @transform_2(%arg0: i32) -> (i32, i32) {
    %c0_i32 = arith.constant 0 : i32
    %c0_i32_0 = arith.constant 0 : i32
    %c0_i32_1 = arith.constant 0 : i32
    return %c0_i32, %c0_i32_0 : i32, i32
  }
  func.func @transform_3(%arg0: i32) -> (i32, i32) {
    %c0_i32 = arith.constant 0 : i32
    %c0_i32_0 = arith.constant 0 : i32
    return %arg0, %c0_i32 : i32, i32
  }
}

module attributes {stable_mosaic.version = 11 : i64} {
  func.func @kernel(%arg0: i32, %arg1: memref<1x8x64xbf16, #tpu.memory_space<vmem>>, %arg2: memref<1x64x32xbf16, #tpu.memory_space<vmem>>, %arg3: memref<1x32xf32, #tpu.memory_space<vmem>>, %arg4: memref<1x8x32xbf16, #tpu.memory_space<vmem>>, %arg5: memref<1x32xf32, #tpu.memory_space<vmem>>, %arg6: memref<1x32xf32, #tpu.memory_space<vmem>>, %arg7: memref<1x8x32xbf16, #tpu.memory_space<vmem>>) attributes {dimension_semantics = [#tpu.dimension_semantics<parallel>], iteration_bounds = array<i64: 2>, scalar_prefetch = 0 : i64, scratch_operands = 0 : i64, tpu.core_type = #tpu.core_type<tc>, window_params = [{transform_indices = @transform_0, window_bounds = array<i64: 1, 8, 64>}, {pipeline_mode = #tpu.pipeline_mode<synchronous>, transform_indices = @transform_1, window_bounds = array<i64: 1, 64, 32>}, {pipeline_mode = #tpu.pipeline_mode<synchronous>, transform_indices = @transform_2, window_bounds = array<i64: 1, 32>}, {transform_indices = @transform_3, window_bounds = array<i64: 1, 8, 32>}, {pipeline_mode = #tpu.pipeline_mode<synchronous>, transform_indices = @transform_4, window_bounds = array<i64: 1, 32>}, {pipeline_mode = #tpu.pipeline_mode<synchronous>, transform_indices = @transform_5, window_bounds = array<i64: 1, 32>}, {transform_indices = @transform_6, window_bounds = array<i64: 1, 8, 32>}]} {
    %c0 = arith.constant 0 : index
    %c0_0 = arith.constant 0 : index
    %c0_1 = arith.constant 0 : index
    %0 = vector.load %arg1[%c0, %c0_0, %c0_1] : memref<1x8x64xbf16, #tpu.memory_space<vmem>>, vector<1x8x64xbf16>
    %1 = vector.shape_cast %0 : vector<1x8x64xbf16> to vector<8x64xbf16>
    %c0_2 = arith.constant 0 : index
    %c0_3 = arith.constant 0 : index
    %c0_4 = arith.constant 0 : index
    %2 = vector.load %arg2[%c0_2, %c0_3, %c0_4] : memref<1x64x32xbf16, #tpu.memory_space<vmem>>, vector<1x64x32xbf16>
    %3 = vector.shape_cast %2 : vector<1x64x32xbf16> to vector<64x32xbf16>
    %cst = arith.constant dense<0.000000e+00> : vector<8x32xf32>
    %4 = tpu.matmul %1, %3, %cst {dimension_numbers = #tpu.dot_dimension_numbers<[1], [0], [0], [1], [0, 0, 1, 1], [], []>} : vector<8x64xbf16>, vector<64x32xbf16>, vector<8x32xf32> -> vector<8x32xf32>
    %c0_5 = arith.constant 0 : index
    %c0_6 = arith.constant 0 : index
    %5 = vector.load %arg3[%c0_5, %c0_6] : memref<1x32xf32, #tpu.memory_space<vmem>>, vector<1x32xf32>
    %6 = vector.broadcast %5 : vector<1x32xf32> to vector<8x32xf32>
    %7 = arith.addf %4, %6 : vector<8x32xf32>
    %c0_7 = arith.constant 0 : index
    %c0_8 = arith.constant 0 : index
    %c0_9 = arith.constant 0 : index
    %8 = vector.load %arg4[%c0_7, %c0_8, %c0_9] : memref<1x8x32xbf16, #tpu.memory_space<vmem>>, vector<1x8x32xbf16>
    %9 = vector.shape_cast %8 : vector<1x8x32xbf16> to vector<8x32xbf16>
    %10 = arith.extf %9 : vector<8x32xbf16> to vector<8x32xf32>
    %11 = arith.addf %7, %10 : vector<8x32xf32>
    %cst_10 = arith.constant dense<0.000000e+00> : vector<8xf32>
    %12 = vector.multi_reduction <add>, %11, %cst_10 [1] : vector<8x32xf32> to vector<8xf32>
    %13 = vector.shape_cast %12 : vector<8xf32> to vector<8x1xf32>
    %cst_11 = arith.constant 3.200000e+01 : f32
    %14 = vector.broadcast %cst_11 : f32 to vector<8x1xf32>
    %15 = arith.divf %13, %14 : vector<8x1xf32>
    %16 = vector.broadcast %15 : vector<8x1xf32> to vector<8x32xf32>
    %17 = arith.subf %11, %16 : vector<8x32xf32>
    %18 = arith.mulf %17, %17 : vector<8x32xf32>
    %cst_12 = arith.constant dense<0.000000e+00> : vector<8xf32>
    %19 = vector.multi_reduction <add>, %18, %cst_12 [1] : vector<8x32xf32> to vector<8xf32>
    %20 = vector.shape_cast %19 : vector<8xf32> to vector<8x1xf32>
    %cst_13 = arith.constant 3.200000e+01 : f32
    %21 = vector.broadcast %cst_13 : f32 to vector<8x1xf32>
    %22 = arith.divf %20, %21 : vector<8x1xf32>
    %cst_14 = arith.constant 9.99999974E-6 : f32
    %23 = vector.broadcast %cst_14 : f32 to vector<8x1xf32>
    %24 = arith.addf %22, %23 : vector<8x1xf32>
    %25 = math.rsqrt %24 : vector<8x1xf32>
    %26 = vector.broadcast %25 : vector<8x1xf32> to vector<8x32xf32>
    %27 = arith.mulf %17, %26 : vector<8x32xf32>
    %c0_15 = arith.constant 0 : index
    %c0_16 = arith.constant 0 : index
    %28 = vector.load %arg5[%c0_15, %c0_16] : memref<1x32xf32, #tpu.memory_space<vmem>>, vector<1x32xf32>
    %29 = vector.broadcast %28 : vector<1x32xf32> to vector<8x32xf32>
    %30 = arith.mulf %27, %29 : vector<8x32xf32>
    %c0_17 = arith.constant 0 : index
    %c0_18 = arith.constant 0 : index
    %31 = vector.load %arg6[%c0_17, %c0_18] : memref<1x32xf32, #tpu.memory_space<vmem>>, vector<1x32xf32>
    %32 = vector.broadcast %31 : vector<1x32xf32> to vector<8x32xf32>
    %33 = arith.addf %30, %32 : vector<8x32xf32>
    %34 = arith.truncf %33 : vector<8x32xf32> to vector<8x32xbf16>
    %c0_19 = arith.constant 0 : index
    %c0_20 = arith.constant 0 : index
    %c0_21 = arith.constant 0 : index
    %35 = vector.load %arg7[%c0_19, %c0_20, %c0_21] : memref<1x8x32xbf16, #tpu.memory_space<vmem>>, vector<1x8x32xbf16>
    %36 = vector.shape_cast %35 : vector<1x8x32xbf16> to vector<8x32xbf16>
    %37 = vector.shape_cast %34 : vector<8x32xbf16> to vector<1x8x32xbf16>
    tpu.vector_store %arg7[%c0_19, %c0_20, %c0_21], %37 {strides = array<i32>} : memref<1x8x32xbf16, #tpu.memory_space<vmem>>, vector<1x8x32xbf16>,
    return
  }
  func.func @transform_0(%arg0: i32) -> (i32, i32, i32) {
    %c0_i32 = arith.constant 0 : i32
    %c0_i32_0 = arith.constant 0 : i32
    %c0_i32_1 = arith.constant 0 : i32
    return %arg0, %c0_i32, %c0_i32_0 : i32, i32, i32
  }
  func.func @transform_1(%arg0: i32) -> (i32, i32, i32) {
    %c0_i32 = arith.constant 0 : i32
    %c0_i32_0 = arith.constant 0 : i32
    %c0_i32_1 = arith.constant 0 : i32
    %c0_i32_2 = arith.constant 0 : i32
    return %c0_i32, %c0_i32_0, %c0_i32_1 : i32, i32, i32
  }
  func.func @transform_2(%arg0: i32) -> (i32, i32) {
    %c0_i32 = arith.constant 0 : i32
    %c0_i32_0 = arith.constant 0 : i32
    %c0_i32_1 = arith.constant 0 : i32
    return %c0_i32, %c0_i32_0 : i32, i32
  }
  func.func @transform_3(%arg0: i32) -> (i32, i32, i32) {
    %c0_i32 = arith.constant 0 : i32
    %c0_i32_0 = arith.constant 0 : i32
    %c0_i32_1 = arith.constant 0 : i32
    return %arg0, %c0_i32, %c0_i32_0 : i32, i32, i32
  }
  func.func @transform_4(%arg0: i32) -> (i32, i32) {
    %c0_i32 = arith.constant 0 : i32
    %c0_i32_0 = arith.constant 0 : i32
    %c0_i32_1 = arith.constant 0 : i32
    return %c0_i32, %c0_i32_0 : i32, i32
  }
  func.func @transform_5(%arg0: i32) -> (i32, i32) {
    %c0_i32 = arith.constant 0 : i32
    %c0_i32_0 = arith.constant 0 : i32
    %c0_i32_1 = arith.constant 0 : i32
    return %c0_i32, %c0_i32_0 : i32, i32
  }
  func.func @transform_6(%arg0: i32) -> (i32, i32, i32) {
    %c0_i32 = arith.constant 0 : i32
    %c0_i32_0 = arith.constant 0 : i32
    %c0_i32_1 = arith.constant 0 : i32
    return %arg0, %c0_i32, %c0_i32_0 : i32, i32, i32
  }
}

module attributes {stable_mosaic.version = 11 : i64} {
  func.func @kernel(%arg0: i32, %arg1: memref<64x32xbf16, #tpu.memory_space<vmem>>, %arg2: memref<32x32xbf16, #tpu.memory_space<vmem>>, %arg3: memref<32x32xbf16, #tpu.memory_space<vmem>>, %arg4: memref<32x32xbf16, #tpu.memory_space<vmem>>, %arg5: memref<1x32xf32, #tpu.memory_space<vmem>>, %arg6: memref<1x32xf32, #tpu.memory_space<vmem>>, %arg7: memref<1x32xf32, #tpu.memory_space<vmem>>, %arg8: memref<64x32xbf16, #tpu.memory_space<vmem>>, %arg9: memref<64x32xbf16, #tpu.memory_space<vmem>>, %arg10: memref<64x32xbf16, #tpu.memory_space<vmem>>) attributes {dimension_semantics = [#tpu.dimension_semantics<parallel>], iteration_bounds = array<i64: 1>, scalar_prefetch = 0 : i64, scratch_operands = 0 : i64, tpu.core_type = #tpu.core_type<tc>, window_params = [{transform_indices = @transform_0, window_bounds = array<i64: 64, 32>}, {pipeline_mode = #tpu.pipeline_mode<synchronous>, transform_indices = @transform_1, window_bounds = array<i64: 32, 32>}, {pipeline_mode = #tpu.pipeline_mode<synchronous>, transform_indices = @transform_2, window_bounds = array<i64: 32, 32>}, {pipeline_mode = #tpu.pipeline_mode<synchronous>, transform_indices = @transform_3, window_bounds = array<i64: 32, 32>}, {pipeline_mode = #tpu.pipeline_mode<synchronous>, transform_indices = @transform_4, window_bounds = array<i64: 1, 32>}, {pipeline_mode = #tpu.pipeline_mode<synchronous>, transform_indices = @transform_5, window_bounds = array<i64: 1, 32>}, {pipeline_mode = #tpu.pipeline_mode<synchronous>, transform_indices = @transform_6, window_bounds = array<i64: 1, 32>}, {transform_indices = @transform_7, window_bounds = array<i64: 64, 32>}, {transform_indices = @transform_8, window_bounds = array<i64: 64, 32>}, {transform_indices = @transform_9, window_bounds = array<i64: 64, 32>}]} {
    %c0 = arith.constant 0 : index
    %c0_0 = arith.constant 0 : index
    %0 = vector.load %arg1[%c0, %c0_0] : memref<64x32xbf16, #tpu.memory_space<vmem>>, vector<64x32xbf16>
    %c0_1 = arith.constant 0 : index
    %c0_2 = arith.constant 0 : index
    %1 = vector.load %arg2[%c0_1, %c0_2] : memref<32x32xbf16, #tpu.memory_space<vmem>>, vector<32x32xbf16>
    %cst = arith.constant dense<0.000000e+00> : vector<64x32xf32>
    %2 = tpu.matmul %0, %1, %cst {dimension_numbers = #tpu.dot_dimension_numbers<[1], [0], [0], [1], [0, 0, 1, 1], [], []>} : vector<64x32xbf16>, vector<32x32xbf16>, vector<64x32xf32> -> vector<64x32xf32>
    %c0_3 = arith.constant 0 : index
    %c0_4 = arith.constant 0 : index
    %3 = vector.load %arg5[%c0_3, %c0_4] : memref<1x32xf32, #tpu.memory_space<vmem>>, vector<1x32xf32>
    %4 = vector.broadcast %3 : vector<1x32xf32> to vector<64x32xf32>
    %5 = arith.addf %2, %4 : vector<64x32xf32>
    %6 = arith.truncf %5 : vector<64x32xf32> to vector<64x32xbf16>
    %c0_5 = arith.constant 0 : index
    %c0_6 = arith.constant 0 : index
    %7 = vector.load %arg8[%c0_5, %c0_6] : memref<64x32xbf16, #tpu.memory_space<vmem>>, vector<64x32xbf16>
    tpu.vector_store %arg8[%c0_5, %c0_6], %6 {strides = array<i32>} : memref<64x32xbf16, #tpu.memory_space<vmem>>, vector<64x32xbf16>,
    %c0_7 = arith.constant 0 : index
    %c0_8 = arith.constant 0 : index
    %8 = vector.load %arg3[%c0_7, %c0_8] : memref<32x32xbf16, #tpu.memory_space<vmem>>, vector<32x32xbf16>
    %cst_9 = arith.constant dense<0.000000e+00> : vector<64x32xf32>
    %9 = tpu.matmul %0, %8, %cst_9 {dimension_numbers = #tpu.dot_dimension_numbers<[1], [0], [0], [1], [0, 0, 1, 1], [], []>} : vector<64x32xbf16>, vector<32x32xbf16>, vector<64x32xf32> -> vector<64x32xf32>
    %c0_10 = arith.constant 0 : index
    %c0_11 = arith.constant 0 : index
    %10 = vector.load %arg6[%c0_10, %c0_11] : memref<1x32xf32, #tpu.memory_space<vmem>>, vector<1x32xf32>
    %11 = vector.broadcast %10 : vector<1x32xf32> to vector<64x32xf32>
    %12 = arith.addf %9, %11 : vector<64x32xf32>
    %13 = arith.truncf %12 : vector<64x32xf32> to vector<64x32xbf16>
    %c0_12 = arith.constant 0 : index
    %c0_13 = arith.constant 0 : index
    %14 = vector.load %arg9[%c0_12, %c0_13] : memref<64x32xbf16, #tpu.memory_space<vmem>>, vector<64x32xbf16>
    tpu.vector_store %arg9[%c0_12, %c0_13], %13 {strides = array<i32>} : memref<64x32xbf16, #tpu.memory_space<vmem>>, vector<64x32xbf16>,
    %c0_14 = arith.constant 0 : index
    %c0_15 = arith.constant 0 : index
    %15 = vector.load %arg4[%c0_14, %c0_15] : memref<32x32xbf16, #tpu.memory_space<vmem>>, vector<32x32xbf16>
    %cst_16 = arith.constant dense<0.000000e+00> : vector<64x32xf32>
    %16 = tpu.matmul %0, %15, %cst_16 {dimension_numbers = #tpu.dot_dimension_numbers<[1], [0], [0], [1], [0, 0, 1, 1], [], []>} : vector<64x32xbf16>, vector<32x32xbf16>, vector<64x32xf32> -> vector<64x32xf32>
    %c0_17 = arith.constant 0 : index
    %c0_18 = arith.constant 0 : index
    %17 = vector.load %arg7[%c0_17, %c0_18] : memref<1x32xf32, #tpu.memory_space<vmem>>, vector<1x32xf32>
    %18 = vector.broadcast %17 : vector<1x32xf32> to vector<64x32xf32>
    %19 = arith.addf %16, %18 : vector<64x32xf32>
    %20 = arith.truncf %19 : vector<64x32xf32> to vector<64x32xbf16>
    %c0_19 = arith.constant 0 : index
    %c0_20 = arith.constant 0 : index
    %21 = vector.load %arg10[%c0_19, %c0_20] : memref<64x32xbf16, #tpu.memory_space<vmem>>, vector<64x32xbf16>
    tpu.vector_store %arg10[%c0_19, %c0_20], %20 {strides = array<i32>} : memref<64x32xbf16, #tpu.memory_space<vmem>>, vector<64x32xbf16>,
    return
  }
  func.func @transform_0(%arg0: i32) -> (i32, i32) {
    %c0_i32 = arith.constant 0 : i32
    %c0_i32_0 = arith.constant 0 : i32
    return %arg0, %c0_i32 : i32, i32
  }
  func.func @transform_1(%arg0: i32) -> (i32, i32) {
    %c0_i32 = arith.constant 0 : i32
    %c0_i32_0 = arith.constant 0 : i32
    %c0_i32_1 = arith.constant 0 : i32
    return %c0_i32, %c0_i32_0 : i32, i32
  }
  func.func @transform_2(%arg0: i32) -> (i32, i32) {
    %c0_i32 = arith.constant 0 : i32
    %c0_i32_0 = arith.constant 0 : i32
    %c0_i32_1 = arith.constant 0 : i32
    return %c0_i32, %c0_i32_0 : i32, i32
  }
  func.func @transform_3(%arg0: i32) -> (i32, i32) {
    %c0_i32 = arith.constant 0 : i32
    %c0_i32_0 = arith.constant 0 : i32
    %c0_i32_1 = arith.constant 0 : i32
    return %c0_i32, %c0_i32_0 : i32, i32
  }
  func.func @transform_4(%arg0: i32) -> (i32, i32) {
    %c0_i32 = arith.constant 0 : i32
    %c0_i32_0 = arith.constant 0 : i32
    %c0_i32_1 = arith.constant 0 : i32
    return %c0_i32, %c0_i32_0 : i32, i32
  }
  func.func @transform_5(%arg0: i32) -> (i32, i32) {
    %c0_i32 = arith.constant 0 : i32
    %c0_i32_0 = arith.constant 0 : i32
    %c0_i32_1 = arith.constant 0 : i32
    return %c0_i32, %c0_i32_0 : i32, i32
  }
  func.func @transform_6(%arg0: i32) -> (i32, i32) {
    %c0_i32 = arith.constant 0 : i32
    %c0_i32_0 = arith.constant 0 : i32
    %c0_i32_1 = arith.constant 0 : i32
    return %c0_i32, %c0_i32_0 : i32, i32
  }
  func.func @transform_7(%arg0: i32) -> (i32, i32) {
    %c0_i32 = arith.constant 0 : i32
    %c0_i32_0 = arith.constant 0 : i32
    return %arg0, %c0_i32 : i32, i32
  }
  func.func @transform_8(%arg0: i32) -> (i32, i32) {
    %c0_i32 = arith.constant 0 : i32
    %c0_i32_0 = arith.constant 0 : i32
    return %arg0, %c0_i32 : i32, i32
  }
  func.func @transform_9(%arg0: i32) -> (i32, i32) {
    %c0_i32 = arith.constant 0 : i32
    %c0_i32_0 = arith.constant 0 : i32
    return %arg0, %c0_i32 : i32, i32
  }
}

module attributes {stable_mosaic.version = 11 : i64} {
  func.func @kernel(%arg0: i32, %arg1: memref<1x32x32xbf16, #tpu.memory_space<vmem>>, %arg2: memref<1x32x32xbf16, #tpu.memory_space<vmem>>, %arg3: memref<1x32x32xbf16, #tpu.memory_space<vmem>>, %arg4: memref<1x1x32xf32, #tpu.memory_space<vmem>>, %arg5: memref<1x32x32xbf16, #tpu.memory_space<vmem>>) attributes {dimension_semantics = [#tpu.dimension_semantics<parallel>], iteration_bounds = array<i64: 2>, scalar_prefetch = 0 : i64, scratch_operands = 0 : i64, tpu.core_type = #tpu.core_type<tc>, window_params = [{transform_indices = @transform_0, window_bounds = array<i64: 1, 32, 32>}, {transform_indices = @transform_1, window_bounds = array<i64: 1, 32, 32>}, {transform_indices = @transform_2, window_bounds = array<i64: 1, 32, 32>}, {transform_indices = @transform_3, window_bounds = array<i64: 1, 1, 32>}, {transform_indices = @transform_4, window_bounds = array<i64: 1, 32, 32>}]} {
    %c0 = arith.constant 0 : index
    %c0_0 = arith.constant 0 : index
    %c0_1 = arith.constant 0 : index
    %0 = vector.load %arg4[%c0, %c0_0, %c0_1] : memref<1x1x32xf32, #tpu.memory_space<vmem>>, vector<1x1x32xf32>
    %1 = vector.shape_cast %0 : vector<1x1x32xf32> to vector<1x32xf32>
    %c0_2 = arith.constant 0 : index
    %c0_3 = arith.constant 0 : index
    %c0_4 = arith.constant 0 : index
    %2 = vector.load %arg1[%c0_2, %c0_3, %c0_4] : memref<1x32x32xbf16, #tpu.memory_space<vmem>>, vector<1x32x16xbf16>
    %3 = vector.shape_cast %2 : vector<1x32x16xbf16> to vector<32x16xbf16>
    %c0_5 = arith.constant 0 : index
    %c0_6 = arith.constant 0 : index
    %c0_7 = arith.constant 0 : index
    %4 = vector.load %arg2[%c0_5, %c0_6, %c0_7] : memref<1x32x32xbf16, #tpu.memory_space<vmem>>, vector<1x32x16xbf16>
    %5 = vector.shape_cast %4 : vector<1x32x16xbf16> to vector<32x16xbf16>
    %c0_8 = arith.constant 0 : index
    %c0_9 = arith.constant 0 : index
    %c0_10 = arith.constant 0 : index
    %6 = vector.load %arg3[%c0_8, %c0_9, %c0_10] : memref<1x32x32xbf16, #tpu.memory_space<vmem>>, vector<1x32x16xbf16>
    %7 = vector.shape_cast %6 : vector<1x32x16xbf16> to vector<32x16xbf16>
    %cst = arith.constant dense<0.000000e+00> : vector<32x32xf32>
    %8 = tpu.matmul %3, %5, %cst {dimension_numbers = #tpu.dot_dimension_numbers<[1], [1], [0], [0], [0, 0, 1, 0], [], []>} : vector<32x16xbf16>, vector<32x16xbf16>, vector<32x32xf32> -> vector<32x32xf32>
    %cst_11 = arith.constant 2.500000e-01 : f32
    %9 = vector.broadcast %cst_11 : f32 to vector<32x32xf32>
    %10 = arith.mulf %8, %9 : vector<32x32xf32>
    %11 = vector.broadcast %1 : vector<1x32xf32> to vector<32x32xf32>
    %12 = arith.addf %10, %11 : vector<32x32xf32>
    %cst_12 = arith.constant dense<0xFF800000> : vector<32xf32>
    %13 = vector.multi_reduction <maximumf>, %12, %cst_12 [1] : vector<32x32xf32> to vector<32xf32>
    %14 = vector.shape_cast %13 : vector<32xf32> to vector<32x1xf32>
    %15 = vector.broadcast %14 : vector<32x1xf32> to vector<32x32xf32>
    %16 = arith.subf %12, %15 : vector<32x32xf32>
    %17 = math.exp %16 : vector<32x32xf32>
    %cst_13 = arith.constant dense<0.000000e+00> : vector<32xf32>
    %18 = vector.multi_reduction <add>, %17, %cst_13 [1] : vector<32x32xf32> to vector<32xf32>
    %19 = vector.shape_cast %18 : vector<32xf32> to vector<32x1xf32>
    %20 = tpu.reciprocal %19 {approx = true} : vector<32x1xf32> -> vector<32x1xf32>
    %21 = vector.broadcast %20 : vector<32x1xf32> to vector<32x32xf32>
    %22 = arith.mulf %17, %21 : vector<32x32xf32>
    %23 = arith.truncf %22 : vector<32x32xf32> to vector<32x32xbf16>
    %cst_14 = arith.constant dense<0.000000e+00> : vector<32x16xf32>
    %24 = tpu.matmul %23, %7, %cst_14 {dimension_numbers = #tpu.dot_dimension_numbers<[1], [0], [0], [1], [0, 0, 1, 1], [], []>} : vector<32x32xbf16>, vector<32x16xbf16>, vector<32x16xf32> -> vector<32x16xf32>
    %c0_15 = arith.constant 0 : index
    %c0_16 = arith.constant 0 : index
    %c16 = arith.constant 16 : index
    %25 = vector.load %arg1[%c0_15, %c0_16, %c16] : memref<1x32x32xbf16, #tpu.memory_space<vmem>>, vector<1x32x16xbf16>
    %26 = vector.shape_cast %25 : vector<1x32x16xbf16> to vector<32x16xbf16>
    %c0_17 = arith.constant 0 : index
    %c0_18 = arith.constant 0 : index
    %c16_19 = arith.constant 16 : index
    %27 = vector.load %arg2[%c0_17, %c0_18, %c16_19] : memref<1x32x32xbf16, #tpu.memory_space<vmem>>, vector<1x32x16xbf16>
    %28 = vector.shape_cast %27 : vector<1x32x16xbf16> to vector<32x16xbf16>
    %c0_20 = arith.constant 0 : index
    %c0_21 = arith.constant 0 : index
    %c16_22 = arith.constant 16 : index
    %29 = vector.load %arg3[%c0_20, %c0_21, %c16_22] : memref<1x32x32xbf16, #tpu.memory_space<vmem>>, vector<1x32x16xbf16>
    %30 = vector.shape_cast %29 : vector<1x32x16xbf16> to vector<32x16xbf16>
    %cst_23 = arith.constant dense<0.000000e+00> : vector<32x32xf32>
    %31 = tpu.matmul %26, %28, %cst_23 {dimension_numbers = #tpu.dot_dimension_numbers<[1], [1], [0], [0], [0, 0, 1, 0], [], []>} : vector<32x16xbf16>, vector<32x16xbf16>, vector<32x32xf32> -> vector<32x32xf32>
    %cst_24 = arith.constant 2.500000e-01 : f32
    %32 = vector.broadcast %cst_24 : f32 to vector<32x32xf32>
    %33 = arith.mulf %31, %32 : vector<32x32xf32>
    %34 = vector.broadcast %1 : vector<1x32xf32> to vector<32x32xf32>
    %35 = arith.addf %33, %34 : vector<32x32xf32>
    %cst_25 = arith.constant dense<0xFF800000> : vector<32xf32>
    %36 = vector.multi_reduction <maximumf>, %35, %cst_25 [1] : vector<32x32xf32> to vector<32xf32>
    %37 = vector.shape_cast %36 : vector<32xf32> to vector<32x1xf32>
    %38 = vector.broadcast %37 : vector<32x1xf32> to vector<32x32xf32>
    %39 = arith.subf %35, %38 : vector<32x32xf32>
    %40 = math.exp %39 : vector<32x32xf32>
    %cst_26 = arith.constant dense<0.000000e+00> : vector<32xf32>
    %41 = vector.multi_reduction <add>, %40, %cst_26 [1] : vector<32x32xf32> to vector<32xf32>
    %42 = vector.shape_cast %41 : vector<32xf32> to vector<32x1xf32>
    %43 = tpu.reciprocal %42 {approx = true} : vector<32x1xf32> -> vector<32x1xf32>
    %44 = vector.broadcast %43 : vector<32x1xf32> to vector<32x32xf32>
    %45 = arith.mulf %40, %44 : vector<32x32xf32>
    %46 = arith.truncf %45 : vector<32x32xf32> to vector<32x32xbf16>
    %cst_27 = arith.constant dense<0.000000e+00> : vector<32x16xf32>
    %47 = tpu.matmul %46, %30, %cst_27 {dimension_numbers = #tpu.dot_dimension_numbers<[1], [0], [0], [1], [0, 0, 1, 1], [], []>} : vector<32x32xbf16>, vector<32x16xbf16>, vector<32x16xf32> -> vector<32x16xf32>
    %48 = tpu.concatenate %24, %47 in 1 : vector<32x16xf32>, vector<32x16xf32> -> vector<32x32xf32>
    %49 = arith.truncf %48 : vector<32x32xf32> to vector<32x32xbf16>
    %c0_28 = arith.constant 0 : index
    %c0_29 = arith.constant 0 : index
    %c0_30 = arith.constant 0 : index
    %50 = vector.load %arg5[%c0_28, %c0_29, %c0_30] : memref<1x32x32xbf16, #tpu.memory_space<vmem>>, vector<1x32x32xbf16>
    %51 = vector.shape_cast %50 : vector<1x32x32xbf16> to vector<32x32xbf16>
    %52 = vector.shape_cast %49 : vector<32x32xbf16> to vector<1x32x32xbf16>
    tpu.vector_store %arg5[%c0_28, %c0_29, %c0_30], %52 {strides = array<i32>} : memref<1x32x32xbf16, #tpu.memory_space<vmem>>, vector<1x32x32xbf16>,
    return
  }
  func.func @transform_0(%arg0: i32) -> (i32, i32, i32) {
    %c0_i32 = arith.constant 0 : i32
    %c0_i32_0 = arith.constant 0 : i32
    %c0_i32_1 = arith.constant 0 : i32
    return %arg0, %c0_i32, %c0_i32_0 : i32, i32, i32
  }
  func.func @transform_1(%arg0: i32) -> (i32, i32, i32) {
    %c0_i32 = arith.constant 0 : i32
    %c0_i32_0 = arith.constant 0 : i32
    %c0_i32_1 = arith.constant 0 : i32
    return %arg0, %c0_i32, %c0_i32_0 : i32, i32, i32
  }
  func.func @transform_2(%arg0: i32) -> (i32, i32, i32) {
    %c0_i32 = arith.constant 0 : i32
    %c0_i32_0 = arith.constant 0 : i32
    %c0_i32_1 = arith.constant 0 : i32
    return %arg0, %c0_i32, %c0_i32_0 : i32, i32, i32
  }
  func.func @transform_3(%arg0: i32) -> (i32, i32, i32) {
    %c0_i32 = arith.constant 0 : i32
    %c0_i32_0 = arith.constant 0 : i32
    %c0_i32_1 = arith.constant 0 : i32
    return %arg0, %c0_i32, %c0_i32_0 : i32, i32, i32
  }
  func.func @transform_4(%arg0: i32) -> (i32, i32, i32) {
    %c0_i32 = arith.constant 0 : i32
    %c0_i32_0 = arith.constant 0 : i32
    %c0_i32_1 = arith.constant 0 : i32
    return %arg0, %c0_i32, %c0_i32_0 : i32, i32, i32
  }
}

module attributes {stable_mosaic.version = 11 : i64} {
  func.func @kernel(%arg0: i32, %arg1: memref<64x32xbf16, #tpu.memory_space<vmem>>, %arg2: memref<32x32xbf16, #tpu.memory_space<vmem>>, %arg3: memref<1x32xf32, #tpu.memory_space<vmem>>, %arg4: memref<64x32xbf16, #tpu.memory_space<vmem>>, %arg5: memref<1x32xf32, #tpu.memory_space<vmem>>, %arg6: memref<1x32xf32, #tpu.memory_space<vmem>>, %arg7: memref<64x32xbf16, #tpu.memory_space<vmem>>) attributes {dimension_semantics = [#tpu.dimension_semantics<parallel>], iteration_bounds = array<i64: 1>, scalar_prefetch = 0 : i64, scratch_operands = 0 : i64, tpu.core_type = #tpu.core_type<tc>, window_params = [{transform_indices = @transform_0, window_bounds = array<i64: 64, 32>}, {pipeline_mode = #tpu.pipeline_mode<synchronous>, transform_indices = @transform_1, window_bounds = array<i64: 32, 32>}, {pipeline_mode = #tpu.pipeline_mode<synchronous>, transform_indices = @transform_2, window_bounds = array<i64: 1, 32>}, {transform_indices = @transform_3, window_bounds = array<i64: 64, 32>}, {pipeline_mode = #tpu.pipeline_mode<synchronous>, transform_indices = @transform_4, window_bounds = array<i64: 1, 32>}, {pipeline_mode = #tpu.pipeline_mode<synchronous>, transform_indices = @transform_5, window_bounds = array<i64: 1, 32>}, {transform_indices = @transform_6, window_bounds = array<i64: 64, 32>}]} {
    %c0 = arith.constant 0 : index
    %c0_0 = arith.constant 0 : index
    %0 = vector.load %arg1[%c0, %c0_0] : memref<64x32xbf16, #tpu.memory_space<vmem>>, vector<64x32xbf16>
    %c0_1 = arith.constant 0 : index
    %c0_2 = arith.constant 0 : index
    %1 = vector.load %arg2[%c0_1, %c0_2] : memref<32x32xbf16, #tpu.memory_space<vmem>>, vector<32x32xbf16>
    %cst = arith.constant dense<0.000000e+00> : vector<64x32xf32>
    %2 = tpu.matmul %0, %1, %cst {dimension_numbers = #tpu.dot_dimension_numbers<[1], [0], [0], [1], [0, 0, 1, 1], [], []>} : vector<64x32xbf16>, vector<32x32xbf16>, vector<64x32xf32> -> vector<64x32xf32>
    %c0_3 = arith.constant 0 : index
    %c0_4 = arith.constant 0 : index
    %3 = vector.load %arg3[%c0_3, %c0_4] : memref<1x32xf32, #tpu.memory_space<vmem>>, vector<1x32xf32>
    %4 = vector.broadcast %3 : vector<1x32xf32> to vector<64x32xf32>
    %5 = arith.addf %2, %4 : vector<64x32xf32>
    %c0_5 = arith.constant 0 : index
    %c0_6 = arith.constant 0 : index
    %6 = vector.load %arg4[%c0_5, %c0_6] : memref<64x32xbf16, #tpu.memory_space<vmem>>, vector<64x32xbf16>
    %7 = arith.extf %6 : vector<64x32xbf16> to vector<64x32xf32>
    %8 = arith.addf %5, %7 : vector<64x32xf32>
    %cst_7 = arith.constant dense<0.000000e+00> : vector<64xf32>
    %9 = vector.multi_reduction <add>, %8, %cst_7 [1] : vector<64x32xf32> to vector<64xf32>
    %10 = vector.shape_cast %9 : vector<64xf32> to vector<64x1xf32>
    %cst_8 = arith.constant 3.200000e+01 : f32
    %11 = vector.broadcast %cst_8 : f32 to vector<64x1xf32>
    %12 = arith.divf %10, %11 : vector<64x1xf32>
    %13 = vector.broadcast %12 : vector<64x1xf32> to vector<64x32xf32>
    %14 = arith.subf %8, %13 : vector<64x32xf32>
    %15 = arith.mulf %14, %14 : vector<64x32xf32>
    %cst_9 = arith.constant dense<0.000000e+00> : vector<64xf32>
    %16 = vector.multi_reduction <add>, %15, %cst_9 [1] : vector<64x32xf32> to vector<64xf32>
    %17 = vector.shape_cast %16 : vector<64xf32> to vector<64x1xf32>
    %cst_10 = arith.constant 3.200000e+01 : f32
    %18 = vector.broadcast %cst_10 : f32 to vector<64x1xf32>
    %19 = arith.divf %17, %18 : vector<64x1xf32>
    %cst_11 = arith.constant 9.99999974E-6 : f32
    %20 = vector.broadcast %cst_11 : f32 to vector<64x1xf32>
    %21 = arith.addf %19, %20 : vector<64x1xf32>
    %22 = math.rsqrt %21 : vector<64x1xf32>
    %23 = vector.broadcast %22 : vector<64x1xf32> to vector<64x32xf32>
    %24 = arith.mulf %14, %23 : vector<64x32xf32>
    %c0_12 = arith.constant 0 : index
    %c0_13 = arith.constant 0 : index
    %25 = vector.load %arg5[%c0_12, %c0_13] : memref<1x32xf32, #tpu.memory_space<vmem>>, vector<1x32xf32>
    %26 = vector.broadcast %25 : vector<1x32xf32> to vector<64x32xf32>
    %27 = arith.mulf %24, %26 : vector<64x32xf32>
    %c0_14 = arith.constant 0 : index
    %c0_15 = arith.constant 0 : index
    %28 = vector.load %arg6[%c0_14, %c0_15] : memref<1x32xf32, #tpu.memory_space<vmem>>, vector<1x32xf32>
    %29 = vector.broadcast %28 : vector<1x32xf32> to vector<64x32xf32>
    %30 = arith.addf %27, %29 : vector<64x32xf32>
    %31 = arith.truncf %30 : vector<64x32xf32> to vector<64x32xbf16>
    %c0_16 = arith.constant 0 : index
    %c0_17 = arith.constant 0 : index
    %32 = vector.load %arg7[%c0_16, %c0_17] : memref<64x32xbf16, #tpu.memory_space<vmem>>, vector<64x32xbf16>
    tpu.vector_store %arg7[%c0_16, %c0_17], %31 {strides = array<i32>} : memref<64x32xbf16, #tpu.memory_space<vmem>>, vector<64x32xbf16>,
    return
  }
  func.func @transform_0(%arg0: i32) -> (i32, i32) {
    %c0_i32 = arith.constant 0 : i32
    %c0_i32_0 = arith.constant 0 : i32
    return %arg0, %c0_i32 : i32, i32
  }
  func.func @transform_1(%arg0: i32) -> (i32, i32) {
    %c0_i32 = arith.constant 0 : i32
    %c0_i32_0 = arith.constant 0 : i32
    %c0_i32_1 = arith.constant 0 : i32
    return %c0_i32, %c0_i32_0 : i32, i32
  }
  func.func @transform_2(%arg0: i32) -> (i32, i32) {
    %c0_i32 = arith.constant 0 : i32
    %c0_i32_0 = arith.constant 0 : i32
    %c0_i32_1 = arith.constant 0 : i32
    return %c0_i32, %c0_i32_0 : i32, i32
  }
  func.func @transform_3(%arg0: i32) -> (i32, i32) {
    %c0_i32 = arith.constant 0 : i32
    %c0_i32_0 = arith.constant 0 : i32
    return %arg0, %c0_i32 : i32, i32
  }
  func.func @transform_4(%arg0: i32) -> (i32, i32) {
    %c0_i32 = arith.constant 0 : i32
    %c0_i32_0 = arith.constant 0 : i32
    %c0_i32_1 = arith.constant 0 : i32
    return %c0_i32, %c0_i32_0 : i32, i32
  }
  func.func @transform_5(%arg0: i32) -> (i32, i32) {
    %c0_i32 = arith.constant 0 : i32
    %c0_i32_0 = arith.constant 0 : i32
    %c0_i32_1 = arith.constant 0 : i32
    return %c0_i32, %c0_i32_0 : i32, i32
  }
  func.func @transform_6(%arg0: i32) -> (i32, i32) {
    %c0_i32 = arith.constant 0 : i32
    %c0_i32_0 = arith.constant 0 : i32
    return %arg0, %c0_i32 : i32, i32
  }
}

module attributes {stable_mosaic.version = 11 : i64} {
  func.func @kernel(%arg0: i32, %arg1: memref<1x34x32xbf16, #tpu.memory_space<vmem>>, %arg2: memref<3x32x64xbf16, #tpu.memory_space<vmem>>, %arg3: memref<1x64xf32, #tpu.memory_space<vmem>>, %arg4: memref<1x32x64xbf16, #tpu.memory_space<vmem>>) attributes {dimension_semantics = [#tpu.dimension_semantics<parallel>], iteration_bounds = array<i64: 2>, scalar_prefetch = 0 : i64, scratch_operands = 0 : i64, tpu.core_type = #tpu.core_type<tc>, window_params = [{transform_indices = @transform_0, window_bounds = array<i64: 1, 34, 32>}, {pipeline_mode = #tpu.pipeline_mode<synchronous>, transform_indices = @transform_1, window_bounds = array<i64: 3, 32, 64>}, {pipeline_mode = #tpu.pipeline_mode<synchronous>, transform_indices = @transform_2, window_bounds = array<i64: 1, 64>}, {transform_indices = @transform_3, window_bounds = array<i64: 1, 32, 64>}]} {
    %c0 = arith.constant 0 : index
    %c0_0 = arith.constant 0 : index
    %c0_1 = arith.constant 0 : index
    %0 = vector.load %arg1[%c0, %c0_0, %c0_1] : memref<1x34x32xbf16, #tpu.memory_space<vmem>>, vector<1x32x32xbf16>
    %1 = vector.shape_cast %0 : vector<1x32x32xbf16> to vector<32x32xbf16>
    %c0_2 = arith.constant 0 : index
    %c0_3 = arith.constant 0 : index
    %c0_4 = arith.constant 0 : index
    %2 = vector.load %arg2[%c0_2, %c0_3, %c0_4] : memref<3x32x64xbf16, #tpu.memory_space<vmem>>, vector<1x32x64xbf16>
    %3 = vector.shape_cast %2 : vector<1x32x64xbf16> to vector<32x64xbf16>
    %cst = arith.constant dense<0.000000e+00> : vector<32x64xf32>
    %4 = tpu.matmul %1, %3, %cst {dimension_numbers = #tpu.dot_dimension_numbers<[1], [0], [0], [1], [0, 0, 1, 1], [], []>} : vector<32x32xbf16>, vector<32x64xbf16>, vector<32x64xf32> -> vector<32x64xf32>
    %c0_5 = arith.constant 0 : index
    %c1 = arith.constant 1 : index
    %c0_6 = arith.constant 0 : index
    %5 = vector.load %arg1[%c0_5, %c1, %c0_6] : memref<1x34x32xbf16, #tpu.memory_space<vmem>>, vector<1x32x32xbf16>
    %6 = vector.shape_cast %5 : vector<1x32x32xbf16> to vector<32x32xbf16>
    %c1_7 = arith.constant 1 : index
    %c0_8 = arith.constant 0 : index
    %c0_9 = arith.constant 0 : index
    %7 = vector.load %arg2[%c1_7, %c0_8, %c0_9] : memref<3x32x64xbf16, #tpu.memory_space<vmem>>, vector<1x32x64xbf16>
    %8 = vector.shape_cast %7 : vector<1x32x64xbf16> to vector<32x64xbf16>
    %cst_10 = arith.constant dense<0.000000e+00> : vector<32x64xf32>
    %9 = tpu.matmul %6, %8, %cst_10 {dimension_numbers = #tpu.dot_dimension_numbers<[1], [0], [0], [1], [0, 0, 1, 1], [], []>} : vector<32x32xbf16>, vector<32x64xbf16>, vector<32x64xf32> -> vector<32x64xf32>
    %10 = arith.addf %4, %9 : vector<32x64xf32>
    %c0_11 = arith.constant 0 : index
    %c2 = arith.constant 2 : index
    %c0_12 = arith.constant 0 : index
    %11 = vector.load %arg1[%c0_11, %c2, %c0_12] : memref<1x34x32xbf16, #tpu.memory_space<vmem>>, vector<1x32x32xbf16>
    %12 = vector.shape_cast %11 : vector<1x32x32xbf16> to vector<32x32xbf16>
    %c2_13 = arith.constant 2 : index
    %c0_14 = arith.constant 0 : index
    %c0_15 = arith.constant 0 : index
    %13 = vector.load %arg2[%c2_13, %c0_14, %c0_15] : memref<3x32x64xbf16, #tpu.memory_space<vmem>>, vector<1x32x64xbf16>
    %14 = vector.shape_cast %13 : vector<1x32x64xbf16> to vector<32x64xbf16>
    %cst_16 = arith.constant dense<0.000000e+00> : vector<32x64xf32>
    %15 = tpu.matmul %12, %14, %cst_16 {dimension_numbers = #tpu.dot_dimension_numbers<[1], [0], [0], [1], [0, 0, 1, 1], [], []>} : vector<32x32xbf16>, vector<32x64xbf16>, vector<32x64xf32> -> vector<32x64xf32>
    %16 = arith.addf %10, %15 : vector<32x64xf32>
    %c0_17 = arith.constant 0 : index
    %c0_18 = arith.constant 0 : index
    %17 = vector.load %arg3[%c0_17, %c0_18] : memref<1x64xf32, #tpu.memory_space<vmem>>, vector<1x64xf32>
    %18 = vector.broadcast %17 : vector<1x64xf32> to vector<32x64xf32>
    %19 = arith.addf %16, %18 : vector<32x64xf32>
    %cst_19 = arith.constant 0.000000e+00 : f32
    %20 = vector.broadcast %cst_19 : f32 to vector<32x64xf32>
    %21 = arith.maximumf %19, %20 : vector<32x64xf32>
    %22 = arith.truncf %21 : vector<32x64xf32> to vector<32x64xbf16>
    %c0_20 = arith.constant 0 : index
    %c0_21 = arith.constant 0 : index
    %c0_22 = arith.constant 0 : index
    %23 = vector.load %arg4[%c0_20, %c0_21, %c0_22] : memref<1x32x64xbf16, #tpu.memory_space<vmem>>, vector<1x32x64xbf16>
    %24 = vector.shape_cast %23 : vector<1x32x64xbf16> to vector<32x64xbf16>
    %25 = vector.shape_cast %22 : vector<32x64xbf16> to vector<1x32x64xbf16>
    tpu.vector_store %arg4[%c0_20, %c0_21, %c0_22], %25 {strides = array<i32>} : memref<1x32x64xbf16, #tpu.memory_space<vmem>>, vector<1x32x64xbf16>,
    return
  }
  func.func @transform_0(%arg0: i32) -> (i32, i32, i32) {
    %c0_i32 = arith.constant 0 : i32
    %c0_i32_0 = arith.constant 0 : i32
    %c0_i32_1 = arith.constant 0 : i32
    return %arg0, %c0_i32, %c0_i32_0 : i32, i32, i32
  }
  func.func @transform_1(%arg0: i32) -> (i32, i32, i32) {
    %c0_i32 = arith.constant 0 : i32
    %c0_i32_0 = arith.constant 0 : i32
    %c0_i32_1 = arith.constant 0 : i32
    %c0_i32_2 = arith.constant 0 : i32
    return %c0_i32, %c0_i32_0, %c0_i32_1 : i32, i32, i32
  }
  func.func @transform_2(%arg0: i32) -> (i32, i32) {
    %c0_i32 = arith.constant 0 : i32
    %c0_i32_0 = arith.constant 0 : i32
    %c0_i32_1 = arith.constant 0 : i32
    return %c0_i32, %c0_i32_0 : i32, i32
  }
  func.func @transform_3(%arg0: i32) -> (i32, i32, i32) {
    %c0_i32 = arith.constant 0 : i32
    %c0_i32_0 = arith.constant 0 : i32
    %c0_i32_1 = arith.constant 0 : i32
    return %arg0, %c0_i32, %c0_i32_0 : i32, i32, i32
  }
}

module attributes {stable_mosaic.version = 11 : i64} {
  func.func @kernel(%arg0: i32, %arg1: memref<1x32x64xbf16, #tpu.memory_space<vmem>>, %arg2: memref<1x64x32xbf16, #tpu.memory_space<vmem>>, %arg3: memref<1x32xf32, #tpu.memory_space<vmem>>, %arg4: memref<1x32x32xbf16, #tpu.memory_space<vmem>>, %arg5: memref<1x32xf32, #tpu.memory_space<vmem>>, %arg6: memref<1x32xf32, #tpu.memory_space<vmem>>, %arg7: memref<1x32x32xbf16, #tpu.memory_space<vmem>>) attributes {dimension_semantics = [#tpu.dimension_semantics<parallel>], iteration_bounds = array<i64: 2>, scalar_prefetch = 0 : i64, scratch_operands = 0 : i64, tpu.core_type = #tpu.core_type<tc>, window_params = [{transform_indices = @transform_0, window_bounds = array<i64: 1, 32, 64>}, {pipeline_mode = #tpu.pipeline_mode<synchronous>, transform_indices = @transform_1, window_bounds = array<i64: 1, 64, 32>}, {pipeline_mode = #tpu.pipeline_mode<synchronous>, transform_indices = @transform_2, window_bounds = array<i64: 1, 32>}, {transform_indices = @transform_3, window_bounds = array<i64: 1, 32, 32>}, {pipeline_mode = #tpu.pipeline_mode<synchronous>, transform_indices = @transform_4, window_bounds = array<i64: 1, 32>}, {pipeline_mode = #tpu.pipeline_mode<synchronous>, transform_indices = @transform_5, window_bounds = array<i64: 1, 32>}, {transform_indices = @transform_6, window_bounds = array<i64: 1, 32, 32>}]} {
    %c0 = arith.constant 0 : index
    %c0_0 = arith.constant 0 : index
    %c0_1 = arith.constant 0 : index
    %0 = vector.load %arg1[%c0, %c0_0, %c0_1] : memref<1x32x64xbf16, #tpu.memory_space<vmem>>, vector<1x32x64xbf16>
    %1 = vector.shape_cast %0 : vector<1x32x64xbf16> to vector<32x64xbf16>
    %c0_2 = arith.constant 0 : index
    %c0_3 = arith.constant 0 : index
    %c0_4 = arith.constant 0 : index
    %2 = vector.load %arg2[%c0_2, %c0_3, %c0_4] : memref<1x64x32xbf16, #tpu.memory_space<vmem>>, vector<1x64x32xbf16>
    %3 = vector.shape_cast %2 : vector<1x64x32xbf16> to vector<64x32xbf16>
    %cst = arith.constant dense<0.000000e+00> : vector<32x32xf32>
    %4 = tpu.matmul %1, %3, %cst {dimension_numbers = #tpu.dot_dimension_numbers<[1], [0], [0], [1], [0, 0, 1, 1], [], []>} : vector<32x64xbf16>, vector<64x32xbf16>, vector<32x32xf32> -> vector<32x32xf32>
    %c0_5 = arith.constant 0 : index
    %c0_6 = arith.constant 0 : index
    %5 = vector.load %arg3[%c0_5, %c0_6] : memref<1x32xf32, #tpu.memory_space<vmem>>, vector<1x32xf32>
    %6 = vector.broadcast %5 : vector<1x32xf32> to vector<32x32xf32>
    %7 = arith.addf %4, %6 : vector<32x32xf32>
    %c0_7 = arith.constant 0 : index
    %c0_8 = arith.constant 0 : index
    %c0_9 = arith.constant 0 : index
    %8 = vector.load %arg4[%c0_7, %c0_8, %c0_9] : memref<1x32x32xbf16, #tpu.memory_space<vmem>>, vector<1x32x32xbf16>
    %9 = vector.shape_cast %8 : vector<1x32x32xbf16> to vector<32x32xbf16>
    %10 = arith.extf %9 : vector<32x32xbf16> to vector<32x32xf32>
    %11 = arith.addf %7, %10 : vector<32x32xf32>
    %cst_10 = arith.constant dense<0.000000e+00> : vector<32xf32>
    %12 = vector.multi_reduction <add>, %11, %cst_10 [1] : vector<32x32xf32> to vector<32xf32>
    %13 = vector.shape_cast %12 : vector<32xf32> to vector<32x1xf32>
    %cst_11 = arith.constant 3.200000e+01 : f32
    %14 = vector.broadcast %cst_11 : f32 to vector<32x1xf32>
    %15 = arith.divf %13, %14 : vector<32x1xf32>
    %16 = vector.broadcast %15 : vector<32x1xf32> to vector<32x32xf32>
    %17 = arith.subf %11, %16 : vector<32x32xf32>
    %18 = arith.mulf %17, %17 : vector<32x32xf32>
    %cst_12 = arith.constant dense<0.000000e+00> : vector<32xf32>
    %19 = vector.multi_reduction <add>, %18, %cst_12 [1] : vector<32x32xf32> to vector<32xf32>
    %20 = vector.shape_cast %19 : vector<32xf32> to vector<32x1xf32>
    %cst_13 = arith.constant 3.200000e+01 : f32
    %21 = vector.broadcast %cst_13 : f32 to vector<32x1xf32>
    %22 = arith.divf %20, %21 : vector<32x1xf32>
    %cst_14 = arith.constant 9.99999974E-6 : f32
    %23 = vector.broadcast %cst_14 : f32 to vector<32x1xf32>
    %24 = arith.addf %22, %23 : vector<32x1xf32>
    %25 = math.rsqrt %24 : vector<32x1xf32>
    %26 = vector.broadcast %25 : vector<32x1xf32> to vector<32x32xf32>
    %27 = arith.mulf %17, %26 : vector<32x32xf32>
    %c0_15 = arith.constant 0 : index
    %c0_16 = arith.constant 0 : index
    %28 = vector.load %arg5[%c0_15, %c0_16] : memref<1x32xf32, #tpu.memory_space<vmem>>, vector<1x32xf32>
    %29 = vector.broadcast %28 : vector<1x32xf32> to vector<32x32xf32>
    %30 = arith.mulf %27, %29 : vector<32x32xf32>
    %c0_17 = arith.constant 0 : index
    %c0_18 = arith.constant 0 : index
    %31 = vector.load %arg6[%c0_17, %c0_18] : memref<1x32xf32, #tpu.memory_space<vmem>>, vector<1x32xf32>
    %32 = vector.broadcast %31 : vector<1x32xf32> to vector<32x32xf32>
    %33 = arith.addf %30, %32 : vector<32x32xf32>
    %34 = arith.truncf %33 : vector<32x32xf32> to vector<32x32xbf16>
    %c0_19 = arith.constant 0 : index
    %c0_20 = arith.constant 0 : index
    %c0_21 = arith.constant 0 : index
    %35 = vector.load %arg7[%c0_19, %c0_20, %c0_21] : memref<1x32x32xbf16, #tpu.memory_space<vmem>>, vector<1x32x32xbf16>
    %36 = vector.shape_cast %35 : vector<1x32x32xbf16> to vector<32x32xbf16>
    %37 = vector.shape_cast %34 : vector<32x32xbf16> to vector<1x32x32xbf16>
    tpu.vector_store %arg7[%c0_19, %c0_20, %c0_21], %37 {strides = array<i32>} : memref<1x32x32xbf16, #tpu.memory_space<vmem>>, vector<1x32x32xbf16>,
    return
  }
  func.func @transform_0(%arg0: i32) -> (i32, i32, i32) {
    %c0_i32 = arith.constant 0 : i32
    %c0_i32_0 = arith.constant 0 : i32
    %c0_i32_1 = arith.constant 0 : i32
    return %arg0, %c0_i32, %c0_i32_0 : i32, i32, i32
  }
  func.func @transform_1(%arg0: i32) -> (i32, i32, i32) {
    %c0_i32 = arith.constant 0 : i32
    %c0_i32_0 = arith.constant 0 : i32
    %c0_i32_1 = arith.constant 0 : i32
    %c0_i32_2 = arith.constant 0 : i32
    return %c0_i32, %c0_i32_0, %c0_i32_1 : i32, i32, i32
  }
  func.func @transform_2(%arg0: i32) -> (i32, i32) {
    %c0_i32 = arith.constant 0 : i32
    %c0_i32_0 = arith.constant 0 : i32
    %c0_i32_1 = arith.constant 0 : i32
    return %c0_i32, %c0_i32_0 : i32, i32
  }
  func.func @transform_3(%arg0: i32) -> (i32, i32, i32) {
    %c0_i32 = arith.constant 0 : i32
    %c0_i32_0 = arith.constant 0 : i32
    %c0_i32_1 = arith.constant 0 : i32
    return %arg0, %c0_i32, %c0_i32_0 : i32, i32, i32
  }
  func.func @transform_4(%arg0: i32) -> (i32, i32) {
    %c0_i32 = arith.constant 0 : i32
    %c0_i32_0 = arith.constant 0 : i32
    %c0_i32_1 = arith.constant 0 : i32
    return %c0_i32, %c0_i32_0 : i32, i32
  }
  func.func @transform_5(%arg0: i32) -> (i32, i32) {
    %c0_i32 = arith.constant 0 : i32
    %c0_i32_0 = arith.constant 0 : i32
    %c0_i32_1 = arith.constant 0 : i32
    return %c0_i32, %c0_i32_0 : i32, i32
  }
  func.func @transform_6(%arg0: i32) -> (i32, i32, i32) {
    %c0_i32 = arith.constant 0 : i32
    %c0_i32_0 = arith.constant 0 : i32
    %c0_i32_1 = arith.constant 0 : i32
    return %arg0, %c0_i32, %c0_i32_0 : i32, i32, i32
  }
}

module attributes {stable_mosaic.version = 11 : i64} {
  func.func @kernel(%arg0: i32, %arg1: memref<64x32xbf16, #tpu.memory_space<vmem>>, %arg2: memref<1x32xf32, #tpu.memory_space<vmem>>, %arg3: memref<1x32xf32, #tpu.memory_space<vmem>>, %arg4: memref<64x32xbf16, #tpu.memory_space<vmem>>) attributes {dimension_semantics = [#tpu.dimension_semantics<parallel>], iteration_bounds = array<i64: 1>, scalar_prefetch = 0 : i64, scratch_operands = 0 : i64, tpu.core_type = #tpu.core_type<tc>, window_params = [{transform_indices = @transform_0, window_bounds = array<i64: 64, 32>}, {pipeline_mode = #tpu.pipeline_mode<synchronous>, transform_indices = @transform_1, window_bounds = array<i64: 1, 32>}, {pipeline_mode = #tpu.pipeline_mode<synchronous>, transform_indices = @transform_2, window_bounds = array<i64: 1, 32>}, {transform_indices = @transform_3, window_bounds = array<i64: 64, 32>}]} {
    %c0 = arith.constant 0 : index
    %c0_0 = arith.constant 0 : index
    %0 = vector.load %arg1[%c0, %c0_0] : memref<64x32xbf16, #tpu.memory_space<vmem>>, vector<64x32xbf16>
    %1 = arith.extf %0 : vector<64x32xbf16> to vector<64x32xf32>
    %cst = arith.constant dense<0.000000e+00> : vector<64xf32>
    %2 = vector.multi_reduction <add>, %1, %cst [1] : vector<64x32xf32> to vector<64xf32>
    %3 = vector.shape_cast %2 : vector<64xf32> to vector<64x1xf32>
    %cst_1 = arith.constant 3.200000e+01 : f32
    %4 = vector.broadcast %cst_1 : f32 to vector<64x1xf32>
    %5 = arith.divf %3, %4 : vector<64x1xf32>
    %6 = vector.broadcast %5 : vector<64x1xf32> to vector<64x32xf32>
    %7 = arith.subf %1, %6 : vector<64x32xf32>
    %8 = arith.mulf %7, %7 : vector<64x32xf32>
    %cst_2 = arith.constant dense<0.000000e+00> : vector<64xf32>
    %9 = vector.multi_reduction <add>, %8, %cst_2 [1] : vector<64x32xf32> to vector<64xf32>
    %10 = vector.shape_cast %9 : vector<64xf32> to vector<64x1xf32>
    %cst_3 = arith.constant 3.200000e+01 : f32
    %11 = vector.broadcast %cst_3 : f32 to vector<64x1xf32>
    %12 = arith.divf %10, %11 : vector<64x1xf32>
    %cst_4 = arith.constant 9.99999974E-6 : f32
    %13 = vector.broadcast %cst_4 : f32 to vector<64x1xf32>
    %14 = arith.addf %12, %13 : vector<64x1xf32>
    %15 = math.rsqrt %14 : vector<64x1xf32>
    %16 = vector.broadcast %15 : vector<64x1xf32> to vector<64x32xf32>
    %17 = arith.mulf %7, %16 : vector<64x32xf32>
    %c0_5 = arith.constant 0 : index
    %c0_6 = arith.constant 0 : index
    %18 = vector.load %arg2[%c0_5, %c0_6] : memref<1x32xf32, #tpu.memory_space<vmem>>, vector<1x32xf32>
    %19 = vector.broadcast %18 : vector<1x32xf32> to vector<64x32xf32>
    %20 = arith.mulf %17, %19 : vector<64x32xf32>
    %c0_7 = arith.constant 0 : index
    %c0_8 = arith.constant 0 : index
    %21 = vector.load %arg3[%c0_7, %c0_8] : memref<1x32xf32, #tpu.memory_space<vmem>>, vector<1x32xf32>
    %22 = vector.broadcast %21 : vector<1x32xf32> to vector<64x32xf32>
    %23 = arith.addf %20, %22 : vector<64x32xf32>
    %24 = arith.truncf %23 : vector<64x32xf32> to vector<64x32xbf16>
    %c0_9 = arith.constant 0 : index
    %c0_10 = arith.constant 0 : index
    %25 = vector.load %arg4[%c0_9, %c0_10] : memref<64x32xbf16, #tpu.memory_space<vmem>>, vector<64x32xbf16>
    tpu.vector_store %arg4[%c0_9, %c0_10], %24 {strides = array<i32>} : memref<64x32xbf16, #tpu.memory_space<vmem>>, vector<64x32xbf16>,
    return
  }
  func.func @transform_0(%arg0: i32) -> (i32, i32) {
    %c0_i32 = arith.constant 0 : i32
    %c0_i32_0 = arith.constant 0 : i32
    return %arg0, %c0_i32 : i32, i32
  }
  func.func @transform_1(%arg0: i32) -> (i32, i32) {
    %c0_i32 = arith.constant 0 : i32
    %c0_i32_0 = arith.constant 0 : i32
    %c0_i32_1 = arith.constant 0 : i32
    return %c0_i32, %c0_i32_0 : i32, i32
  }
  func.func @transform_2(%arg0: i32) -> (i32, i32) {
    %c0_i32 = arith.constant 0 : i32
    %c0_i32_0 = arith.constant 0 : i32
    %c0_i32_1 = arith.constant 0 : i32
    return %c0_i32, %c0_i32_0 : i32, i32
  }
  func.func @transform_3(%arg0: i32) -> (i32, i32) {
    %c0_i32 = arith.constant 0 : i32
    %c0_i32_0 = arith.constant 0 : i32
    return %arg0, %c0_i32 : i32, i32
  }
}

module attributes {stable_mosaic.version = 11 : i64} {
  func.func @kernel(%arg0: i32, %arg1: memref<64x32xbf16, #tpu.memory_space<vmem>>, %arg2: memref<32x128xbf16, #tpu.memory_space<vmem>>, %arg3: memref<1x128xf32, #tpu.memory_space<vmem>>, %arg4: memref<64x128xbf16, #tpu.memory_space<vmem>>) attributes {dimension_semantics = [#tpu.dimension_semantics<parallel>], iteration_bounds = array<i64: 1>, scalar_prefetch = 0 : i64, scratch_operands = 0 : i64, tpu.core_type = #tpu.core_type<tc>, window_params = [{transform_indices = @transform_0, window_bounds = array<i64: 64, 32>}, {pipeline_mode = #tpu.pipeline_mode<synchronous>, transform_indices = @transform_1, window_bounds = array<i64: 32, 128>}, {pipeline_mode = #tpu.pipeline_mode<synchronous>, transform_indices = @transform_2, window_bounds = array<i64: 1, 128>}, {transform_indices = @transform_3, window_bounds = array<i64: 64, 128>}]} {
    %c0 = arith.constant 0 : index
    %c0_0 = arith.constant 0 : index
    %0 = vector.load %arg1[%c0, %c0_0] : memref<64x32xbf16, #tpu.memory_space<vmem>>, vector<64x32xbf16>
    %c0_1 = arith.constant 0 : index
    %c0_2 = arith.constant 0 : index
    %1 = vector.load %arg2[%c0_1, %c0_2] : memref<32x128xbf16, #tpu.memory_space<vmem>>, vector<32x128xbf16>
    %cst = arith.constant dense<0.000000e+00> : vector<64x128xf32>
    %2 = tpu.matmul %0, %1, %cst {dimension_numbers = #tpu.dot_dimension_numbers<[1], [0], [0], [1], [0, 0, 1, 1], [], []>} : vector<64x32xbf16>, vector<32x128xbf16>, vector<64x128xf32> -> vector<64x128xf32>
    %c0_3 = arith.constant 0 : index
    %c0_4 = arith.constant 0 : index
    %3 = vector.load %arg3[%c0_3, %c0_4] : memref<1x128xf32, #tpu.memory_space<vmem>>, vector<1x128xf32>
    %4 = vector.broadcast %3 : vector<1x128xf32> to vector<64x128xf32>
    %5 = arith.addf %2, %4 : vector<64x128xf32>
    %6 = arith.truncf %5 : vector<64x128xf32> to vector<64x128xbf16>
    %c0_5 = arith.constant 0 : index
    %c0_6 = arith.constant 0 : index
    %7 = vector.load %arg4[%c0_5, %c0_6] : memref<64x128xbf16, #tpu.memory_space<vmem>>, vector<64x128xbf16>
    tpu.vector_store %arg4[%c0_5, %c0_6], %6 {strides = array<i32>} : memref<64x128xbf16, #tpu.memory_space<vmem>>, vector<64x128xbf16>,
    return
  }
  func.func @transform_0(%arg0: i32) -> (i32, i32) {
    %c0_i32 = arith.constant 0 : i32
    %c0_i32_0 = arith.constant 0 : i32
    return %arg0, %c0_i32 : i32, i32
  }
  func.func @transform_1(%arg0: i32) -> (i32, i32) {
    %c0_i32 = arith.constant 0 : i32
    %c0_i32_0 = arith.constant 0 : i32
    %c0_i32_1 = arith.constant 0 : i32
    return %c0_i32, %c0_i32_0 : i32, i32
  }
  func.func @transform_2(%arg0: i32) -> (i32, i32) {
    %c0_i32 = arith.constant 0 : i32
    %c0_i32_0 = arith.constant 0 : i32
    %c0_i32_1 = arith.constant 0 : i32
    return %c0_i32, %c0_i32_0 : i32, i32
  }
  func.func @transform_3(%arg0: i32) -> (i32, i32) {
    %c0_i32 = arith.constant 0 : i32
    %c0_i32_0 = arith.constant 0 : i32
    return %arg0, %c0_i32 : i32, i32
  }
}

</mosaic_0001>

<llo_original>
// kernel: _fwd.45
$region0: #{_fwd.45}
  #allocation0 [shape = 'u32[]', space=smem, size = 0x4, offset = 0x4, fixed_abs, tag = 'smem constant byte address 0x4 - core index']
  #allocation1 [shape = 'u32[144,128]{1,0:T(1,128)}', space=vmem, size = 0x12000, scoped, tag = 'internal scratch']
  %s0 = inlined_call_operand.vmem [shape: bf16[16,16], index: 0, kind: input, shape index: {}]
  %s1 = inlined_call_operand.vmem [shape: bf16[16,16], index: 1, kind: input, shape index: {}]
  %s2 = inlined_call_operand.vmem [shape: f32[1,16], index: 2, kind: input, shape index: {}, may-alias: {2,5}]
  %s3 = inlined_call_operand.vmem [shape: bf16[16,16], index: 3, kind: input, shape index: {}]
  %s4 = inlined_call_operand.vmem [shape: f32[1,16], index: 4, kind: input, shape index: {}]
  %s5 = inlined_call_operand.vmem [shape: f32[1,16], index: 5, kind: input, shape index: {}, may-alias: {2,5}]
  %s6 = inlined_call_operand.vmem [shape: bf16[16,16], index: 6, kind: output, shape index: {}]
  %s7 = sld [smem:[#allocation0]]
  $region34: #{_fwd.45} parent=0
    _
  %s9 = ssub.s32 1, %s7
  %s10 = scalar_select 0, %s9, %s7
  // Predicated region
  $region2: #{_fwd.45} parent=0 // pred_check
    _
  $region3: #{_fwd.45} parent=0 // pred_check_branch
    %12 = sbr.rel (0) target = $region5
  $region4: #{_fwd.45} parent=0 // pred_region
    _
  $region5: #{_fwd.45} parent=0 // pred_fallthru
    _
  // Predicated region
  $region6: #{_fwd.45} parent=0 // pred_check
    _
  $region7: #{_fwd.45} parent=0 // pred_check_branch
    %14 = sbr.rel (0) target = $region9
  $region8: #{_fwd.45} parent=0 // pred_region
    _
  $region9: #{_fwd.45} parent=0 // pred_fallthru
    _
  // Predicated region
  $region10: #{_fwd.45} parent=0 // pred_check
    _
  $region11: #{_fwd.45} parent=0 // pred_check_branch
    %16 = sbr.rel (0) target = $region13
  $region12: #{_fwd.45} parent=0 // pred_region
    _
  $region13: #{_fwd.45} parent=0 // pred_fallthru
    _
  // Predicated region
  $region14: #{_fwd.45} parent=0 // pred_check
    _
  $region15: #{_fwd.45} parent=0 // pred_check_branch
    %18 = sbr.rel (0) target = $region17
  $region16: #{_fwd.45} parent=0 // pred_region
    _
  $region17: #{_fwd.45} parent=0 // pred_fallthru
    _
  // Predicated region
  $region18: #{_fwd.45} parent=0 // pred_check
    _
  $region19: #{_fwd.45} parent=0 // pred_check_branch
    %20 = sbr.rel (0) target = $region21
  $region20: #{_fwd.45} parent=0 // pred_region
    _
  $region21: #{_fwd.45} parent=0 // pred_fallthru
    _
  // Predicated region
  $region22: #{_fwd.45} parent=0 // pred_check
    _
  $region23: #{_fwd.45} parent=0 // pred_check_branch
    %22 = sbr.rel (0) target = $region25
  $region24: #{_fwd.45} parent=0 // pred_region
    _
  $region25: #{_fwd.45} parent=0 // pred_fallthru
    _
  %v24 = vld [vmem:[%s0] sm:$0xf]
  %v25 = vld [vmem:[%s0 + $0x4] sm:$0xf]
  %v26 = vld [vmem:[%s1] sm:$0xf]
  %v27 = vld [vmem:[%s1 + $0x4] sm:$0xf]
  %v28 = vld [vmem:[%s2] sm:$0x1]
  %v30 = vlaneseq
  %v31 = vshrl.u32 %v30, 7
  %v32 = vsub.s32 0, %v31
  %v33 = vrot.slane %v28, %v32
  %v37 = vunpack.c.l.b16 %v24
  %v38 = vunpack.c.l.b16 %v25
  %v39 = vpack.c.b16 %v38, %v37
  %v42 = vunpack.c.l.b16 %v26
  %v43 = vunpack.c.l.b16 %v27
  %v44 = vpack.c.b16 %v43, %v42
  %vm46 = vcmask 130048
  %v48 = vsel %vm46, %v39, 0
  %50 = vmatprep.subr.bf16.mxu0 0
  %51 = vmatpush1.bf16.msra.mxu0 %v44
  %52 = vmatprep.subr.bf16.mxu0 0
  %53 = vmatpush1.bf16.msra.mxu0 0
  %54 = vmatprep.subr.bf16.mxu0 0
  %55 = vmatpush1.bf16.msra.mxu0 0
  %56 = vmatprep.subr.bf16.mxu0 0
  %57 = vmatpush1.bf16.msra.mxu0 0
  %58 = vmatprep.subr.bf16.mxu0 0
  %59 = vmatpush1.bf16.msra.mxu0 0
  %60 = vmatprep.subr.bf16.mxu0 0
  %61 = vmatpush1.bf16.msra.mxu0 0
  %62 = vmatprep.subr.bf16.mxu0 0
  %63 = vmatpush1.bf16.msra.mxu0 0
  %64 = vmatprep.subr.bf16.mxu0 0
  %65 = vmatpush1.bf16.msra.mxu0 0
  %66 = vmatprep.subr.bf16.mxu0 0
  %67 = vmatpush1.bf16.msra.mxu0 0
  %68 = vmatprep.subr.bf16.mxu0 0
  %69 = vmatpush1.bf16.msra.mxu0 0
  %70 = vmatprep.subr.bf16.mxu0 0
  %71 = vmatpush1.bf16.msra.mxu0 0
  %72 = vmatprep.subr.bf16.mxu0 0
  %73 = vmatpush1.bf16.msra.mxu0 0
  %74 = vmatprep.subr.bf16.mxu0 0
  %75 = vmatpush1.bf16.msra.mxu0 0
  %76 = vmatprep.subr.bf16.mxu0 0
  %77 = vmatpush1.bf16.msra.mxu0 0
  %78 = vmatprep.subr.bf16.mxu0 0
  %79 = vmatpush1.bf16.msra.mxu0 0
  %80 = vmatprep.subr.bf16.mxu0 0
  %81 = vmatpush1.bf16.msra.mxu0 0
  %82 = vmatprep.mubr.bf16.mxu0 0
  %83 = vmatmul.mubr.bf16.gmra.mrb[0].mxu0 %v48
  %v84 = vpop.f32.mrb[0].mxu0
  %v85 = vadd.f32 %v33, %v84
  %v86 = vpop.f32.mrb[0].mxu0
  %v87 = vpop.f32.mrb[0].mxu0
  %v88 = vadd.f32 %v33, %v87
  %v89 = vpop.f32.mrb[0].mxu0
  %90 = vdwg.mxu0
  %v91 = vld [vmem:[%s3] sm:$0xf]
  %v92 = vld [vmem:[%s3 + $0x4] sm:$0xf]
  %v93 = vunpack.c.l.bf16 %v91
  %v94 = vunpack.c.l.bf16 %v92
  %v95 = vadd.f32 %v85, %v93
  %v96 = vadd.f32 %v88, %v94
  %v97 = vsel %vm46, %v95, 0.0
  %98 = vadd.xlane.f32.xlu0 %v97
  %v99 = vpop.xlane.xlu0 %98
  %v100 = vsel %vm46, %v96, 0.0
  %101 = vadd.xlane.f32.xlu0 %v100
  %v102 = vpop.xlane.xlu0 %101
  %v103 = vrcp.pop 16.0
  %v104 = vmul.f32 %v99, %v103
  %v105 = vmul.f32 %v102, %v103
  %v106 = vsub.f32 %v95, %v104
  %v107 = vsub.f32 %v96, %v105
  %v108 = vmul.f32 %v106, %v106
  %v109 = vmul.f32 %v107, %v107
  %v110 = vsel %vm46, %v108, 0.0
  %111 = vadd.xlane.f32.xlu0 %v110
  %v112 = vpop.xlane.xlu0 %111
  %v113 = vsel %vm46, %v109, 0.0
  %114 = vadd.xlane.f32.xlu0 %v113
  %v115 = vpop.xlane.xlu0 %114
  %v116 = vmul.f32 %v112, %v103
  %v117 = vmul.f32 %v115, %v103
  %v118 = vadd.f32 %v116, 1e-05
  %v119 = vadd.f32 %v117, 1e-05
  %v120 = vrsqrt.pop %v118
  %v121 = vrsqrt.pop %v119
  %v122 = vmul.f32 %v106, %v120
  %v123 = vmul.f32 %v107, %v121
  %v124 = vld [vmem:[%s4] sm:$0x1]
  %v126 = vlaneseq
  %v127 = vshrl.u32 %v126, 7
  %v128 = vsub.s32 0, %v127
  %v129 = vrot.slane %v124, %v128
  %v131 = vmul.f32 %v122, %v129
  %v132 = vmul.f32 %v123, %v129
  %v133 = vld [vmem:[%s5] sm:$0x1]
  %v135 = vlaneseq
  %v136 = vshrl.u32 %v135, 7
  %v137 = vsub.s32 0, %v136
  %v138 = vrot.slane %v133, %v137
  %v140 = vadd.f32 %v131, %v138
  %v141 = vadd.f32 %v132, %v138
  %v142 = vpack.c.bf16 %v141, %v140
  %v144 = vunpack.c.l.b16 %v142
  %v145 = vunpack.c.h.b16 %v142
  %v146 = vpack.c.b16 %v144, %v144
  %v147 = vpack.c.b16 %v145, %v145
  %vm150 = vcmask 125952
  %151 = vst.msk [vmem:[%s6] sm:$0xf] %vm150, %v146
  %152 = vst.msk [vmem:[%s6 + $0x4] sm:$0xf] %vm150, %v147
  // Predicated region
  $region26: #{_fwd.45} parent=0 // pred_check
    _
  $region27: #{_fwd.45} parent=0 // pred_check_branch
    %154 = sbr.rel (0) target = $region29
  $region28: #{_fwd.45} parent=0 // pred_region
    _
  $region29: #{_fwd.45} parent=0 // pred_fallthru
    _
  // Predicated region
  $region30: #{_fwd.45} parent=0 // pred_check
    _
  $region31: #{_fwd.45} parent=0 // pred_check_branch
    %156 = sbr.rel (0) target = $region33
  $region32: #{_fwd.45} parent=0 // pred_region
    _
  $region33: #{_fwd.45} parent=0 // pred_fallthru
    _

// kernel: _fwd.63
$region0: #{_fwd.63}
  #allocation0 [shape = 'u32[]', space=smem, size = 0x4, offset = 0x4, fixed_abs, tag = 'smem constant byte address 0x4 - core index']
  #allocation1 [shape = 'u32[144,128]{1,0:T(1,128)}', space=vmem, size = 0x12000, scoped, tag = 'internal scratch']
  %s0 = inlined_call_operand.vmem [shape: bf16[2,10,1], index: 0, kind: input, shape index: {}]
  %s1 = inlined_call_operand.vmem [shape: bf16[3,1,32], index: 1, kind: input, shape index: {}]
  %s2 = inlined_call_operand.vmem [shape: f32[1,32], index: 2, kind: input, shape index: {}]
  %s3 = inlined_call_operand.vmem [shape: bf16[2,8,32], index: 3, kind: output, shape index: {}]
  %s4 = sld [smem:[#allocation0]]
  $region45: #{_fwd.63} parent=0
    _
  %s6 = ssub.s32 1, %s4
  %s7 = scalar_select 0, %s6, %s4
  loop: start=0, step=1, limit=4
  $region2: #{_fwd.63} parent=0 // loop_pre_header
    _
  $region3: #{_fwd.63} parent=0 // loop_header
    %s9 = sphi 0, %s13
    %p10 = scmp.ge.s32.totalorder %s9, 4
    %s19 = sphi 0, %s21
    %s22 = sphi 0, %s19
    %s23 = sphi 0, %s22
    %s39 = sphi 0, %s23
    %s43 = sphi 0, %s43
    %s45 = sphi 0, %s43
    %s46 = sphi 0, %s45
    %s60 = sphi 0, %s46
    %s64 = sphi 0, %s64
    %s66 = sphi 0, %s64
    %s67 = sphi 0, %s66
    %s81 = sphi 0, %s67
    %s87 = sphi 0, %s89
    %s90 = sphi 0, %s87
    %s91 = sphi 0, %s90
    %s107 = sphi 0, %s91
  $region4: #{_fwd.63} parent=0 // loop_header_branch
    %12 = sbr.rel (%p10) target = $region8
  $region5: #{_fwd.63} parent=0 // loop_body
    %s14 = ssub.s32 %s9, 1
    %s15 = ssub.s32 %s9, 2
    %s16 = sadd.s32 %s9, 1
    %s17 = ssub.s32 %s9, %s16
    %p18 = scmp.eq.s32.totalorder %s17, 0
    %s20 = sadd.s32 %s19, 1
    %s21 = scalar_select %p18, %s19, %s20
    %p24 = pneg %p18
    %p25 = scmp.eq.s32.totalorder %s9, 1
    %p26 = por %p24, %p25
    %p27 = scmp.ne.s32.totalorder %s19, %s22
    %p28 = scmp.eq.s32.totalorder %s9, 0
    %p29 = por %p27, %p28
    %p30 = scmp.ne.s32.totalorder %s19, %s22
    %p31 = scmp.eq.s32.totalorder %s14, 1
    %p32 = por %p30, %p31
    %p33 = scmp.ne.s32.totalorder %s22, %s23
    %p34 = scmp.eq.s32.totalorder %s14, 0
    %p35 = por %p33, %p34
    %p36 = scmp.ne.s32.totalorder %s22, %s23
    %p37 = scmp.eq.s32.totalorder %s15, 1
    %p38 = por %p36, %p37
    %p40 = scmp.ne.s32.totalorder %s23, %s39
    %p41 = scmp.eq.s32.totalorder %s15, 0
    %p42 = por %p40, %p41
    %s44 = sadd.s32 %s43, 1
    %p47 = scmp.eq.s32.totalorder %s9, 1
    %p48 = scmp.ne.s32.totalorder %s43, %s45
    %p49 = scmp.eq.s32.totalorder %s9, 0
    %p50 = por %p48, %p49
    %p51 = scmp.ne.s32.totalorder %s43, %s45
    %p52 = scmp.eq.s32.totalorder %s14, 1
    %p53 = por %p51, %p52
    %p54 = scmp.ne.s32.totalorder %s45, %s46
    %p55 = scmp.eq.s32.totalorder %s14, 0
    %p56 = por %p54, %p55
    %p57 = scmp.ne.s32.totalorder %s45, %s46
    %p58 = scmp.eq.s32.totalorder %s15, 1
    %p59 = por %p57, %p58
    %p61 = scmp.ne.s32.totalorder %s46, %s60
    %p62 = scmp.eq.s32.totalorder %s15, 0
    %p63 = por %p61, %p62
    %s65 = sadd.s32 %s64, 1
    %p68 = scmp.eq.s32.totalorder %s9, 1
    %p69 = scmp.ne.s32.totalorder %s64, %s66
    %p70 = scmp.eq.s32.totalorder %s9, 0
    %p71 = por %p69, %p70
    %p72 = scmp.ne.s32.totalorder %s64, %s66
    %p73 = scmp.eq.s32.totalorder %s14, 1
    %p74 = por %p72, %p73
    %p75 = scmp.ne.s32.totalorder %s66, %s67
    %p76 = scmp.eq.s32.totalorder %s14, 0
    %p77 = por %p75, %p76
    %p78 = scmp.ne.s32.totalorder %s66, %s67
    %p79 = scmp.eq.s32.totalorder %s15, 1
    %p80 = por %p78, %p79
    %p82 = scmp.ne.s32.totalorder %s67, %s81
    %p83 = scmp.eq.s32.totalorder %s15, 0
    %p84 = por %p82, %p83
    %s85 = ssub.s32 %s9, %s16
    %p86 = scmp.eq.s32.totalorder %s85, 0
    %s88 = sadd.s32 %s87, 1
    %s89 = scalar_select %p86, %s87, %s88
    %p92 = pneg %p86
    %p93 = scmp.eq.s32.totalorder %s9, 1
    %p94 = por %p92, %p93
    %p95 = scmp.ne.s32.totalorder %s87, %s90
    %p96 = scmp.eq.s32.totalorder %s9, 0
    %p97 = por %p95, %p96
    %p98 = scmp.ne.s32.totalorder %s87, %s90
    %p99 = scmp.eq.s32.totalorder %s14, 1
    %p100 = por %p98, %p99
    %p101 = scmp.ne.s32.totalorder %s90, %s91
    %p102 = scmp.eq.s32.totalorder %s14, 0
    %p103 = por %p101, %p102
    %p104 = scmp.ne.s32.totalorder %s90, %s91
    %p105 = scmp.eq.s32.totalorder %s15, 1
    %p106 = por %p104, %p105
    %p108 = scmp.ne.s32.totalorder %s91, %s107
    %p109 = scmp.eq.s32.totalorder %s15, 0
    %p110 = por %p108, %p109
    %p111 = scmp.le.s32.totalorder 1, %s9
    %p112 = scmp.lt.s32.totalorder %s9, 3
    %p113 = pnand %p111, %p112
    %p114 = pneg %p113
    // Predicated region
    $region9: #{_fwd.63} parent=5 // pred_check
      _
    $region10: #{_fwd.63} parent=5 // pred_check_branch
      %116 = sbr.rel (%p113) target = $region12
    $region11: #{_fwd.63} parent=5 // pred_region
      %s117 = ssub.s32 %s9, 1
      // Predicated region
      $region13: #{_fwd.63} parent=11 // pred_check
        %p118 = pneg %p56
      $region14: #{_fwd.63} parent=11 // pred_check_branch
        %120 = sbr.rel (%p118) target = $region16
      $region15: #{_fwd.63} parent=11 // pred_region
        _
      $region16: #{_fwd.63} parent=11 // pred_fallthru
        _
      // Predicated region
      $region17: #{_fwd.63} parent=11 // pred_check
        %p121 = pneg %p77
      $region18: #{_fwd.63} parent=11 // pred_check_branch
        %123 = sbr.rel (%p121) target = $region20
      $region19: #{_fwd.63} parent=11 // pred_region
        _
      $region20: #{_fwd.63} parent=11 // pred_fallthru
        _
    $region12: #{_fwd.63} parent=5 // pred_fallthru
      _
    %p124 = scmp.lt.s32.totalorder %s9, 2
    // Predicated region
    $region21: #{_fwd.63} parent=5 // pred_check
      %p125 = pneg %p124
    $region22: #{_fwd.63} parent=5 // pred_check_branch
      %127 = sbr.rel (%p125) target = $region24
    $region23: #{_fwd.63} parent=5 // pred_region
      // Predicated region
      $region25: #{_fwd.63} parent=23 // pred_check
        %p128 = pneg %p29
      $region26: #{_fwd.63} parent=23 // pred_check_branch
        %130 = sbr.rel (%p128) target = $region28
      $region27: #{_fwd.63} parent=23 // pred_region
        %p131 = scmp.lt.s32.totalorder %s9, 1
        %s132 = scalar_select %p131, %s9, 1
        %s133 = smul.addr %s132, 2
        %s134 = smul.addr %s133, 4
        %s135 = scalar_lea.vmem %s0, %s134
      $region28: #{_fwd.63} parent=23 // pred_fallthru
        _
    $region24: #{_fwd.63} parent=5 // pred_fallthru
      _
    %p136 = scmp.le.s32.totalorder 1, %s9
    %p137 = scmp.lt.s32.totalorder %s9, 3
    %p138 = pnand %p136, %p137
    %p139 = pneg %p138
    // Predicated region
    $region29: #{_fwd.63} parent=5 // pred_check
      _
    $region30: #{_fwd.63} parent=5 // pred_check_branch
      %141 = sbr.rel (%p138) target = $region32
    $region31: #{_fwd.63} parent=5 // pred_region
      %s142 = ssub.s32 %s9, 1
      %p143 = scmp.lt.s32.totalorder %s14, 1
      %s144 = scalar_select %p143, %s14, 1
      %s145 = smul.addr %s144, 2
      %s146 = smul.addr %s145, 4
      %s147 = scalar_lea.vmem %s0, %s146
      %p148 = pneg %p35
      %p149 = pneg %p32
      %p150 = pneg %p56
      %p151 = pneg %p53
      %p152 = pneg %p77
      %p153 = pneg %p74
      %p154 = pneg %p103
      %p155 = pneg %p100
      %p156 = scmp.lt.s32.totalorder %s14, 1
      %s157 = scalar_select %p156, %s14, 1
      %s158 = smul.addr %s157, 4
      %s159 = scalar_lea.vmem %s3, %s158
      %p160 = scmp.lt.s32.totalorder %s14, 1
      %s161 = scalar_select %p160, %s14, 1
      %s162 = smul.addr %s161, 2
      %s163 = smul.addr %s162, 4
      %s164 = scalar_lea.vmem %s0, %s163
      %p165 = scmp.lt.s32.totalorder %s14, 1
      %s166 = scalar_select %p165, %s14, 1
      %s167 = smul.addr %s166, 4
      %s168 = scalar_lea.vmem %s3, %s167
      %v169 = vld [vmem:[%s164] sm:$0xf]
      %v170 = vld [vmem:[%s1] sm:$0x1]
      %v171 = vunpack.c.l.bf16 %v169
      %v172 = vunpack.c.l.bf16 %v170
      %174 = vset.pattern.permute.xlu0 0
      %175 = vperm.xlu0 %174, %v171
      %v176 = vpop.permute.xlu0 %175
      %v178 = vlaneseq
      %v179 = vshrl.u32 %v178, 7
      %v180 = vsub.s32 0, %v179
      %v181 = vrot.slane %v172, %v180
      %v182 = vmul.f32 %v176, %v181
      %v183 = vld [vmem:[%s164] sm:$0xf]
      %v184 = vld [vmem:[%s164 + $0x4] sm:$0x1]
      %s185 = scalar_lea.vmem %s1, 1
      %v186 = vld [vmem:[%s185] sm:$0x1]
      %v187 = vunpack.c.l.bf16 %v183
      %v188 = vunpack.c.l.bf16 %v184
      %v189 = vunpack.c.l.bf16 %v186
      %191 = vset.pattern.permute.xlu0 0
      %192 = vperm.xlu0 %191, %v187
      %v193 = vpop.permute.xlu0 %192
      %196 = vset.pattern.permute.xlu0 0
      %197 = vperm.xlu0 %196, %v188
      %v198 = vpop.permute.xlu0 %197
      %v200 = vlaneseq
      %v201 = vshrl.u32 %v200, 7
      %v202 = vsub.s32 0, %v201
      %v203 = vrot.slane %v189, %v202
      %v204 = vmul.f32 %v193, %v203
      %v205 = vmul.f32 %v198, %v203
      %vm208 = vcmask 1046528
      %v209 = vrot.slane %v204, 1
      %v210 = vrot.slane %v205, 1
      %v211 = vsel %vm208, %v209, %v210
      %v213 = vadd.f32 %v182, %v211
      %v214 = vld [vmem:[%s164] sm:$0xe]
      %s215 = scalar_lea.vmem %s1, 2
      %v216 = vld [vmem:[%s215] sm:$0x1]
      %v217 = vunpack.c.l.bf16 %v214
      %v218 = vunpack.c.l.bf16 %v216
      %220 = vset.pattern.permute.xlu0 0
      %221 = vperm.xlu0 %220, %v217
      %v222 = vpop.permute.xlu0 %221
      %v224 = vlaneseq
      %v225 = vshrl.u32 %v224, 7
      %v226 = vsub.s32 0, %v225
      %v227 = vrot.slane %v218, %v226
      %v228 = vmul.f32 %v222, %v227
      %v229 = vmul.f32 %v198, %v227
      %vm232 = vcmask 1045504
      %v233 = vrot.slane %v228, 2
      %v234 = vrot.slane %v229, 2
      %v235 = vsel %vm232, %v233, %v234
      %v237 = vadd.f32 %v213, %v235
      %v238 = vld [vmem:[%s2] sm:$0x1]
      %v240 = vlaneseq
      %v241 = vshrl.u32 %v240, 7
      %v242 = vsub.s32 0, %v241
      %v243 = vrot.slane %v238, %v242
      %v245 = vadd.f32 %v237, %v243
      %v246 = vpack.c.bf16 %v245, %v245
      %vm247 = vcmask 257024
      %248 = vst.msk [vmem:[%s168] sm:$0xf] %vm247, %v246
      %p249 = scmp.lt.s32.totalorder %s14, 1
      %s250 = scalar_select %p249, %s14, 1
      %s251 = smul.addr %s250, 4
      %s252 = scalar_lea.vmem %s3, %s251
      // Predicated region
      $region33: #{_fwd.63} parent=31 // pred_check
        %p253 = pneg %p100
      $region34: #{_fwd.63} parent=31 // pred_check_branch
        %255 = sbr.rel (%p253) target = $region36
      $region35: #{_fwd.63} parent=31 // pred_region
        _
      $region36: #{_fwd.63} parent=31 // pred_fallthru
        _
    $region32: #{_fwd.63} parent=5 // pred_fallthru
      _
    %p256 = scmp.le.s32.totalorder 2, %s9
    // Predicated region
    $region37: #{_fwd.63} parent=5 // pred_check
      %p257 = pneg %p256
    $region38: #{_fwd.63} parent=5 // pred_check_branch
      %259 = sbr.rel (%p257) target = $region40
    $region39: #{_fwd.63} parent=5 // pred_region
      %s260 = ssub.s32 %s9, 2
      // Predicated region
      $region41: #{_fwd.63} parent=39 // pred_check
        %p261 = pneg %p106
      $region42: #{_fwd.63} parent=39 // pred_check_branch
        %263 = sbr.rel (%p261) target = $region44
      $region43: #{_fwd.63} parent=39 // pred_region
        %p264 = scmp.lt.s32.totalorder %s15, 1
        %s265 = scalar_select %p264, %s15, 1
        %s266 = smul.addr %s265, 4
        %s267 = scalar_lea.vmem %s3, %s266
      $region44: #{_fwd.63} parent=39 // pred_fallthru
        _
    $region40: #{_fwd.63} parent=5 // pred_fallthru
      _
  $region6: #{_fwd.63} parent=0 // loop_footer
    %s13 = sadd.s32 1, %s9
  $region7: #{_fwd.63} parent=0 // loop_footer_branch
    %8 = sbr.rel target = $region3
  $region8: #{_fwd.63} parent=0 // loop_exit
    _

// kernel: _fwd.43
$region0: #{_fwd.43}
  #allocation0 [shape = 'u32[]', space=smem, size = 0x4, offset = 0x4, fixed_abs, tag = 'smem constant byte address 0x4 - core index']
  #allocation1 [shape = 'u32[144,128]{1,0:T(1,128)}', space=vmem, size = 0x12000, scoped, tag = 'internal scratch']
  %s0 = inlined_call_operand.vmem [shape: bf16[16,16], index: 0, kind: input, shape index: {}]
  %s1 = inlined_call_operand.vmem [shape: bf16[16,16], index: 1, kind: input, shape index: {}]
  %s2 = inlined_call_operand.vmem [shape: bf16[16,16], index: 2, kind: input, shape index: {}]
  %s3 = inlined_call_operand.vmem [shape: bf16[16,16], index: 3, kind: input, shape index: {}]
  %s4 = inlined_call_operand.vmem [shape: f32[1,16], index: 4, kind: input, shape index: {}, may-alias: {4,5,6}]
  %s5 = inlined_call_operand.vmem [shape: f32[1,16], index: 5, kind: input, shape index: {}, may-alias: {4,5,6}]
  %s6 = inlined_call_operand.vmem [shape: f32[1,16], index: 6, kind: input, shape index: {}, may-alias: {4,5,6}]
  %s7 = inlined_call_operand.vmem [shape: bf16[16,16], index: 7, kind: output, shape index: {0}]
  %s8 = inlined_call_operand.vmem [shape: bf16[16,16], index: 8, kind: output, shape index: {1}]
  %s9 = inlined_call_operand.vmem [shape: bf16[16,16], index: 9, kind: output, shape index: {2}]
  %10 = xla_tuple %s7, %s8, %s9
  %s11 = sld [smem:[#allocation0]]
  $region54: #{_fwd.43} parent=0
    _
  %s13 = ssub.s32 1, %s11
  %s14 = scalar_select 0, %s13, %s11
  // Predicated region
  $region2: #{_fwd.43} parent=0 // pred_check
    _
  $region3: #{_fwd.43} parent=0 // pred_check_branch
    %16 = sbr.rel (0) target = $region5
  $region4: #{_fwd.43} parent=0 // pred_region
    _
  $region5: #{_fwd.43} parent=0 // pred_fallthru
    _
  // Predicated region
  $region6: #{_fwd.43} parent=0 // pred_check
    _
  $region7: #{_fwd.43} parent=0 // pred_check_branch
    %18 = sbr.rel (0) target = $region9
  $region8: #{_fwd.43} parent=0 // pred_region
    _
  $region9: #{_fwd.43} parent=0 // pred_fallthru
    _
  // Predicated region
  $region10: #{_fwd.43} parent=0 // pred_check
    _
  $region11: #{_fwd.43} parent=0 // pred_check_branch
    %20 = sbr.rel (0) target = $region13
  $region12: #{_fwd.43} parent=0 // pred_region
    _
  $region13: #{_fwd.43} parent=0 // pred_fallthru
    _
  // Predicated region
  $region14: #{_fwd.43} parent=0 // pred_check
    _
  $region15: #{_fwd.43} parent=0 // pred_check_branch
    %22 = sbr.rel (0) target = $region17
  $region16: #{_fwd.43} parent=0 // pred_region
    _
  $region17: #{_fwd.43} parent=0 // pred_fallthru
    _
  // Predicated region
  $region18: #{_fwd.43} parent=0 // pred_check
    _
  $region19: #{_fwd.43} parent=0 // pred_check_branch
    %24 = sbr.rel (0) target = $region21
  $region20: #{_fwd.43} parent=0 // pred_region
    _
  $region21: #{_fwd.43} parent=0 // pred_fallthru
    _
  // Predicated region
  $region22: #{_fwd.43} parent=0 // pred_check
    _
  $region23: #{_fwd.43} parent=0 // pred_check_branch
    %26 = sbr.rel (0) target = $region25
  $region24: #{_fwd.43} parent=0 // pred_region
    _
  $region25: #{_fwd.43} parent=0 // pred_fallthru
    _
  // Predicated region
  $region26: #{_fwd.43} parent=0 // pred_check
    _
  $region27: #{_fwd.43} parent=0 // pred_check_branch
    %28 = sbr.rel (0) target = $region29
  $region28: #{_fwd.43} parent=0 // pred_region
    _
  $region29: #{_fwd.43} parent=0 // pred_fallthru
    _
  %v30 = vld [vmem:[%s0] sm:$0xf]
  %v31 = vld [vmem:[%s0 + $0x4] sm:$0xf]
  %v32 = vld [vmem:[%s1] sm:$0xf]
  %v33 = vld [vmem:[%s1 + $0x4] sm:$0xf]
  %v34 = vld [vmem:[%s4] sm:$0x1]
  %v36 = vlaneseq
  %v37 = vshrl.u32 %v36, 7
  %v38 = vsub.s32 0, %v37
  %v39 = vrot.slane %v34, %v38
  %v43 = vunpack.c.l.b16 %v30
  %v44 = vunpack.c.l.b16 %v31
  %v45 = vpack.c.b16 %v44, %v43
  %v48 = vunpack.c.l.b16 %v32
  %v49 = vunpack.c.l.b16 %v33
  %v50 = vpack.c.b16 %v49, %v48
  %vm52 = vcmask 130048
  %v54 = vsel %vm52, %v45, 0
  %56 = vmatprep.subr.bf16.mxu0 0
  %57 = vmatpush1.bf16.msra.mxu0 %v50
  %58 = vmatprep.subr.bf16.mxu0 0
  %59 = vmatpush1.bf16.msra.mxu0 0
  %60 = vmatprep.subr.bf16.mxu0 0
  %61 = vmatpush1.bf16.msra.mxu0 0
  %62 = vmatprep.subr.bf16.mxu0 0
  %63 = vmatpush1.bf16.msra.mxu0 0
  %64 = vmatprep.subr.bf16.mxu0 0
  %65 = vmatpush1.bf16.msra.mxu0 0
  %66 = vmatprep.subr.bf16.mxu0 0
  %67 = vmatpush1.bf16.msra.mxu0 0
  %68 = vmatprep.subr.bf16.mxu0 0
  %69 = vmatpush1.bf16.msra.mxu0 0
  %70 = vmatprep.subr.bf16.mxu0 0
  %71 = vmatpush1.bf16.msra.mxu0 0
  %72 = vmatprep.subr.bf16.mxu0 0
  %73 = vmatpush1.bf16.msra.mxu0 0
  %74 = vmatprep.subr.bf16.mxu0 0
  %75 = vmatpush1.bf16.msra.mxu0 0
  %76 = vmatprep.subr.bf16.mxu0 0
  %77 = vmatpush1.bf16.msra.mxu0 0
  %78 = vmatprep.subr.bf16.mxu0 0
  %79 = vmatpush1.bf16.msra.mxu0 0
  %80 = vmatprep.subr.bf16.mxu0 0
  %81 = vmatpush1.bf16.msra.mxu0 0
  %82 = vmatprep.subr.bf16.mxu0 0
  %83 = vmatpush1.bf16.msra.mxu0 0
  %84 = vmatprep.subr.bf16.mxu0 0
  %85 = vmatpush1.bf16.msra.mxu0 0
  %86 = vmatprep.subr.bf16.mxu0 0
  %87 = vmatpush1.bf16.msra.mxu0 0
  %88 = vmatprep.mubr.bf16.mxu0 0
  %89 = vmatmul.mubr.bf16.gmra.mrb[0].mxu0 %v54
  %v90 = vpop.f32.mrb[0].mxu0
  %v91 = vadd.f32 %v39, %v90
  %v92 = vpop.f32.mrb[0].mxu0
  %v93 = vpop.f32.mrb[0].mxu0
  %v94 = vadd.f32 %v39, %v93
  %v95 = vpop.f32.mrb[0].mxu0
  %96 = vdwg.mxu0
  %v97 = vpack.c.bf16 %v94, %v91
  %v99 = vunpack.c.l.b16 %v97
  %v100 = vunpack.c.h.b16 %v97
  %v101 = vpack.c.b16 %v99, %v99
  %v102 = vpack.c.b16 %v100, %v100
  %vm105 = vcmask 125952
  %106 = vst.msk [vmem:[%s7] sm:$0xf] %vm105, %v101
  %107 = vst.msk [vmem:[%s7 + $0x4] sm:$0xf] %vm105, %v102
  %v108 = vld [vmem:[%s2] sm:$0xf]
  %v109 = vld [vmem:[%s2 + $0x4] sm:$0xf]
  %v110 = vld [vmem:[%s5] sm:$0x1]
  %v112 = vlaneseq
  %v113 = vshrl.u32 %v112, 7
  %v114 = vsub.s32 0, %v113
  %v115 = vrot.slane %v110, %v114
  %v119 = vunpack.c.l.b16 %v108
  %v120 = vunpack.c.l.b16 %v109
  %v121 = vpack.c.b16 %v120, %v119
  %123 = vmatprep.subr.bf16.mxu0 0
  %124 = vmatpush1.bf16.msra.mxu0 %v121
  %125 = vmatprep.subr.bf16.mxu0 0
  %126 = vmatpush1.bf16.msra.mxu0 0
  %127 = vmatprep.subr.bf16.mxu0 0
  %128 = vmatpush1.bf16.msra.mxu0 0
  %129 = vmatprep.subr.bf16.mxu0 0
  %130 = vmatpush1.bf16.msra.mxu0 0
  %131 = vmatprep.subr.bf16.mxu0 0
  %132 = vmatpush1.bf16.msra.mxu0 0
  %133 = vmatprep.subr.bf16.mxu0 0
  %134 = vmatpush1.bf16.msra.mxu0 0
  %135 = vmatprep.subr.bf16.mxu0 0
  %136 = vmatpush1.bf16.msra.mxu0 0
  %137 = vmatprep.subr.bf16.mxu0 0
  %138 = vmatpush1.bf16.msra.mxu0 0
  %139 = vmatprep.subr.bf16.mxu0 0
  %140 = vmatpush1.bf16.msra.mxu0 0
  %141 = vmatprep.subr.bf16.mxu0 0
  %142 = vmatpush1.bf16.msra.mxu0 0
  %143 = vmatprep.subr.bf16.mxu0 0
  %144 = vmatpush1.bf16.msra.mxu0 0
  %145 = vmatprep.subr.bf16.mxu0 0
  %146 = vmatpush1.bf16.msra.mxu0 0
  %147 = vmatprep.subr.bf16.mxu0 0
  %148 = vmatpush1.bf16.msra.mxu0 0
  %149 = vmatprep.subr.bf16.mxu0 0
  %150 = vmatpush1.bf16.msra.mxu0 0
  %151 = vmatprep.subr.bf16.mxu0 0
  %152 = vmatpush1.bf16.msra.mxu0 0
  %153 = vmatprep.subr.bf16.mxu0 0
  %154 = vmatpush1.bf16.msra.mxu0 0
  %155 = vmatprep.mubr.bf16.mxu0 0
  %156 = vmatmul.mubr.bf16.gmra.mrb[0].mxu0 %v54
  %v157 = vpop.f32.mrb[0].mxu0
  %v158 = vadd.f32 %v115, %v157
  %v159 = vpop.f32.mrb[0].mxu0
  %v160 = vpop.f32.mrb[0].mxu0
  %v161 = vadd.f32 %v115, %v160
  %v162 = vpop.f32.mrb[0].mxu0
  %163 = vdwg.mxu0
  %v164 = vpack.c.bf16 %v161, %v158
  %v166 = vunpack.c.l.b16 %v164
  %v167 = vunpack.c.h.b16 %v164
  %v168 = vpack.c.b16 %v166, %v166
  %v169 = vpack.c.b16 %v167, %v167
  %172 = vst.msk [vmem:[%s8] sm:$0xf] %vm105, %v168
  %173 = vst.msk [vmem:[%s8 + $0x4] sm:$0xf] %vm105, %v169
  %v174 = vld [vmem:[%s3] sm:$0xf]
  %v175 = vld [vmem:[%s3 + $0x4] sm:$0xf]
  %v176 = vld [vmem:[%s6] sm:$0x1]
  %v178 = vlaneseq
  %v179 = vshrl.u32 %v178, 7
  %v180 = vsub.s32 0, %v179
  %v181 = vrot.slane %v176, %v180
  %v185 = vunpack.c.l.b16 %v174
  %v186 = vunpack.c.l.b16 %v175
  %v187 = vpack.c.b16 %v186, %v185
  %189 = vmatprep.subr.bf16.mxu0 0
  %190 = vmatpush1.bf16.msra.mxu0 %v187
  %191 = vmatprep.subr.bf16.mxu0 0
  %192 = vmatpush1.bf16.msra.mxu0 0
  %193 = vmatprep.subr.bf16.mxu0 0
  %194 = vmatpush1.bf16.msra.mxu0 0
  %195 = vmatprep.subr.bf16.mxu0 0
  %196 = vmatpush1.bf16.msra.mxu0 0
  %197 = vmatprep.subr.bf16.mxu0 0
  %198 = vmatpush1.bf16.msra.mxu0 0
  %199 = vmatprep.subr.bf16.mxu0 0
  %200 = vmatpush1.bf16.msra.mxu0 0
  %201 = vmatprep.subr.bf16.mxu0 0
  %202 = vmatpush1.bf16.msra.mxu0 0
  %203 = vmatprep.subr.bf16.mxu0 0
  %204 = vmatpush1.bf16.msra.mxu0 0
  %205 = vmatprep.subr.bf16.mxu0 0
  %206 = vmatpush1.bf16.msra.mxu0 0
  %207 = vmatprep.subr.bf16.mxu0 0
  %208 = vmatpush1.bf16.msra.mxu0 0
  %209 = vmatprep.subr.bf16.mxu0 0
  %210 = vmatpush1.bf16.msra.mxu0 0
  %211 = vmatprep.subr.bf16.mxu0 0
  %212 = vmatpush1.bf16.msra.mxu0 0
  %213 = vmatprep.subr.bf16.mxu0 0
  %214 = vmatpush1.bf16.msra.mxu0 0
  %215 = vmatprep.subr.bf16.mxu0 0
  %216 = vmatpush1.bf16.msra.mxu0 0
  %217 = vmatprep.subr.bf16.mxu0 0
  %218 = vmatpush1.bf16.msra.mxu0 0
  %219 = vmatprep.subr.bf16.mxu0 0
  %220 = vmatpush1.bf16.msra.mxu0 0
  %221 = vmatprep.mubr.bf16.mxu0 0
  %222 = vmatmul.mubr.bf16.gmra.mrb[0].mxu0 %v54
  %v223 = vpop.f32.mrb[0].mxu0
  %v224 = vadd.f32 %v181, %v223
  %v225 = vpop.f32.mrb[0].mxu0
  %v226 = vpop.f32.mrb[0].mxu0
  %v227 = vadd.f32 %v181, %v226
  %v228 = vpop.f32.mrb[0].mxu0
  %229 = vdwg.mxu0
  %v230 = vpack.c.bf16 %v227, %v224
  %v232 = vunpack.c.l.b16 %v230
  %v233 = vunpack.c.h.b16 %v230
  %v234 = vpack.c.b16 %v232, %v232
  %v235 = vpack.c.b16 %v233, %v233
  %238 = vst.msk [vmem:[%s9] sm:$0xf] %vm105, %v234
  %239 = vst.msk [vmem:[%s9 + $0x4] sm:$0xf] %vm105, %v235
  // Predicated region
  $region30: #{_fwd.43} parent=0 // pred_check
    _
  $region31: #{_fwd.43} parent=0 // pred_check_branch
    %241 = sbr.rel (0) target = $region33
  $region32: #{_fwd.43} parent=0 // pred_region
    _
  $region33: #{_fwd.43} parent=0 // pred_fallthru
    _
  // Predicated region
  $region34: #{_fwd.43} parent=0 // pred_check
    _
  $region35: #{_fwd.43} parent=0 // pred_check_branch
    %243 = sbr.rel (0) target = $region37
  $region36: #{_fwd.43} parent=0 // pred_region
    _
  $region37: #{_fwd.43} parent=0 // pred_fallthru
    _
  // Predicated region
  $region38: #{_fwd.43} parent=0 // pred_check
    _
  $region39: #{_fwd.43} parent=0 // pred_check_branch
    %245 = sbr.rel (0) target = $region41
  $region40: #{_fwd.43} parent=0 // pred_region
    _
  $region41: #{_fwd.43} parent=0 // pred_fallthru
    _
  // Predicated region
  $region42: #{_fwd.43} parent=0 // pred_check
    _
  $region43: #{_fwd.43} parent=0 // pred_check_branch
    %247 = sbr.rel (0) target = $region45
  $region44: #{_fwd.43} parent=0 // pred_region
    _
  $region45: #{_fwd.43} parent=0 // pred_fallthru
    _
  // Predicated region
  $region46: #{_fwd.43} parent=0 // pred_check
    _
  $region47: #{_fwd.43} parent=0 // pred_check_branch
    %249 = sbr.rel (0) target = $region49
  $region48: #{_fwd.43} parent=0 // pred_region
    _
  $region49: #{_fwd.43} parent=0 // pred_fallthru
    _
  // Predicated region
  $region50: #{_fwd.43} parent=0 // pred_check
    _
  $region51: #{_fwd.43} parent=0 // pred_check_branch
    %251 = sbr.rel (0) target = $region53
  $region52: #{_fwd.43} parent=0 // pred_region
    _
  $region53: #{_fwd.43} parent=0 // pred_fallthru
    _

// kernel: _fwd.44
$region0: #{_fwd.44}
  #allocation0 [shape = 'u32[]', space=smem, size = 0x4, offset = 0x4, fixed_abs, tag = 'smem constant byte address 0x4 - core index']
  #allocation1 [shape = 'u32[144,128]{1,0:T(1,128)}', space=vmem, size = 0x12000, scoped, tag = 'internal scratch']
  %s0 = inlined_call_operand.vmem [shape: bf16[2,8,16], index: 0, kind: input, shape index: {}]
  %s1 = inlined_call_operand.vmem [shape: bf16[2,8,16], index: 1, kind: input, shape index: {}]
  %s2 = inlined_call_operand.vmem [shape: bf16[2,8,16], index: 2, kind: input, shape index: {}]
  %s3 = inlined_call_operand.vmem [shape: f32[2,1,8], index: 3, kind: input, shape index: {}]
  %s4 = inlined_call_operand.vmem [shape: bf16[2,8,16], index: 4, kind: output, shape index: {}]
  %s5 = sld [smem:[#allocation0]]
  $region49: #{_fwd.44} parent=0
    _
  %s7 = ssub.s32 1, %s5
  %s8 = scalar_select 0, %s7, %s5
  loop: start=0, step=1, limit=4
  $region2: #{_fwd.44} parent=0 // loop_pre_header
    _
  $region3: #{_fwd.44} parent=0 // loop_header
    %s10 = sphi 0, %s14
    %p11 = scmp.ge.s32.totalorder %s10, 4
    %s20 = sphi 0, %s22
    %s23 = sphi 0, %s20
    %s24 = sphi 0, %s23
    %s40 = sphi 0, %s24
    %s46 = sphi 0, %s48
    %s49 = sphi 0, %s46
    %s50 = sphi 0, %s49
    %s66 = sphi 0, %s50
    %s72 = sphi 0, %s74
    %s75 = sphi 0, %s72
    %s76 = sphi 0, %s75
    %s92 = sphi 0, %s76
    %s98 = sphi 0, %s100
    %s101 = sphi 0, %s98
    %s102 = sphi 0, %s101
    %s118 = sphi 0, %s102
    %s124 = sphi 0, %s126
    %s127 = sphi 0, %s124
    %s128 = sphi 0, %s127
    %s144 = sphi 0, %s128
  $region4: #{_fwd.44} parent=0 // loop_header_branch
    %13 = sbr.rel (%p11) target = $region8
  $region5: #{_fwd.44} parent=0 // loop_body
    %s15 = ssub.s32 %s10, 1
    %s16 = ssub.s32 %s10, 2
    %s17 = sadd.s32 %s10, 1
    %s18 = ssub.s32 %s10, %s17
    %p19 = scmp.eq.s32.totalorder %s18, 0
    %s21 = sadd.s32 %s20, 1
    %s22 = scalar_select %p19, %s20, %s21
    %p25 = pneg %p19
    %p26 = scmp.eq.s32.totalorder %s10, 1
    %p27 = por %p25, %p26
    %p28 = scmp.ne.s32.totalorder %s20, %s23
    %p29 = scmp.eq.s32.totalorder %s10, 0
    %p30 = por %p28, %p29
    %p31 = scmp.ne.s32.totalorder %s20, %s23
    %p32 = scmp.eq.s32.totalorder %s15, 1
    %p33 = por %p31, %p32
    %p34 = scmp.ne.s32.totalorder %s23, %s24
    %p35 = scmp.eq.s32.totalorder %s15, 0
    %p36 = por %p34, %p35
    %p37 = scmp.ne.s32.totalorder %s23, %s24
    %p38 = scmp.eq.s32.totalorder %s16, 1
    %p39 = por %p37, %p38
    %p41 = scmp.ne.s32.totalorder %s24, %s40
    %p42 = scmp.eq.s32.totalorder %s16, 0
    %p43 = por %p41, %p42
    %s44 = ssub.s32 %s10, %s17
    %p45 = scmp.eq.s32.totalorder %s44, 0
    %s47 = sadd.s32 %s46, 1
    %s48 = scalar_select %p45, %s46, %s47
    %p51 = pneg %p45
    %p52 = scmp.eq.s32.totalorder %s10, 1
    %p53 = por %p51, %p52
    %p54 = scmp.ne.s32.totalorder %s46, %s49
    %p55 = scmp.eq.s32.totalorder %s10, 0
    %p56 = por %p54, %p55
    %p57 = scmp.ne.s32.totalorder %s46, %s49
    %p58 = scmp.eq.s32.totalorder %s15, 1
    %p59 = por %p57, %p58
    %p60 = scmp.ne.s32.totalorder %s49, %s50
    %p61 = scmp.eq.s32.totalorder %s15, 0
    %p62 = por %p60, %p61
    %p63 = scmp.ne.s32.totalorder %s49, %s50
    %p64 = scmp.eq.s32.totalorder %s16, 1
    %p65 = por %p63, %p64
    %p67 = scmp.ne.s32.totalorder %s50, %s66
    %p68 = scmp.eq.s32.totalorder %s16, 0
    %p69 = por %p67, %p68
    %s70 = ssub.s32 %s10, %s17
    %p71 = scmp.eq.s32.totalorder %s70, 0
    %s73 = sadd.s32 %s72, 1
    %s74 = scalar_select %p71, %s72, %s73
    %p77 = pneg %p71
    %p78 = scmp.eq.s32.totalorder %s10, 1
    %p79 = por %p77, %p78
    %p80 = scmp.ne.s32.totalorder %s72, %s75
    %p81 = scmp.eq.s32.totalorder %s10, 0
    %p82 = por %p80, %p81
    %p83 = scmp.ne.s32.totalorder %s72, %s75
    %p84 = scmp.eq.s32.totalorder %s15, 1
    %p85 = por %p83, %p84
    %p86 = scmp.ne.s32.totalorder %s75, %s76
    %p87 = scmp.eq.s32.totalorder %s15, 0
    %p88 = por %p86, %p87
    %p89 = scmp.ne.s32.totalorder %s75, %s76
    %p90 = scmp.eq.s32.totalorder %s16, 1
    %p91 = por %p89, %p90
    %p93 = scmp.ne.s32.totalorder %s76, %s92
    %p94 = scmp.eq.s32.totalorder %s16, 0
    %p95 = por %p93, %p94
    %s96 = ssub.s32 %s10, %s17
    %p97 = scmp.eq.s32.totalorder %s96, 0
    %s99 = sadd.s32 %s98, 1
    %s100 = scalar_select %p97, %s98, %s99
    %p103 = pneg %p97
    %p104 = scmp.eq.s32.totalorder %s10, 1
    %p105 = por %p103, %p104
    %p106 = scmp.ne.s32.totalorder %s98, %s101
    %p107 = scmp.eq.s32.totalorder %s10, 0
    %p108 = por %p106, %p107
    %p109 = scmp.ne.s32.totalorder %s98, %s101
    %p110 = scmp.eq.s32.totalorder %s15, 1
    %p111 = por %p109, %p110
    %p112 = scmp.ne.s32.totalorder %s101, %s102
    %p113 = scmp.eq.s32.totalorder %s15, 0
    %p114 = por %p112, %p113
    %p115 = scmp.ne.s32.totalorder %s101, %s102
    %p116 = scmp.eq.s32.totalorder %s16, 1
    %p117 = por %p115, %p116
    %p119 = scmp.ne.s32.totalorder %s102, %s118
    %p120 = scmp.eq.s32.totalorder %s16, 0
    %p121 = por %p119, %p120
    %s122 = ssub.s32 %s10, %s17
    %p123 = scmp.eq.s32.totalorder %s122, 0
    %s125 = sadd.s32 %s124, 1
    %s126 = scalar_select %p123, %s124, %s125
    %p129 = pneg %p123
    %p130 = scmp.eq.s32.totalorder %s10, 1
    %p131 = por %p129, %p130
    %p132 = scmp.ne.s32.totalorder %s124, %s127
    %p133 = scmp.eq.s32.totalorder %s10, 0
    %p134 = por %p132, %p133
    %p135 = scmp.ne.s32.totalorder %s124, %s127
    %p136 = scmp.eq.s32.totalorder %s15, 1
    %p137 = por %p135, %p136
    %p138 = scmp.ne.s32.totalorder %s127, %s128
    %p139 = scmp.eq.s32.totalorder %s15, 0
    %p140 = por %p138, %p139
    %p141 = scmp.ne.s32.totalorder %s127, %s128
    %p142 = scmp.eq.s32.totalorder %s16, 1
    %p143 = por %p141, %p142
    %p145 = scmp.ne.s32.totalorder %s128, %s144
    %p146 = scmp.eq.s32.totalorder %s16, 0
    %p147 = por %p145, %p146
    %p148 = scmp.le.s32.totalorder 1, %s10
    %p149 = scmp.lt.s32.totalorder %s10, 3
    %p150 = pnand %p148, %p149
    %p151 = pneg %p150
    // Predicated region
    $region9: #{_fwd.44} parent=5 // pred_check
      _
    $region10: #{_fwd.44} parent=5 // pred_check_branch
      %153 = sbr.rel (%p150) target = $region12
    $region11: #{_fwd.44} parent=5 // pred_region
      %s154 = ssub.s32 %s10, 1
    $region12: #{_fwd.44} parent=5 // pred_fallthru
      _
    %p155 = scmp.lt.s32.totalorder %s10, 2
    // Predicated region
    $region13: #{_fwd.44} parent=5 // pred_check
      %p156 = pneg %p155
    $region14: #{_fwd.44} parent=5 // pred_check_branch
      %158 = sbr.rel (%p156) target = $region16
    $region15: #{_fwd.44} parent=5 // pred_region
      // Predicated region
      $region17: #{_fwd.44} parent=15 // pred_check
        %p159 = pneg %p30
      $region18: #{_fwd.44} parent=15 // pred_check_branch
        %161 = sbr.rel (%p159) target = $region20
      $region19: #{_fwd.44} parent=15 // pred_region
        %p162 = scmp.lt.s32.totalorder %s10, 1
        %s163 = scalar_select %p162, %s10, 1
        %s164 = smul.addr %s163, 4
        %s165 = scalar_lea.vmem %s0, %s164
      $region20: #{_fwd.44} parent=15 // pred_fallthru
        _
      // Predicated region
      $region21: #{_fwd.44} parent=15 // pred_check
        %p166 = pneg %p56
      $region22: #{_fwd.44} parent=15 // pred_check_branch
        %168 = sbr.rel (%p166) target = $region24
      $region23: #{_fwd.44} parent=15 // pred_region
        %p169 = scmp.lt.s32.totalorder %s10, 1
        %s170 = scalar_select %p169, %s10, 1
        %s171 = smul.addr %s170, 4
        %s172 = scalar_lea.vmem %s1, %s171
      $region24: #{_fwd.44} parent=15 // pred_fallthru
        _
      // Predicated region
      $region25: #{_fwd.44} parent=15 // pred_check
        %p173 = pneg %p82
      $region26: #{_fwd.44} parent=15 // pred_check_branch
        %175 = sbr.rel (%p173) target = $region28
      $region27: #{_fwd.44} parent=15 // pred_region
        %p176 = scmp.lt.s32.totalorder %s10, 1
        %s177 = scalar_select %p176, %s10, 1
        %s178 = smul.addr %s177, 4
        %s179 = scalar_lea.vmem %s2, %s178
      $region28: #{_fwd.44} parent=15 // pred_fallthru
        _
      // Predicated region
      $region29: #{_fwd.44} parent=15 // pred_check
        %p180 = pneg %p108
      $region30: #{_fwd.44} parent=15 // pred_check_branch
        %182 = sbr.rel (%p180) target = $region32
      $region31: #{_fwd.44} parent=15 // pred_region
        %p183 = scmp.lt.s32.totalorder %s10, 1
        %s184 = scalar_select %p183, %s10, 1
        %s185 = scalar_lea.vmem %s3, %s184
      $region32: #{_fwd.44} parent=15 // pred_fallthru
        _
    $region16: #{_fwd.44} parent=5 // pred_fallthru
      _
    %p186 = scmp.le.s32.totalorder 1, %s10
    %p187 = scmp.lt.s32.totalorder %s10, 3
    %p188 = pnand %p186, %p187
    %p189 = pneg %p188
    // Predicated region
    $region33: #{_fwd.44} parent=5 // pred_check
      _
    $region34: #{_fwd.44} parent=5 // pred_check_branch
      %191 = sbr.rel (%p188) target = $region36
    $region35: #{_fwd.44} parent=5 // pred_region
      %s192 = ssub.s32 %s10, 1
      %p193 = scmp.lt.s32.totalorder %s15, 1
      %s194 = scalar_select %p193, %s15, 1
      %s195 = smul.addr %s194, 4
      %s196 = scalar_lea.vmem %s0, %s195
      %p197 = pneg %p36
      %p198 = pneg %p33
      %p199 = scmp.lt.s32.totalorder %s15, 1
      %s200 = scalar_select %p199, %s15, 1
      %s201 = smul.addr %s200, 4
      %s202 = scalar_lea.vmem %s1, %s201
      %p203 = pneg %p62
      %p204 = pneg %p59
      %p205 = scmp.lt.s32.totalorder %s15, 1
      %s206 = scalar_select %p205, %s15, 1
      %s207 = smul.addr %s206, 4
      %s208 = scalar_lea.vmem %s2, %s207
      %p209 = pneg %p88
      %p210 = pneg %p85
      %p211 = scmp.lt.s32.totalorder %s15, 1
      %s212 = scalar_select %p211, %s15, 1
      %s213 = scalar_lea.vmem %s3, %s212
      %p214 = pneg %p114
      %p215 = pneg %p111
      %p216 = pneg %p140
      %p217 = pneg %p137
      %p218 = scmp.lt.s32.totalorder %s15, 1
      %s219 = scalar_select %p218, %s15, 1
      %s220 = smul.addr %s219, 4
      %s221 = scalar_lea.vmem %s4, %s220
      %p222 = scmp.lt.s32.totalorder %s15, 1
      %s223 = scalar_select %p222, %s15, 1
      %s224 = smul.addr %s223, 4
      %s225 = scalar_lea.vmem %s0, %s224
      %p226 = scmp.lt.s32.totalorder %s15, 1
      %s227 = scalar_select %p226, %s15, 1
      %s228 = smul.addr %s227, 4
      %s229 = scalar_lea.vmem %s1, %s228
      %p230 = scmp.lt.s32.totalorder %s15, 1
      %s231 = scalar_select %p230, %s15, 1
      %s232 = smul.addr %s231, 4
      %s233 = scalar_lea.vmem %s2, %s232
      %p234 = scmp.lt.s32.totalorder %s15, 1
      %s235 = scalar_select %p234, %s15, 1
      %s236 = scalar_lea.vmem %s3, %s235
      %p237 = scmp.lt.s32.totalorder %s15, 1
      %s238 = scalar_select %p237, %s15, 1
      %s239 = smul.addr %s238, 4
      %s240 = scalar_lea.vmem %s4, %s239
      %v242 = vld [vmem:[%s236] sm:$0x1]
      %v243 = vld [vmem:[%s225] sm:$0xf]
      %v244 = vld [vmem:[%s229] sm:$0xf]
      %v245 = vld [vmem:[%s233] sm:$0xf]
      %vm246 = vcmask 64512
      %v248 = vsel %vm246, %v243, 0
      %v251 = vsel %vm246, %v244, 0
      %253 = vmatprep.subr.bf16.mxu0 0
      %254 = vmatpush1.bf16.xpose.msra.mxu0 %v251
      %255 = vmatprep.subr.bf16.mxu0 0
      %256 = vmatpush1.bf16.xpose.msra.mxu0 0
      %257 = vmatprep.subr.bf16.mxu0 0
      %258 = vmatpush1.bf16.xpose.msra.mxu0 0
      %259 = vmatprep.subr.bf16.mxu0 0
      %260 = vmatpush1.bf16.xpose.msra.mxu0 0
      %261 = vmatprep.subr.bf16.mxu0 0
      %262 = vmatpush1.bf16.xpose.msra.mxu0 0
      %263 = vmatprep.subr.bf16.mxu0 0
      %264 = vmatpush1.bf16.xpose.msra.mxu0 0
      %265 = vmatprep.subr.bf16.mxu0 0
      %266 = vmatpush1.bf16.xpose.msra.mxu0 0
      %267 = vmatprep.subr.bf16.mxu0 0
      %268 = vmatpush1.bf16.xpose.msra.mxu0 0
      %269 = vmatprep.subr.bf16.mxu0 0
      %270 = vmatpush1.bf16.xpose.msra.mxu0 0
      %271 = vmatprep.subr.bf16.mxu0 0
      %272 = vmatpush1.bf16.xpose.msra.mxu0 0
      %273 = vmatprep.subr.bf16.mxu0 0
      %274 = vmatpush1.bf16.xpose.msra.mxu0 0
      %275 = vmatprep.subr.bf16.mxu0 0
      %276 = vmatpush1.bf16.xpose.msra.mxu0 0
      %277 = vmatprep.subr.bf16.mxu0 0
      %278 = vmatpush1.bf16.xpose.msra.mxu0 0
      %279 = vmatprep.subr.bf16.mxu0 0
      %280 = vmatpush1.bf16.xpose.msra.mxu0 0
      %281 = vmatprep.subr.bf16.mxu0 0
      %282 = vmatpush1.bf16.xpose.msra.mxu0 0
      %283 = vmatprep.subr.bf16.mxu0 0
      %284 = vmatpush1.bf16.xpose.msra.mxu0 0
      %285 = vmatprep.mubr.bf16.mxu0 0
      %286 = vmatmul.mubr.bf16.gmra.mrb[0].mxu0 %v248
      %v287 = vpop.f32.mrb[0].mxu0
      %v288 = vadd.f32 0.0, %v287
      %v289 = vpop.f32.mrb[0].mxu0
      %v290 = vpop.f32.mrb[0].mxu0
      %v291 = vpop.f32.mrb[0].mxu0
      %292 = vdwg.mxu0
      %v293 = vmul.f32 %v288, 0.35355338
      %v295 = vlaneseq
      %v296 = vshrl.u32 %v295, 7
      %v297 = vsub.s32 0, %v296
      %v298 = vrot.slane %v242, %v297
      %v300 = vadd.f32 %v293, %v298
      %v301 = vsel %vm246, %v300, -inf
      %302 = vmax.xlane.f32.xlu0 %v301
      %v303 = vpop.xlane.xlu0 %302
      %v304 = vsub.f32 %v300, %v303
      %v305 = vmul.f32 %v304, 1.442695
      %v306 = vpow.pop %v305
      %v307 = vsel %vm246, %v306, 0.0
      %308 = vadd.xlane.f32.xlu0 %v307
      %v309 = vpop.xlane.xlu0 %308
      %v310 = vrcp.pop %v309
      %v311 = vmul.f32 %v306, %v310
      %v312 = vpack.c.bf16 %v311, %v311
      %v314 = vsel %vm246, %v312, 0
      %vm316 = vcmask 1043456
      %v318 = vsel %vm316, %v245, 0
      %320 = vmatprep.subr.bf16.mxu0 0
      %321 = vmatpush1.bf16.msra.mxu0 %v318
      %322 = vmatprep.subr.bf16.mxu0 0
      %323 = vmatpush1.bf16.msra.mxu0 0
      %324 = vmatprep.subr.bf16.mxu0 0
      %325 = vmatpush1.bf16.msra.mxu0 0
      %326 = vmatprep.subr.bf16.mxu0 0
      %327 = vmatpush1.bf16.msra.mxu0 0
      %328 = vmatprep.subr.bf16.mxu0 0
      %329 = vmatpush1.bf16.msra.mxu0 0
      %330 = vmatprep.subr.bf16.mxu0 0
      %331 = vmatpush1.bf16.msra.mxu0 0
      %332 = vmatprep.subr.bf16.mxu0 0
      %333 = vmatpush1.bf16.msra.mxu0 0
      %334 = vmatprep.subr.bf16.mxu0 0
      %335 = vmatpush1.bf16.msra.mxu0 0
      %336 = vmatprep.subr.bf16.mxu0 0
      %337 = vmatpush1.bf16.msra.mxu0 0
      %338 = vmatprep.subr.bf16.mxu0 0
      %339 = vmatpush1.bf16.msra.mxu0 0
      %340 = vmatprep.subr.bf16.mxu0 0
      %341 = vmatpush1.bf16.msra.mxu0 0
      %342 = vmatprep.subr.bf16.mxu0 0
      %343 = vmatpush1.bf16.msra.mxu0 0
      %344 = vmatprep.subr.bf16.mxu0 0
      %345 = vmatpush1.bf16.msra.mxu0 0
      %346 = vmatprep.subr.bf16.mxu0 0
      %347 = vmatpush1.bf16.msra.mxu0 0
      %348 = vmatprep.subr.bf16.mxu0 0
      %349 = vmatpush1.bf16.msra.mxu0 0
      %350 = vmatprep.subr.bf16.mxu0 0
      %351 = vmatpush1.bf16.msra.mxu0 0
      %352 = vmatprep.mubr.bf16.mxu0 0
      %353 = vmatmul.mubr.bf16.gmra.mrb[0].mxu0 %v314
      %v354 = vpop.f32.mrb[0].mxu0
      %v355 = vadd.f32 0.0, %v354
      %v356 = vpop.f32.mrb[0].mxu0
      %v357 = vpop.f32.mrb[0].mxu0
      %v358 = vpop.f32.mrb[0].mxu0
      %359 = vdwg.mxu0
      %v361 = vunpack.c.l.b16 %v243
      %v362 = vpack.c.b16 %v361, %v361
      %363 = vrot.lane.b32.xlu0 %v362, 120
      %v364 = vpop.permute.xlu0 %363
      %v366 = vunpack.c.l.b16 %v244
      %v367 = vpack.c.b16 %v366, %v366
      %368 = vrot.lane.b32.xlu0 %v367, 120
      %v369 = vpop.permute.xlu0 %368
      %v371 = vsel %vm246, %v364, 0
      %v374 = vsel %vm246, %v369, 0
      %376 = vmatprep.subr.bf16.mxu0 0
      %377 = vmatpush1.bf16.xpose.msra.mxu0 %v374
      %378 = vmatprep.subr.bf16.mxu0 0
      %379 = vmatpush1.bf16.xpose.msra.mxu0 0
      %380 = vmatprep.subr.bf16.mxu0 0
      %381 = vmatpush1.bf16.xpose.msra.mxu0 0
      %382 = vmatprep.subr.bf16.mxu0 0
      %383 = vmatpush1.bf16.xpose.msra.mxu0 0
      %384 = vmatprep.subr.bf16.mxu0 0
      %385 = vmatpush1.bf16.xpose.msra.mxu0 0
      %386 = vmatprep.subr.bf16.mxu0 0
      %387 = vmatpush1.bf16.xpose.msra.mxu0 0
      %388 = vmatprep.subr.bf16.mxu0 0
      %389 = vmatpush1.bf16.xpose.msra.mxu0 0
      %390 = vmatprep.subr.bf16.mxu0 0
      %391 = vmatpush1.bf16.xpose.msra.mxu0 0
      %392 = vmatprep.subr.bf16.mxu0 0
      %393 = vmatpush1.bf16.xpose.msra.mxu0 0
      %394 = vmatprep.subr.bf16.mxu0 0
      %395 = vmatpush1.bf16.xpose.msra.mxu0 0
      %396 = vmatprep.subr.bf16.mxu0 0
      %397 = vmatpush1.bf16.xpose.msra.mxu0 0
      %398 = vmatprep.subr.bf16.mxu0 0
      %399 = vmatpush1.bf16.xpose.msra.mxu0 0
      %400 = vmatprep.subr.bf16.mxu0 0
      %401 = vmatpush1.bf16.xpose.msra.mxu0 0
      %402 = vmatprep.subr.bf16.mxu0 0
      %403 = vmatpush1.bf16.xpose.msra.mxu0 0
      %404 = vmatprep.subr.bf16.mxu0 0
      %405 = vmatpush1.bf16.xpose.msra.mxu0 0
      %406 = vmatprep.subr.bf16.mxu0 0
      %407 = vmatpush1.bf16.xpose.msra.mxu0 0
      %408 = vmatprep.mubr.bf16.mxu0 0
      %409 = vmatmul.mubr.bf16.gmra.mrb[0].mxu0 %v371
      %v410 = vpop.f32.mrb[0].mxu0
      %v411 = vadd.f32 0.0, %v410
      %v412 = vpop.f32.mrb[0].mxu0
      %v413 = vpop.f32.mrb[0].mxu0
      %v414 = vpop.f32.mrb[0].mxu0
      %415 = vdwg.mxu0
      %v416 = vmul.f32 %v411, 0.35355338
      %v417 = vadd.f32 %v416, %v298
      %v418 = vsel %vm246, %v417, -inf
      %419 = vmax.xlane.f32.xlu0 %v418
      %v420 = vpop.xlane.xlu0 %419
      %v421 = vsub.f32 %v417, %v420
      %v422 = vmul.f32 %v421, 1.442695
      %v423 = vpow.pop %v422
      %v424 = vsel %vm246, %v423, 0.0
      %425 = vadd.xlane.f32.xlu0 %v424
      %v426 = vpop.xlane.xlu0 %425
      %v427 = vrcp.pop %v426
      %v428 = vmul.f32 %v423, %v427
      %v429 = vpack.c.bf16 %v428, %v428
      %v431 = vunpack.c.l.b16 %v245
      %v432 = vpack.c.b16 %v431, %v431
      %433 = vrot.lane.b32.xlu0 %v432, 120
      %v434 = vpop.permute.xlu0 %433
      %v436 = vsel %vm246, %v429, 0
      %v439 = vsel %vm316, %v434, 0
      %441 = vmatprep.subr.bf16.mxu0 0
      %442 = vmatpush1.bf16.msra.mxu0 %v439
      %443 = vmatprep.subr.bf16.mxu0 0
      %444 = vmatpush1.bf16.msra.mxu0 0
      %445 = vmatprep.subr.bf16.mxu0 0
      %446 = vmatpush1.bf16.msra.mxu0 0
      %447 = vmatprep.subr.bf16.mxu0 0
      %448 = vmatpush1.bf16.msra.mxu0 0
      %449 = vmatprep.subr.bf16.mxu0 0
      %450 = vmatpush1.bf16.msra.mxu0 0
      %451 = vmatprep.subr.bf16.mxu0 0
      %452 = vmatpush1.bf16.msra.mxu0 0
      %453 = vmatprep.subr.bf16.mxu0 0
      %454 = vmatpush1.bf16.msra.mxu0 0
      %455 = vmatprep.subr.bf16.mxu0 0
      %456 = vmatpush1.bf16.msra.mxu0 0
      %457 = vmatprep.subr.bf16.mxu0 0
      %458 = vmatpush1.bf16.msra.mxu0 0
      %459 = vmatprep.subr.bf16.mxu0 0
      %460 = vmatpush1.bf16.msra.mxu0 0
      %461 = vmatprep.subr.bf16.mxu0 0
      %462 = vmatpush1.bf16.msra.mxu0 0
      %463 = vmatprep.subr.bf16.mxu0 0
      %464 = vmatpush1.bf16.msra.mxu0 0
      %465 = vmatprep.subr.bf16.mxu0 0
      %466 = vmatpush1.bf16.msra.mxu0 0
      %467 = vmatprep.subr.bf16.mxu0 0
      %468 = vmatpush1.bf16.msra.mxu0 0
      %469 = vmatprep.subr.bf16.mxu0 0
      %470 = vmatpush1.bf16.msra.mxu0 0
      %471 = vmatprep.subr.bf16.mxu0 0
      %472 = vmatpush1.bf16.msra.mxu0 0
      %473 = vmatprep.mubr.bf16.mxu0 0
      %474 = vmatmul.mubr.bf16.gmra.mrb[0].mxu0 %v436
      %v475 = vpop.f32.mrb[0].mxu0
      %v476 = vadd.f32 0.0, %v475
      %v477 = vpop.f32.mrb[0].mxu0
      %v478 = vpop.f32.mrb[0].mxu0
      %v479 = vpop.f32.mrb[0].mxu0
      %480 = vdwg.mxu0
      %482 = vrot.lane.b32.xlu0 %v476, 8
      %v483 = vpop.permute.xlu0 %482
      %v485 = vsel %vm246, %v355, %v483
      %v486 = vpack.c.bf16 %v485, %v485
      %vm487 = vcmask 125952
      %488 = vst.msk [vmem:[%s240] sm:$0xf] %vm487, %v486
      %p489 = scmp.lt.s32.totalorder %s15, 1
      %s490 = scalar_select %p489, %s15, 1
      %s491 = smul.addr %s490, 4
      %s492 = scalar_lea.vmem %s4, %s491
      // Predicated region
      $region37: #{_fwd.44} parent=35 // pred_check
        %p493 = pneg %p137
      $region38: #{_fwd.44} parent=35 // pred_check_branch
        %495 = sbr.rel (%p493) target = $region40
      $region39: #{_fwd.44} parent=35 // pred_region
        _
      $region40: #{_fwd.44} parent=35 // pred_fallthru
        _
    $region36: #{_fwd.44} parent=5 // pred_fallthru
      _
    %p496 = scmp.le.s32.totalorder 2, %s10
    // Predicated region
    $region41: #{_fwd.44} parent=5 // pred_check
      %p497 = pneg %p496
    $region42: #{_fwd.44} parent=5 // pred_check_branch
      %499 = sbr.rel (%p497) target = $region44
    $region43: #{_fwd.44} parent=5 // pred_region
      %s500 = ssub.s32 %s10, 2
      // Predicated region
      $region45: #{_fwd.44} parent=43 // pred_check
        %p501 = pneg %p143
      $region46: #{_fwd.44} parent=43 // pred_check_branch
        %503 = sbr.rel (%p501) target = $region48
      $region47: #{_fwd.44} parent=43 // pred_region
        %p504 = scmp.lt.s32.totalorder %s16, 1
        %s505 = scalar_select %p504, %s16, 1
        %s506 = smul.addr %s505, 4
        %s507 = scalar_lea.vmem %s4, %s506
      $region48: #{_fwd.44} parent=43 // pred_fallthru
        _
    $region44: #{_fwd.44} parent=5 // pred_fallthru
      _
  $region6: #{_fwd.44} parent=0 // loop_footer
    %s14 = sadd.s32 1, %s10
  $region7: #{_fwd.44} parent=0 // loop_footer_branch
    %9 = sbr.rel target = $region3
  $region8: #{_fwd.44} parent=0 // loop_exit
    _

// kernel: _fwd.47
$region0: #{_fwd.47}
  #allocation0 [shape = 'u32[]', space=smem, size = 0x4, offset = 0x4, fixed_abs, tag = 'smem constant byte address 0x4 - core index']
  #allocation1 [shape = 'u32[144,128]{1,0:T(1,128)}', space=vmem, size = 0x12000, scoped, tag = 'internal scratch']
  %s0 = inlined_call_operand.vmem [shape: bf16[2,8,32], index: 0, kind: input, shape index: {}]
  %s1 = inlined_call_operand.vmem [shape: bf16[1,32,16], index: 1, kind: input, shape index: {}]
  %s2 = inlined_call_operand.vmem [shape: f32[1,16], index: 2, kind: input, shape index: {}, may-alias: {2,5}]
  %s3 = inlined_call_operand.vmem [shape: bf16[2,8,16], index: 3, kind: input, shape index: {}]
  %s4 = inlined_call_operand.vmem [shape: f32[1,16], index: 4, kind: input, shape index: {}]
  %s5 = inlined_call_operand.vmem [shape: f32[1,16], index: 5, kind: input, shape index: {}, may-alias: {2,5}]
  %s6 = inlined_call_operand.vmem [shape: bf16[2,8,16], index: 6, kind: output, shape index: {}]
  %s7 = sld [smem:[#allocation0]]
  $region57: #{_fwd.47} parent=0
    _
  %s9 = ssub.s32 1, %s7
  %s10 = scalar_select 0, %s9, %s7
  loop: start=0, step=1, limit=4
  $region2: #{_fwd.47} parent=0 // loop_pre_header
    _
  $region3: #{_fwd.47} parent=0 // loop_header
    %s12 = sphi 0, %s16
    %p13 = scmp.ge.s32.totalorder %s12, 4
    %s22 = sphi 0, %s24
    %s25 = sphi 0, %s22
    %s26 = sphi 0, %s25
    %s42 = sphi 0, %s26
    %s46 = sphi 0, %s46
    %s48 = sphi 0, %s46
    %s49 = sphi 0, %s48
    %s63 = sphi 0, %s49
    %s67 = sphi 0, %s67
    %s69 = sphi 0, %s67
    %s70 = sphi 0, %s69
    %s84 = sphi 0, %s70
    %s90 = sphi 0, %s92
    %s93 = sphi 0, %s90
    %s94 = sphi 0, %s93
    %s110 = sphi 0, %s94
    %s114 = sphi 0, %s114
    %s116 = sphi 0, %s114
    %s117 = sphi 0, %s116
    %s131 = sphi 0, %s117
    %s135 = sphi 0, %s135
    %s137 = sphi 0, %s135
    %s138 = sphi 0, %s137
    %s152 = sphi 0, %s138
    %s158 = sphi 0, %s160
    %s161 = sphi 0, %s158
    %s162 = sphi 0, %s161
    %s178 = sphi 0, %s162
  $region4: #{_fwd.47} parent=0 // loop_header_branch
    %15 = sbr.rel (%p13) target = $region8
  $region5: #{_fwd.47} parent=0 // loop_body
    %s17 = ssub.s32 %s12, 1
    %s18 = ssub.s32 %s12, 2
    %s19 = sadd.s32 %s12, 1
    %s20 = ssub.s32 %s12, %s19
    %p21 = scmp.eq.s32.totalorder %s20, 0
    %s23 = sadd.s32 %s22, 1
    %s24 = scalar_select %p21, %s22, %s23
    %p27 = pneg %p21
    %p28 = scmp.eq.s32.totalorder %s12, 1
    %p29 = por %p27, %p28
    %p30 = scmp.ne.s32.totalorder %s22, %s25
    %p31 = scmp.eq.s32.totalorder %s12, 0
    %p32 = por %p30, %p31
    %p33 = scmp.ne.s32.totalorder %s22, %s25
    %p34 = scmp.eq.s32.totalorder %s17, 1
    %p35 = por %p33, %p34
    %p36 = scmp.ne.s32.totalorder %s25, %s26
    %p37 = scmp.eq.s32.totalorder %s17, 0
    %p38 = por %p36, %p37
    %p39 = scmp.ne.s32.totalorder %s25, %s26
    %p40 = scmp.eq.s32.totalorder %s18, 1
    %p41 = por %p39, %p40
    %p43 = scmp.ne.s32.totalorder %s26, %s42
    %p44 = scmp.eq.s32.totalorder %s18, 0
    %p45 = por %p43, %p44
    %s47 = sadd.s32 %s46, 1
    %p50 = scmp.eq.s32.totalorder %s12, 1
    %p51 = scmp.ne.s32.totalorder %s46, %s48
    %p52 = scmp.eq.s32.totalorder %s12, 0
    %p53 = por %p51, %p52
    %p54 = scmp.ne.s32.totalorder %s46, %s48
    %p55 = scmp.eq.s32.totalorder %s17, 1
    %p56 = por %p54, %p55
    %p57 = scmp.ne.s32.totalorder %s48, %s49
    %p58 = scmp.eq.s32.totalorder %s17, 0
    %p59 = por %p57, %p58
    %p60 = scmp.ne.s32.totalorder %s48, %s49
    %p61 = scmp.eq.s32.totalorder %s18, 1
    %p62 = por %p60, %p61
    %p64 = scmp.ne.s32.totalorder %s49, %s63
    %p65 = scmp.eq.s32.totalorder %s18, 0
    %p66 = por %p64, %p65
    %s68 = sadd.s32 %s67, 1
    %p71 = scmp.eq.s32.totalorder %s12, 1
    %p72 = scmp.ne.s32.totalorder %s67, %s69
    %p73 = scmp.eq.s32.totalorder %s12, 0
    %p74 = por %p72, %p73
    %p75 = scmp.ne.s32.totalorder %s67, %s69
    %p76 = scmp.eq.s32.totalorder %s17, 1
    %p77 = por %p75, %p76
    %p78 = scmp.ne.s32.totalorder %s69, %s70
    %p79 = scmp.eq.s32.totalorder %s17, 0
    %p80 = por %p78, %p79
    %p81 = scmp.ne.s32.totalorder %s69, %s70
    %p82 = scmp.eq.s32.totalorder %s18, 1
    %p83 = por %p81, %p82
    %p85 = scmp.ne.s32.totalorder %s70, %s84
    %p86 = scmp.eq.s32.totalorder %s18, 0
    %p87 = por %p85, %p86
    %s88 = ssub.s32 %s12, %s19
    %p89 = scmp.eq.s32.totalorder %s88, 0
    %s91 = sadd.s32 %s90, 1
    %s92 = scalar_select %p89, %s90, %s91
    %p95 = pneg %p89
    %p96 = scmp.eq.s32.totalorder %s12, 1
    %p97 = por %p95, %p96
    %p98 = scmp.ne.s32.totalorder %s90, %s93
    %p99 = scmp.eq.s32.totalorder %s12, 0
    %p100 = por %p98, %p99
    %p101 = scmp.ne.s32.totalorder %s90, %s93
    %p102 = scmp.eq.s32.totalorder %s17, 1
    %p103 = por %p101, %p102
    %p104 = scmp.ne.s32.totalorder %s93, %s94
    %p105 = scmp.eq.s32.totalorder %s17, 0
    %p106 = por %p104, %p105
    %p107 = scmp.ne.s32.totalorder %s93, %s94
    %p108 = scmp.eq.s32.totalorder %s18, 1
    %p109 = por %p107, %p108
    %p111 = scmp.ne.s32.totalorder %s94, %s110
    %p112 = scmp.eq.s32.totalorder %s18, 0
    %p113 = por %p111, %p112
    %s115 = sadd.s32 %s114, 1
    %p118 = scmp.eq.s32.totalorder %s12, 1
    %p119 = scmp.ne.s32.totalorder %s114, %s116
    %p120 = scmp.eq.s32.totalorder %s12, 0
    %p121 = por %p119, %p120
    %p122 = scmp.ne.s32.totalorder %s114, %s116
    %p123 = scmp.eq.s32.totalorder %s17, 1
    %p124 = por %p122, %p123
    %p125 = scmp.ne.s32.totalorder %s116, %s117
    %p126 = scmp.eq.s32.totalorder %s17, 0
    %p127 = por %p125, %p126
    %p128 = scmp.ne.s32.totalorder %s116, %s117
    %p129 = scmp.eq.s32.totalorder %s18, 1
    %p130 = por %p128, %p129
    %p132 = scmp.ne.s32.totalorder %s117, %s131
    %p133 = scmp.eq.s32.totalorder %s18, 0
    %p134 = por %p132, %p133
    %s136 = sadd.s32 %s135, 1
    %p139 = scmp.eq.s32.totalorder %s12, 1
    %p140 = scmp.ne.s32.totalorder %s135, %s137
    %p141 = scmp.eq.s32.totalorder %s12, 0
    %p142 = por %p140, %p141
    %p143 = scmp.ne.s32.totalorder %s135, %s137
    %p144 = scmp.eq.s32.totalorder %s17, 1
    %p145 = por %p143, %p144
    %p146 = scmp.ne.s32.totalorder %s137, %s138
    %p147 = scmp.eq.s32.totalorder %s17, 0
    %p148 = por %p146, %p147
    %p149 = scmp.ne.s32.totalorder %s137, %s138
    %p150 = scmp.eq.s32.totalorder %s18, 1
    %p151 = por %p149, %p150
    %p153 = scmp.ne.s32.totalorder %s138, %s152
    %p154 = scmp.eq.s32.totalorder %s18, 0
    %p155 = por %p153, %p154
    %s156 = ssub.s32 %s12, %s19
    %p157 = scmp.eq.s32.totalorder %s156, 0
    %s159 = sadd.s32 %s158, 1
    %s160 = scalar_select %p157, %s158, %s159
    %p163 = pneg %p157
    %p164 = scmp.eq.s32.totalorder %s12, 1
    %p165 = por %p163, %p164
    %p166 = scmp.ne.s32.totalorder %s158, %s161
    %p167 = scmp.eq.s32.totalorder %s12, 0
    %p168 = por %p166, %p167
    %p169 = scmp.ne.s32.totalorder %s158, %s161
    %p170 = scmp.eq.s32.totalorder %s17, 1
    %p171 = por %p169, %p170
    %p172 = scmp.ne.s32.totalorder %s161, %s162
    %p173 = scmp.eq.s32.totalorder %s17, 0
    %p174 = por %p172, %p173
    %p175 = scmp.ne.s32.totalorder %s161, %s162
    %p176 = scmp.eq.s32.totalorder %s18, 1
    %p177 = por %p175, %p176
    %p179 = scmp.ne.s32.totalorder %s162, %s178
    %p180 = scmp.eq.s32.totalorder %s18, 0
    %p181 = por %p179, %p180
    %p182 = scmp.le.s32.totalorder 1, %s12
    %p183 = scmp.lt.s32.totalorder %s12, 3
    %p184 = pnand %p182, %p183
    %p185 = pneg %p184
    // Predicated region
    $region9: #{_fwd.47} parent=5 // pred_check
      _
    $region10: #{_fwd.47} parent=5 // pred_check_branch
      %187 = sbr.rel (%p184) target = $region12
    $region11: #{_fwd.47} parent=5 // pred_region
      %s188 = ssub.s32 %s12, 1
      // Predicated region
      $region13: #{_fwd.47} parent=11 // pred_check
        %p189 = pneg %p59
      $region14: #{_fwd.47} parent=11 // pred_check_branch
        %191 = sbr.rel (%p189) target = $region16
      $region15: #{_fwd.47} parent=11 // pred_region
        _
      $region16: #{_fwd.47} parent=11 // pred_fallthru
        _
      // Predicated region
      $region17: #{_fwd.47} parent=11 // pred_check
        %p192 = pneg %p80
      $region18: #{_fwd.47} parent=11 // pred_check_branch
        %194 = sbr.rel (%p192) target = $region20
      $region19: #{_fwd.47} parent=11 // pred_region
        _
      $region20: #{_fwd.47} parent=11 // pred_fallthru
        _
      // Predicated region
      $region21: #{_fwd.47} parent=11 // pred_check
        %p195 = pneg %p127
      $region22: #{_fwd.47} parent=11 // pred_check_branch
        %197 = sbr.rel (%p195) target = $region24
      $region23: #{_fwd.47} parent=11 // pred_region
        _
      $region24: #{_fwd.47} parent=11 // pred_fallthru
        _
      // Predicated region
      $region25: #{_fwd.47} parent=11 // pred_check
        %p198 = pneg %p148
      $region26: #{_fwd.47} parent=11 // pred_check_branch
        %200 = sbr.rel (%p198) target = $region28
      $region27: #{_fwd.47} parent=11 // pred_region
        _
      $region28: #{_fwd.47} parent=11 // pred_fallthru
        _
    $region12: #{_fwd.47} parent=5 // pred_fallthru
      _
    %p201 = scmp.lt.s32.totalorder %s12, 2
    // Predicated region
    $region29: #{_fwd.47} parent=5 // pred_check
      %p202 = pneg %p201
    $region30: #{_fwd.47} parent=5 // pred_check_branch
      %204 = sbr.rel (%p202) target = $region32
    $region31: #{_fwd.47} parent=5 // pred_region
      // Predicated region
      $region33: #{_fwd.47} parent=31 // pred_check
        %p205 = pneg %p32
      $region34: #{_fwd.47} parent=31 // pred_check_branch
        %207 = sbr.rel (%p205) target = $region36
      $region35: #{_fwd.47} parent=31 // pred_region
        %p208 = scmp.lt.s32.totalorder %s12, 1
        %s209 = scalar_select %p208, %s12, 1
        %s210 = smul.addr %s209, 4
        %s211 = scalar_lea.vmem %s0, %s210
      $region36: #{_fwd.47} parent=31 // pred_fallthru
        _
      // Predicated region
      $region37: #{_fwd.47} parent=31 // pred_check
        %p212 = pneg %p100
      $region38: #{_fwd.47} parent=31 // pred_check_branch
        %214 = sbr.rel (%p212) target = $region40
      $region39: #{_fwd.47} parent=31 // pred_region
        %p215 = scmp.lt.s32.totalorder %s12, 1
        %s216 = scalar_select %p215, %s12, 1
        %s217 = smul.addr %s216, 4
        %s218 = scalar_lea.vmem %s3, %s217
      $region40: #{_fwd.47} parent=31 // pred_fallthru
        _
    $region32: #{_fwd.47} parent=5 // pred_fallthru
      _
    %p219 = scmp.le.s32.totalorder 1, %s12
    %p220 = scmp.lt.s32.totalorder %s12, 3
    %p221 = pnand %p219, %p220
    %p222 = pneg %p221
    // Predicated region
    $region41: #{_fwd.47} parent=5 // pred_check
      _
    $region42: #{_fwd.47} parent=5 // pred_check_branch
      %224 = sbr.rel (%p221) target = $region44
    $region43: #{_fwd.47} parent=5 // pred_region
      %s225 = ssub.s32 %s12, 1
      %p226 = scmp.lt.s32.totalorder %s17, 1
      %s227 = scalar_select %p226, %s17, 1
      %s228 = smul.addr %s227, 4
      %s229 = scalar_lea.vmem %s0, %s228
      %p230 = pneg %p38
      %p231 = pneg %p35
      %p232 = pneg %p59
      %p233 = pneg %p56
      %p234 = pneg %p80
      %p235 = pneg %p77
      %p236 = scmp.lt.s32.totalorder %s17, 1
      %s237 = scalar_select %p236, %s17, 1
      %s238 = smul.addr %s237, 4
      %s239 = scalar_lea.vmem %s3, %s238
      %p240 = pneg %p106
      %p241 = pneg %p103
      %p242 = pneg %p127
      %p243 = pneg %p124
      %p244 = pneg %p148
      %p245 = pneg %p145
      %p246 = pneg %p174
      %p247 = pneg %p171
      %p248 = scmp.lt.s32.totalorder %s17, 1
      %s249 = scalar_select %p248, %s17, 1
      %s250 = smul.addr %s249, 4
      %s251 = scalar_lea.vmem %s6, %s250
      %p252 = scmp.lt.s32.totalorder %s17, 1
      %s253 = scalar_select %p252, %s17, 1
      %s254 = smul.addr %s253, 4
      %s255 = scalar_lea.vmem %s0, %s254
      %p256 = scmp.lt.s32.totalorder %s17, 1
      %s257 = scalar_select %p256, %s17, 1
      %s258 = smul.addr %s257, 4
      %s259 = scalar_lea.vmem %s3, %s258
      %p260 = scmp.lt.s32.totalorder %s17, 1
      %s261 = scalar_select %p260, %s17, 1
      %s262 = smul.addr %s261, 4
      %s263 = scalar_lea.vmem %s6, %s262
      %v265 = vld [vmem:[%s255] sm:$0xf]
      %v266 = vld [vmem:[%s1] sm:$0xf]
      %v267 = vld [vmem:[%s1 + $0x4] sm:$0xf]
      %v268 = vld [vmem:[%s1 + $0x8] sm:$0xf]
      %v269 = vld [vmem:[%s1 + $0xc] sm:$0xf]
      %v270 = vld [vmem:[%s2] sm:$0x1]
      %v272 = vlaneseq
      %v273 = vshrl.u32 %v272, 7
      %v274 = vsub.s32 0, %v273
      %v275 = vrot.slane %v270, %v274
      %v281 = vunpack.c.l.b16 %v266
      %v282 = vunpack.c.l.b16 %v267
      %v283 = vunpack.c.l.b16 %v268
      %v284 = vunpack.c.l.b16 %v269
      %v285 = vpack.c.b16 %v282, %v281
      %v286 = vpack.c.b16 %v284, %v283
      %vm289 = vcmask 261120
      %v291 = vsel %vm289, %v265, 0
      %293 = vmatprep.subr.bf16.mxu0 0
      %294 = vmatpush1.bf16.msra.mxu0 %v285
      %295 = vmatprep.subr.bf16.mxu0 0
      %296 = vmatpush1.bf16.msra.mxu0 %v286
      %297 = vmatprep.subr.bf16.mxu0 0
      %298 = vmatpush1.bf16.msra.mxu0 0
      %299 = vmatprep.subr.bf16.mxu0 0
      %300 = vmatpush1.bf16.msra.mxu0 0
      %301 = vmatprep.subr.bf16.mxu0 0
      %302 = vmatpush1.bf16.msra.mxu0 0
      %303 = vmatprep.subr.bf16.mxu0 0
      %304 = vmatpush1.bf16.msra.mxu0 0
      %305 = vmatprep.subr.bf16.mxu0 0
      %306 = vmatpush1.bf16.msra.mxu0 0
      %307 = vmatprep.subr.bf16.mxu0 0
      %308 = vmatpush1.bf16.msra.mxu0 0
      %309 = vmatprep.subr.bf16.mxu0 0
      %310 = vmatpush1.bf16.msra.mxu0 0
      %311 = vmatprep.subr.bf16.mxu0 0
      %312 = vmatpush1.bf16.msra.mxu0 0
      %313 = vmatprep.subr.bf16.mxu0 0
      %314 = vmatpush1.bf16.msra.mxu0 0
      %315 = vmatprep.subr.bf16.mxu0 0
      %316 = vmatpush1.bf16.msra.mxu0 0
      %317 = vmatprep.subr.bf16.mxu0 0
      %318 = vmatpush1.bf16.msra.mxu0 0
      %319 = vmatprep.subr.bf16.mxu0 0
      %320 = vmatpush1.bf16.msra.mxu0 0
      %321 = vmatprep.subr.bf16.mxu0 0
      %322 = vmatpush1.bf16.msra.mxu0 0
      %323 = vmatprep.subr.bf16.mxu0 0
      %324 = vmatpush1.bf16.msra.mxu0 0
      %325 = vmatprep.mubr.bf16.mxu0 0
      %326 = vmatmul.mubr.bf16.gmra.mrb[0].mxu0 %v291
      %v327 = vpop.f32.mrb[0].mxu0
      %v328 = vadd.f32 %v275, %v327
      %v329 = vpop.f32.mrb[0].mxu0
      %v330 = vpop.f32.mrb[0].mxu0
      %v331 = vpop.f32.mrb[0].mxu0
      %332 = vdwg.mxu0
      %v333 = vld [vmem:[%s259] sm:$0xf]
      %v334 = vunpack.c.l.bf16 %v333
      %v335 = vadd.f32 %v328, %v334
      %vm336 = vcmask 130048
      %v337 = vsel %vm336, %v335, 0.0
      %338 = vadd.xlane.f32.xlu0 %v337
      %v339 = vpop.xlane.xlu0 %338
      %v340 = vrcp.pop 16.0
      %v341 = vmul.f32 %v339, %v340
      %v342 = vsub.f32 %v335, %v341
      %v343 = vmul.f32 %v342, %v342
      %v344 = vsel %vm336, %v343, 0.0
      %345 = vadd.xlane.f32.xlu0 %v344
      %v346 = vpop.xlane.xlu0 %345
      %v347 = vmul.f32 %v346, %v340
      %v348 = vadd.f32 %v347, 1e-05
      %v349 = vrsqrt.pop %v348
      %v350 = vmul.f32 %v342, %v349
      %v351 = vld [vmem:[%s4] sm:$0x1]
      %v353 = vlaneseq
      %v354 = vshrl.u32 %v353, 7
      %v355 = vsub.s32 0, %v354
      %v356 = vrot.slane %v351, %v355
      %v358 = vmul.f32 %v350, %v356
      %v359 = vld [vmem:[%s5] sm:$0x1]
      %v361 = vlaneseq
      %v362 = vshrl.u32 %v361, 7
      %v363 = vsub.s32 0, %v362
      %v364 = vrot.slane %v359, %v363
      %v366 = vadd.f32 %v358, %v364
      %v367 = vpack.c.bf16 %v366, %v366
      %vm368 = vcmask 125952
      %369 = vst.msk [vmem:[%s263] sm:$0xf] %vm368, %v367
      %p370 = scmp.lt.s32.totalorder %s17, 1
      %s371 = scalar_select %p370, %s17, 1
      %s372 = smul.addr %s371, 4
      %s373 = scalar_lea.vmem %s6, %s372
      // Predicated region
      $region45: #{_fwd.47} parent=43 // pred_check
        %p374 = pneg %p171
      $region46: #{_fwd.47} parent=43 // pred_check_branch
        %376 = sbr.rel (%p374) target = $region48
      $region47: #{_fwd.47} parent=43 // pred_region
        _
      $region48: #{_fwd.47} parent=43 // pred_fallthru
        _
    $region44: #{_fwd.47} parent=5 // pred_fallthru
      _
    %p377 = scmp.le.s32.totalorder 2, %s12
    // Predicated region
    $region49: #{_fwd.47} parent=5 // pred_check
      %p378 = pneg %p377
    $region50: #{_fwd.47} parent=5 // pred_check_branch
      %380 = sbr.rel (%p378) target = $region52
    $region51: #{_fwd.47} parent=5 // pred_region
      %s381 = ssub.s32 %s12, 2
      // Predicated region
      $region53: #{_fwd.47} parent=51 // pred_check
        %p382 = pneg %p177
      $region54: #{_fwd.47} parent=51 // pred_check_branch
        %384 = sbr.rel (%p382) target = $region56
      $region55: #{_fwd.47} parent=51 // pred_region
        %p385 = scmp.lt.s32.totalorder %s18, 1
        %s386 = scalar_select %p385, %s18, 1
        %s387 = smul.addr %s386, 4
        %s388 = scalar_lea.vmem %s6, %s387
      $region56: #{_fwd.47} parent=51 // pred_fallthru
        _
    $region52: #{_fwd.47} parent=5 // pred_fallthru
      _
  $region6: #{_fwd.47} parent=0 // loop_footer
    %s16 = sadd.s32 1, %s12
  $region7: #{_fwd.47} parent=0 // loop_footer_branch
    %11 = sbr.rel target = $region3
  $region8: #{_fwd.47} parent=0 // loop_exit
    _

// kernel: _fwd.49
$region0: #{_fwd.49}
  #allocation0 [shape = 'u32[]', space=smem, size = 0x4, offset = 0x4, fixed_abs, tag = 'smem constant byte address 0x4 - core index']
  #allocation1 [shape = 'u32[144,128]{1,0:T(1,128)}', space=vmem, size = 0x12000, scoped, tag = 'internal scratch']
  %s0 = inlined_call_operand.vmem [shape: bf16[16,16], index: 0, kind: input, shape index: {}]
  %s1 = inlined_call_operand.vmem [shape: bf16[16,128], index: 1, kind: input, shape index: {}]
  %s2 = inlined_call_operand.vmem [shape: f32[1,128], index: 2, kind: input, shape index: {}]
  %s3 = inlined_call_operand.vmem [shape: bf16[16,128], index: 3, kind: output, shape index: {}]
  %s4 = sld [smem:[#allocation0]]
  $region22: #{_fwd.49} parent=0
    _
  %s6 = ssub.s32 1, %s4
  %s7 = scalar_select 0, %s6, %s4
  // Predicated region
  $region2: #{_fwd.49} parent=0 // pred_check
    _
  $region3: #{_fwd.49} parent=0 // pred_check_branch
    %9 = sbr.rel (0) target = $region5
  $region4: #{_fwd.49} parent=0 // pred_region
    _
  $region5: #{_fwd.49} parent=0 // pred_fallthru
    _
  // Predicated region
  $region6: #{_fwd.49} parent=0 // pred_check
    _
  $region7: #{_fwd.49} parent=0 // pred_check_branch
    %11 = sbr.rel (0) target = $region9
  $region8: #{_fwd.49} parent=0 // pred_region
    _
  $region9: #{_fwd.49} parent=0 // pred_fallthru
    _
  // Predicated region
  $region10: #{_fwd.49} parent=0 // pred_check
    _
  $region11: #{_fwd.49} parent=0 // pred_check_branch
    %13 = sbr.rel (0) target = $region13
  $region12: #{_fwd.49} parent=0 // pred_region
    _
  $region13: #{_fwd.49} parent=0 // pred_fallthru
    _
  %v15 = vld [vmem:[%s0] sm:$0xf]
  %v16 = vld [vmem:[%s0 + $0x4] sm:$0xf]
  %v17 = vld [vmem:[%s1] sm:$0xf]
  %v18 = vld [vmem:[%s1 + $0x4] sm:$0xf]
  %v19 = vld [vmem:[%s2] sm:$0x1]
  %v21 = vlaneseq
  %v22 = vshrl.u32 %v21, 7
  %v23 = vsub.s32 0, %v22
  %v24 = vrot.slane %v19, %v23
  %v28 = vunpack.c.l.b16 %v15
  %v29 = vunpack.c.l.b16 %v16
  %v30 = vpack.c.b16 %v29, %v28
  %v33 = vunpack.c.l.b16 %v17
  %v34 = vunpack.c.l.b16 %v18
  %v35 = vpack.c.b16 %v34, %v33
  %vm37 = vcmask 130048
  %v39 = vsel %vm37, %v30, 0
  %41 = vmatprep.subr.bf16.mxu0 0
  %42 = vmatpush1.bf16.msra.mxu0 %v35
  %43 = vmatprep.subr.bf16.mxu0 0
  %44 = vmatpush1.bf16.msra.mxu0 0
  %45 = vmatprep.subr.bf16.mxu0 0
  %46 = vmatpush1.bf16.msra.mxu0 0
  %47 = vmatprep.subr.bf16.mxu0 0
  %48 = vmatpush1.bf16.msra.mxu0 0
  %49 = vmatprep.subr.bf16.mxu0 0
  %50 = vmatpush1.bf16.msra.mxu0 0
  %51 = vmatprep.subr.bf16.mxu0 0
  %52 = vmatpush1.bf16.msra.mxu0 0
  %53 = vmatprep.subr.bf16.mxu0 0
  %54 = vmatpush1.bf16.msra.mxu0 0
  %55 = vmatprep.subr.bf16.mxu0 0
  %56 = vmatpush1.bf16.msra.mxu0 0
  %57 = vmatprep.subr.bf16.mxu0 0
  %58 = vmatpush1.bf16.msra.mxu0 0
  %59 = vmatprep.subr.bf16.mxu0 0
  %60 = vmatpush1.bf16.msra.mxu0 0
  %61 = vmatprep.subr.bf16.mxu0 0
  %62 = vmatpush1.bf16.msra.mxu0 0
  %63 = vmatprep.subr.bf16.mxu0 0
  %64 = vmatpush1.bf16.msra.mxu0 0
  %65 = vmatprep.subr.bf16.mxu0 0
  %66 = vmatpush1.bf16.msra.mxu0 0
  %67 = vmatprep.subr.bf16.mxu0 0
  %68 = vmatpush1.bf16.msra.mxu0 0
  %69 = vmatprep.subr.bf16.mxu0 0
  %70 = vmatpush1.bf16.msra.mxu0 0
  %71 = vmatprep.subr.bf16.mxu0 0
  %72 = vmatpush1.bf16.msra.mxu0 0
  %73 = vmatprep.mubr.bf16.mxu0 0
  %74 = vmatmul.mubr.bf16.gmra.mrb[0].mxu0 %v39
  %v75 = vpop.f32.mrb[0].mxu0
  %v76 = vadd.f32 %v24, %v75
  %v77 = vpop.f32.mrb[0].mxu0
  %v78 = vpop.f32.mrb[0].mxu0
  %v79 = vadd.f32 %v24, %v78
  %v80 = vpop.f32.mrb[0].mxu0
  %81 = vdwg.mxu0
  %v82 = vpack.c.bf16 %v79, %v76
  %v84 = vunpack.c.l.b16 %v82
  %v85 = vunpack.c.h.b16 %v82
  %v86 = vpack.c.b16 %v84, %v84
  %v87 = vpack.c.b16 %v85, %v85
  %90 = vst [vmem:[%s3] sm:$0xf] %v86
  %91 = vst [vmem:[%s3 + $0x4] sm:$0xf] %v87
  // Predicated region
  $region14: #{_fwd.49} parent=0 // pred_check
    _
  $region15: #{_fwd.49} parent=0 // pred_check_branch
    %93 = sbr.rel (0) target = $region17
  $region16: #{_fwd.49} parent=0 // pred_region
    _
  $region17: #{_fwd.49} parent=0 // pred_fallthru
    _
  // Predicated region
  $region18: #{_fwd.49} parent=0 // pred_check
    _
  $region19: #{_fwd.49} parent=0 // pred_check_branch
    %95 = sbr.rel (0) target = $region21
  $region20: #{_fwd.49} parent=0 // pred_region
    _
  $region21: #{_fwd.49} parent=0 // pred_fallthru
    _

// kernel: _fwd.46
$region0: #{_fwd.46}
  #allocation0 [shape = 'u32[]', space=smem, size = 0x4, offset = 0x4, fixed_abs, tag = 'smem constant byte address 0x4 - core index']
  #allocation1 [shape = 'u32[144,128]{1,0:T(1,128)}', space=vmem, size = 0x12000, scoped, tag = 'internal scratch']
  %s0 = inlined_call_operand.vmem [shape: bf16[2,10,16], index: 0, kind: input, shape index: {}]
  %s1 = inlined_call_operand.vmem [shape: bf16[3,16,32], index: 1, kind: input, shape index: {}]
  %s2 = inlined_call_operand.vmem [shape: f32[1,32], index: 2, kind: input, shape index: {}]
  %s3 = inlined_call_operand.vmem [shape: bf16[2,8,32], index: 3, kind: output, shape index: {}]
  %s4 = sld [smem:[#allocation0]]
  $region45: #{_fwd.46} parent=0
    _
  %s6 = ssub.s32 1, %s4
  %s7 = scalar_select 0, %s6, %s4
  loop: start=0, step=1, limit=4
  $region2: #{_fwd.46} parent=0 // loop_pre_header
    _
  $region3: #{_fwd.46} parent=0 // loop_header
    %s9 = sphi 0, %s13
    %p10 = scmp.ge.s32.totalorder %s9, 4
    %s19 = sphi 0, %s21
    %s22 = sphi 0, %s19
    %s23 = sphi 0, %s22
    %s39 = sphi 0, %s23
    %s43 = sphi 0, %s43
    %s45 = sphi 0, %s43
    %s46 = sphi 0, %s45
    %s60 = sphi 0, %s46
    %s64 = sphi 0, %s64
    %s66 = sphi 0, %s64
    %s67 = sphi 0, %s66
    %s81 = sphi 0, %s67
    %s87 = sphi 0, %s89
    %s90 = sphi 0, %s87
    %s91 = sphi 0, %s90
    %s107 = sphi 0, %s91
  $region4: #{_fwd.46} parent=0 // loop_header_branch
    %12 = sbr.rel (%p10) target = $region8
  $region5: #{_fwd.46} parent=0 // loop_body
    %s14 = ssub.s32 %s9, 1
    %s15 = ssub.s32 %s9, 2
    %s16 = sadd.s32 %s9, 1
    %s17 = ssub.s32 %s9, %s16
    %p18 = scmp.eq.s32.totalorder %s17, 0
    %s20 = sadd.s32 %s19, 1
    %s21 = scalar_select %p18, %s19, %s20
    %p24 = pneg %p18
    %p25 = scmp.eq.s32.totalorder %s9, 1
    %p26 = por %p24, %p25
    %p27 = scmp.ne.s32.totalorder %s19, %s22
    %p28 = scmp.eq.s32.totalorder %s9, 0
    %p29 = por %p27, %p28
    %p30 = scmp.ne.s32.totalorder %s19, %s22
    %p31 = scmp.eq.s32.totalorder %s14, 1
    %p32 = por %p30, %p31
    %p33 = scmp.ne.s32.totalorder %s22, %s23
    %p34 = scmp.eq.s32.totalorder %s14, 0
    %p35 = por %p33, %p34
    %p36 = scmp.ne.s32.totalorder %s22, %s23
    %p37 = scmp.eq.s32.totalorder %s15, 1
    %p38 = por %p36, %p37
    %p40 = scmp.ne.s32.totalorder %s23, %s39
    %p41 = scmp.eq.s32.totalorder %s15, 0
    %p42 = por %p40, %p41
    %s44 = sadd.s32 %s43, 1
    %p47 = scmp.eq.s32.totalorder %s9, 1
    %p48 = scmp.ne.s32.totalorder %s43, %s45
    %p49 = scmp.eq.s32.totalorder %s9, 0
    %p50 = por %p48, %p49
    %p51 = scmp.ne.s32.totalorder %s43, %s45
    %p52 = scmp.eq.s32.totalorder %s14, 1
    %p53 = por %p51, %p52
    %p54 = scmp.ne.s32.totalorder %s45, %s46
    %p55 = scmp.eq.s32.totalorder %s14, 0
    %p56 = por %p54, %p55
    %p57 = scmp.ne.s32.totalorder %s45, %s46
    %p58 = scmp.eq.s32.totalorder %s15, 1
    %p59 = por %p57, %p58
    %p61 = scmp.ne.s32.totalorder %s46, %s60
    %p62 = scmp.eq.s32.totalorder %s15, 0
    %p63 = por %p61, %p62
    %s65 = sadd.s32 %s64, 1
    %p68 = scmp.eq.s32.totalorder %s9, 1
    %p69 = scmp.ne.s32.totalorder %s64, %s66
    %p70 = scmp.eq.s32.totalorder %s9, 0
    %p71 = por %p69, %p70
    %p72 = scmp.ne.s32.totalorder %s64, %s66
    %p73 = scmp.eq.s32.totalorder %s14, 1
    %p74 = por %p72, %p73
    %p75 = scmp.ne.s32.totalorder %s66, %s67
    %p76 = scmp.eq.s32.totalorder %s14, 0
    %p77 = por %p75, %p76
    %p78 = scmp.ne.s32.totalorder %s66, %s67
    %p79 = scmp.eq.s32.totalorder %s15, 1
    %p80 = por %p78, %p79
    %p82 = scmp.ne.s32.totalorder %s67, %s81
    %p83 = scmp.eq.s32.totalorder %s15, 0
    %p84 = por %p82, %p83
    %s85 = ssub.s32 %s9, %s16
    %p86 = scmp.eq.s32.totalorder %s85, 0
    %s88 = sadd.s32 %s87, 1
    %s89 = scalar_select %p86, %s87, %s88
    %p92 = pneg %p86
    %p93 = scmp.eq.s32.totalorder %s9, 1
    %p94 = por %p92, %p93
    %p95 = scmp.ne.s32.totalorder %s87, %s90
    %p96 = scmp.eq.s32.totalorder %s9, 0
    %p97 = por %p95, %p96
    %p98 = scmp.ne.s32.totalorder %s87, %s90
    %p99 = scmp.eq.s32.totalorder %s14, 1
    %p100 = por %p98, %p99
    %p101 = scmp.ne.s32.totalorder %s90, %s91
    %p102 = scmp.eq.s32.totalorder %s14, 0
    %p103 = por %p101, %p102
    %p104 = scmp.ne.s32.totalorder %s90, %s91
    %p105 = scmp.eq.s32.totalorder %s15, 1
    %p106 = por %p104, %p105
    %p108 = scmp.ne.s32.totalorder %s91, %s107
    %p109 = scmp.eq.s32.totalorder %s15, 0
    %p110 = por %p108, %p109
    %p111 = scmp.le.s32.totalorder 1, %s9
    %p112 = scmp.lt.s32.totalorder %s9, 3
    %p113 = pnand %p111, %p112
    %p114 = pneg %p113
    // Predicated region
    $region9: #{_fwd.46} parent=5 // pred_check
      _
    $region10: #{_fwd.46} parent=5 // pred_check_branch
      %116 = sbr.rel (%p113) target = $region12
    $region11: #{_fwd.46} parent=5 // pred_region
      %s117 = ssub.s32 %s9, 1
      // Predicated region
      $region13: #{_fwd.46} parent=11 // pred_check
        %p118 = pneg %p56
      $region14: #{_fwd.46} parent=11 // pred_check_branch
        %120 = sbr.rel (%p118) target = $region16
      $region15: #{_fwd.46} parent=11 // pred_region
        _
      $region16: #{_fwd.46} parent=11 // pred_fallthru
        _
      // Predicated region
      $region17: #{_fwd.46} parent=11 // pred_check
        %p121 = pneg %p77
      $region18: #{_fwd.46} parent=11 // pred_check_branch
        %123 = sbr.rel (%p121) target = $region20
      $region19: #{_fwd.46} parent=11 // pred_region
        _
      $region20: #{_fwd.46} parent=11 // pred_fallthru
        _
    $region12: #{_fwd.46} parent=5 // pred_fallthru
      _
    %p124 = scmp.lt.s32.totalorder %s9, 2
    // Predicated region
    $region21: #{_fwd.46} parent=5 // pred_check
      %p125 = pneg %p124
    $region22: #{_fwd.46} parent=5 // pred_check_branch
      %127 = sbr.rel (%p125) target = $region24
    $region23: #{_fwd.46} parent=5 // pred_region
      // Predicated region
      $region25: #{_fwd.46} parent=23 // pred_check
        %p128 = pneg %p29
      $region26: #{_fwd.46} parent=23 // pred_check_branch
        %130 = sbr.rel (%p128) target = $region28
      $region27: #{_fwd.46} parent=23 // pred_region
        %p131 = scmp.lt.s32.totalorder %s9, 1
        %s132 = scalar_select %p131, %s9, 1
        %s133 = smul.addr %s132, 2
        %s134 = smul.addr %s133, 4
        %s135 = scalar_lea.vmem %s0, %s134
      $region28: #{_fwd.46} parent=23 // pred_fallthru
        _
    $region24: #{_fwd.46} parent=5 // pred_fallthru
      _
    %p136 = scmp.le.s32.totalorder 1, %s9
    %p137 = scmp.lt.s32.totalorder %s9, 3
    %p138 = pnand %p136, %p137
    %p139 = pneg %p138
    // Predicated region
    $region29: #{_fwd.46} parent=5 // pred_check
      _
    $region30: #{_fwd.46} parent=5 // pred_check_branch
      %141 = sbr.rel (%p138) target = $region32
    $region31: #{_fwd.46} parent=5 // pred_region
      %s142 = ssub.s32 %s9, 1
      %p143 = scmp.lt.s32.totalorder %s14, 1
      %s144 = scalar_select %p143, %s14, 1
      %s145 = smul.addr %s144, 2
      %s146 = smul.addr %s145, 4
      %s147 = scalar_lea.vmem %s0, %s146
      %p148 = pneg %p35
      %p149 = pneg %p32
      %p150 = pneg %p56
      %p151 = pneg %p53
      %p152 = pneg %p77
      %p153 = pneg %p74
      %p154 = pneg %p103
      %p155 = pneg %p100
      %p156 = scmp.lt.s32.totalorder %s14, 1
      %s157 = scalar_select %p156, %s14, 1
      %s158 = smul.addr %s157, 4
      %s159 = scalar_lea.vmem %s3, %s158
      %p160 = scmp.lt.s32.totalorder %s14, 1
      %s161 = scalar_select %p160, %s14, 1
      %s162 = smul.addr %s161, 2
      %s163 = smul.addr %s162, 4
      %s164 = scalar_lea.vmem %s0, %s163
      %p165 = scmp.lt.s32.totalorder %s14, 1
      %s166 = scalar_select %p165, %s14, 1
      %s167 = smul.addr %s166, 4
      %s168 = scalar_lea.vmem %s3, %s167
      %v170 = vld [vmem:[%s164] sm:$0xf]
      %v171 = vld [vmem:[%s1] sm:$0xf]
      %v172 = vld [vmem:[%s1 + $0x4] sm:$0xf]
      %v173 = vld [vmem:[%s164 + $0x4] sm:$0x1]
      %s174 = scalar_lea.vmem %s1, 8
      %v175 = vld [vmem:[%s174] sm:$0xf]
      %v176 = vld [vmem:[%s174 + $0x4] sm:$0xf]
      %v179 = vunpack.c.l.b16 %v170
      %v180 = vunpack.c.l.b16 %v173
      %v181 = vpack.c.b16 %v180, %v179
      %v183 = vshrl.u32 %v181, 16
      %v185 = vshll.u32 %v181, 16
      %v187 = vrot.slane %v185, 1
      %v188 = vor.u32 %v183, %v187
      %v191 = vunpack.c.l.b16 %v175
      %v192 = vunpack.c.l.b16 %v176
      %v193 = vpack.c.b16 %v192, %v191
      %vm195 = vcmask 130048
      %v197 = vsel %vm195, %v188, 0
      %199 = vmatprep.subr.bf16.mxu0 0
      %200 = vmatpush1.bf16.msra.mxu0 %v193
      %201 = vmatprep.subr.bf16.mxu0 0
      %202 = vmatpush1.bf16.msra.mxu0 0
      %203 = vmatprep.subr.bf16.mxu0 0
      %204 = vmatpush1.bf16.msra.mxu0 0
      %205 = vmatprep.subr.bf16.mxu0 0
      %206 = vmatpush1.bf16.msra.mxu0 0
      %207 = vmatprep.subr.bf16.mxu0 0
      %208 = vmatpush1.bf16.msra.mxu0 0
      %209 = vmatprep.subr.bf16.mxu0 0
      %210 = vmatpush1.bf16.msra.mxu0 0
      %211 = vmatprep.subr.bf16.mxu0 0
      %212 = vmatpush1.bf16.msra.mxu0 0
      %213 = vmatprep.subr.bf16.mxu0 0
      %214 = vmatpush1.bf16.msra.mxu0 0
      %215 = vmatprep.subr.bf16.mxu0 0
      %216 = vmatpush1.bf16.msra.mxu0 0
      %217 = vmatprep.subr.bf16.mxu0 0
      %218 = vmatpush1.bf16.msra.mxu0 0
      %219 = vmatprep.subr.bf16.mxu0 0
      %220 = vmatpush1.bf16.msra.mxu0 0
      %221 = vmatprep.subr.bf16.mxu0 0
      %222 = vmatpush1.bf16.msra.mxu0 0
      %223 = vmatprep.subr.bf16.mxu0 0
      %224 = vmatpush1.bf16.msra.mxu0 0
      %225 = vmatprep.subr.bf16.mxu0 0
      %226 = vmatpush1.bf16.msra.mxu0 0
      %227 = vmatprep.subr.bf16.mxu0 0
      %228 = vmatpush1.bf16.msra.mxu0 0
      %229 = vmatprep.subr.bf16.mxu0 0
      %230 = vmatpush1.bf16.msra.mxu0 0
      %231 = vmatprep.mubr.bf16.mxu0 0
      %232 = vmatmul.mubr.bf16.gmra.mrb[0].mxu0 %v197
      %v233 = vpop.f32.mrb[0].mxu0
      %v234 = vadd.f32 0.0, %v233
      %v235 = vpop.f32.mrb[0].mxu0
      %v236 = vpop.f32.mrb[0].mxu0
      %v237 = vpop.f32.mrb[0].mxu0
      %238 = vdwg.mxu0
      %v241 = vunpack.c.l.b16 %v171
      %v242 = vunpack.c.l.b16 %v172
      %v243 = vpack.c.b16 %v242, %v241
      %v246 = vsel %vm195, %v170, 0
      %248 = vmatprep.subr.bf16.mxu0 0
      %249 = vmatpush1.bf16.msra.mxu0 %v243
      %250 = vmatprep.subr.bf16.mxu0 0
      %251 = vmatpush1.bf16.msra.mxu0 0
      %252 = vmatprep.subr.bf16.mxu0 0
      %253 = vmatpush1.bf16.msra.mxu0 0
      %254 = vmatprep.subr.bf16.mxu0 0
      %255 = vmatpush1.bf16.msra.mxu0 0
      %256 = vmatprep.subr.bf16.mxu0 0
      %257 = vmatpush1.bf16.msra.mxu0 0
      %258 = vmatprep.subr.bf16.mxu0 0
      %259 = vmatpush1.bf16.msra.mxu0 0
      %260 = vmatprep.subr.bf16.mxu0 0
      %261 = vmatpush1.bf16.msra.mxu0 0
      %262 = vmatprep.subr.bf16.mxu0 0
      %263 = vmatpush1.bf16.msra.mxu0 0
      %264 = vmatprep.subr.bf16.mxu0 0
      %265 = vmatpush1.bf16.msra.mxu0 0
      %266 = vmatprep.subr.bf16.mxu0 0
      %267 = vmatpush1.bf16.msra.mxu0 0
      %268 = vmatprep.subr.bf16.mxu0 0
      %269 = vmatpush1.bf16.msra.mxu0 0
      %270 = vmatprep.subr.bf16.mxu0 0
      %271 = vmatpush1.bf16.msra.mxu0 0
      %272 = vmatprep.subr.bf16.mxu0 0
      %273 = vmatpush1.bf16.msra.mxu0 0
      %274 = vmatprep.subr.bf16.mxu0 0
      %275 = vmatpush1.bf16.msra.mxu0 0
      %276 = vmatprep.subr.bf16.mxu0 0
      %277 = vmatpush1.bf16.msra.mxu0 0
      %278 = vmatprep.subr.bf16.mxu0 0
      %279 = vmatpush1.bf16.msra.mxu0 0
      %280 = vmatprep.mubr.bf16.mxu0 0
      %281 = vmatmul.mubr.bf16.gmra.mrb[0].mxu0 %v246
      %v282 = vpop.f32.mrb[0].mxu0
      %v283 = vadd.f32 %v234, %v282
      %v284 = vpop.f32.mrb[0].mxu0
      %v285 = vpop.f32.mrb[0].mxu0
      %v286 = vpop.f32.mrb[0].mxu0
      %287 = vdwg.mxu0
      %v288 = vld [vmem:[%s164] sm:$0xe]
      %s289 = scalar_lea.vmem %s1, 16
      %v290 = vld [vmem:[%s289] sm:$0xf]
      %v291 = vld [vmem:[%s289 + $0x4] sm:$0xf]
      %v293 = vunpack.c.l.b16 %v288
      %v294 = vpack.c.b16 %v180, %v293
      %v295 = vrot.slane %v294, 1
      %v298 = vunpack.c.l.b16 %v290
      %v299 = vunpack.c.l.b16 %v291
      %v300 = vpack.c.b16 %v299, %v298
      %v303 = vsel %vm195, %v295, 0
      %305 = vmatprep.subr.bf16.mxu0 0
      %306 = vmatpush1.bf16.msra.mxu0 %v300
      %307 = vmatprep.subr.bf16.mxu0 0
      %308 = vmatpush1.bf16.msra.mxu0 0
      %309 = vmatprep.subr.bf16.mxu0 0
      %310 = vmatpush1.bf16.msra.mxu0 0
      %311 = vmatprep.subr.bf16.mxu0 0
      %312 = vmatpush1.bf16.msra.mxu0 0
      %313 = vmatprep.subr.bf16.mxu0 0
      %314 = vmatpush1.bf16.msra.mxu0 0
      %315 = vmatprep.subr.bf16.mxu0 0
      %316 = vmatpush1.bf16.msra.mxu0 0
      %317 = vmatprep.subr.bf16.mxu0 0
      %318 = vmatpush1.bf16.msra.mxu0 0
      %319 = vmatprep.subr.bf16.mxu0 0
      %320 = vmatpush1.bf16.msra.mxu0 0
      %321 = vmatprep.subr.bf16.mxu0 0
      %322 = vmatpush1.bf16.msra.mxu0 0
      %323 = vmatprep.subr.bf16.mxu0 0
      %324 = vmatpush1.bf16.msra.mxu0 0
      %325 = vmatprep.subr.bf16.mxu0 0
      %326 = vmatpush1.bf16.msra.mxu0 0
      %327 = vmatprep.subr.bf16.mxu0 0
      %328 = vmatpush1.bf16.msra.mxu0 0
      %329 = vmatprep.subr.bf16.mxu0 0
      %330 = vmatpush1.bf16.msra.mxu0 0
      %331 = vmatprep.subr.bf16.mxu0 0
      %332 = vmatpush1.bf16.msra.mxu0 0
      %333 = vmatprep.subr.bf16.mxu0 0
      %334 = vmatpush1.bf16.msra.mxu0 0
      %335 = vmatprep.subr.bf16.mxu0 0
      %336 = vmatpush1.bf16.msra.mxu0 0
      %337 = vmatprep.mubr.bf16.mxu0 0
      %338 = vmatmul.mubr.bf16.gmra.mrb[0].mxu0 %v303
      %v339 = vpop.f32.mrb[0].mxu0
      %v340 = vadd.f32 0.0, %v339
      %v341 = vpop.f32.mrb[0].mxu0
      %v342 = vpop.f32.mrb[0].mxu0
      %v343 = vpop.f32.mrb[0].mxu0
      %344 = vdwg.mxu0
      %v345 = vadd.f32 %v283, %v340
      %v346 = vld [vmem:[%s2] sm:$0x1]
      %v348 = vlaneseq
      %v349 = vshrl.u32 %v348, 7
      %v350 = vsub.s32 0, %v349
      %v351 = vrot.slane %v346, %v350
      %v353 = vadd.f32 %v345, %v351
      %v354 = vmax.f32 %v353, 0.0
      %v355 = vpack.c.bf16 %v354, %v354
      %vm356 = vcmask 257024
      %357 = vst.msk [vmem:[%s168] sm:$0xf] %vm356, %v355
      %p358 = scmp.lt.s32.totalorder %s14, 1
      %s359 = scalar_select %p358, %s14, 1
      %s360 = smul.addr %s359, 4
      %s361 = scalar_lea.vmem %s3, %s360
      // Predicated region
      $region33: #{_fwd.46} parent=31 // pred_check
        %p362 = pneg %p100
      $region34: #{_fwd.46} parent=31 // pred_check_branch
        %364 = sbr.rel (%p362) target = $region36
      $region35: #{_fwd.46} parent=31 // pred_region
        _
      $region36: #{_fwd.46} parent=31 // pred_fallthru
        _
    $region32: #{_fwd.46} parent=5 // pred_fallthru
      _
    %p365 = scmp.le.s32.totalorder 2, %s9
    // Predicated region
    $region37: #{_fwd.46} parent=5 // pred_check
      %p366 = pneg %p365
    $region38: #{_fwd.46} parent=5 // pred_check_branch
      %368 = sbr.rel (%p366) target = $region40
    $region39: #{_fwd.46} parent=5 // pred_region
      %s369 = ssub.s32 %s9, 2
      // Predicated region
      $region41: #{_fwd.46} parent=39 // pred_check
        %p370 = pneg %p106
      $region42: #{_fwd.46} parent=39 // pred_check_branch
        %372 = sbr.rel (%p370) target = $region44
      $region43: #{_fwd.46} parent=39 // pred_region
        %p373 = scmp.lt.s32.totalorder %s15, 1
        %s374 = scalar_select %p373, %s15, 1
        %s375 = smul.addr %s374, 4
        %s376 = scalar_lea.vmem %s3, %s375
      $region44: #{_fwd.46} parent=39 // pred_fallthru
        _
    $region40: #{_fwd.46} parent=5 // pred_fallthru
      _
  $region6: #{_fwd.46} parent=0 // loop_footer
    %s13 = sadd.s32 1, %s9
  $region7: #{_fwd.46} parent=0 // loop_footer_branch
    %8 = sbr.rel target = $region3
  $region8: #{_fwd.46} parent=0 // loop_exit
    _

// kernel: _fwd.48
$region0: #{_fwd.48}
  #allocation0 [shape = 'u32[]', space=smem, size = 0x4, offset = 0x4, fixed_abs, tag = 'smem constant byte address 0x4 - core index']
  #allocation1 [shape = 'u32[144,128]{1,0:T(1,128)}', space=vmem, size = 0x12000, scoped, tag = 'internal scratch']
  %s0 = inlined_call_operand.vmem [shape: bf16[16,16], index: 0, kind: input, shape index: {}]
  %s1 = inlined_call_operand.vmem [shape: f32[1,16], index: 1, kind: input, shape index: {}]
  %s2 = inlined_call_operand.vmem [shape: f32[1,16], index: 2, kind: input, shape index: {}]
  %s3 = inlined_call_operand.vmem [shape: bf16[16,16], index: 3, kind: output, shape index: {}]
  %s4 = sld [smem:[#allocation0]]
  $region22: #{_fwd.48} parent=0
    _
  %s6 = ssub.s32 1, %s4
  %s7 = scalar_select 0, %s6, %s4
  // Predicated region
  $region2: #{_fwd.48} parent=0 // pred_check
    _
  $region3: #{_fwd.48} parent=0 // pred_check_branch
    %9 = sbr.rel (0) target = $region5
  $region4: #{_fwd.48} parent=0 // pred_region
    _
  $region5: #{_fwd.48} parent=0 // pred_fallthru
    _
  // Predicated region
  $region6: #{_fwd.48} parent=0 // pred_check
    _
  $region7: #{_fwd.48} parent=0 // pred_check_branch
    %11 = sbr.rel (0) target = $region9
  $region8: #{_fwd.48} parent=0 // pred_region
    _
  $region9: #{_fwd.48} parent=0 // pred_fallthru
    _
  // Predicated region
  $region10: #{_fwd.48} parent=0 // pred_check
    _
  $region11: #{_fwd.48} parent=0 // pred_check_branch
    %13 = sbr.rel (0) target = $region13
  $region12: #{_fwd.48} parent=0 // pred_region
    _
  $region13: #{_fwd.48} parent=0 // pred_fallthru
    _
  %v14 = vld [vmem:[%s0] sm:$0xf]
  %v15 = vld [vmem:[%s0 + $0x4] sm:$0xf]
  %v16 = vunpack.c.l.bf16 %v14
  %v17 = vunpack.c.l.bf16 %v15
  %vm18 = vcmask 130048
  %v19 = vsel %vm18, %v16, 0.0
  %20 = vadd.xlane.f32.xlu0 %v19
  %v21 = vpop.xlane.xlu0 %20
  %v22 = vsel %vm18, %v17, 0.0
  %23 = vadd.xlane.f32.xlu0 %v22
  %v24 = vpop.xlane.xlu0 %23
  %v25 = vrcp.pop 16.0
  %v26 = vmul.f32 %v21, %v25
  %v27 = vmul.f32 %v24, %v25
  %v28 = vsub.f32 %v16, %v26
  %v29 = vsub.f32 %v17, %v27
  %v30 = vmul.f32 %v28, %v28
  %v31 = vmul.f32 %v29, %v29
  %v32 = vsel %vm18, %v30, 0.0
  %33 = vadd.xlane.f32.xlu0 %v32
  %v34 = vpop.xlane.xlu0 %33
  %v35 = vsel %vm18, %v31, 0.0
  %36 = vadd.xlane.f32.xlu0 %v35
  %v37 = vpop.xlane.xlu0 %36
  %v38 = vmul.f32 %v34, %v25
  %v39 = vmul.f32 %v37, %v25
  %v40 = vadd.f32 %v38, 1e-05
  %v41 = vadd.f32 %v39, 1e-05
  %v42 = vrsqrt.pop %v40
  %v43 = vrsqrt.pop %v41
  %v44 = vmul.f32 %v28, %v42
  %v45 = vmul.f32 %v29, %v43
  %v46 = vld [vmem:[%s1] sm:$0x1]
  %v48 = vlaneseq
  %v49 = vshrl.u32 %v48, 7
  %v50 = vsub.s32 0, %v49
  %v51 = vrot.slane %v46, %v50
  %v53 = vmul.f32 %v44, %v51
  %v54 = vmul.f32 %v45, %v51
  %v55 = vld [vmem:[%s2] sm:$0x1]
  %v57 = vlaneseq
  %v58 = vshrl.u32 %v57, 7
  %v59 = vsub.s32 0, %v58
  %v60 = vrot.slane %v55, %v59
  %v62 = vadd.f32 %v53, %v60
  %v63 = vadd.f32 %v54, %v60
  %v64 = vpack.c.bf16 %v63, %v62
  %v66 = vunpack.c.l.b16 %v64
  %v67 = vunpack.c.h.b16 %v64
  %v68 = vpack.c.b16 %v66, %v66
  %v69 = vpack.c.b16 %v67, %v67
  %vm72 = vcmask 125952
  %73 = vst.msk [vmem:[%s3] sm:$0xf] %vm72, %v68
  %74 = vst.msk [vmem:[%s3 + $0x4] sm:$0xf] %vm72, %v69
  // Predicated region
  $region14: #{_fwd.48} parent=0 // pred_check
    _
  $region15: #{_fwd.48} parent=0 // pred_check_branch
    %76 = sbr.rel (0) target = $region17
  $region16: #{_fwd.48} parent=0 // pred_region
    _
  $region17: #{_fwd.48} parent=0 // pred_fallthru
    _
  // Predicated region
  $region18: #{_fwd.48} parent=0 // pred_check
    _
  $region19: #{_fwd.48} parent=0 // pred_check_branch
    %78 = sbr.rel (0) target = $region21
  $region20: #{_fwd.48} parent=0 // pred_region
    _
  $region21: #{_fwd.48} parent=0 // pred_fallthru
    _

// kernel: _fwd.58
$region0: #{_fwd.58}
  #allocation0 [shape = 'u32[]', space=smem, size = 0x4, offset = 0x4, fixed_abs, tag = 'smem constant byte address 0x4 - core index']
  #allocation1 [shape = 'u32[144,128]{1,0:T(1,128)}', space=vmem, size = 0x12000, scoped, tag = 'internal scratch']
  %s0 = inlined_call_operand.vmem [shape: bf16[2,8,32], index: 0, kind: input, shape index: {}]
  %s1 = inlined_call_operand.vmem [shape: bf16[2,8,32], index: 1, kind: input, shape index: {}]
  %s2 = inlined_call_operand.vmem [shape: bf16[2,8,32], index: 2, kind: input, shape index: {}]
  %s3 = inlined_call_operand.vmem [shape: f32[2,1,8], index: 3, kind: input, shape index: {}]
  %s4 = inlined_call_operand.vmem [shape: bf16[2,8,32], index: 4, kind: output, shape index: {}]
  %s5 = sld [smem:[#allocation0]]
  $region49: #{_fwd.58} parent=0
    _
  %s7 = ssub.s32 1, %s5
  %s8 = scalar_select 0, %s7, %s5
  loop: start=0, step=1, limit=4
  $region2: #{_fwd.58} parent=0 // loop_pre_header
    _
  $region3: #{_fwd.58} parent=0 // loop_header
    %s10 = sphi 0, %s14
    %p11 = scmp.ge.s32.totalorder %s10, 4
    %s20 = sphi 0, %s22
    %s23 = sphi 0, %s20
    %s24 = sphi 0, %s23
    %s40 = sphi 0, %s24
    %s46 = sphi 0, %s48
    %s49 = sphi 0, %s46
    %s50 = sphi 0, %s49
    %s66 = sphi 0, %s50
    %s72 = sphi 0, %s74
    %s75 = sphi 0, %s72
    %s76 = sphi 0, %s75
    %s92 = sphi 0, %s76
    %s98 = sphi 0, %s100
    %s101 = sphi 0, %s98
    %s102 = sphi 0, %s101
    %s118 = sphi 0, %s102
    %s124 = sphi 0, %s126
    %s127 = sphi 0, %s124
    %s128 = sphi 0, %s127
    %s144 = sphi 0, %s128
  $region4: #{_fwd.58} parent=0 // loop_header_branch
    %13 = sbr.rel (%p11) target = $region8
  $region5: #{_fwd.58} parent=0 // loop_body
    %s15 = ssub.s32 %s10, 1
    %s16 = ssub.s32 %s10, 2
    %s17 = sadd.s32 %s10, 1
    %s18 = ssub.s32 %s10, %s17
    %p19 = scmp.eq.s32.totalorder %s18, 0
    %s21 = sadd.s32 %s20, 1
    %s22 = scalar_select %p19, %s20, %s21
    %p25 = pneg %p19
    %p26 = scmp.eq.s32.totalorder %s10, 1
    %p27 = por %p25, %p26
    %p28 = scmp.ne.s32.totalorder %s20, %s23
    %p29 = scmp.eq.s32.totalorder %s10, 0
    %p30 = por %p28, %p29
    %p31 = scmp.ne.s32.totalorder %s20, %s23
    %p32 = scmp.eq.s32.totalorder %s15, 1
    %p33 = por %p31, %p32
    %p34 = scmp.ne.s32.totalorder %s23, %s24
    %p35 = scmp.eq.s32.totalorder %s15, 0
    %p36 = por %p34, %p35
    %p37 = scmp.ne.s32.totalorder %s23, %s24
    %p38 = scmp.eq.s32.totalorder %s16, 1
    %p39 = por %p37, %p38
    %p41 = scmp.ne.s32.totalorder %s24, %s40
    %p42 = scmp.eq.s32.totalorder %s16, 0
    %p43 = por %p41, %p42
    %s44 = ssub.s32 %s10, %s17
    %p45 = scmp.eq.s32.totalorder %s44, 0
    %s47 = sadd.s32 %s46, 1
    %s48 = scalar_select %p45, %s46, %s47
    %p51 = pneg %p45
    %p52 = scmp.eq.s32.totalorder %s10, 1
    %p53 = por %p51, %p52
    %p54 = scmp.ne.s32.totalorder %s46, %s49
    %p55 = scmp.eq.s32.totalorder %s10, 0
    %p56 = por %p54, %p55
    %p57 = scmp.ne.s32.totalorder %s46, %s49
    %p58 = scmp.eq.s32.totalorder %s15, 1
    %p59 = por %p57, %p58
    %p60 = scmp.ne.s32.totalorder %s49, %s50
    %p61 = scmp.eq.s32.totalorder %s15, 0
    %p62 = por %p60, %p61
    %p63 = scmp.ne.s32.totalorder %s49, %s50
    %p64 = scmp.eq.s32.totalorder %s16, 1
    %p65 = por %p63, %p64
    %p67 = scmp.ne.s32.totalorder %s50, %s66
    %p68 = scmp.eq.s32.totalorder %s16, 0
    %p69 = por %p67, %p68
    %s70 = ssub.s32 %s10, %s17
    %p71 = scmp.eq.s32.totalorder %s70, 0
    %s73 = sadd.s32 %s72, 1
    %s74 = scalar_select %p71, %s72, %s73
    %p77 = pneg %p71
    %p78 = scmp.eq.s32.totalorder %s10, 1
    %p79 = por %p77, %p78
    %p80 = scmp.ne.s32.totalorder %s72, %s75
    %p81 = scmp.eq.s32.totalorder %s10, 0
    %p82 = por %p80, %p81
    %p83 = scmp.ne.s32.totalorder %s72, %s75
    %p84 = scmp.eq.s32.totalorder %s15, 1
    %p85 = por %p83, %p84
    %p86 = scmp.ne.s32.totalorder %s75, %s76
    %p87 = scmp.eq.s32.totalorder %s15, 0
    %p88 = por %p86, %p87
    %p89 = scmp.ne.s32.totalorder %s75, %s76
    %p90 = scmp.eq.s32.totalorder %s16, 1
    %p91 = por %p89, %p90
    %p93 = scmp.ne.s32.totalorder %s76, %s92
    %p94 = scmp.eq.s32.totalorder %s16, 0
    %p95 = por %p93, %p94
    %s96 = ssub.s32 %s10, %s17
    %p97 = scmp.eq.s32.totalorder %s96, 0
    %s99 = sadd.s32 %s98, 1
    %s100 = scalar_select %p97, %s98, %s99
    %p103 = pneg %p97
    %p104 = scmp.eq.s32.totalorder %s10, 1
    %p105 = por %p103, %p104
    %p106 = scmp.ne.s32.totalorder %s98, %s101
    %p107 = scmp.eq.s32.totalorder %s10, 0
    %p108 = por %p106, %p107
    %p109 = scmp.ne.s32.totalorder %s98, %s101
    %p110 = scmp.eq.s32.totalorder %s15, 1
    %p111 = por %p109, %p110
    %p112 = scmp.ne.s32.totalorder %s101, %s102
    %p113 = scmp.eq.s32.totalorder %s15, 0
    %p114 = por %p112, %p113
    %p115 = scmp.ne.s32.totalorder %s101, %s102
    %p116 = scmp.eq.s32.totalorder %s16, 1
    %p117 = por %p115, %p116
    %p119 = scmp.ne.s32.totalorder %s102, %s118
    %p120 = scmp.eq.s32.totalorder %s16, 0
    %p121 = por %p119, %p120
    %s122 = ssub.s32 %s10, %s17
    %p123 = scmp.eq.s32.totalorder %s122, 0
    %s125 = sadd.s32 %s124, 1
    %s126 = scalar_select %p123, %s124, %s125
    %p129 = pneg %p123
    %p130 = scmp.eq.s32.totalorder %s10, 1
    %p131 = por %p129, %p130
    %p132 = scmp.ne.s32.totalorder %s124, %s127
    %p133 = scmp.eq.s32.totalorder %s10, 0
    %p134 = por %p132, %p133
    %p135 = scmp.ne.s32.totalorder %s124, %s127
    %p136 = scmp.eq.s32.totalorder %s15, 1
    %p137 = por %p135, %p136
    %p138 = scmp.ne.s32.totalorder %s127, %s128
    %p139 = scmp.eq.s32.totalorder %s15, 0
    %p140 = por %p138, %p139
    %p141 = scmp.ne.s32.totalorder %s127, %s128
    %p142 = scmp.eq.s32.totalorder %s16, 1
    %p143 = por %p141, %p142
    %p145 = scmp.ne.s32.totalorder %s128, %s144
    %p146 = scmp.eq.s32.totalorder %s16, 0
    %p147 = por %p145, %p146
    %p148 = scmp.le.s32.totalorder 1, %s10
    %p149 = scmp.lt.s32.totalorder %s10, 3
    %p150 = pnand %p148, %p149
    %p151 = pneg %p150
    // Predicated region
    $region9: #{_fwd.58} parent=5 // pred_check
      _
    $region10: #{_fwd.58} parent=5 // pred_check_branch
      %153 = sbr.rel (%p150) target = $region12
    $region11: #{_fwd.58} parent=5 // pred_region
      %s154 = ssub.s32 %s10, 1
    $region12: #{_fwd.58} parent=5 // pred_fallthru
      _
    %p155 = scmp.lt.s32.totalorder %s10, 2
    // Predicated region
    $region13: #{_fwd.58} parent=5 // pred_check
      %p156 = pneg %p155
    $region14: #{_fwd.58} parent=5 // pred_check_branch
      %158 = sbr.rel (%p156) target = $region16
    $region15: #{_fwd.58} parent=5 // pred_region
      // Predicated region
      $region17: #{_fwd.58} parent=15 // pred_check
        %p159 = pneg %p30
      $region18: #{_fwd.58} parent=15 // pred_check_branch
        %161 = sbr.rel (%p159) target = $region20
      $region19: #{_fwd.58} parent=15 // pred_region
        %p162 = scmp.lt.s32.totalorder %s10, 1
        %s163 = scalar_select %p162, %s10, 1
        %s164 = smul.addr %s163, 4
        %s165 = scalar_lea.vmem %s0, %s164
      $region20: #{_fwd.58} parent=15 // pred_fallthru
        _
      // Predicated region
      $region21: #{_fwd.58} parent=15 // pred_check
        %p166 = pneg %p56
      $region22: #{_fwd.58} parent=15 // pred_check_branch
        %168 = sbr.rel (%p166) target = $region24
      $region23: #{_fwd.58} parent=15 // pred_region
        %p169 = scmp.lt.s32.totalorder %s10, 1
        %s170 = scalar_select %p169, %s10, 1
        %s171 = smul.addr %s170, 4
        %s172 = scalar_lea.vmem %s1, %s171
      $region24: #{_fwd.58} parent=15 // pred_fallthru
        _
      // Predicated region
      $region25: #{_fwd.58} parent=15 // pred_check
        %p173 = pneg %p82
      $region26: #{_fwd.58} parent=15 // pred_check_branch
        %175 = sbr.rel (%p173) target = $region28
      $region27: #{_fwd.58} parent=15 // pred_region
        %p176 = scmp.lt.s32.totalorder %s10, 1
        %s177 = scalar_select %p176, %s10, 1
        %s178 = smul.addr %s177, 4
        %s179 = scalar_lea.vmem %s2, %s178
      $region28: #{_fwd.58} parent=15 // pred_fallthru
        _
      // Predicated region
      $region29: #{_fwd.58} parent=15 // pred_check
        %p180 = pneg %p108
      $region30: #{_fwd.58} parent=15 // pred_check_branch
        %182 = sbr.rel (%p180) target = $region32
      $region31: #{_fwd.58} parent=15 // pred_region
        %p183 = scmp.lt.s32.totalorder %s10, 1
        %s184 = scalar_select %p183, %s10, 1
        %s185 = scalar_lea.vmem %s3, %s184
      $region32: #{_fwd.58} parent=15 // pred_fallthru
        _
    $region16: #{_fwd.58} parent=5 // pred_fallthru
      _
    %p186 = scmp.le.s32.totalorder 1, %s10
    %p187 = scmp.lt.s32.totalorder %s10, 3
    %p188 = pnand %p186, %p187
    %p189 = pneg %p188
    // Predicated region
    $region33: #{_fwd.58} parent=5 // pred_check
      _
    $region34: #{_fwd.58} parent=5 // pred_check_branch
      %191 = sbr.rel (%p188) target = $region36
    $region35: #{_fwd.58} parent=5 // pred_region
      %s192 = ssub.s32 %s10, 1
      %p193 = scmp.lt.s32.totalorder %s15, 1
      %s194 = scalar_select %p193, %s15, 1
      %s195 = smul.addr %s194, 4
      %s196 = scalar_lea.vmem %s0, %s195
      %p197 = pneg %p36
      %p198 = pneg %p33
      %p199 = scmp.lt.s32.totalorder %s15, 1
      %s200 = scalar_select %p199, %s15, 1
      %s201 = smul.addr %s200, 4
      %s202 = scalar_lea.vmem %s1, %s201
      %p203 = pneg %p62
      %p204 = pneg %p59
      %p205 = scmp.lt.s32.totalorder %s15, 1
      %s206 = scalar_select %p205, %s15, 1
      %s207 = smul.addr %s206, 4
      %s208 = scalar_lea.vmem %s2, %s207
      %p209 = pneg %p88
      %p210 = pneg %p85
      %p211 = scmp.lt.s32.totalorder %s15, 1
      %s212 = scalar_select %p211, %s15, 1
      %s213 = scalar_lea.vmem %s3, %s212
      %p214 = pneg %p114
      %p215 = pneg %p111
      %p216 = pneg %p140
      %p217 = pneg %p137
      %p218 = scmp.lt.s32.totalorder %s15, 1
      %s219 = scalar_select %p218, %s15, 1
      %s220 = smul.addr %s219, 4
      %s221 = scalar_lea.vmem %s4, %s220
      %p222 = scmp.lt.s32.totalorder %s15, 1
      %s223 = scalar_select %p222, %s15, 1
      %s224 = smul.addr %s223, 4
      %s225 = scalar_lea.vmem %s0, %s224
      %p226 = scmp.lt.s32.totalorder %s15, 1
      %s227 = scalar_select %p226, %s15, 1
      %s228 = smul.addr %s227, 4
      %s229 = scalar_lea.vmem %s1, %s228
      %p230 = scmp.lt.s32.totalorder %s15, 1
      %s231 = scalar_select %p230, %s15, 1
      %s232 = smul.addr %s231, 4
      %s233 = scalar_lea.vmem %s2, %s232
      %p234 = scmp.lt.s32.totalorder %s15, 1
      %s235 = scalar_select %p234, %s15, 1
      %s236 = scalar_lea.vmem %s3, %s235
      %p237 = scmp.lt.s32.totalorder %s15, 1
      %s238 = scalar_select %p237, %s15, 1
      %s239 = smul.addr %s238, 4
      %s240 = scalar_lea.vmem %s4, %s239
      %v242 = vld [vmem:[%s236] sm:$0x1]
      %v243 = vld [vmem:[%s225] sm:$0xf]
      %v244 = vld [vmem:[%s229] sm:$0xf]
      %v245 = vld [vmem:[%s233] sm:$0xf]
      %vm246 = vcmask 130048
      %v248 = vsel %vm246, %v243, 0
      %v251 = vsel %vm246, %v244, 0
      %253 = vmatprep.subr.bf16.mxu0 0
      %254 = vmatpush1.bf16.xpose.msra.mxu0 %v251
      %255 = vmatprep.subr.bf16.mxu0 0
      %256 = vmatpush1.bf16.xpose.msra.mxu0 0
      %257 = vmatprep.subr.bf16.mxu0 0
      %258 = vmatpush1.bf16.xpose.msra.mxu0 0
      %259 = vmatprep.subr.bf16.mxu0 0
      %260 = vmatpush1.bf16.xpose.msra.mxu0 0
      %261 = vmatprep.subr.bf16.mxu0 0
      %262 = vmatpush1.bf16.xpose.msra.mxu0 0
      %263 = vmatprep.subr.bf16.mxu0 0
      %264 = vmatpush1.bf16.xpose.msra.mxu0 0
      %265 = vmatprep.subr.bf16.mxu0 0
      %266 = vmatpush1.bf16.xpose.msra.mxu0 0
      %267 = vmatprep.subr.bf16.mxu0 0
      %268 = vmatpush1.bf16.xpose.msra.mxu0 0
      %269 = vmatprep.subr.bf16.mxu0 0
      %270 = vmatpush1.bf16.xpose.msra.mxu0 0
      %271 = vmatprep.subr.bf16.mxu0 0
      %272 = vmatpush1.bf16.xpose.msra.mxu0 0
      %273 = vmatprep.subr.bf16.mxu0 0
      %274 = vmatpush1.bf16.xpose.msra.mxu0 0
      %275 = vmatprep.subr.bf16.mxu0 0
      %276 = vmatpush1.bf16.xpose.msra.mxu0 0
      %277 = vmatprep.subr.bf16.mxu0 0
      %278 = vmatpush1.bf16.xpose.msra.mxu0 0
      %279 = vmatprep.subr.bf16.mxu0 0
      %280 = vmatpush1.bf16.xpose.msra.mxu0 0
      %281 = vmatprep.subr.bf16.mxu0 0
      %282 = vmatpush1.bf16.xpose.msra.mxu0 0
      %283 = vmatprep.subr.bf16.mxu0 0
      %284 = vmatpush1.bf16.xpose.msra.mxu0 0
      %285 = vmatprep.mubr.bf16.mxu0 0
      %286 = vmatmul.mubr.bf16.gmra.mrb[0].mxu0 %v248
      %v287 = vpop.f32.mrb[0].mxu0
      %v288 = vadd.f32 0.0, %v287
      %v289 = vpop.f32.mrb[0].mxu0
      %v290 = vpop.f32.mrb[0].mxu0
      %v291 = vpop.f32.mrb[0].mxu0
      %292 = vdwg.mxu0
      %v293 = vmul.f32 %v288, 0.25
      %v295 = vlaneseq
      %v296 = vshrl.u32 %v295, 7
      %v297 = vsub.s32 0, %v296
      %v298 = vrot.slane %v242, %v297
      %v300 = vadd.f32 %v293, %v298
      %vm301 = vcmask 64512
      %v302 = vsel %vm301, %v300, -inf
      %303 = vmax.xlane.f32.xlu0 %v302
      %v304 = vpop.xlane.xlu0 %303
      %v305 = vsub.f32 %v300, %v304
      %v306 = vmul.f32 %v305, 1.442695
      %v307 = vpow.pop %v306
      %v308 = vsel %vm301, %v307, 0.0
      %309 = vadd.xlane.f32.xlu0 %v308
      %v310 = vpop.xlane.xlu0 %309
      %v311 = vrcp.pop %v310
      %v312 = vmul.f32 %v307, %v311
      %v313 = vpack.c.bf16 %v312, %v312
      %v315 = vsel %vm301, %v313, 0
      %vm317 = vcmask 1043456
      %v319 = vsel %vm317, %v245, 0
      %321 = vmatprep.subr.bf16.mxu0 0
      %322 = vmatpush1.bf16.msra.mxu0 %v319
      %323 = vmatprep.subr.bf16.mxu0 0
      %324 = vmatpush1.bf16.msra.mxu0 0
      %325 = vmatprep.subr.bf16.mxu0 0
      %326 = vmatpush1.bf16.msra.mxu0 0
      %327 = vmatprep.subr.bf16.mxu0 0
      %328 = vmatpush1.bf16.msra.mxu0 0
      %329 = vmatprep.subr.bf16.mxu0 0
      %330 = vmatpush1.bf16.msra.mxu0 0
      %331 = vmatprep.subr.bf16.mxu0 0
      %332 = vmatpush1.bf16.msra.mxu0 0
      %333 = vmatprep.subr.bf16.mxu0 0
      %334 = vmatpush1.bf16.msra.mxu0 0
      %335 = vmatprep.subr.bf16.mxu0 0
      %336 = vmatpush1.bf16.msra.mxu0 0
      %337 = vmatprep.subr.bf16.mxu0 0
      %338 = vmatpush1.bf16.msra.mxu0 0
      %339 = vmatprep.subr.bf16.mxu0 0
      %340 = vmatpush1.bf16.msra.mxu0 0
      %341 = vmatprep.subr.bf16.mxu0 0
      %342 = vmatpush1.bf16.msra.mxu0 0
      %343 = vmatprep.subr.bf16.mxu0 0
      %344 = vmatpush1.bf16.msra.mxu0 0
      %345 = vmatprep.subr.bf16.mxu0 0
      %346 = vmatpush1.bf16.msra.mxu0 0
      %347 = vmatprep.subr.bf16.mxu0 0
      %348 = vmatpush1.bf16.msra.mxu0 0
      %349 = vmatprep.subr.bf16.mxu0 0
      %350 = vmatpush1.bf16.msra.mxu0 0
      %351 = vmatprep.subr.bf16.mxu0 0
      %352 = vmatpush1.bf16.msra.mxu0 0
      %353 = vmatprep.mubr.bf16.mxu0 0
      %354 = vmatmul.mubr.bf16.gmra.mrb[0].mxu0 %v315
      %v355 = vpop.f32.mrb[0].mxu0
      %v356 = vadd.f32 0.0, %v355
      %v357 = vpop.f32.mrb[0].mxu0
      %v358 = vpop.f32.mrb[0].mxu0
      %v359 = vpop.f32.mrb[0].mxu0
      %360 = vdwg.mxu0
      %v362 = vunpack.c.l.b16 %v243
      %v363 = vpack.c.b16 %v362, %v362
      %364 = vrot.lane.b32.xlu0 %v363, 112
      %v365 = vpop.permute.xlu0 %364
      %v367 = vunpack.c.l.b16 %v244
      %v368 = vpack.c.b16 %v367, %v367
      %369 = vrot.lane.b32.xlu0 %v368, 112
      %v370 = vpop.permute.xlu0 %369
      %v372 = vsel %vm246, %v365, 0
      %v375 = vsel %vm246, %v370, 0
      %377 = vmatprep.subr.bf16.mxu0 0
      %378 = vmatpush1.bf16.xpose.msra.mxu0 %v375
      %379 = vmatprep.subr.bf16.mxu0 0
      %380 = vmatpush1.bf16.xpose.msra.mxu0 0
      %381 = vmatprep.subr.bf16.mxu0 0
      %382 = vmatpush1.bf16.xpose.msra.mxu0 0
      %383 = vmatprep.subr.bf16.mxu0 0
      %384 = vmatpush1.bf16.xpose.msra.mxu0 0
      %385 = vmatprep.subr.bf16.mxu0 0
      %386 = vmatpush1.bf16.xpose.msra.mxu0 0
      %387 = vmatprep.subr.bf16.mxu0 0
      %388 = vmatpush1.bf16.xpose.msra.mxu0 0
      %389 = vmatprep.subr.bf16.mxu0 0
      %390 = vmatpush1.bf16.xpose.msra.mxu0 0
      %391 = vmatprep.subr.bf16.mxu0 0
      %392 = vmatpush1.bf16.xpose.msra.mxu0 0
      %393 = vmatprep.subr.bf16.mxu0 0
      %394 = vmatpush1.bf16.xpose.msra.mxu0 0
      %395 = vmatprep.subr.bf16.mxu0 0
      %396 = vmatpush1.bf16.xpose.msra.mxu0 0
      %397 = vmatprep.subr.bf16.mxu0 0
      %398 = vmatpush1.bf16.xpose.msra.mxu0 0
      %399 = vmatprep.subr.bf16.mxu0 0
      %400 = vmatpush1.bf16.xpose.msra.mxu0 0
      %401 = vmatprep.subr.bf16.mxu0 0
      %402 = vmatpush1.bf16.xpose.msra.mxu0 0
      %403 = vmatprep.subr.bf16.mxu0 0
      %404 = vmatpush1.bf16.xpose.msra.mxu0 0
      %405 = vmatprep.subr.bf16.mxu0 0
      %406 = vmatpush1.bf16.xpose.msra.mxu0 0
      %407 = vmatprep.subr.bf16.mxu0 0
      %408 = vmatpush1.bf16.xpose.msra.mxu0 0
      %409 = vmatprep.mubr.bf16.mxu0 0
      %410 = vmatmul.mubr.bf16.gmra.mrb[0].mxu0 %v372
      %v411 = vpop.f32.mrb[0].mxu0
      %v412 = vadd.f32 0.0, %v411
      %v413 = vpop.f32.mrb[0].mxu0
      %v414 = vpop.f32.mrb[0].mxu0
      %v415 = vpop.f32.mrb[0].mxu0
      %416 = vdwg.mxu0
      %v417 = vmul.f32 %v412, 0.25
      %v418 = vadd.f32 %v417, %v298
      %v419 = vsel %vm301, %v418, -inf
      %420 = vmax.xlane.f32.xlu0 %v419
      %v421 = vpop.xlane.xlu0 %420
      %v422 = vsub.f32 %v418, %v421
      %v423 = vmul.f32 %v422, 1.442695
      %v424 = vpow.pop %v423
      %v425 = vsel %vm301, %v424, 0.0
      %426 = vadd.xlane.f32.xlu0 %v425
      %v427 = vpop.xlane.xlu0 %426
      %v428 = vrcp.pop %v427
      %v429 = vmul.f32 %v424, %v428
      %v430 = vpack.c.bf16 %v429, %v429
      %v432 = vunpack.c.l.b16 %v245
      %v433 = vpack.c.b16 %v432, %v432
      %434 = vrot.lane.b32.xlu0 %v433, 112
      %v435 = vpop.permute.xlu0 %434
      %v437 = vsel %vm301, %v430, 0
      %v440 = vsel %vm317, %v435, 0
      %442 = vmatprep.subr.bf16.mxu0 0
      %443 = vmatpush1.bf16.msra.mxu0 %v440
      %444 = vmatprep.subr.bf16.mxu0 0
      %445 = vmatpush1.bf16.msra.mxu0 0
      %446 = vmatprep.subr.bf16.mxu0 0
      %447 = vmatpush1.bf16.msra.mxu0 0
      %448 = vmatprep.subr.bf16.mxu0 0
      %449 = vmatpush1.bf16.msra.mxu0 0
      %450 = vmatprep.subr.bf16.mxu0 0
      %451 = vmatpush1.bf16.msra.mxu0 0
      %452 = vmatprep.subr.bf16.mxu0 0
      %453 = vmatpush1.bf16.msra.mxu0 0
      %454 = vmatprep.subr.bf16.mxu0 0
      %455 = vmatpush1.bf16.msra.mxu0 0
      %456 = vmatprep.subr.bf16.mxu0 0
      %457 = vmatpush1.bf16.msra.mxu0 0
      %458 = vmatprep.subr.bf16.mxu0 0
      %459 = vmatpush1.bf16.msra.mxu0 0
      %460 = vmatprep.subr.bf16.mxu0 0
      %461 = vmatpush1.bf16.msra.mxu0 0
      %462 = vmatprep.subr.bf16.mxu0 0
      %463 = vmatpush1.bf16.msra.mxu0 0
      %464 = vmatprep.subr.bf16.mxu0 0
      %465 = vmatpush1.bf16.msra.mxu0 0
      %466 = vmatprep.subr.bf16.mxu0 0
      %467 = vmatpush1.bf16.msra.mxu0 0
      %468 = vmatprep.subr.bf16.mxu0 0
      %469 = vmatpush1.bf16.msra.mxu0 0
      %470 = vmatprep.subr.bf16.mxu0 0
      %471 = vmatpush1.bf16.msra.mxu0 0
      %472 = vmatprep.subr.bf16.mxu0 0
      %473 = vmatpush1.bf16.msra.mxu0 0
      %474 = vmatprep.mubr.bf16.mxu0 0
      %475 = vmatmul.mubr.bf16.gmra.mrb[0].mxu0 %v437
      %v476 = vpop.f32.mrb[0].mxu0
      %v477 = vadd.f32 0.0, %v476
      %v478 = vpop.f32.mrb[0].mxu0
      %v479 = vpop.f32.mrb[0].mxu0
      %v480 = vpop.f32.mrb[0].mxu0
      %481 = vdwg.mxu0
      %483 = vrot.lane.b32.xlu0 %v477, 16
      %v484 = vpop.permute.xlu0 %483
      %v486 = vsel %vm246, %v356, %v484
      %v487 = vpack.c.bf16 %v486, %v486
      %vm488 = vcmask 257024
      %489 = vst.msk [vmem:[%s240] sm:$0xf] %vm488, %v487
      %p490 = scmp.lt.s32.totalorder %s15, 1
      %s491 = scalar_select %p490, %s15, 1
      %s492 = smul.addr %s491, 4
      %s493 = scalar_lea.vmem %s4, %s492
      // Predicated region
      $region37: #{_fwd.58} parent=35 // pred_check
        %p494 = pneg %p137
      $region38: #{_fwd.58} parent=35 // pred_check_branch
        %496 = sbr.rel (%p494) target = $region40
      $region39: #{_fwd.58} parent=35 // pred_region
        _
      $region40: #{_fwd.58} parent=35 // pred_fallthru
        _
    $region36: #{_fwd.58} parent=5 // pred_fallthru
      _
    %p497 = scmp.le.s32.totalorder 2, %s10
    // Predicated region
    $region41: #{_fwd.58} parent=5 // pred_check
      %p498 = pneg %p497
    $region42: #{_fwd.58} parent=5 // pred_check_branch
      %500 = sbr.rel (%p498) target = $region44
    $region43: #{_fwd.58} parent=5 // pred_region
      %s501 = ssub.s32 %s10, 2
      // Predicated region
      $region45: #{_fwd.58} parent=43 // pred_check
        %p502 = pneg %p143
      $region46: #{_fwd.58} parent=43 // pred_check_branch
        %504 = sbr.rel (%p502) target = $region48
      $region47: #{_fwd.58} parent=43 // pred_region
        %p505 = scmp.lt.s32.totalorder %s16, 1
        %s506 = scalar_select %p505, %s16, 1
        %s507 = smul.addr %s506, 4
        %s508 = scalar_lea.vmem %s4, %s507
      $region48: #{_fwd.58} parent=43 // pred_fallthru
        _
    $region44: #{_fwd.58} parent=5 // pred_fallthru
      _
  $region6: #{_fwd.58} parent=0 // loop_footer
    %s14 = sadd.s32 1, %s10
  $region7: #{_fwd.58} parent=0 // loop_footer_branch
    %9 = sbr.rel target = $region3
  $region8: #{_fwd.58} parent=0 // loop_exit
    _

// kernel: _fwd.59
$region0: #{_fwd.59}
  #allocation0 [shape = 'u32[]', space=smem, size = 0x4, offset = 0x4, fixed_abs, tag = 'smem constant byte address 0x4 - core index']
  #allocation1 [shape = 'u32[144,128]{1,0:T(1,128)}', space=vmem, size = 0x12000, scoped, tag = 'internal scratch']
  %s0 = inlined_call_operand.vmem [shape: bf16[16,32], index: 0, kind: input, shape index: {}]
  %s1 = inlined_call_operand.vmem [shape: bf16[32,32], index: 1, kind: input, shape index: {}]
  %s2 = inlined_call_operand.vmem [shape: f32[1,32], index: 2, kind: input, shape index: {}, may-alias: {2,5}]
  %s3 = inlined_call_operand.vmem [shape: bf16[16,32], index: 3, kind: input, shape index: {}]
  %s4 = inlined_call_operand.vmem [shape: f32[1,32], index: 4, kind: input, shape index: {}]
  %s5 = inlined_call_operand.vmem [shape: f32[1,32], index: 5, kind: input, shape index: {}, may-alias: {2,5}]
  %s6 = inlined_call_operand.vmem [shape: bf16[16,32], index: 6, kind: output, shape index: {}]
  %s7 = sld [smem:[#allocation0]]
  $region34: #{_fwd.59} parent=0
    _
  %s9 = ssub.s32 1, %s7
  %s10 = scalar_select 0, %s9, %s7
  // Predicated region
  $region2: #{_fwd.59} parent=0 // pred_check
    _
  $region3: #{_fwd.59} parent=0 // pred_check_branch
    %12 = sbr.rel (0) target = $region5
  $region4: #{_fwd.59} parent=0 // pred_region
    _
  $region5: #{_fwd.59} parent=0 // pred_fallthru
    _
  // Predicated region
  $region6: #{_fwd.59} parent=0 // pred_check
    _
  $region7: #{_fwd.59} parent=0 // pred_check_branch
    %14 = sbr.rel (0) target = $region9
  $region8: #{_fwd.59} parent=0 // pred_region
    _
  $region9: #{_fwd.59} parent=0 // pred_fallthru
    _
  // Predicated region
  $region10: #{_fwd.59} parent=0 // pred_check
    _
  $region11: #{_fwd.59} parent=0 // pred_check_branch
    %16 = sbr.rel (0) target = $region13
  $region12: #{_fwd.59} parent=0 // pred_region
    _
  $region13: #{_fwd.59} parent=0 // pred_fallthru
    _
  // Predicated region
  $region14: #{_fwd.59} parent=0 // pred_check
    _
  $region15: #{_fwd.59} parent=0 // pred_check_branch
    %18 = sbr.rel (0) target = $region17
  $region16: #{_fwd.59} parent=0 // pred_region
    _
  $region17: #{_fwd.59} parent=0 // pred_fallthru
    _
  // Predicated region
  $region18: #{_fwd.59} parent=0 // pred_check
    _
  $region19: #{_fwd.59} parent=0 // pred_check_branch
    %20 = sbr.rel (0) target = $region21
  $region20: #{_fwd.59} parent=0 // pred_region
    _
  $region21: #{_fwd.59} parent=0 // pred_fallthru
    _
  // Predicated region
  $region22: #{_fwd.59} parent=0 // pred_check
    _
  $region23: #{_fwd.59} parent=0 // pred_check_branch
    %22 = sbr.rel (0) target = $region25
  $region24: #{_fwd.59} parent=0 // pred_region
    _
  $region25: #{_fwd.59} parent=0 // pred_fallthru
    _
  %v24 = vld [vmem:[%s0] sm:$0xf]
  %v25 = vld [vmem:[%s0 + $0x4] sm:$0xf]
  %v26 = vld [vmem:[%s1] sm:$0xf]
  %v27 = vld [vmem:[%s1 + $0x4] sm:$0xf]
  %v28 = vld [vmem:[%s1 + $0x8] sm:$0xf]
  %v29 = vld [vmem:[%s1 + $0xc] sm:$0xf]
  %v30 = vld [vmem:[%s2] sm:$0x1]
  %v32 = vlaneseq
  %v33 = vshrl.u32 %v32, 7
  %v34 = vsub.s32 0, %v33
  %v35 = vrot.slane %v30, %v34
  %v39 = vunpack.c.l.b16 %v24
  %v40 = vunpack.c.l.b16 %v25
  %v41 = vpack.c.b16 %v40, %v39
  %v46 = vunpack.c.l.b16 %v26
  %v47 = vunpack.c.l.b16 %v27
  %v48 = vunpack.c.l.b16 %v28
  %v49 = vunpack.c.l.b16 %v29
  %v50 = vpack.c.b16 %v47, %v46
  %v51 = vpack.c.b16 %v49, %v48
  %vm54 = vcmask 261120
  %v56 = vsel %vm54, %v41, 0
  %58 = vmatprep.subr.bf16.mxu0 0
  %59 = vmatpush1.bf16.msra.mxu0 %v50
  %60 = vmatprep.subr.bf16.mxu0 0
  %61 = vmatpush1.bf16.msra.mxu0 %v51
  %62 = vmatprep.subr.bf16.mxu0 0
  %63 = vmatpush1.bf16.msra.mxu0 0
  %64 = vmatprep.subr.bf16.mxu0 0
  %65 = vmatpush1.bf16.msra.mxu0 0
  %66 = vmatprep.subr.bf16.mxu0 0
  %67 = vmatpush1.bf16.msra.mxu0 0
  %68 = vmatprep.subr.bf16.mxu0 0
  %69 = vmatpush1.bf16.msra.mxu0 0
  %70 = vmatprep.subr.bf16.mxu0 0
  %71 = vmatpush1.bf16.msra.mxu0 0
  %72 = vmatprep.subr.bf16.mxu0 0
  %73 = vmatpush1.bf16.msra.mxu0 0
  %74 = vmatprep.subr.bf16.mxu0 0
  %75 = vmatpush1.bf16.msra.mxu0 0
  %76 = vmatprep.subr.bf16.mxu0 0
  %77 = vmatpush1.bf16.msra.mxu0 0
  %78 = vmatprep.subr.bf16.mxu0 0
  %79 = vmatpush1.bf16.msra.mxu0 0
  %80 = vmatprep.subr.bf16.mxu0 0
  %81 = vmatpush1.bf16.msra.mxu0 0
  %82 = vmatprep.subr.bf16.mxu0 0
  %83 = vmatpush1.bf16.msra.mxu0 0
  %84 = vmatprep.subr.bf16.mxu0 0
  %85 = vmatpush1.bf16.msra.mxu0 0
  %86 = vmatprep.subr.bf16.mxu0 0
  %87 = vmatpush1.bf16.msra.mxu0 0
  %88 = vmatprep.subr.bf16.mxu0 0
  %89 = vmatpush1.bf16.msra.mxu0 0
  %90 = vmatprep.mubr.bf16.mxu0 0
  %91 = vmatmul.mubr.bf16.gmra.mrb[0].mxu0 %v56
  %v92 = vpop.f32.mrb[0].mxu0
  %v93 = vadd.f32 %v35, %v92
  %v94 = vpop.f32.mrb[0].mxu0
  %v95 = vpop.f32.mrb[0].mxu0
  %v96 = vadd.f32 %v35, %v95
  %v97 = vpop.f32.mrb[0].mxu0
  %98 = vdwg.mxu0
  %v99 = vld [vmem:[%s3] sm:$0xf]
  %v100 = vld [vmem:[%s3 + $0x4] sm:$0xf]
  %v101 = vunpack.c.l.bf16 %v99
  %v102 = vunpack.c.l.bf16 %v100
  %v103 = vadd.f32 %v93, %v101
  %v104 = vadd.f32 %v96, %v102
  %v105 = vsel %vm54, %v103, 0.0
  %106 = vadd.xlane.f32.xlu0 %v105
  %v107 = vpop.xlane.xlu0 %106
  %v108 = vsel %vm54, %v104, 0.0
  %109 = vadd.xlane.f32.xlu0 %v108
  %v110 = vpop.xlane.xlu0 %109
  %v111 = vrcp.pop 32.0
  %v112 = vmul.f32 %v107, %v111
  %v113 = vmul.f32 %v110, %v111
  %v114 = vsub.f32 %v103, %v112
  %v115 = vsub.f32 %v104, %v113
  %v116 = vmul.f32 %v114, %v114
  %v117 = vmul.f32 %v115, %v115
  %v118 = vsel %vm54, %v116, 0.0
  %119 = vadd.xlane.f32.xlu0 %v118
  %v120 = vpop.xlane.xlu0 %119
  %v121 = vsel %vm54, %v117, 0.0
  %122 = vadd.xlane.f32.xlu0 %v121
  %v123 = vpop.xlane.xlu0 %122
  %v124 = vmul.f32 %v120, %v111
  %v125 = vmul.f32 %v123, %v111
  %v126 = vadd.f32 %v124, 1e-05
  %v127 = vadd.f32 %v125, 1e-05
  %v128 = vrsqrt.pop %v126
  %v129 = vrsqrt.pop %v127
  %v130 = vmul.f32 %v114, %v128
  %v131 = vmul.f32 %v115, %v129
  %v132 = vld [vmem:[%s4] sm:$0x1]
  %v134 = vlaneseq
  %v135 = vshrl.u32 %v134, 7
  %v136 = vsub.s32 0, %v135
  %v137 = vrot.slane %v132, %v136
  %v139 = vmul.f32 %v130, %v137
  %v140 = vmul.f32 %v131, %v137
  %v141 = vld [vmem:[%s5] sm:$0x1]
  %v143 = vlaneseq
  %v144 = vshrl.u32 %v143, 7
  %v145 = vsub.s32 0, %v144
  %v146 = vrot.slane %v141, %v145
  %v148 = vadd.f32 %v139, %v146
  %v149 = vadd.f32 %v140, %v146
  %v150 = vpack.c.bf16 %v149, %v148
  %v152 = vunpack.c.l.b16 %v150
  %v153 = vunpack.c.h.b16 %v150
  %v154 = vpack.c.b16 %v152, %v152
  %v155 = vpack.c.b16 %v153, %v153
  %vm158 = vcmask 257024
  %159 = vst.msk [vmem:[%s6] sm:$0xf] %vm158, %v154
  %160 = vst.msk [vmem:[%s6 + $0x4] sm:$0xf] %vm158, %v155
  // Predicated region
  $region26: #{_fwd.59} parent=0 // pred_check
    _
  $region27: #{_fwd.59} parent=0 // pred_check_branch
    %162 = sbr.rel (0) target = $region29
  $region28: #{_fwd.59} parent=0 // pred_region
    _
  $region29: #{_fwd.59} parent=0 // pred_fallthru
    _
  // Predicated region
  $region30: #{_fwd.59} parent=0 // pred_check
    _
  $region31: #{_fwd.59} parent=0 // pred_check_branch
    %164 = sbr.rel (0) target = $region33
  $region32: #{_fwd.59} parent=0 // pred_region
    _
  $region33: #{_fwd.59} parent=0 // pred_fallthru
    _

// kernel: _fwd.57
$region0: #{_fwd.57}
  #allocation0 [shape = 'u32[]', space=smem, size = 0x4, offset = 0x4, fixed_abs, tag = 'smem constant byte address 0x4 - core index']
  #allocation1 [shape = 'u32[144,128]{1,0:T(1,128)}', space=vmem, size = 0x12000, scoped, tag = 'internal scratch']
  %s0 = inlined_call_operand.vmem [shape: bf16[16,32], index: 0, kind: input, shape index: {}]
  %s1 = inlined_call_operand.vmem [shape: bf16[32,32], index: 1, kind: input, shape index: {}]
  %s2 = inlined_call_operand.vmem [shape: bf16[32,32], index: 2, kind: input, shape index: {}]
  %s3 = inlined_call_operand.vmem [shape: bf16[32,32], index: 3, kind: input, shape index: {}]
  %s4 = inlined_call_operand.vmem [shape: f32[1,32], index: 4, kind: input, shape index: {}, may-alias: {4,5,6}]
  %s5 = inlined_call_operand.vmem [shape: f32[1,32], index: 5, kind: input, shape index: {}, may-alias: {4,5,6}]
  %s6 = inlined_call_operand.vmem [shape: f32[1,32], index: 6, kind: input, shape index: {}, may-alias: {4,5,6}]
  %s7 = inlined_call_operand.vmem [shape: bf16[16,32], index: 7, kind: output, shape index: {0}]
  %s8 = inlined_call_operand.vmem [shape: bf16[16,32], index: 8, kind: output, shape index: {1}]
  %s9 = inlined_call_operand.vmem [shape: bf16[16,32], index: 9, kind: output, shape index: {2}]
  %10 = xla_tuple %s7, %s8, %s9
  %s11 = sld [smem:[#allocation0]]
  $region54: #{_fwd.57} parent=0
    _
  %s13 = ssub.s32 1, %s11
  %s14 = scalar_select 0, %s13, %s11
  // Predicated region
  $region2: #{_fwd.57} parent=0 // pred_check
    _
  $region3: #{_fwd.57} parent=0 // pred_check_branch
    %16 = sbr.rel (0) target = $region5
  $region4: #{_fwd.57} parent=0 // pred_region
    _
  $region5: #{_fwd.57} parent=0 // pred_fallthru
    _
  // Predicated region
  $region6: #{_fwd.57} parent=0 // pred_check
    _
  $region7: #{_fwd.57} parent=0 // pred_check_branch
    %18 = sbr.rel (0) target = $region9
  $region8: #{_fwd.57} parent=0 // pred_region
    _
  $region9: #{_fwd.57} parent=0 // pred_fallthru
    _
  // Predicated region
  $region10: #{_fwd.57} parent=0 // pred_check
    _
  $region11: #{_fwd.57} parent=0 // pred_check_branch
    %20 = sbr.rel (0) target = $region13
  $region12: #{_fwd.57} parent=0 // pred_region
    _
  $region13: #{_fwd.57} parent=0 // pred_fallthru
    _
  // Predicated region
  $region14: #{_fwd.57} parent=0 // pred_check
    _
  $region15: #{_fwd.57} parent=0 // pred_check_branch
    %22 = sbr.rel (0) target = $region17
  $region16: #{_fwd.57} parent=0 // pred_region
    _
  $region17: #{_fwd.57} parent=0 // pred_fallthru
    _
  // Predicated region
  $region18: #{_fwd.57} parent=0 // pred_check
    _
  $region19: #{_fwd.57} parent=0 // pred_check_branch
    %24 = sbr.rel (0) target = $region21
  $region20: #{_fwd.57} parent=0 // pred_region
    _
  $region21: #{_fwd.57} parent=0 // pred_fallthru
    _
  // Predicated region
  $region22: #{_fwd.57} parent=0 // pred_check
    _
  $region23: #{_fwd.57} parent=0 // pred_check_branch
    %26 = sbr.rel (0) target = $region25
  $region24: #{_fwd.57} parent=0 // pred_region
    _
  $region25: #{_fwd.57} parent=0 // pred_fallthru
    _
  // Predicated region
  $region26: #{_fwd.57} parent=0 // pred_check
    _
  $region27: #{_fwd.57} parent=0 // pred_check_branch
    %28 = sbr.rel (0) target = $region29
  $region28: #{_fwd.57} parent=0 // pred_region
    _
  $region29: #{_fwd.57} parent=0 // pred_fallthru
    _
  %v30 = vld [vmem:[%s0] sm:$0xf]
  %v31 = vld [vmem:[%s0 + $0x4] sm:$0xf]
  %v32 = vld [vmem:[%s1] sm:$0xf]
  %v33 = vld [vmem:[%s1 + $0x4] sm:$0xf]
  %v34 = vld [vmem:[%s1 + $0x8] sm:$0xf]
  %v35 = vld [vmem:[%s1 + $0xc] sm:$0xf]
  %v36 = vld [vmem:[%s4] sm:$0x1]
  %v38 = vlaneseq
  %v39 = vshrl.u32 %v38, 7
  %v40 = vsub.s32 0, %v39
  %v41 = vrot.slane %v36, %v40
  %v45 = vunpack.c.l.b16 %v30
  %v46 = vunpack.c.l.b16 %v31
  %v47 = vpack.c.b16 %v46, %v45
  %v52 = vunpack.c.l.b16 %v32
  %v53 = vunpack.c.l.b16 %v33
  %v54 = vunpack.c.l.b16 %v34
  %v55 = vunpack.c.l.b16 %v35
  %v56 = vpack.c.b16 %v53, %v52
  %v57 = vpack.c.b16 %v55, %v54
  %vm60 = vcmask 261120
  %v62 = vsel %vm60, %v47, 0
  %64 = vmatprep.subr.bf16.mxu0 0
  %65 = vmatpush1.bf16.msra.mxu0 %v56
  %66 = vmatprep.subr.bf16.mxu0 0
  %67 = vmatpush1.bf16.msra.mxu0 %v57
  %68 = vmatprep.subr.bf16.mxu0 0
  %69 = vmatpush1.bf16.msra.mxu0 0
  %70 = vmatprep.subr.bf16.mxu0 0
  %71 = vmatpush1.bf16.msra.mxu0 0
  %72 = vmatprep.subr.bf16.mxu0 0
  %73 = vmatpush1.bf16.msra.mxu0 0
  %74 = vmatprep.subr.bf16.mxu0 0
  %75 = vmatpush1.bf16.msra.mxu0 0
  %76 = vmatprep.subr.bf16.mxu0 0
  %77 = vmatpush1.bf16.msra.mxu0 0
  %78 = vmatprep.subr.bf16.mxu0 0
  %79 = vmatpush1.bf16.msra.mxu0 0
  %80 = vmatprep.subr.bf16.mxu0 0
  %81 = vmatpush1.bf16.msra.mxu0 0
  %82 = vmatprep.subr.bf16.mxu0 0
  %83 = vmatpush1.bf16.msra.mxu0 0
  %84 = vmatprep.subr.bf16.mxu0 0
  %85 = vmatpush1.bf16.msra.mxu0 0
  %86 = vmatprep.subr.bf16.mxu0 0
  %87 = vmatpush1.bf16.msra.mxu0 0
  %88 = vmatprep.subr.bf16.mxu0 0
  %89 = vmatpush1.bf16.msra.mxu0 0
  %90 = vmatprep.subr.bf16.mxu0 0
  %91 = vmatpush1.bf16.msra.mxu0 0
  %92 = vmatprep.subr.bf16.mxu0 0
  %93 = vmatpush1.bf16.msra.mxu0 0
  %94 = vmatprep.subr.bf16.mxu0 0
  %95 = vmatpush1.bf16.msra.mxu0 0
  %96 = vmatprep.mubr.bf16.mxu0 0
  %97 = vmatmul.mubr.bf16.gmra.mrb[0].mxu0 %v62
  %v98 = vpop.f32.mrb[0].mxu0
  %v99 = vadd.f32 %v41, %v98
  %v100 = vpop.f32.mrb[0].mxu0
  %v101 = vpop.f32.mrb[0].mxu0
  %v102 = vadd.f32 %v41, %v101
  %v103 = vpop.f32.mrb[0].mxu0
  %104 = vdwg.mxu0
  %v105 = vpack.c.bf16 %v102, %v99
  %v107 = vunpack.c.l.b16 %v105
  %v108 = vunpack.c.h.b16 %v105
  %v109 = vpack.c.b16 %v107, %v107
  %v110 = vpack.c.b16 %v108, %v108
  %vm113 = vcmask 257024
  %114 = vst.msk [vmem:[%s7] sm:$0xf] %vm113, %v109
  %115 = vst.msk [vmem:[%s7 + $0x4] sm:$0xf] %vm113, %v110
  %v116 = vld [vmem:[%s2] sm:$0xf]
  %v117 = vld [vmem:[%s2 + $0x4] sm:$0xf]
  %v118 = vld [vmem:[%s2 + $0x8] sm:$0xf]
  %v119 = vld [vmem:[%s2 + $0xc] sm:$0xf]
  %v120 = vld [vmem:[%s5] sm:$0x1]
  %v122 = vlaneseq
  %v123 = vshrl.u32 %v122, 7
  %v124 = vsub.s32 0, %v123
  %v125 = vrot.slane %v120, %v124
  %v131 = vunpack.c.l.b16 %v116
  %v132 = vunpack.c.l.b16 %v117
  %v133 = vunpack.c.l.b16 %v118
  %v134 = vunpack.c.l.b16 %v119
  %v135 = vpack.c.b16 %v132, %v131
  %v136 = vpack.c.b16 %v134, %v133
  %139 = vmatprep.subr.bf16.mxu0 0
  %140 = vmatpush1.bf16.msra.mxu0 %v135
  %141 = vmatprep.subr.bf16.mxu0 0
  %142 = vmatpush1.bf16.msra.mxu0 %v136
  %143 = vmatprep.subr.bf16.mxu0 0
  %144 = vmatpush1.bf16.msra.mxu0 0
  %145 = vmatprep.subr.bf16.mxu0 0
  %146 = vmatpush1.bf16.msra.mxu0 0
  %147 = vmatprep.subr.bf16.mxu0 0
  %148 = vmatpush1.bf16.msra.mxu0 0
  %149 = vmatprep.subr.bf16.mxu0 0
  %150 = vmatpush1.bf16.msra.mxu0 0
  %151 = vmatprep.subr.bf16.mxu0 0
  %152 = vmatpush1.bf16.msra.mxu0 0
  %153 = vmatprep.subr.bf16.mxu0 0
  %154 = vmatpush1.bf16.msra.mxu0 0
  %155 = vmatprep.subr.bf16.mxu0 0
  %156 = vmatpush1.bf16.msra.mxu0 0
  %157 = vmatprep.subr.bf16.mxu0 0
  %158 = vmatpush1.bf16.msra.mxu0 0
  %159 = vmatprep.subr.bf16.mxu0 0
  %160 = vmatpush1.bf16.msra.mxu0 0
  %161 = vmatprep.subr.bf16.mxu0 0
  %162 = vmatpush1.bf16.msra.mxu0 0
  %163 = vmatprep.subr.bf16.mxu0 0
  %164 = vmatpush1.bf16.msra.mxu0 0
  %165 = vmatprep.subr.bf16.mxu0 0
  %166 = vmatpush1.bf16.msra.mxu0 0
  %167 = vmatprep.subr.bf16.mxu0 0
  %168 = vmatpush1.bf16.msra.mxu0 0
  %169 = vmatprep.subr.bf16.mxu0 0
  %170 = vmatpush1.bf16.msra.mxu0 0
  %171 = vmatprep.mubr.bf16.mxu0 0
  %172 = vmatmul.mubr.bf16.gmra.mrb[0].mxu0 %v62
  %v173 = vpop.f32.mrb[0].mxu0
  %v174 = vadd.f32 %v125, %v173
  %v175 = vpop.f32.mrb[0].mxu0
  %v176 = vpop.f32.mrb[0].mxu0
  %v177 = vadd.f32 %v125, %v176
  %v178 = vpop.f32.mrb[0].mxu0
  %179 = vdwg.mxu0
  %v180 = vpack.c.bf16 %v177, %v174
  %v182 = vunpack.c.l.b16 %v180
  %v183 = vunpack.c.h.b16 %v180
  %v184 = vpack.c.b16 %v182, %v182
  %v185 = vpack.c.b16 %v183, %v183
  %188 = vst.msk [vmem:[%s8] sm:$0xf] %vm113, %v184
  %189 = vst.msk [vmem:[%s8 + $0x4] sm:$0xf] %vm113, %v185
  %v190 = vld [vmem:[%s3] sm:$0xf]
  %v191 = vld [vmem:[%s3 + $0x4] sm:$0xf]
  %v192 = vld [vmem:[%s3 + $0x8] sm:$0xf]
  %v193 = vld [vmem:[%s3 + $0xc] sm:$0xf]
  %v194 = vld [vmem:[%s6] sm:$0x1]
  %v196 = vlaneseq
  %v197 = vshrl.u32 %v196, 7
  %v198 = vsub.s32 0, %v197
  %v199 = vrot.slane %v194, %v198
  %v205 = vunpack.c.l.b16 %v190
  %v206 = vunpack.c.l.b16 %v191
  %v207 = vunpack.c.l.b16 %v192
  %v208 = vunpack.c.l.b16 %v193
  %v209 = vpack.c.b16 %v206, %v205
  %v210 = vpack.c.b16 %v208, %v207
  %213 = vmatprep.subr.bf16.mxu0 0
  %214 = vmatpush1.bf16.msra.mxu0 %v209
  %215 = vmatprep.subr.bf16.mxu0 0
  %216 = vmatpush1.bf16.msra.mxu0 %v210
  %217 = vmatprep.subr.bf16.mxu0 0
  %218 = vmatpush1.bf16.msra.mxu0 0
  %219 = vmatprep.subr.bf16.mxu0 0
  %220 = vmatpush1.bf16.msra.mxu0 0
  %221 = vmatprep.subr.bf16.mxu0 0
  %222 = vmatpush1.bf16.msra.mxu0 0
  %223 = vmatprep.subr.bf16.mxu0 0
  %224 = vmatpush1.bf16.msra.mxu0 0
  %225 = vmatprep.subr.bf16.mxu0 0
  %226 = vmatpush1.bf16.msra.mxu0 0
  %227 = vmatprep.subr.bf16.mxu0 0
  %228 = vmatpush1.bf16.msra.mxu0 0
  %229 = vmatprep.subr.bf16.mxu0 0
  %230 = vmatpush1.bf16.msra.mxu0 0
  %231 = vmatprep.subr.bf16.mxu0 0
  %232 = vmatpush1.bf16.msra.mxu0 0
  %233 = vmatprep.subr.bf16.mxu0 0
  %234 = vmatpush1.bf16.msra.mxu0 0
  %235 = vmatprep.subr.bf16.mxu0 0
  %236 = vmatpush1.bf16.msra.mxu0 0
  %237 = vmatprep.subr.bf16.mxu0 0
  %238 = vmatpush1.bf16.msra.mxu0 0
  %239 = vmatprep.subr.bf16.mxu0 0
  %240 = vmatpush1.bf16.msra.mxu0 0
  %241 = vmatprep.subr.bf16.mxu0 0
  %242 = vmatpush1.bf16.msra.mxu0 0
  %243 = vmatprep.subr.bf16.mxu0 0
  %244 = vmatpush1.bf16.msra.mxu0 0
  %245 = vmatprep.mubr.bf16.mxu0 0
  %246 = vmatmul.mubr.bf16.gmra.mrb[0].mxu0 %v62
  %v247 = vpop.f32.mrb[0].mxu0
  %v248 = vadd.f32 %v199, %v247
  %v249 = vpop.f32.mrb[0].mxu0
  %v250 = vpop.f32.mrb[0].mxu0
  %v251 = vadd.f32 %v199, %v250
  %v252 = vpop.f32.mrb[0].mxu0
  %253 = vdwg.mxu0
  %v254 = vpack.c.bf16 %v251, %v248
  %v256 = vunpack.c.l.b16 %v254
  %v257 = vunpack.c.h.b16 %v254
  %v258 = vpack.c.b16 %v256, %v256
  %v259 = vpack.c.b16 %v257, %v257
  %262 = vst.msk [vmem:[%s9] sm:$0xf] %vm113, %v258
  %263 = vst.msk [vmem:[%s9 + $0x4] sm:$0xf] %vm113, %v259
  // Predicated region
  $region30: #{_fwd.57} parent=0 // pred_check
    _
  $region31: #{_fwd.57} parent=0 // pred_check_branch
    %265 = sbr.rel (0) target = $region33
  $region32: #{_fwd.57} parent=0 // pred_region
    _
  $region33: #{_fwd.57} parent=0 // pred_fallthru
    _
  // Predicated region
  $region34: #{_fwd.57} parent=0 // pred_check
    _
  $region35: #{_fwd.57} parent=0 // pred_check_branch
    %267 = sbr.rel (0) target = $region37
  $region36: #{_fwd.57} parent=0 // pred_region
    _
  $region37: #{_fwd.57} parent=0 // pred_fallthru
    _
  // Predicated region
  $region38: #{_fwd.57} parent=0 // pred_check
    _
  $region39: #{_fwd.57} parent=0 // pred_check_branch
    %269 = sbr.rel (0) target = $region41
  $region40: #{_fwd.57} parent=0 // pred_region
    _
  $region41: #{_fwd.57} parent=0 // pred_fallthru
    _
  // Predicated region
  $region42: #{_fwd.57} parent=0 // pred_check
    _
  $region43: #{_fwd.57} parent=0 // pred_check_branch
    %271 = sbr.rel (0) target = $region45
  $region44: #{_fwd.57} parent=0 // pred_region
    _
  $region45: #{_fwd.57} parent=0 // pred_fallthru
    _
  // Predicated region
  $region46: #{_fwd.57} parent=0 // pred_check
    _
  $region47: #{_fwd.57} parent=0 // pred_check_branch
    %273 = sbr.rel (0) target = $region49
  $region48: #{_fwd.57} parent=0 // pred_region
    _
  $region49: #{_fwd.57} parent=0 // pred_fallthru
    _
  // Predicated region
  $region50: #{_fwd.57} parent=0 // pred_check
    _
  $region51: #{_fwd.57} parent=0 // pred_check_branch
    %275 = sbr.rel (0) target = $region53
  $region52: #{_fwd.57} parent=0 // pred_region
    _
  $region53: #{_fwd.57} parent=0 // pred_fallthru
    _

// kernel: _fwd.60
$region0: #{_fwd.60}
  #allocation0 [shape = 'u32[]', space=smem, size = 0x4, offset = 0x4, fixed_abs, tag = 'smem constant byte address 0x4 - core index']
  #allocation1 [shape = 'u32[144,128]{1,0:T(1,128)}', space=vmem, size = 0x12000, scoped, tag = 'internal scratch']
  %s0 = inlined_call_operand.vmem [shape: bf16[2,10,32], index: 0, kind: input, shape index: {}]
  %s1 = inlined_call_operand.vmem [shape: bf16[3,32,64], index: 1, kind: input, shape index: {}]
  %s2 = inlined_call_operand.vmem [shape: f32[1,64], index: 2, kind: input, shape index: {}]
  %s3 = inlined_call_operand.vmem [shape: bf16[2,8,64], index: 3, kind: output, shape index: {}]
  %s4 = sld [smem:[#allocation0]]
  $region45: #{_fwd.60} parent=0
    _
  %s6 = ssub.s32 1, %s4
  %s7 = scalar_select 0, %s6, %s4
  loop: start=0, step=1, limit=4
  $region2: #{_fwd.60} parent=0 // loop_pre_header
    _
  $region3: #{_fwd.60} parent=0 // loop_header
    %s9 = sphi 0, %s13
    %p10 = scmp.ge.s32.totalorder %s9, 4
    %s19 = sphi 0, %s21
    %s22 = sphi 0, %s19
    %s23 = sphi 0, %s22
    %s39 = sphi 0, %s23
    %s43 = sphi 0, %s43
    %s45 = sphi 0, %s43
    %s46 = sphi 0, %s45
    %s60 = sphi 0, %s46
    %s64 = sphi 0, %s64
    %s66 = sphi 0, %s64
    %s67 = sphi 0, %s66
    %s81 = sphi 0, %s67
    %s87 = sphi 0, %s89
    %s90 = sphi 0, %s87
    %s91 = sphi 0, %s90
    %s107 = sphi 0, %s91
  $region4: #{_fwd.60} parent=0 // loop_header_branch
    %12 = sbr.rel (%p10) target = $region8
  $region5: #{_fwd.60} parent=0 // loop_body
    %s14 = ssub.s32 %s9, 1
    %s15 = ssub.s32 %s9, 2
    %s16 = sadd.s32 %s9, 1
    %s17 = ssub.s32 %s9, %s16
    %p18 = scmp.eq.s32.totalorder %s17, 0
    %s20 = sadd.s32 %s19, 1
    %s21 = scalar_select %p18, %s19, %s20
    %p24 = pneg %p18
    %p25 = scmp.eq.s32.totalorder %s9, 1
    %p26 = por %p24, %p25
    %p27 = scmp.ne.s32.totalorder %s19, %s22
    %p28 = scmp.eq.s32.totalorder %s9, 0
    %p29 = por %p27, %p28
    %p30 = scmp.ne.s32.totalorder %s19, %s22
    %p31 = scmp.eq.s32.totalorder %s14, 1
    %p32 = por %p30, %p31
    %p33 = scmp.ne.s32.totalorder %s22, %s23
    %p34 = scmp.eq.s32.totalorder %s14, 0
    %p35 = por %p33, %p34
    %p36 = scmp.ne.s32.totalorder %s22, %s23
    %p37 = scmp.eq.s32.totalorder %s15, 1
    %p38 = por %p36, %p37
    %p40 = scmp.ne.s32.totalorder %s23, %s39
    %p41 = scmp.eq.s32.totalorder %s15, 0
    %p42 = por %p40, %p41
    %s44 = sadd.s32 %s43, 1
    %p47 = scmp.eq.s32.totalorder %s9, 1
    %p48 = scmp.ne.s32.totalorder %s43, %s45
    %p49 = scmp.eq.s32.totalorder %s9, 0
    %p50 = por %p48, %p49
    %p51 = scmp.ne.s32.totalorder %s43, %s45
    %p52 = scmp.eq.s32.totalorder %s14, 1
    %p53 = por %p51, %p52
    %p54 = scmp.ne.s32.totalorder %s45, %s46
    %p55 = scmp.eq.s32.totalorder %s14, 0
    %p56 = por %p54, %p55
    %p57 = scmp.ne.s32.totalorder %s45, %s46
    %p58 = scmp.eq.s32.totalorder %s15, 1
    %p59 = por %p57, %p58
    %p61 = scmp.ne.s32.totalorder %s46, %s60
    %p62 = scmp.eq.s32.totalorder %s15, 0
    %p63 = por %p61, %p62
    %s65 = sadd.s32 %s64, 1
    %p68 = scmp.eq.s32.totalorder %s9, 1
    %p69 = scmp.ne.s32.totalorder %s64, %s66
    %p70 = scmp.eq.s32.totalorder %s9, 0
    %p71 = por %p69, %p70
    %p72 = scmp.ne.s32.totalorder %s64, %s66
    %p73 = scmp.eq.s32.totalorder %s14, 1
    %p74 = por %p72, %p73
    %p75 = scmp.ne.s32.totalorder %s66, %s67
    %p76 = scmp.eq.s32.totalorder %s14, 0
    %p77 = por %p75, %p76
    %p78 = scmp.ne.s32.totalorder %s66, %s67
    %p79 = scmp.eq.s32.totalorder %s15, 1
    %p80 = por %p78, %p79
    %p82 = scmp.ne.s32.totalorder %s67, %s81
    %p83 = scmp.eq.s32.totalorder %s15, 0
    %p84 = por %p82, %p83
    %s85 = ssub.s32 %s9, %s16
    %p86 = scmp.eq.s32.totalorder %s85, 0
    %s88 = sadd.s32 %s87, 1
    %s89 = scalar_select %p86, %s87, %s88
    %p92 = pneg %p86
    %p93 = scmp.eq.s32.totalorder %s9, 1
    %p94 = por %p92, %p93
    %p95 = scmp.ne.s32.totalorder %s87, %s90
    %p96 = scmp.eq.s32.totalorder %s9, 0
    %p97 = por %p95, %p96
    %p98 = scmp.ne.s32.totalorder %s87, %s90
    %p99 = scmp.eq.s32.totalorder %s14, 1
    %p100 = por %p98, %p99
    %p101 = scmp.ne.s32.totalorder %s90, %s91
    %p102 = scmp.eq.s32.totalorder %s14, 0
    %p103 = por %p101, %p102
    %p104 = scmp.ne.s32.totalorder %s90, %s91
    %p105 = scmp.eq.s32.totalorder %s15, 1
    %p106 = por %p104, %p105
    %p108 = scmp.ne.s32.totalorder %s91, %s107
    %p109 = scmp.eq.s32.totalorder %s15, 0
    %p110 = por %p108, %p109
    %p111 = scmp.le.s32.totalorder 1, %s9
    %p112 = scmp.lt.s32.totalorder %s9, 3
    %p113 = pnand %p111, %p112
    %p114 = pneg %p113
    // Predicated region
    $region9: #{_fwd.60} parent=5 // pred_check
      _
    $region10: #{_fwd.60} parent=5 // pred_check_branch
      %116 = sbr.rel (%p113) target = $region12
    $region11: #{_fwd.60} parent=5 // pred_region
      %s117 = ssub.s32 %s9, 1
      // Predicated region
      $region13: #{_fwd.60} parent=11 // pred_check
        %p118 = pneg %p56
      $region14: #{_fwd.60} parent=11 // pred_check_branch
        %120 = sbr.rel (%p118) target = $region16
      $region15: #{_fwd.60} parent=11 // pred_region
        _
      $region16: #{_fwd.60} parent=11 // pred_fallthru
        _
      // Predicated region
      $region17: #{_fwd.60} parent=11 // pred_check
        %p121 = pneg %p77
      $region18: #{_fwd.60} parent=11 // pred_check_branch
        %123 = sbr.rel (%p121) target = $region20
      $region19: #{_fwd.60} parent=11 // pred_region
        _
      $region20: #{_fwd.60} parent=11 // pred_fallthru
        _
    $region12: #{_fwd.60} parent=5 // pred_fallthru
      _
    %p124 = scmp.lt.s32.totalorder %s9, 2
    // Predicated region
    $region21: #{_fwd.60} parent=5 // pred_check
      %p125 = pneg %p124
    $region22: #{_fwd.60} parent=5 // pred_check_branch
      %127 = sbr.rel (%p125) target = $region24
    $region23: #{_fwd.60} parent=5 // pred_region
      // Predicated region
      $region25: #{_fwd.60} parent=23 // pred_check
        %p128 = pneg %p29
      $region26: #{_fwd.60} parent=23 // pred_check_branch
        %130 = sbr.rel (%p128) target = $region28
      $region27: #{_fwd.60} parent=23 // pred_region
        %p131 = scmp.lt.s32.totalorder %s9, 1
        %s132 = scalar_select %p131, %s9, 1
        %s133 = smul.addr %s132, 2
        %s134 = smul.addr %s133, 4
        %s135 = scalar_lea.vmem %s0, %s134
      $region28: #{_fwd.60} parent=23 // pred_fallthru
        _
    $region24: #{_fwd.60} parent=5 // pred_fallthru
      _
    %p136 = scmp.le.s32.totalorder 1, %s9
    %p137 = scmp.lt.s32.totalorder %s9, 3
    %p138 = pnand %p136, %p137
    %p139 = pneg %p138
    // Predicated region
    $region29: #{_fwd.60} parent=5 // pred_check
      _
    $region30: #{_fwd.60} parent=5 // pred_check_branch
      %141 = sbr.rel (%p138) target = $region32
    $region31: #{_fwd.60} parent=5 // pred_region
      %s142 = ssub.s32 %s9, 1
      %p143 = scmp.lt.s32.totalorder %s14, 1
      %s144 = scalar_select %p143, %s14, 1
      %s145 = smul.addr %s144, 2
      %s146 = smul.addr %s145, 4
      %s147 = scalar_lea.vmem %s0, %s146
      %p148 = pneg %p35
      %p149 = pneg %p32
      %p150 = pneg %p56
      %p151 = pneg %p53
      %p152 = pneg %p77
      %p153 = pneg %p74
      %p154 = pneg %p103
      %p155 = pneg %p100
      %p156 = scmp.lt.s32.totalorder %s14, 1
      %s157 = scalar_select %p156, %s14, 1
      %s158 = smul.addr %s157, 4
      %s159 = scalar_lea.vmem %s3, %s158
      %p160 = scmp.lt.s32.totalorder %s14, 1
      %s161 = scalar_select %p160, %s14, 1
      %s162 = smul.addr %s161, 2
      %s163 = smul.addr %s162, 4
      %s164 = scalar_lea.vmem %s0, %s163
      %p165 = scmp.lt.s32.totalorder %s14, 1
      %s166 = scalar_select %p165, %s14, 1
      %s167 = smul.addr %s166, 4
      %s168 = scalar_lea.vmem %s3, %s167
      %v170 = vld [vmem:[%s164] sm:$0xf]
      %v171 = vld [vmem:[%s1] sm:$0xf]
      %v172 = vld [vmem:[%s1 + $0x4] sm:$0xf]
      %v173 = vld [vmem:[%s1 + $0x8] sm:$0xf]
      %v174 = vld [vmem:[%s1 + $0xc] sm:$0xf]
      %v175 = vld [vmem:[%s164 + $0x4] sm:$0x1]
      %s176 = scalar_lea.vmem %s1, 16
      %v177 = vld [vmem:[%s176] sm:$0xf]
      %v178 = vld [vmem:[%s176 + $0x4] sm:$0xf]
      %v179 = vld [vmem:[%s176 + $0x8] sm:$0xf]
      %v180 = vld [vmem:[%s176 + $0xc] sm:$0xf]
      %v183 = vunpack.c.l.b16 %v170
      %v184 = vunpack.c.l.b16 %v175
      %v185 = vpack.c.b16 %v184, %v183
      %v187 = vshrl.u32 %v185, 16
      %v189 = vshll.u32 %v185, 16
      %v191 = vrot.slane %v189, 1
      %v192 = vor.u32 %v187, %v191
      %v197 = vunpack.c.l.b16 %v177
      %v198 = vunpack.c.l.b16 %v178
      %v199 = vunpack.c.l.b16 %v179
      %v200 = vunpack.c.l.b16 %v180
      %v201 = vpack.c.b16 %v198, %v197
      %v202 = vpack.c.b16 %v200, %v199
      %vm205 = vcmask 261120
      %v207 = vsel %vm205, %v192, 0
      %209 = vmatprep.subr.bf16.mxu0 0
      %210 = vmatpush1.bf16.msra.mxu0 %v201
      %211 = vmatprep.subr.bf16.mxu0 0
      %212 = vmatpush1.bf16.msra.mxu0 %v202
      %213 = vmatprep.subr.bf16.mxu0 0
      %214 = vmatpush1.bf16.msra.mxu0 0
      %215 = vmatprep.subr.bf16.mxu0 0
      %216 = vmatpush1.bf16.msra.mxu0 0
      %217 = vmatprep.subr.bf16.mxu0 0
      %218 = vmatpush1.bf16.msra.mxu0 0
      %219 = vmatprep.subr.bf16.mxu0 0
      %220 = vmatpush1.bf16.msra.mxu0 0
      %221 = vmatprep.subr.bf16.mxu0 0
      %222 = vmatpush1.bf16.msra.mxu0 0
      %223 = vmatprep.subr.bf16.mxu0 0
      %224 = vmatpush1.bf16.msra.mxu0 0
      %225 = vmatprep.subr.bf16.mxu0 0
      %226 = vmatpush1.bf16.msra.mxu0 0
      %227 = vmatprep.subr.bf16.mxu0 0
      %228 = vmatpush1.bf16.msra.mxu0 0
      %229 = vmatprep.subr.bf16.mxu0 0
      %230 = vmatpush1.bf16.msra.mxu0 0
      %231 = vmatprep.subr.bf16.mxu0 0
      %232 = vmatpush1.bf16.msra.mxu0 0
      %233 = vmatprep.subr.bf16.mxu0 0
      %234 = vmatpush1.bf16.msra.mxu0 0
      %235 = vmatprep.subr.bf16.mxu0 0
      %236 = vmatpush1.bf16.msra.mxu0 0
      %237 = vmatprep.subr.bf16.mxu0 0
      %238 = vmatpush1.bf16.msra.mxu0 0
      %239 = vmatprep.subr.bf16.mxu0 0
      %240 = vmatpush1.bf16.msra.mxu0 0
      %241 = vmatprep.mubr.bf16.mxu0 0
      %242 = vmatmul.mubr.bf16.gmra.mrb[0].mxu0 %v207
      %v243 = vpop.f32.mrb[0].mxu0
      %v244 = vadd.f32 0.0, %v243
      %v245 = vpop.f32.mrb[0].mxu0
      %v246 = vpop.f32.mrb[0].mxu0
      %v247 = vpop.f32.mrb[0].mxu0
      %248 = vdwg.mxu0
      %v253 = vunpack.c.l.b16 %v171
      %v254 = vunpack.c.l.b16 %v172
      %v255 = vunpack.c.l.b16 %v173
      %v256 = vunpack.c.l.b16 %v174
      %v257 = vpack.c.b16 %v254, %v253
      %v258 = vpack.c.b16 %v256, %v255
      %v262 = vsel %vm205, %v170, 0
      %264 = vmatprep.subr.bf16.mxu0 0
      %265 = vmatpush1.bf16.msra.mxu0 %v257
      %266 = vmatprep.subr.bf16.mxu0 0
      %267 = vmatpush1.bf16.msra.mxu0 %v258
      %268 = vmatprep.subr.bf16.mxu0 0
      %269 = vmatpush1.bf16.msra.mxu0 0
      %270 = vmatprep.subr.bf16.mxu0 0
      %271 = vmatpush1.bf16.msra.mxu0 0
      %272 = vmatprep.subr.bf16.mxu0 0
      %273 = vmatpush1.bf16.msra.mxu0 0
      %274 = vmatprep.subr.bf16.mxu0 0
      %275 = vmatpush1.bf16.msra.mxu0 0
      %276 = vmatprep.subr.bf16.mxu0 0
      %277 = vmatpush1.bf16.msra.mxu0 0
      %278 = vmatprep.subr.bf16.mxu0 0
      %279 = vmatpush1.bf16.msra.mxu0 0
      %280 = vmatprep.subr.bf16.mxu0 0
      %281 = vmatpush1.bf16.msra.mxu0 0
      %282 = vmatprep.subr.bf16.mxu0 0
      %283 = vmatpush1.bf16.msra.mxu0 0
      %284 = vmatprep.subr.bf16.mxu0 0
      %285 = vmatpush1.bf16.msra.mxu0 0
      %286 = vmatprep.subr.bf16.mxu0 0
      %287 = vmatpush1.bf16.msra.mxu0 0
      %288 = vmatprep.subr.bf16.mxu0 0
      %289 = vmatpush1.bf16.msra.mxu0 0
      %290 = vmatprep.subr.bf16.mxu0 0
      %291 = vmatpush1.bf16.msra.mxu0 0
      %292 = vmatprep.subr.bf16.mxu0 0
      %293 = vmatpush1.bf16.msra.mxu0 0
      %294 = vmatprep.subr.bf16.mxu0 0
      %295 = vmatpush1.bf16.msra.mxu0 0
      %296 = vmatprep.mubr.bf16.mxu0 0
      %297 = vmatmul.mubr.bf16.gmra.mrb[0].mxu0 %v262
      %v298 = vpop.f32.mrb[0].mxu0
      %v299 = vadd.f32 %v244, %v298
      %v300 = vpop.f32.mrb[0].mxu0
      %v301 = vpop.f32.mrb[0].mxu0
      %v302 = vpop.f32.mrb[0].mxu0
      %303 = vdwg.mxu0
      %v304 = vld [vmem:[%s164] sm:$0xe]
      %s305 = scalar_lea.vmem %s1, 32
      %v306 = vld [vmem:[%s305] sm:$0xf]
      %v307 = vld [vmem:[%s305 + $0x4] sm:$0xf]
      %v308 = vld [vmem:[%s305 + $0x8] sm:$0xf]
      %v309 = vld [vmem:[%s305 + $0xc] sm:$0xf]
      %v311 = vunpack.c.l.b16 %v304
      %v312 = vpack.c.b16 %v184, %v311
      %v313 = vrot.slane %v312, 1
      %v318 = vunpack.c.l.b16 %v306
      %v319 = vunpack.c.l.b16 %v307
      %v320 = vunpack.c.l.b16 %v308
      %v321 = vunpack.c.l.b16 %v309
      %v322 = vpack.c.b16 %v319, %v318
      %v323 = vpack.c.b16 %v321, %v320
      %v327 = vsel %vm205, %v313, 0
      %329 = vmatprep.subr.bf16.mxu0 0
      %330 = vmatpush1.bf16.msra.mxu0 %v322
      %331 = vmatprep.subr.bf16.mxu0 0
      %332 = vmatpush1.bf16.msra.mxu0 %v323
      %333 = vmatprep.subr.bf16.mxu0 0
      %334 = vmatpush1.bf16.msra.mxu0 0
      %335 = vmatprep.subr.bf16.mxu0 0
      %336 = vmatpush1.bf16.msra.mxu0 0
      %337 = vmatprep.subr.bf16.mxu0 0
      %338 = vmatpush1.bf16.msra.mxu0 0
      %339 = vmatprep.subr.bf16.mxu0 0
      %340 = vmatpush1.bf16.msra.mxu0 0
      %341 = vmatprep.subr.bf16.mxu0 0
      %342 = vmatpush1.bf16.msra.mxu0 0
      %343 = vmatprep.subr.bf16.mxu0 0
      %344 = vmatpush1.bf16.msra.mxu0 0
      %345 = vmatprep.subr.bf16.mxu0 0
      %346 = vmatpush1.bf16.msra.mxu0 0
      %347 = vmatprep.subr.bf16.mxu0 0
      %348 = vmatpush1.bf16.msra.mxu0 0
      %349 = vmatprep.subr.bf16.mxu0 0
      %350 = vmatpush1.bf16.msra.mxu0 0
      %351 = vmatprep.subr.bf16.mxu0 0
      %352 = vmatpush1.bf16.msra.mxu0 0
      %353 = vmatprep.subr.bf16.mxu0 0
      %354 = vmatpush1.bf16.msra.mxu0 0
      %355 = vmatprep.subr.bf16.mxu0 0
      %356 = vmatpush1.bf16.msra.mxu0 0
      %357 = vmatprep.subr.bf16.mxu0 0
      %358 = vmatpush1.bf16.msra.mxu0 0
      %359 = vmatprep.subr.bf16.mxu0 0
      %360 = vmatpush1.bf16.msra.mxu0 0
      %361 = vmatprep.mubr.bf16.mxu0 0
      %362 = vmatmul.mubr.bf16.gmra.mrb[0].mxu0 %v327
      %v363 = vpop.f32.mrb[0].mxu0
      %v364 = vadd.f32 0.0, %v363
      %v365 = vpop.f32.mrb[0].mxu0
      %v366 = vpop.f32.mrb[0].mxu0
      %v367 = vpop.f32.mrb[0].mxu0
      %368 = vdwg.mxu0
      %v369 = vadd.f32 %v299, %v364
      %v370 = vld [vmem:[%s2] sm:$0x1]
      %v372 = vlaneseq
      %v373 = vshrl.u32 %v372, 7
      %v374 = vsub.s32 0, %v373
      %v375 = vrot.slane %v370, %v374
      %v377 = vadd.f32 %v369, %v375
      %v378 = vmax.f32 %v377, 0.0
      %v379 = vpack.c.bf16 %v378, %v378
      %vm380 = vcmask 519168
      %381 = vst.msk [vmem:[%s168] sm:$0xf] %vm380, %v379
      %p382 = scmp.lt.s32.totalorder %s14, 1
      %s383 = scalar_select %p382, %s14, 1
      %s384 = smul.addr %s383, 4
      %s385 = scalar_lea.vmem %s3, %s384
      // Predicated region
      $region33: #{_fwd.60} parent=31 // pred_check
        %p386 = pneg %p100
      $region34: #{_fwd.60} parent=31 // pred_check_branch
        %388 = sbr.rel (%p386) target = $region36
      $region35: #{_fwd.60} parent=31 // pred_region
        _
      $region36: #{_fwd.60} parent=31 // pred_fallthru
        _
    $region32: #{_fwd.60} parent=5 // pred_fallthru
      _
    %p389 = scmp.le.s32.totalorder 2, %s9
    // Predicated region
    $region37: #{_fwd.60} parent=5 // pred_check
      %p390 = pneg %p389
    $region38: #{_fwd.60} parent=5 // pred_check_branch
      %392 = sbr.rel (%p390) target = $region40
    $region39: #{_fwd.60} parent=5 // pred_region
      %s393 = ssub.s32 %s9, 2
      // Predicated region
      $region41: #{_fwd.60} parent=39 // pred_check
        %p394 = pneg %p106
      $region42: #{_fwd.60} parent=39 // pred_check_branch
        %396 = sbr.rel (%p394) target = $region44
      $region43: #{_fwd.60} parent=39 // pred_region
        %p397 = scmp.lt.s32.totalorder %s15, 1
        %s398 = scalar_select %p397, %s15, 1
        %s399 = smul.addr %s398, 4
        %s400 = scalar_lea.vmem %s3, %s399
      $region44: #{_fwd.60} parent=39 // pred_fallthru
        _
    $region40: #{_fwd.60} parent=5 // pred_fallthru
      _
  $region6: #{_fwd.60} parent=0 // loop_footer
    %s13 = sadd.s32 1, %s9
  $region7: #{_fwd.60} parent=0 // loop_footer_branch
    %8 = sbr.rel target = $region3
  $region8: #{_fwd.60} parent=0 // loop_exit
    _

// kernel: _fwd.62
$region0: #{_fwd.62}
  #allocation0 [shape = 'u32[]', space=smem, size = 0x4, offset = 0x4, fixed_abs, tag = 'smem constant byte address 0x4 - core index']
  #allocation1 [shape = 'u32[144,128]{1,0:T(1,128)}', space=vmem, size = 0x12000, scoped, tag = 'internal scratch']
  %s0 = inlined_call_operand.vmem [shape: bf16[16,32], index: 0, kind: input, shape index: {}]
  %s1 = inlined_call_operand.vmem [shape: f32[1,32], index: 1, kind: input, shape index: {}]
  %s2 = inlined_call_operand.vmem [shape: f32[1,32], index: 2, kind: input, shape index: {}]
  %s3 = inlined_call_operand.vmem [shape: bf16[16,32], index: 3, kind: output, shape index: {}]
  %s4 = sld [smem:[#allocation0]]
  $region22: #{_fwd.62} parent=0
    _
  %s6 = ssub.s32 1, %s4
  %s7 = scalar_select 0, %s6, %s4
  // Predicated region
  $region2: #{_fwd.62} parent=0 // pred_check
    _
  $region3: #{_fwd.62} parent=0 // pred_check_branch
    %9 = sbr.rel (0) target = $region5
  $region4: #{_fwd.62} parent=0 // pred_region
    _
  $region5: #{_fwd.62} parent=0 // pred_fallthru
    _
  // Predicated region
  $region6: #{_fwd.62} parent=0 // pred_check
    _
  $region7: #{_fwd.62} parent=0 // pred_check_branch
    %11 = sbr.rel (0) target = $region9
  $region8: #{_fwd.62} parent=0 // pred_region
    _
  $region9: #{_fwd.62} parent=0 // pred_fallthru
    _
  // Predicated region
  $region10: #{_fwd.62} parent=0 // pred_check
    _
  $region11: #{_fwd.62} parent=0 // pred_check_branch
    %13 = sbr.rel (0) target = $region13
  $region12: #{_fwd.62} parent=0 // pred_region
    _
  $region13: #{_fwd.62} parent=0 // pred_fallthru
    _
  %v14 = vld [vmem:[%s0] sm:$0xf]
  %v15 = vld [vmem:[%s0 + $0x4] sm:$0xf]
  %v16 = vunpack.c.l.bf16 %v14
  %v17 = vunpack.c.l.bf16 %v15
  %vm18 = vcmask 261120
  %v19 = vsel %vm18, %v16, 0.0
  %20 = vadd.xlane.f32.xlu0 %v19
  %v21 = vpop.xlane.xlu0 %20
  %v22 = vsel %vm18, %v17, 0.0
  %23 = vadd.xlane.f32.xlu0 %v22
  %v24 = vpop.xlane.xlu0 %23
  %v25 = vrcp.pop 32.0
  %v26 = vmul.f32 %v21, %v25
  %v27 = vmul.f32 %v24, %v25
  %v28 = vsub.f32 %v16, %v26
  %v29 = vsub.f32 %v17, %v27
  %v30 = vmul.f32 %v28, %v28
  %v31 = vmul.f32 %v29, %v29
  %v32 = vsel %vm18, %v30, 0.0
  %33 = vadd.xlane.f32.xlu0 %v32
  %v34 = vpop.xlane.xlu0 %33
  %v35 = vsel %vm18, %v31, 0.0
  %36 = vadd.xlane.f32.xlu0 %v35
  %v37 = vpop.xlane.xlu0 %36
  %v38 = vmul.f32 %v34, %v25
  %v39 = vmul.f32 %v37, %v25
  %v40 = vadd.f32 %v38, 1e-05
  %v41 = vadd.f32 %v39, 1e-05
  %v42 = vrsqrt.pop %v40
  %v43 = vrsqrt.pop %v41
  %v44 = vmul.f32 %v28, %v42
  %v45 = vmul.f32 %v29, %v43
  %v46 = vld [vmem:[%s1] sm:$0x1]
  %v48 = vlaneseq
  %v49 = vshrl.u32 %v48, 7
  %v50 = vsub.s32 0, %v49
  %v51 = vrot.slane %v46, %v50
  %v53 = vmul.f32 %v44, %v51
  %v54 = vmul.f32 %v45, %v51
  %v55 = vld [vmem:[%s2] sm:$0x1]
  %v57 = vlaneseq
  %v58 = vshrl.u32 %v57, 7
  %v59 = vsub.s32 0, %v58
  %v60 = vrot.slane %v55, %v59
  %v62 = vadd.f32 %v53, %v60
  %v63 = vadd.f32 %v54, %v60
  %v64 = vpack.c.bf16 %v63, %v62
  %v66 = vunpack.c.l.b16 %v64
  %v67 = vunpack.c.h.b16 %v64
  %v68 = vpack.c.b16 %v66, %v66
  %v69 = vpack.c.b16 %v67, %v67
  %vm72 = vcmask 257024
  %73 = vst.msk [vmem:[%s3] sm:$0xf] %vm72, %v68
  %74 = vst.msk [vmem:[%s3 + $0x4] sm:$0xf] %vm72, %v69
  // Predicated region
  $region14: #{_fwd.62} parent=0 // pred_check
    _
  $region15: #{_fwd.62} parent=0 // pred_check_branch
    %76 = sbr.rel (0) target = $region17
  $region16: #{_fwd.62} parent=0 // pred_region
    _
  $region17: #{_fwd.62} parent=0 // pred_fallthru
    _
  // Predicated region
  $region18: #{_fwd.62} parent=0 // pred_check
    _
  $region19: #{_fwd.62} parent=0 // pred_check_branch
    %78 = sbr.rel (0) target = $region21
  $region20: #{_fwd.62} parent=0 // pred_region
    _
  $region21: #{_fwd.62} parent=0 // pred_fallthru
    _

// kernel: _fwd.61
$region0: #{_fwd.61}
  #allocation0 [shape = 'u32[]', space=smem, size = 0x4, offset = 0x4, fixed_abs, tag = 'smem constant byte address 0x4 - core index']
  #allocation1 [shape = 'u32[144,128]{1,0:T(1,128)}', space=vmem, size = 0x12000, scoped, tag = 'internal scratch']
  %s0 = inlined_call_operand.vmem [shape: bf16[2,8,64], index: 0, kind: input, shape index: {}]
  %s1 = inlined_call_operand.vmem [shape: bf16[1,64,32], index: 1, kind: input, shape index: {}]
  %s2 = inlined_call_operand.vmem [shape: f32[1,32], index: 2, kind: input, shape index: {}, may-alias: {2,5}]
  %s3 = inlined_call_operand.vmem [shape: bf16[2,8,32], index: 3, kind: input, shape index: {}]
  %s4 = inlined_call_operand.vmem [shape: f32[1,32], index: 4, kind: input, shape index: {}]
  %s5 = inlined_call_operand.vmem [shape: f32[1,32], index: 5, kind: input, shape index: {}, may-alias: {2,5}]
  %s6 = inlined_call_operand.vmem [shape: bf16[2,8,32], index: 6, kind: output, shape index: {}]
  %s7 = sld [smem:[#allocation0]]
  $region57: #{_fwd.61} parent=0
    _
  %s9 = ssub.s32 1, %s7
  %s10 = scalar_select 0, %s9, %s7
  loop: start=0, step=1, limit=4
  $region2: #{_fwd.61} parent=0 // loop_pre_header
    _
  $region3: #{_fwd.61} parent=0 // loop_header
    %s12 = sphi 0, %s16
    %p13 = scmp.ge.s32.totalorder %s12, 4
    %s22 = sphi 0, %s24
    %s25 = sphi 0, %s22
    %s26 = sphi 0, %s25
    %s42 = sphi 0, %s26
    %s46 = sphi 0, %s46
    %s48 = sphi 0, %s46
    %s49 = sphi 0, %s48
    %s63 = sphi 0, %s49
    %s67 = sphi 0, %s67
    %s69 = sphi 0, %s67
    %s70 = sphi 0, %s69
    %s84 = sphi 0, %s70
    %s90 = sphi 0, %s92
    %s93 = sphi 0, %s90
    %s94 = sphi 0, %s93
    %s110 = sphi 0, %s94
    %s114 = sphi 0, %s114
    %s116 = sphi 0, %s114
    %s117 = sphi 0, %s116
    %s131 = sphi 0, %s117
    %s135 = sphi 0, %s135
    %s137 = sphi 0, %s135
    %s138 = sphi 0, %s137
    %s152 = sphi 0, %s138
    %s158 = sphi 0, %s160
    %s161 = sphi 0, %s158
    %s162 = sphi 0, %s161
    %s178 = sphi 0, %s162
  $region4: #{_fwd.61} parent=0 // loop_header_branch
    %15 = sbr.rel (%p13) target = $region8
  $region5: #{_fwd.61} parent=0 // loop_body
    %s17 = ssub.s32 %s12, 1
    %s18 = ssub.s32 %s12, 2
    %s19 = sadd.s32 %s12, 1
    %s20 = ssub.s32 %s12, %s19
    %p21 = scmp.eq.s32.totalorder %s20, 0
    %s23 = sadd.s32 %s22, 1
    %s24 = scalar_select %p21, %s22, %s23
    %p27 = pneg %p21
    %p28 = scmp.eq.s32.totalorder %s12, 1
    %p29 = por %p27, %p28
    %p30 = scmp.ne.s32.totalorder %s22, %s25
    %p31 = scmp.eq.s32.totalorder %s12, 0
    %p32 = por %p30, %p31
    %p33 = scmp.ne.s32.totalorder %s22, %s25
    %p34 = scmp.eq.s32.totalorder %s17, 1
    %p35 = por %p33, %p34
    %p36 = scmp.ne.s32.totalorder %s25, %s26
    %p37 = scmp.eq.s32.totalorder %s17, 0
    %p38 = por %p36, %p37
    %p39 = scmp.ne.s32.totalorder %s25, %s26
    %p40 = scmp.eq.s32.totalorder %s18, 1
    %p41 = por %p39, %p40
    %p43 = scmp.ne.s32.totalorder %s26, %s42
    %p44 = scmp.eq.s32.totalorder %s18, 0
    %p45 = por %p43, %p44
    %s47 = sadd.s32 %s46, 1
    %p50 = scmp.eq.s32.totalorder %s12, 1
    %p51 = scmp.ne.s32.totalorder %s46, %s48
    %p52 = scmp.eq.s32.totalorder %s12, 0
    %p53 = por %p51, %p52
    %p54 = scmp.ne.s32.totalorder %s46, %s48
    %p55 = scmp.eq.s32.totalorder %s17, 1
    %p56 = por %p54, %p55
    %p57 = scmp.ne.s32.totalorder %s48, %s49
    %p58 = scmp.eq.s32.totalorder %s17, 0
    %p59 = por %p57, %p58
    %p60 = scmp.ne.s32.totalorder %s48, %s49
    %p61 = scmp.eq.s32.totalorder %s18, 1
    %p62 = por %p60, %p61
    %p64 = scmp.ne.s32.totalorder %s49, %s63
    %p65 = scmp.eq.s32.totalorder %s18, 0
    %p66 = por %p64, %p65
    %s68 = sadd.s32 %s67, 1
    %p71 = scmp.eq.s32.totalorder %s12, 1
    %p72 = scmp.ne.s32.totalorder %s67, %s69
    %p73 = scmp.eq.s32.totalorder %s12, 0
    %p74 = por %p72, %p73
    %p75 = scmp.ne.s32.totalorder %s67, %s69
    %p76 = scmp.eq.s32.totalorder %s17, 1
    %p77 = por %p75, %p76
    %p78 = scmp.ne.s32.totalorder %s69, %s70
    %p79 = scmp.eq.s32.totalorder %s17, 0
    %p80 = por %p78, %p79
    %p81 = scmp.ne.s32.totalorder %s69, %s70
    %p82 = scmp.eq.s32.totalorder %s18, 1
    %p83 = por %p81, %p82
    %p85 = scmp.ne.s32.totalorder %s70, %s84
    %p86 = scmp.eq.s32.totalorder %s18, 0
    %p87 = por %p85, %p86
    %s88 = ssub.s32 %s12, %s19
    %p89 = scmp.eq.s32.totalorder %s88, 0
    %s91 = sadd.s32 %s90, 1
    %s92 = scalar_select %p89, %s90, %s91
    %p95 = pneg %p89
    %p96 = scmp.eq.s32.totalorder %s12, 1
    %p97 = por %p95, %p96
    %p98 = scmp.ne.s32.totalorder %s90, %s93
    %p99 = scmp.eq.s32.totalorder %s12, 0
    %p100 = por %p98, %p99
    %p101 = scmp.ne.s32.totalorder %s90, %s93
    %p102 = scmp.eq.s32.totalorder %s17, 1
    %p103 = por %p101, %p102
    %p104 = scmp.ne.s32.totalorder %s93, %s94
    %p105 = scmp.eq.s32.totalorder %s17, 0
    %p106 = por %p104, %p105
    %p107 = scmp.ne.s32.totalorder %s93, %s94
    %p108 = scmp.eq.s32.totalorder %s18, 1
    %p109 = por %p107, %p108
    %p111 = scmp.ne.s32.totalorder %s94, %s110
    %p112 = scmp.eq.s32.totalorder %s18, 0
    %p113 = por %p111, %p112
    %s115 = sadd.s32 %s114, 1
    %p118 = scmp.eq.s32.totalorder %s12, 1
    %p119 = scmp.ne.s32.totalorder %s114, %s116
    %p120 = scmp.eq.s32.totalorder %s12, 0
    %p121 = por %p119, %p120
    %p122 = scmp.ne.s32.totalorder %s114, %s116
    %p123 = scmp.eq.s32.totalorder %s17, 1
    %p124 = por %p122, %p123
    %p125 = scmp.ne.s32.totalorder %s116, %s117
    %p126 = scmp.eq.s32.totalorder %s17, 0
    %p127 = por %p125, %p126
    %p128 = scmp.ne.s32.totalorder %s116, %s117
    %p129 = scmp.eq.s32.totalorder %s18, 1
    %p130 = por %p128, %p129
    %p132 = scmp.ne.s32.totalorder %s117, %s131
    %p133 = scmp.eq.s32.totalorder %s18, 0
    %p134 = por %p132, %p133
    %s136 = sadd.s32 %s135, 1
    %p139 = scmp.eq.s32.totalorder %s12, 1
    %p140 = scmp.ne.s32.totalorder %s135, %s137
    %p141 = scmp.eq.s32.totalorder %s12, 0
    %p142 = por %p140, %p141
    %p143 = scmp.ne.s32.totalorder %s135, %s137
    %p144 = scmp.eq.s32.totalorder %s17, 1
    %p145 = por %p143, %p144
    %p146 = scmp.ne.s32.totalorder %s137, %s138
    %p147 = scmp.eq.s32.totalorder %s17, 0
    %p148 = por %p146, %p147
    %p149 = scmp.ne.s32.totalorder %s137, %s138
    %p150 = scmp.eq.s32.totalorder %s18, 1
    %p151 = por %p149, %p150
    %p153 = scmp.ne.s32.totalorder %s138, %s152
    %p154 = scmp.eq.s32.totalorder %s18, 0
    %p155 = por %p153, %p154
    %s156 = ssub.s32 %s12, %s19
    %p157 = scmp.eq.s32.totalorder %s156, 0
    %s159 = sadd.s32 %s158, 1
    %s160 = scalar_select %p157, %s158, %s159
    %p163 = pneg %p157
    %p164 = scmp.eq.s32.totalorder %s12, 1
    %p165 = por %p163, %p164
    %p166 = scmp.ne.s32.totalorder %s158, %s161
    %p167 = scmp.eq.s32.totalorder %s12, 0
    %p168 = por %p166, %p167
    %p169 = scmp.ne.s32.totalorder %s158, %s161
    %p170 = scmp.eq.s32.totalorder %s17, 1
    %p171 = por %p169, %p170
    %p172 = scmp.ne.s32.totalorder %s161, %s162
    %p173 = scmp.eq.s32.totalorder %s17, 0
    %p174 = por %p172, %p173
    %p175 = scmp.ne.s32.totalorder %s161, %s162
    %p176 = scmp.eq.s32.totalorder %s18, 1
    %p177 = por %p175, %p176
    %p179 = scmp.ne.s32.totalorder %s162, %s178
    %p180 = scmp.eq.s32.totalorder %s18, 0
    %p181 = por %p179, %p180
    %p182 = scmp.le.s32.totalorder 1, %s12
    %p183 = scmp.lt.s32.totalorder %s12, 3
    %p184 = pnand %p182, %p183
    %p185 = pneg %p184
    // Predicated region
    $region9: #{_fwd.61} parent=5 // pred_check
      _
    $region10: #{_fwd.61} parent=5 // pred_check_branch
      %187 = sbr.rel (%p184) target = $region12
    $region11: #{_fwd.61} parent=5 // pred_region
      %s188 = ssub.s32 %s12, 1
      // Predicated region
      $region13: #{_fwd.61} parent=11 // pred_check
        %p189 = pneg %p59
      $region14: #{_fwd.61} parent=11 // pred_check_branch
        %191 = sbr.rel (%p189) target = $region16
      $region15: #{_fwd.61} parent=11 // pred_region
        _
      $region16: #{_fwd.61} parent=11 // pred_fallthru
        _
      // Predicated region
      $region17: #{_fwd.61} parent=11 // pred_check
        %p192 = pneg %p80
      $region18: #{_fwd.61} parent=11 // pred_check_branch
        %194 = sbr.rel (%p192) target = $region20
      $region19: #{_fwd.61} parent=11 // pred_region
        _
      $region20: #{_fwd.61} parent=11 // pred_fallthru
        _
      // Predicated region
      $region21: #{_fwd.61} parent=11 // pred_check
        %p195 = pneg %p127
      $region22: #{_fwd.61} parent=11 // pred_check_branch
        %197 = sbr.rel (%p195) target = $region24
      $region23: #{_fwd.61} parent=11 // pred_region
        _
      $region24: #{_fwd.61} parent=11 // pred_fallthru
        _
      // Predicated region
      $region25: #{_fwd.61} parent=11 // pred_check
        %p198 = pneg %p148
      $region26: #{_fwd.61} parent=11 // pred_check_branch
        %200 = sbr.rel (%p198) target = $region28
      $region27: #{_fwd.61} parent=11 // pred_region
        _
      $region28: #{_fwd.61} parent=11 // pred_fallthru
        _
    $region12: #{_fwd.61} parent=5 // pred_fallthru
      _
    %p201 = scmp.lt.s32.totalorder %s12, 2
    // Predicated region
    $region29: #{_fwd.61} parent=5 // pred_check
      %p202 = pneg %p201
    $region30: #{_fwd.61} parent=5 // pred_check_branch
      %204 = sbr.rel (%p202) target = $region32
    $region31: #{_fwd.61} parent=5 // pred_region
      // Predicated region
      $region33: #{_fwd.61} parent=31 // pred_check
        %p205 = pneg %p32
      $region34: #{_fwd.61} parent=31 // pred_check_branch
        %207 = sbr.rel (%p205) target = $region36
      $region35: #{_fwd.61} parent=31 // pred_region
        %p208 = scmp.lt.s32.totalorder %s12, 1
        %s209 = scalar_select %p208, %s12, 1
        %s210 = smul.addr %s209, 4
        %s211 = scalar_lea.vmem %s0, %s210
      $region36: #{_fwd.61} parent=31 // pred_fallthru
        _
      // Predicated region
      $region37: #{_fwd.61} parent=31 // pred_check
        %p212 = pneg %p100
      $region38: #{_fwd.61} parent=31 // pred_check_branch
        %214 = sbr.rel (%p212) target = $region40
      $region39: #{_fwd.61} parent=31 // pred_region
        %p215 = scmp.lt.s32.totalorder %s12, 1
        %s216 = scalar_select %p215, %s12, 1
        %s217 = smul.addr %s216, 4
        %s218 = scalar_lea.vmem %s3, %s217
      $region40: #{_fwd.61} parent=31 // pred_fallthru
        _
    $region32: #{_fwd.61} parent=5 // pred_fallthru
      _
    %p219 = scmp.le.s32.totalorder 1, %s12
    %p220 = scmp.lt.s32.totalorder %s12, 3
    %p221 = pnand %p219, %p220
    %p222 = pneg %p221
    // Predicated region
    $region41: #{_fwd.61} parent=5 // pred_check
      _
    $region42: #{_fwd.61} parent=5 // pred_check_branch
      %224 = sbr.rel (%p221) target = $region44
    $region43: #{_fwd.61} parent=5 // pred_region
      %s225 = ssub.s32 %s12, 1
      %p226 = scmp.lt.s32.totalorder %s17, 1
      %s227 = scalar_select %p226, %s17, 1
      %s228 = smul.addr %s227, 4
      %s229 = scalar_lea.vmem %s0, %s228
      %p230 = pneg %p38
      %p231 = pneg %p35
      %p232 = pneg %p59
      %p233 = pneg %p56
      %p234 = pneg %p80
      %p235 = pneg %p77
      %p236 = scmp.lt.s32.totalorder %s17, 1
      %s237 = scalar_select %p236, %s17, 1
      %s238 = smul.addr %s237, 4
      %s239 = scalar_lea.vmem %s3, %s238
      %p240 = pneg %p106
      %p241 = pneg %p103
      %p242 = pneg %p127
      %p243 = pneg %p124
      %p244 = pneg %p148
      %p245 = pneg %p145
      %p246 = pneg %p174
      %p247 = pneg %p171
      %p248 = scmp.lt.s32.totalorder %s17, 1
      %s249 = scalar_select %p248, %s17, 1
      %s250 = smul.addr %s249, 4
      %s251 = scalar_lea.vmem %s6, %s250
      %p252 = scmp.lt.s32.totalorder %s17, 1
      %s253 = scalar_select %p252, %s17, 1
      %s254 = smul.addr %s253, 4
      %s255 = scalar_lea.vmem %s0, %s254
      %p256 = scmp.lt.s32.totalorder %s17, 1
      %s257 = scalar_select %p256, %s17, 1
      %s258 = smul.addr %s257, 4
      %s259 = scalar_lea.vmem %s3, %s258
      %p260 = scmp.lt.s32.totalorder %s17, 1
      %s261 = scalar_select %p260, %s17, 1
      %s262 = smul.addr %s261, 4
      %s263 = scalar_lea.vmem %s6, %s262
      %v265 = vld [vmem:[%s255] sm:$0xf]
      %v266 = vld [vmem:[%s1] sm:$0xf]
      %v267 = vld [vmem:[%s1 + $0x4] sm:$0xf]
      %v268 = vld [vmem:[%s1 + $0x8] sm:$0xf]
      %v269 = vld [vmem:[%s1 + $0xc] sm:$0xf]
      %v270 = vld [vmem:[%s1 + $0x10] sm:$0xf]
      %v271 = vld [vmem:[%s1 + $0x14] sm:$0xf]
      %v272 = vld [vmem:[%s1 + $0x18] sm:$0xf]
      %v273 = vld [vmem:[%s1 + $0x1c] sm:$0xf]
      %v274 = vld [vmem:[%s2] sm:$0x1]
      %v276 = vlaneseq
      %v277 = vshrl.u32 %v276, 7
      %v278 = vsub.s32 0, %v277
      %v279 = vrot.slane %v274, %v278
      %v289 = vunpack.c.l.b16 %v266
      %v290 = vunpack.c.l.b16 %v267
      %v291 = vunpack.c.l.b16 %v268
      %v292 = vunpack.c.l.b16 %v269
      %v293 = vunpack.c.l.b16 %v270
      %v294 = vunpack.c.l.b16 %v271
      %v295 = vunpack.c.l.b16 %v272
      %v296 = vunpack.c.l.b16 %v273
      %v297 = vpack.c.b16 %v290, %v289
      %v298 = vpack.c.b16 %v292, %v291
      %v299 = vpack.c.b16 %v294, %v293
      %v300 = vpack.c.b16 %v296, %v295
      %vm305 = vcmask 523264
      %v307 = vsel %vm305, %v265, 0
      %309 = vmatprep.subr.bf16.mxu0 0
      %310 = vmatpush1.bf16.msra.mxu0 %v297
      %311 = vmatprep.subr.bf16.mxu0 0
      %312 = vmatpush1.bf16.msra.mxu0 %v298
      %313 = vmatprep.subr.bf16.mxu0 0
      %314 = vmatpush1.bf16.msra.mxu0 %v299
      %315 = vmatprep.subr.bf16.mxu0 0
      %316 = vmatpush1.bf16.msra.mxu0 %v300
      %317 = vmatprep.subr.bf16.mxu0 0
      %318 = vmatpush1.bf16.msra.mxu0 0
      %319 = vmatprep.subr.bf16.mxu0 0
      %320 = vmatpush1.bf16.msra.mxu0 0
      %321 = vmatprep.subr.bf16.mxu0 0
      %322 = vmatpush1.bf16.msra.mxu0 0
      %323 = vmatprep.subr.bf16.mxu0 0
      %324 = vmatpush1.bf16.msra.mxu0 0
      %325 = vmatprep.subr.bf16.mxu0 0
      %326 = vmatpush1.bf16.msra.mxu0 0
      %327 = vmatprep.subr.bf16.mxu0 0
      %328 = vmatpush1.bf16.msra.mxu0 0
      %329 = vmatprep.subr.bf16.mxu0 0
      %330 = vmatpush1.bf16.msra.mxu0 0
      %331 = vmatprep.subr.bf16.mxu0 0
      %332 = vmatpush1.bf16.msra.mxu0 0
      %333 = vmatprep.subr.bf16.mxu0 0
      %334 = vmatpush1.bf16.msra.mxu0 0
      %335 = vmatprep.subr.bf16.mxu0 0
      %336 = vmatpush1.bf16.msra.mxu0 0
      %337 = vmatprep.subr.bf16.mxu0 0
      %338 = vmatpush1.bf16.msra.mxu0 0
      %339 = vmatprep.subr.bf16.mxu0 0
      %340 = vmatpush1.bf16.msra.mxu0 0
      %341 = vmatprep.mubr.bf16.mxu0 0
      %342 = vmatmul.mubr.bf16.gmra.mrb[0].mxu0 %v307
      %v343 = vpop.f32.mrb[0].mxu0
      %v344 = vadd.f32 %v279, %v343
      %v345 = vpop.f32.mrb[0].mxu0
      %v346 = vpop.f32.mrb[0].mxu0
      %v347 = vpop.f32.mrb[0].mxu0
      %348 = vdwg.mxu0
      %v349 = vld [vmem:[%s259] sm:$0xf]
      %v350 = vunpack.c.l.bf16 %v349
      %v351 = vadd.f32 %v344, %v350
      %vm352 = vcmask 261120
      %v353 = vsel %vm352, %v351, 0.0
      %354 = vadd.xlane.f32.xlu0 %v353
      %v355 = vpop.xlane.xlu0 %354
      %v356 = vrcp.pop 32.0
      %v357 = vmul.f32 %v355, %v356
      %v358 = vsub.f32 %v351, %v357
      %v359 = vmul.f32 %v358, %v358
      %v360 = vsel %vm352, %v359, 0.0
      %361 = vadd.xlane.f32.xlu0 %v360
      %v362 = vpop.xlane.xlu0 %361
      %v363 = vmul.f32 %v362, %v356
      %v364 = vadd.f32 %v363, 1e-05
      %v365 = vrsqrt.pop %v364
      %v366 = vmul.f32 %v358, %v365
      %v367 = vld [vmem:[%s4] sm:$0x1]
      %v369 = vlaneseq
      %v370 = vshrl.u32 %v369, 7
      %v371 = vsub.s32 0, %v370
      %v372 = vrot.slane %v367, %v371
      %v374 = vmul.f32 %v366, %v372
      %v375 = vld [vmem:[%s5] sm:$0x1]
      %v377 = vlaneseq
      %v378 = vshrl.u32 %v377, 7
      %v379 = vsub.s32 0, %v378
      %v380 = vrot.slane %v375, %v379
      %v382 = vadd.f32 %v374, %v380
      %v383 = vpack.c.bf16 %v382, %v382
      %vm384 = vcmask 257024
      %385 = vst.msk [vmem:[%s263] sm:$0xf] %vm384, %v383
      %p386 = scmp.lt.s32.totalorder %s17, 1
      %s387 = scalar_select %p386, %s17, 1
      %s388 = smul.addr %s387, 4
      %s389 = scalar_lea.vmem %s6, %s388
      // Predicated region
      $region45: #{_fwd.61} parent=43 // pred_check
        %p390 = pneg %p171
      $region46: #{_fwd.61} parent=43 // pred_check_branch
        %392 = sbr.rel (%p390) target = $region48
      $region47: #{_fwd.61} parent=43 // pred_region
        _
      $region48: #{_fwd.61} parent=43 // pred_fallthru
        _
    $region44: #{_fwd.61} parent=5 // pred_fallthru
      _
    %p393 = scmp.le.s32.totalorder 2, %s12
    // Predicated region
    $region49: #{_fwd.61} parent=5 // pred_check
      %p394 = pneg %p393
    $region50: #{_fwd.61} parent=5 // pred_check_branch
      %396 = sbr.rel (%p394) target = $region52
    $region51: #{_fwd.61} parent=5 // pred_region
      %s397 = ssub.s32 %s12, 2
      // Predicated region
      $region53: #{_fwd.61} parent=51 // pred_check
        %p398 = pneg %p177
      $region54: #{_fwd.61} parent=51 // pred_check_branch
        %400 = sbr.rel (%p398) target = $region56
      $region55: #{_fwd.61} parent=51 // pred_region
        %p401 = scmp.lt.s32.totalorder %s18, 1
        %s402 = scalar_select %p401, %s18, 1
        %s403 = smul.addr %s402, 4
        %s404 = scalar_lea.vmem %s6, %s403
      $region56: #{_fwd.61} parent=51 // pred_fallthru
        _
    $region52: #{_fwd.61} parent=5 // pred_fallthru
      _
  $region6: #{_fwd.61} parent=0 // loop_footer
    %s16 = sadd.s32 1, %s12
  $region7: #{_fwd.61} parent=0 // loop_footer_branch
    %11 = sbr.rel target = $region3
  $region8: #{_fwd.61} parent=0 // loop_exit
    _

// kernel: _fwd.65
$region0: #{_fwd.65}
  #allocation0 [shape = 'u32[]', space=smem, size = 0x4, offset = 0x4, fixed_abs, tag = 'smem constant byte address 0x4 - core index']
  #allocation1 [shape = 'u32[144,128]{1,0:T(1,128)}', space=vmem, size = 0x12000, scoped, tag = 'internal scratch']
  %s0 = inlined_call_operand.vmem [shape: bf16[64,32], index: 0, kind: input, shape index: {}]
  %s1 = inlined_call_operand.vmem [shape: bf16[32,32], index: 1, kind: input, shape index: {}]
  %s2 = inlined_call_operand.vmem [shape: bf16[32,32], index: 2, kind: input, shape index: {}]
  %s3 = inlined_call_operand.vmem [shape: bf16[32,32], index: 3, kind: input, shape index: {}]
  %s4 = inlined_call_operand.vmem [shape: f32[1,32], index: 4, kind: input, shape index: {}, may-alias: {4,5,6}]
  %s5 = inlined_call_operand.vmem [shape: f32[1,32], index: 5, kind: input, shape index: {}, may-alias: {4,5,6}]
  %s6 = inlined_call_operand.vmem [shape: f32[1,32], index: 6, kind: input, shape index: {}, may-alias: {4,5,6}]
  %s7 = inlined_call_operand.vmem [shape: bf16[64,32], index: 7, kind: output, shape index: {0}]
  %s8 = inlined_call_operand.vmem [shape: bf16[64,32], index: 8, kind: output, shape index: {1}]
  %s9 = inlined_call_operand.vmem [shape: bf16[64,32], index: 9, kind: output, shape index: {2}]
  %10 = xla_tuple %s7, %s8, %s9
  %s11 = sld [smem:[#allocation0]]
  $region54: #{_fwd.65} parent=0
    _
  %s13 = ssub.s32 1, %s11
  %s14 = scalar_select 0, %s13, %s11
  // Predicated region
  $region2: #{_fwd.65} parent=0 // pred_check
    _
  $region3: #{_fwd.65} parent=0 // pred_check_branch
    %16 = sbr.rel (0) target = $region5
  $region4: #{_fwd.65} parent=0 // pred_region
    _
  $region5: #{_fwd.65} parent=0 // pred_fallthru
    _
  // Predicated region
  $region6: #{_fwd.65} parent=0 // pred_check
    _
  $region7: #{_fwd.65} parent=0 // pred_check_branch
    %18 = sbr.rel (0) target = $region9
  $region8: #{_fwd.65} parent=0 // pred_region
    _
  $region9: #{_fwd.65} parent=0 // pred_fallthru
    _
  // Predicated region
  $region10: #{_fwd.65} parent=0 // pred_check
    _
  $region11: #{_fwd.65} parent=0 // pred_check_branch
    %20 = sbr.rel (0) target = $region13
  $region12: #{_fwd.65} parent=0 // pred_region
    _
  $region13: #{_fwd.65} parent=0 // pred_fallthru
    _
  // Predicated region
  $region14: #{_fwd.65} parent=0 // pred_check
    _
  $region15: #{_fwd.65} parent=0 // pred_check_branch
    %22 = sbr.rel (0) target = $region17
  $region16: #{_fwd.65} parent=0 // pred_region
    _
  $region17: #{_fwd.65} parent=0 // pred_fallthru
    _
  // Predicated region
  $region18: #{_fwd.65} parent=0 // pred_check
    _
  $region19: #{_fwd.65} parent=0 // pred_check_branch
    %24 = sbr.rel (0) target = $region21
  $region20: #{_fwd.65} parent=0 // pred_region
    _
  $region21: #{_fwd.65} parent=0 // pred_fallthru
    _
  // Predicated region
  $region22: #{_fwd.65} parent=0 // pred_check
    _
  $region23: #{_fwd.65} parent=0 // pred_check_branch
    %26 = sbr.rel (0) target = $region25
  $region24: #{_fwd.65} parent=0 // pred_region
    _
  $region25: #{_fwd.65} parent=0 // pred_fallthru
    _
  // Predicated region
  $region26: #{_fwd.65} parent=0 // pred_check
    _
  $region27: #{_fwd.65} parent=0 // pred_check_branch
    %28 = sbr.rel (0) target = $region29
  $region28: #{_fwd.65} parent=0 // pred_region
    _
  $region29: #{_fwd.65} parent=0 // pred_fallthru
    _
  %v30 = vld [vmem:[%s0] sm:$0xf]
  %v31 = vld [vmem:[%s0 + $0x4] sm:$0xf]
  %v32 = vld [vmem:[%s0 + $0x8] sm:$0xf]
  %v33 = vld [vmem:[%s0 + $0xc] sm:$0xf]
  %v34 = vld [vmem:[%s0 + $0x10] sm:$0xf]
  %v35 = vld [vmem:[%s0 + $0x14] sm:$0xf]
  %v36 = vld [vmem:[%s0 + $0x18] sm:$0xf]
  %v37 = vld [vmem:[%s0 + $0x1c] sm:$0xf]
  %v38 = vld [vmem:[%s1] sm:$0xf]
  %v39 = vld [vmem:[%s1 + $0x4] sm:$0xf]
  %v40 = vld [vmem:[%s1 + $0x8] sm:$0xf]
  %v41 = vld [vmem:[%s1 + $0xc] sm:$0xf]
  %v42 = vld [vmem:[%s4] sm:$0x1]
  %v44 = vlaneseq
  %v45 = vshrl.u32 %v44, 7
  %v46 = vsub.s32 0, %v45
  %v47 = vrot.slane %v42, %v46
  %v57 = vunpack.c.l.b16 %v30
  %v58 = vunpack.c.l.b16 %v31
  %v59 = vunpack.c.l.b16 %v32
  %v60 = vunpack.c.l.b16 %v33
  %v61 = vunpack.c.l.b16 %v34
  %v62 = vunpack.c.l.b16 %v35
  %v63 = vunpack.c.l.b16 %v36
  %v64 = vunpack.c.l.b16 %v37
  %v65 = vpack.c.b16 %v58, %v57
  %v66 = vpack.c.b16 %v60, %v59
  %v67 = vpack.c.b16 %v62, %v61
  %v68 = vpack.c.b16 %v64, %v63
  %v73 = vunpack.c.l.b16 %v38
  %v74 = vunpack.c.l.b16 %v39
  %v75 = vunpack.c.l.b16 %v40
  %v76 = vunpack.c.l.b16 %v41
  %v77 = vpack.c.b16 %v74, %v73
  %v78 = vpack.c.b16 %v76, %v75
  %vm81 = vcmask 261120
  %v83 = vsel %vm81, %v65, 0
  %v86 = vsel %vm81, %v66, 0
  %v89 = vsel %vm81, %v67, 0
  %v92 = vsel %vm81, %v68, 0
  %94 = vmatprep.subr.bf16.mxu0 0
  %95 = vmatpush1.bf16.msra.mxu0 %v77
  %96 = vmatprep.subr.bf16.mxu0 0
  %97 = vmatpush1.bf16.msra.mxu0 %v78
  %98 = vmatprep.subr.bf16.mxu0 0
  %99 = vmatpush1.bf16.msra.mxu0 0
  %100 = vmatprep.subr.bf16.mxu0 0
  %101 = vmatpush1.bf16.msra.mxu0 0
  %102 = vmatprep.subr.bf16.mxu0 0
  %103 = vmatpush1.bf16.msra.mxu0 0
  %104 = vmatprep.subr.bf16.mxu0 0
  %105 = vmatpush1.bf16.msra.mxu0 0
  %106 = vmatprep.subr.bf16.mxu0 0
  %107 = vmatpush1.bf16.msra.mxu0 0
  %108 = vmatprep.subr.bf16.mxu0 0
  %109 = vmatpush1.bf16.msra.mxu0 0
  %110 = vmatprep.subr.bf16.mxu0 0
  %111 = vmatpush1.bf16.msra.mxu0 0
  %112 = vmatprep.subr.bf16.mxu0 0
  %113 = vmatpush1.bf16.msra.mxu0 0
  %114 = vmatprep.subr.bf16.mxu0 0
  %115 = vmatpush1.bf16.msra.mxu0 0
  %116 = vmatprep.subr.bf16.mxu0 0
  %117 = vmatpush1.bf16.msra.mxu0 0
  %118 = vmatprep.subr.bf16.mxu0 0
  %119 = vmatpush1.bf16.msra.mxu0 0
  %120 = vmatprep.subr.bf16.mxu0 0
  %121 = vmatpush1.bf16.msra.mxu0 0
  %122 = vmatprep.subr.bf16.mxu0 0
  %123 = vmatpush1.bf16.msra.mxu0 0
  %124 = vmatprep.subr.bf16.mxu0 0
  %125 = vmatpush1.bf16.msra.mxu0 0
  %126 = vmatprep.mubr.bf16.mxu0 0
  %127 = vmatmul.mubr.bf16.gmra.mrb[0].mxu0 %v83
  %v128 = vpop.f32.mrb[0].mxu0
  %v129 = vadd.f32 %v47, %v128
  %v130 = vpop.f32.mrb[0].mxu0
  %v131 = vpop.f32.mrb[0].mxu0
  %v132 = vadd.f32 %v47, %v131
  %v133 = vpop.f32.mrb[0].mxu0
  %134 = vmatprep.mubr.bf16.mxu0 0
  %135 = vmatmul.mubr.bf16.gmra.mrb[0].mxu0 %v86
  %v136 = vpop.f32.mrb[0].mxu0
  %v137 = vadd.f32 %v47, %v136
  %v138 = vpop.f32.mrb[0].mxu0
  %v139 = vpop.f32.mrb[0].mxu0
  %v140 = vadd.f32 %v47, %v139
  %v141 = vpop.f32.mrb[0].mxu0
  %142 = vmatprep.mubr.bf16.mxu0 0
  %143 = vmatmul.mubr.bf16.gmra.mrb[0].mxu0 %v89
  %v144 = vpop.f32.mrb[0].mxu0
  %v145 = vadd.f32 %v47, %v144
  %v146 = vpop.f32.mrb[0].mxu0
  %v147 = vpop.f32.mrb[0].mxu0
  %v148 = vadd.f32 %v47, %v147
  %v149 = vpop.f32.mrb[0].mxu0
  %150 = vmatprep.mubr.bf16.mxu0 0
  %151 = vmatmul.mubr.bf16.gmra.mrb[0].mxu0 %v92
  %v152 = vpop.f32.mrb[0].mxu0
  %v153 = vadd.f32 %v47, %v152
  %v154 = vpop.f32.mrb[0].mxu0
  %v155 = vpop.f32.mrb[0].mxu0
  %v156 = vadd.f32 %v47, %v155
  %v157 = vpop.f32.mrb[0].mxu0
  %158 = vdwg.mxu0
  %v159 = vpack.c.bf16 %v132, %v129
  %v160 = vpack.c.bf16 %v140, %v137
  %v161 = vpack.c.bf16 %v148, %v145
  %v162 = vpack.c.bf16 %v156, %v153
  %v167 = vunpack.c.l.b16 %v159
  %v168 = vunpack.c.h.b16 %v159
  %v169 = vunpack.c.l.b16 %v160
  %v170 = vunpack.c.h.b16 %v160
  %v171 = vunpack.c.l.b16 %v161
  %v172 = vunpack.c.h.b16 %v161
  %v173 = vunpack.c.l.b16 %v162
  %v174 = vunpack.c.h.b16 %v162
  %v175 = vpack.c.b16 %v167, %v167
  %v176 = vpack.c.b16 %v168, %v168
  %v177 = vpack.c.b16 %v169, %v169
  %v178 = vpack.c.b16 %v170, %v170
  %v179 = vpack.c.b16 %v171, %v171
  %v180 = vpack.c.b16 %v172, %v172
  %v181 = vpack.c.b16 %v173, %v173
  %v182 = vpack.c.b16 %v174, %v174
  %vm191 = vcmask 257024
  %192 = vst.msk [vmem:[%s7] sm:$0xf] %vm191, %v175
  %193 = vst.msk [vmem:[%s7 + $0x4] sm:$0xf] %vm191, %v176
  %194 = vst.msk [vmem:[%s7 + $0x8] sm:$0xf] %vm191, %v177
  %195 = vst.msk [vmem:[%s7 + $0xc] sm:$0xf] %vm191, %v178
  %196 = vst.msk [vmem:[%s7 + $0x10] sm:$0xf] %vm191, %v179
  %197 = vst.msk [vmem:[%s7 + $0x14] sm:$0xf] %vm191, %v180
  %198 = vst.msk [vmem:[%s7 + $0x18] sm:$0xf] %vm191, %v181
  %199 = vst.msk [vmem:[%s7 + $0x1c] sm:$0xf] %vm191, %v182
  %v200 = vld [vmem:[%s2] sm:$0xf]
  %v201 = vld [vmem:[%s2 + $0x4] sm:$0xf]
  %v202 = vld [vmem:[%s2 + $0x8] sm:$0xf]
  %v203 = vld [vmem:[%s2 + $0xc] sm:$0xf]
  %v204 = vld [vmem:[%s5] sm:$0x1]
  %v206 = vlaneseq
  %v207 = vshrl.u32 %v206, 7
  %v208 = vsub.s32 0, %v207
  %v209 = vrot.slane %v204, %v208
  %v215 = vunpack.c.l.b16 %v200
  %v216 = vunpack.c.l.b16 %v201
  %v217 = vunpack.c.l.b16 %v202
  %v218 = vunpack.c.l.b16 %v203
  %v219 = vpack.c.b16 %v216, %v215
  %v220 = vpack.c.b16 %v218, %v217
  %223 = vmatprep.subr.bf16.mxu0 0
  %224 = vmatpush1.bf16.msra.mxu0 %v219
  %225 = vmatprep.subr.bf16.mxu0 0
  %226 = vmatpush1.bf16.msra.mxu0 %v220
  %227 = vmatprep.subr.bf16.mxu0 0
  %228 = vmatpush1.bf16.msra.mxu0 0
  %229 = vmatprep.subr.bf16.mxu0 0
  %230 = vmatpush1.bf16.msra.mxu0 0
  %231 = vmatprep.subr.bf16.mxu0 0
  %232 = vmatpush1.bf16.msra.mxu0 0
  %233 = vmatprep.subr.bf16.mxu0 0
  %234 = vmatpush1.bf16.msra.mxu0 0
  %235 = vmatprep.subr.bf16.mxu0 0
  %236 = vmatpush1.bf16.msra.mxu0 0
  %237 = vmatprep.subr.bf16.mxu0 0
  %238 = vmatpush1.bf16.msra.mxu0 0
  %239 = vmatprep.subr.bf16.mxu0 0
  %240 = vmatpush1.bf16.msra.mxu0 0
  %241 = vmatprep.subr.bf16.mxu0 0
  %242 = vmatpush1.bf16.msra.mxu0 0
  %243 = vmatprep.subr.bf16.mxu0 0
  %244 = vmatpush1.bf16.msra.mxu0 0
  %245 = vmatprep.subr.bf16.mxu0 0
  %246 = vmatpush1.bf16.msra.mxu0 0
  %247 = vmatprep.subr.bf16.mxu0 0
  %248 = vmatpush1.bf16.msra.mxu0 0
  %249 = vmatprep.subr.bf16.mxu0 0
  %250 = vmatpush1.bf16.msra.mxu0 0
  %251 = vmatprep.subr.bf16.mxu0 0
  %252 = vmatpush1.bf16.msra.mxu0 0
  %253 = vmatprep.subr.bf16.mxu0 0
  %254 = vmatpush1.bf16.msra.mxu0 0
  %255 = vmatprep.mubr.bf16.mxu0 0
  %256 = vmatmul.mubr.bf16.gmra.mrb[0].mxu0 %v83
  %v257 = vpop.f32.mrb[0].mxu0
  %v258 = vadd.f32 %v209, %v257
  %v259 = vpop.f32.mrb[0].mxu0
  %v260 = vpop.f32.mrb[0].mxu0
  %v261 = vadd.f32 %v209, %v260
  %v262 = vpop.f32.mrb[0].mxu0
  %263 = vmatprep.mubr.bf16.mxu0 0
  %264 = vmatmul.mubr.bf16.gmra.mrb[0].mxu0 %v86
  %v265 = vpop.f32.mrb[0].mxu0
  %v266 = vadd.f32 %v209, %v265
  %v267 = vpop.f32.mrb[0].mxu0
  %v268 = vpop.f32.mrb[0].mxu0
  %v269 = vadd.f32 %v209, %v268
  %v270 = vpop.f32.mrb[0].mxu0
  %271 = vmatprep.mubr.bf16.mxu0 0
  %272 = vmatmul.mubr.bf16.gmra.mrb[0].mxu0 %v89
  %v273 = vpop.f32.mrb[0].mxu0
  %v274 = vadd.f32 %v209, %v273
  %v275 = vpop.f32.mrb[0].mxu0
  %v276 = vpop.f32.mrb[0].mxu0
  %v277 = vadd.f32 %v209, %v276
  %v278 = vpop.f32.mrb[0].mxu0
  %279 = vmatprep.mubr.bf16.mxu0 0
  %280 = vmatmul.mubr.bf16.gmra.mrb[0].mxu0 %v92
  %v281 = vpop.f32.mrb[0].mxu0
  %v282 = vadd.f32 %v209, %v281
  %v283 = vpop.f32.mrb[0].mxu0
  %v284 = vpop.f32.mrb[0].mxu0
  %v285 = vadd.f32 %v209, %v284
  %v286 = vpop.f32.mrb[0].mxu0
  %287 = vdwg.mxu0
  %v288 = vpack.c.bf16 %v261, %v258
  %v289 = vpack.c.bf16 %v269, %v266
  %v290 = vpack.c.bf16 %v277, %v274
  %v291 = vpack.c.bf16 %v285, %v282
  %v296 = vunpack.c.l.b16 %v288
  %v297 = vunpack.c.h.b16 %v288
  %v298 = vunpack.c.l.b16 %v289
  %v299 = vunpack.c.h.b16 %v289
  %v300 = vunpack.c.l.b16 %v290
  %v301 = vunpack.c.h.b16 %v290
  %v302 = vunpack.c.l.b16 %v291
  %v303 = vunpack.c.h.b16 %v291
  %v304 = vpack.c.b16 %v296, %v296
  %v305 = vpack.c.b16 %v297, %v297
  %v306 = vpack.c.b16 %v298, %v298
  %v307 = vpack.c.b16 %v299, %v299
  %v308 = vpack.c.b16 %v300, %v300
  %v309 = vpack.c.b16 %v301, %v301
  %v310 = vpack.c.b16 %v302, %v302
  %v311 = vpack.c.b16 %v303, %v303
  %320 = vst.msk [vmem:[%s8] sm:$0xf] %vm191, %v304
  %321 = vst.msk [vmem:[%s8 + $0x4] sm:$0xf] %vm191, %v305
  %322 = vst.msk [vmem:[%s8 + $0x8] sm:$0xf] %vm191, %v306
  %323 = vst.msk [vmem:[%s8 + $0xc] sm:$0xf] %vm191, %v307
  %324 = vst.msk [vmem:[%s8 + $0x10] sm:$0xf] %vm191, %v308
  %325 = vst.msk [vmem:[%s8 + $0x14] sm:$0xf] %vm191, %v309
  %326 = vst.msk [vmem:[%s8 + $0x18] sm:$0xf] %vm191, %v310
  %327 = vst.msk [vmem:[%s8 + $0x1c] sm:$0xf] %vm191, %v311
  %v328 = vld [vmem:[%s3] sm:$0xf]
  %v329 = vld [vmem:[%s3 + $0x4] sm:$0xf]
  %v330 = vld [vmem:[%s3 + $0x8] sm:$0xf]
  %v331 = vld [vmem:[%s3 + $0xc] sm:$0xf]
  %v332 = vld [vmem:[%s6] sm:$0x1]
  %v334 = vlaneseq
  %v335 = vshrl.u32 %v334, 7
  %v336 = vsub.s32 0, %v335
  %v337 = vrot.slane %v332, %v336
  %v343 = vunpack.c.l.b16 %v328
  %v344 = vunpack.c.l.b16 %v329
  %v345 = vunpack.c.l.b16 %v330
  %v346 = vunpack.c.l.b16 %v331
  %v347 = vpack.c.b16 %v344, %v343
  %v348 = vpack.c.b16 %v346, %v345
  %351 = vmatprep.subr.bf16.mxu0 0
  %352 = vmatpush1.bf16.msra.mxu0 %v347
  %353 = vmatprep.subr.bf16.mxu0 0
  %354 = vmatpush1.bf16.msra.mxu0 %v348
  %355 = vmatprep.subr.bf16.mxu0 0
  %356 = vmatpush1.bf16.msra.mxu0 0
  %357 = vmatprep.subr.bf16.mxu0 0
  %358 = vmatpush1.bf16.msra.mxu0 0
  %359 = vmatprep.subr.bf16.mxu0 0
  %360 = vmatpush1.bf16.msra.mxu0 0
  %361 = vmatprep.subr.bf16.mxu0 0
  %362 = vmatpush1.bf16.msra.mxu0 0
  %363 = vmatprep.subr.bf16.mxu0 0
  %364 = vmatpush1.bf16.msra.mxu0 0
  %365 = vmatprep.subr.bf16.mxu0 0
  %366 = vmatpush1.bf16.msra.mxu0 0
  %367 = vmatprep.subr.bf16.mxu0 0
  %368 = vmatpush1.bf16.msra.mxu0 0
  %369 = vmatprep.subr.bf16.mxu0 0
  %370 = vmatpush1.bf16.msra.mxu0 0
  %371 = vmatprep.subr.bf16.mxu0 0
  %372 = vmatpush1.bf16.msra.mxu0 0
  %373 = vmatprep.subr.bf16.mxu0 0
  %374 = vmatpush1.bf16.msra.mxu0 0
  %375 = vmatprep.subr.bf16.mxu0 0
  %376 = vmatpush1.bf16.msra.mxu0 0
  %377 = vmatprep.subr.bf16.mxu0 0
  %378 = vmatpush1.bf16.msra.mxu0 0
  %379 = vmatprep.subr.bf16.mxu0 0
  %380 = vmatpush1.bf16.msra.mxu0 0
  %381 = vmatprep.subr.bf16.mxu0 0
  %382 = vmatpush1.bf16.msra.mxu0 0
  %383 = vmatprep.mubr.bf16.mxu0 0
  %384 = vmatmul.mubr.bf16.gmra.mrb[0].mxu0 %v83
  %v385 = vpop.f32.mrb[0].mxu0
  %v386 = vadd.f32 %v337, %v385
  %v387 = vpop.f32.mrb[0].mxu0
  %v388 = vpop.f32.mrb[0].mxu0
  %v389 = vadd.f32 %v337, %v388
  %v390 = vpop.f32.mrb[0].mxu0
  %391 = vmatprep.mubr.bf16.mxu0 0
  %392 = vmatmul.mubr.bf16.gmra.mrb[0].mxu0 %v86
  %v393 = vpop.f32.mrb[0].mxu0
  %v394 = vadd.f32 %v337, %v393
  %v395 = vpop.f32.mrb[0].mxu0
  %v396 = vpop.f32.mrb[0].mxu0
  %v397 = vadd.f32 %v337, %v396
  %v398 = vpop.f32.mrb[0].mxu0
  %399 = vmatprep.mubr.bf16.mxu0 0
  %400 = vmatmul.mubr.bf16.gmra.mrb[0].mxu0 %v89
  %v401 = vpop.f32.mrb[0].mxu0
  %v402 = vadd.f32 %v337, %v401
  %v403 = vpop.f32.mrb[0].mxu0
  %v404 = vpop.f32.mrb[0].mxu0
  %v405 = vadd.f32 %v337, %v404
  %v406 = vpop.f32.mrb[0].mxu0
  %407 = vmatprep.mubr.bf16.mxu0 0
  %408 = vmatmul.mubr.bf16.gmra.mrb[0].mxu0 %v92
  %v409 = vpop.f32.mrb[0].mxu0
  %v410 = vadd.f32 %v337, %v409
  %v411 = vpop.f32.mrb[0].mxu0
  %v412 = vpop.f32.mrb[0].mxu0
  %v413 = vadd.f32 %v337, %v412
  %v414 = vpop.f32.mrb[0].mxu0
  %415 = vdwg.mxu0
  %v416 = vpack.c.bf16 %v389, %v386
  %v417 = vpack.c.bf16 %v397, %v394
  %v418 = vpack.c.bf16 %v405, %v402
  %v419 = vpack.c.bf16 %v413, %v410
  %v424 = vunpack.c.l.b16 %v416
  %v425 = vunpack.c.h.b16 %v416
  %v426 = vunpack.c.l.b16 %v417
  %v427 = vunpack.c.h.b16 %v417
  %v428 = vunpack.c.l.b16 %v418
  %v429 = vunpack.c.h.b16 %v418
  %v430 = vunpack.c.l.b16 %v419
  %v431 = vunpack.c.h.b16 %v419
  %v432 = vpack.c.b16 %v424, %v424
  %v433 = vpack.c.b16 %v425, %v425
  %v434 = vpack.c.b16 %v426, %v426
  %v435 = vpack.c.b16 %v427, %v427
  %v436 = vpack.c.b16 %v428, %v428
  %v437 = vpack.c.b16 %v429, %v429
  %v438 = vpack.c.b16 %v430, %v430
  %v439 = vpack.c.b16 %v431, %v431
  %448 = vst.msk [vmem:[%s9] sm:$0xf] %vm191, %v432
  %449 = vst.msk [vmem:[%s9 + $0x4] sm:$0xf] %vm191, %v433
  %450 = vst.msk [vmem:[%s9 + $0x8] sm:$0xf] %vm191, %v434
  %451 = vst.msk [vmem:[%s9 + $0xc] sm:$0xf] %vm191, %v435
  %452 = vst.msk [vmem:[%s9 + $0x10] sm:$0xf] %vm191, %v436
  %453 = vst.msk [vmem:[%s9 + $0x14] sm:$0xf] %vm191, %v437
  %454 = vst.msk [vmem:[%s9 + $0x18] sm:$0xf] %vm191, %v438
  %455 = vst.msk [vmem:[%s9 + $0x1c] sm:$0xf] %vm191, %v439
  // Predicated region
  $region30: #{_fwd.65} parent=0 // pred_check
    _
  $region31: #{_fwd.65} parent=0 // pred_check_branch
    %457 = sbr.rel (0) target = $region33
  $region32: #{_fwd.65} parent=0 // pred_region
    _
  $region33: #{_fwd.65} parent=0 // pred_fallthru
    _
  // Predicated region
  $region34: #{_fwd.65} parent=0 // pred_check
    _
  $region35: #{_fwd.65} parent=0 // pred_check_branch
    %459 = sbr.rel (0) target = $region37
  $region36: #{_fwd.65} parent=0 // pred_region
    _
  $region37: #{_fwd.65} parent=0 // pred_fallthru
    _
  // Predicated region
  $region38: #{_fwd.65} parent=0 // pred_check
    _
  $region39: #{_fwd.65} parent=0 // pred_check_branch
    %461 = sbr.rel (0) target = $region41
  $region40: #{_fwd.65} parent=0 // pred_region
    _
  $region41: #{_fwd.65} parent=0 // pred_fallthru
    _
  // Predicated region
  $region42: #{_fwd.65} parent=0 // pred_check
    _
  $region43: #{_fwd.65} parent=0 // pred_check_branch
    %463 = sbr.rel (0) target = $region45
  $region44: #{_fwd.65} parent=0 // pred_region
    _
  $region45: #{_fwd.65} parent=0 // pred_fallthru
    _
  // Predicated region
  $region46: #{_fwd.65} parent=0 // pred_check
    _
  $region47: #{_fwd.65} parent=0 // pred_check_branch
    %465 = sbr.rel (0) target = $region49
  $region48: #{_fwd.65} parent=0 // pred_region
    _
  $region49: #{_fwd.65} parent=0 // pred_fallthru
    _
  // Predicated region
  $region50: #{_fwd.65} parent=0 // pred_check
    _
  $region51: #{_fwd.65} parent=0 // pred_check_branch
    %467 = sbr.rel (0) target = $region53
  $region52: #{_fwd.65} parent=0 // pred_region
    _
  $region53: #{_fwd.65} parent=0 // pred_fallthru
    _

// kernel: _fwd.66
$region0: #{_fwd.66}
  #allocation0 [shape = 'u32[]', space=smem, size = 0x4, offset = 0x4, fixed_abs, tag = 'smem constant byte address 0x4 - core index']
  #allocation1 [shape = 'u32[144,128]{1,0:T(1,128)}', space=vmem, size = 0x12000, scoped, tag = 'internal scratch']
  %s0 = inlined_call_operand.vmem [shape: bf16[2,32,32], index: 0, kind: input, shape index: {}]
  %s1 = inlined_call_operand.vmem [shape: bf16[2,32,32], index: 1, kind: input, shape index: {}]
  %s2 = inlined_call_operand.vmem [shape: bf16[2,32,32], index: 2, kind: input, shape index: {}]
  %s3 = inlined_call_operand.vmem [shape: f32[2,1,32], index: 3, kind: input, shape index: {}]
  %s4 = inlined_call_operand.vmem [shape: bf16[2,32,32], index: 4, kind: output, shape index: {}]
  %s5 = sld [smem:[#allocation0]]
  $region49: #{_fwd.66} parent=0
    _
  %s7 = ssub.s32 1, %s5
  %s8 = scalar_select 0, %s7, %s5
  loop: start=0, step=1, limit=4
  $region2: #{_fwd.66} parent=0 // loop_pre_header
    _
  $region3: #{_fwd.66} parent=0 // loop_header
    %s10 = sphi 0, %s14
    %p11 = scmp.ge.s32.totalorder %s10, 4
    %s20 = sphi 0, %s22
    %s23 = sphi 0, %s20
    %s24 = sphi 0, %s23
    %s40 = sphi 0, %s24
    %s46 = sphi 0, %s48
    %s49 = sphi 0, %s46
    %s50 = sphi 0, %s49
    %s66 = sphi 0, %s50
    %s72 = sphi 0, %s74
    %s75 = sphi 0, %s72
    %s76 = sphi 0, %s75
    %s92 = sphi 0, %s76
    %s98 = sphi 0, %s100
    %s101 = sphi 0, %s98
    %s102 = sphi 0, %s101
    %s118 = sphi 0, %s102
    %s124 = sphi 0, %s126
    %s127 = sphi 0, %s124
    %s128 = sphi 0, %s127
    %s144 = sphi 0, %s128
  $region4: #{_fwd.66} parent=0 // loop_header_branch
    %13 = sbr.rel (%p11) target = $region8
  $region5: #{_fwd.66} parent=0 // loop_body
    %s15 = ssub.s32 %s10, 1
    %s16 = ssub.s32 %s10, 2
    %s17 = sadd.s32 %s10, 1
    %s18 = ssub.s32 %s10, %s17
    %p19 = scmp.eq.s32.totalorder %s18, 0
    %s21 = sadd.s32 %s20, 1
    %s22 = scalar_select %p19, %s20, %s21
    %p25 = pneg %p19
    %p26 = scmp.eq.s32.totalorder %s10, 1
    %p27 = por %p25, %p26
    %p28 = scmp.ne.s32.totalorder %s20, %s23
    %p29 = scmp.eq.s32.totalorder %s10, 0
    %p30 = por %p28, %p29
    %p31 = scmp.ne.s32.totalorder %s20, %s23
    %p32 = scmp.eq.s32.totalorder %s15, 1
    %p33 = por %p31, %p32
    %p34 = scmp.ne.s32.totalorder %s23, %s24
    %p35 = scmp.eq.s32.totalorder %s15, 0
    %p36 = por %p34, %p35
    %p37 = scmp.ne.s32.totalorder %s23, %s24
    %p38 = scmp.eq.s32.totalorder %s16, 1
    %p39 = por %p37, %p38
    %p41 = scmp.ne.s32.totalorder %s24, %s40
    %p42 = scmp.eq.s32.totalorder %s16, 0
    %p43 = por %p41, %p42
    %s44 = ssub.s32 %s10, %s17
    %p45 = scmp.eq.s32.totalorder %s44, 0
    %s47 = sadd.s32 %s46, 1
    %s48 = scalar_select %p45, %s46, %s47
    %p51 = pneg %p45
    %p52 = scmp.eq.s32.totalorder %s10, 1
    %p53 = por %p51, %p52
    %p54 = scmp.ne.s32.totalorder %s46, %s49
    %p55 = scmp.eq.s32.totalorder %s10, 0
    %p56 = por %p54, %p55
    %p57 = scmp.ne.s32.totalorder %s46, %s49
    %p58 = scmp.eq.s32.totalorder %s15, 1
    %p59 = por %p57, %p58
    %p60 = scmp.ne.s32.totalorder %s49, %s50
    %p61 = scmp.eq.s32.totalorder %s15, 0
    %p62 = por %p60, %p61
    %p63 = scmp.ne.s32.totalorder %s49, %s50
    %p64 = scmp.eq.s32.totalorder %s16, 1
    %p65 = por %p63, %p64
    %p67 = scmp.ne.s32.totalorder %s50, %s66
    %p68 = scmp.eq.s32.totalorder %s16, 0
    %p69 = por %p67, %p68
    %s70 = ssub.s32 %s10, %s17
    %p71 = scmp.eq.s32.totalorder %s70, 0
    %s73 = sadd.s32 %s72, 1
    %s74 = scalar_select %p71, %s72, %s73
    %p77 = pneg %p71
    %p78 = scmp.eq.s32.totalorder %s10, 1
    %p79 = por %p77, %p78
    %p80 = scmp.ne.s32.totalorder %s72, %s75
    %p81 = scmp.eq.s32.totalorder %s10, 0
    %p82 = por %p80, %p81
    %p83 = scmp.ne.s32.totalorder %s72, %s75
    %p84 = scmp.eq.s32.totalorder %s15, 1
    %p85 = por %p83, %p84
    %p86 = scmp.ne.s32.totalorder %s75, %s76
    %p87 = scmp.eq.s32.totalorder %s15, 0
    %p88 = por %p86, %p87
    %p89 = scmp.ne.s32.totalorder %s75, %s76
    %p90 = scmp.eq.s32.totalorder %s16, 1
    %p91 = por %p89, %p90
    %p93 = scmp.ne.s32.totalorder %s76, %s92
    %p94 = scmp.eq.s32.totalorder %s16, 0
    %p95 = por %p93, %p94
    %s96 = ssub.s32 %s10, %s17
    %p97 = scmp.eq.s32.totalorder %s96, 0
    %s99 = sadd.s32 %s98, 1
    %s100 = scalar_select %p97, %s98, %s99
    %p103 = pneg %p97
    %p104 = scmp.eq.s32.totalorder %s10, 1
    %p105 = por %p103, %p104
    %p106 = scmp.ne.s32.totalorder %s98, %s101
    %p107 = scmp.eq.s32.totalorder %s10, 0
    %p108 = por %p106, %p107
    %p109 = scmp.ne.s32.totalorder %s98, %s101
    %p110 = scmp.eq.s32.totalorder %s15, 1
    %p111 = por %p109, %p110
    %p112 = scmp.ne.s32.totalorder %s101, %s102
    %p113 = scmp.eq.s32.totalorder %s15, 0
    %p114 = por %p112, %p113
    %p115 = scmp.ne.s32.totalorder %s101, %s102
    %p116 = scmp.eq.s32.totalorder %s16, 1
    %p117 = por %p115, %p116
    %p119 = scmp.ne.s32.totalorder %s102, %s118
    %p120 = scmp.eq.s32.totalorder %s16, 0
    %p121 = por %p119, %p120
    %s122 = ssub.s32 %s10, %s17
    %p123 = scmp.eq.s32.totalorder %s122, 0
    %s125 = sadd.s32 %s124, 1
    %s126 = scalar_select %p123, %s124, %s125
    %p129 = pneg %p123
    %p130 = scmp.eq.s32.totalorder %s10, 1
    %p131 = por %p129, %p130
    %p132 = scmp.ne.s32.totalorder %s124, %s127
    %p133 = scmp.eq.s32.totalorder %s10, 0
    %p134 = por %p132, %p133
    %p135 = scmp.ne.s32.totalorder %s124, %s127
    %p136 = scmp.eq.s32.totalorder %s15, 1
    %p137 = por %p135, %p136
    %p138 = scmp.ne.s32.totalorder %s127, %s128
    %p139 = scmp.eq.s32.totalorder %s15, 0
    %p140 = por %p138, %p139
    %p141 = scmp.ne.s32.totalorder %s127, %s128
    %p142 = scmp.eq.s32.totalorder %s16, 1
    %p143 = por %p141, %p142
    %p145 = scmp.ne.s32.totalorder %s128, %s144
    %p146 = scmp.eq.s32.totalorder %s16, 0
    %p147 = por %p145, %p146
    %p148 = scmp.le.s32.totalorder 1, %s10
    %p149 = scmp.lt.s32.totalorder %s10, 3
    %p150 = pnand %p148, %p149
    %p151 = pneg %p150
    // Predicated region
    $region9: #{_fwd.66} parent=5 // pred_check
      _
    $region10: #{_fwd.66} parent=5 // pred_check_branch
      %153 = sbr.rel (%p150) target = $region12
    $region11: #{_fwd.66} parent=5 // pred_region
      %s154 = ssub.s32 %s10, 1
    $region12: #{_fwd.66} parent=5 // pred_fallthru
      _
    %p155 = scmp.lt.s32.totalorder %s10, 2
    // Predicated region
    $region13: #{_fwd.66} parent=5 // pred_check
      %p156 = pneg %p155
    $region14: #{_fwd.66} parent=5 // pred_check_branch
      %158 = sbr.rel (%p156) target = $region16
    $region15: #{_fwd.66} parent=5 // pred_region
      // Predicated region
      $region17: #{_fwd.66} parent=15 // pred_check
        %p159 = pneg %p30
      $region18: #{_fwd.66} parent=15 // pred_check_branch
        %161 = sbr.rel (%p159) target = $region20
      $region19: #{_fwd.66} parent=15 // pred_region
        %p162 = scmp.lt.s32.totalorder %s10, 1
        %s163 = scalar_select %p162, %s10, 1
        %s164 = smul.addr %s163, 4
        %s165 = smul.addr %s164, 4
        %s166 = scalar_lea.vmem %s0, %s165
      $region20: #{_fwd.66} parent=15 // pred_fallthru
        _
      // Predicated region
      $region21: #{_fwd.66} parent=15 // pred_check
        %p167 = pneg %p56
      $region22: #{_fwd.66} parent=15 // pred_check_branch
        %169 = sbr.rel (%p167) target = $region24
      $region23: #{_fwd.66} parent=15 // pred_region
        %p170 = scmp.lt.s32.totalorder %s10, 1
        %s171 = scalar_select %p170, %s10, 1
        %s172 = smul.addr %s171, 4
        %s173 = smul.addr %s172, 4
        %s174 = scalar_lea.vmem %s1, %s173
      $region24: #{_fwd.66} parent=15 // pred_fallthru
        _
      // Predicated region
      $region25: #{_fwd.66} parent=15 // pred_check
        %p175 = pneg %p82
      $region26: #{_fwd.66} parent=15 // pred_check_branch
        %177 = sbr.rel (%p175) target = $region28
      $region27: #{_fwd.66} parent=15 // pred_region
        %p178 = scmp.lt.s32.totalorder %s10, 1
        %s179 = scalar_select %p178, %s10, 1
        %s180 = smul.addr %s179, 4
        %s181 = smul.addr %s180, 4
        %s182 = scalar_lea.vmem %s2, %s181
      $region28: #{_fwd.66} parent=15 // pred_fallthru
        _
      // Predicated region
      $region29: #{_fwd.66} parent=15 // pred_check
        %p183 = pneg %p108
      $region30: #{_fwd.66} parent=15 // pred_check_branch
        %185 = sbr.rel (%p183) target = $region32
      $region31: #{_fwd.66} parent=15 // pred_region
        %p186 = scmp.lt.s32.totalorder %s10, 1
        %s187 = scalar_select %p186, %s10, 1
        %s188 = scalar_lea.vmem %s3, %s187
      $region32: #{_fwd.66} parent=15 // pred_fallthru
        _
    $region16: #{_fwd.66} parent=5 // pred_fallthru
      _
    %p189 = scmp.le.s32.totalorder 1, %s10
    %p190 = scmp.lt.s32.totalorder %s10, 3
    %p191 = pnand %p189, %p190
    %p192 = pneg %p191
    // Predicated region
    $region33: #{_fwd.66} parent=5 // pred_check
      _
    $region34: #{_fwd.66} parent=5 // pred_check_branch
      %194 = sbr.rel (%p191) target = $region36
    $region35: #{_fwd.66} parent=5 // pred_region
      %s195 = ssub.s32 %s10, 1
      %p196 = scmp.lt.s32.totalorder %s15, 1
      %s197 = scalar_select %p196, %s15, 1
      %s198 = smul.addr %s197, 4
      %s199 = smul.addr %s198, 4
      %s200 = scalar_lea.vmem %s0, %s199
      %p201 = pneg %p36
      %p202 = pneg %p33
      %p203 = scmp.lt.s32.totalorder %s15, 1
      %s204 = scalar_select %p203, %s15, 1
      %s205 = smul.addr %s204, 4
      %s206 = smul.addr %s205, 4
      %s207 = scalar_lea.vmem %s1, %s206
      %p208 = pneg %p62
      %p209 = pneg %p59
      %p210 = scmp.lt.s32.totalorder %s15, 1
      %s211 = scalar_select %p210, %s15, 1
      %s212 = smul.addr %s211, 4
      %s213 = smul.addr %s212, 4
      %s214 = scalar_lea.vmem %s2, %s213
      %p215 = pneg %p88
      %p216 = pneg %p85
      %p217 = scmp.lt.s32.totalorder %s15, 1
      %s218 = scalar_select %p217, %s15, 1
      %s219 = scalar_lea.vmem %s3, %s218
      %p220 = pneg %p114
      %p221 = pneg %p111
      %p222 = pneg %p140
      %p223 = pneg %p137
      %p224 = scmp.lt.s32.totalorder %s15, 1
      %s225 = scalar_select %p224, %s15, 1
      %s226 = smul.addr %s225, 4
      %s227 = smul.addr %s226, 4
      %s228 = scalar_lea.vmem %s4, %s227
      %p229 = scmp.lt.s32.totalorder %s15, 1
      %s230 = scalar_select %p229, %s15, 1
      %s231 = smul.addr %s230, 4
      %s232 = smul.addr %s231, 4
      %s233 = scalar_lea.vmem %s0, %s232
      %p234 = scmp.lt.s32.totalorder %s15, 1
      %s235 = scalar_select %p234, %s15, 1
      %s236 = smul.addr %s235, 4
      %s237 = smul.addr %s236, 4
      %s238 = scalar_lea.vmem %s1, %s237
      %p239 = scmp.lt.s32.totalorder %s15, 1
      %s240 = scalar_select %p239, %s15, 1
      %s241 = smul.addr %s240, 4
      %s242 = smul.addr %s241, 4
      %s243 = scalar_lea.vmem %s2, %s242
      %p244 = scmp.lt.s32.totalorder %s15, 1
      %s245 = scalar_select %p244, %s15, 1
      %s246 = scalar_lea.vmem %s3, %s245
      %p247 = scmp.lt.s32.totalorder %s15, 1
      %s248 = scalar_select %p247, %s15, 1
      %s249 = smul.addr %s248, 4
      %s250 = smul.addr %s249, 4
      %s251 = scalar_lea.vmem %s4, %s250
      %v253 = vld [vmem:[%s246] sm:$0x1]
      %v254 = vld [vmem:[%s233] sm:$0xf]
      %v255 = vld [vmem:[%s233 + $0x4] sm:$0xf]
      %v256 = vld [vmem:[%s233 + $0x8] sm:$0xf]
      %v257 = vld [vmem:[%s233 + $0xc] sm:$0xf]
      %v258 = vld [vmem:[%s238] sm:$0xf]
      %v259 = vld [vmem:[%s238 + $0x4] sm:$0xf]
      %v260 = vld [vmem:[%s238 + $0x8] sm:$0xf]
      %v261 = vld [vmem:[%s238 + $0xc] sm:$0xf]
      %v262 = vld [vmem:[%s243] sm:$0xf]
      %v263 = vld [vmem:[%s243 + $0x4] sm:$0xf]
      %v264 = vld [vmem:[%s243 + $0x8] sm:$0xf]
      %v265 = vld [vmem:[%s243 + $0xc] sm:$0xf]
      %v270 = vunpack.c.l.b16 %v254
      %v271 = vunpack.c.l.b16 %v255
      %v272 = vunpack.c.l.b16 %v256
      %v273 = vunpack.c.l.b16 %v257
      %v274 = vpack.c.b16 %v271, %v270
      %v275 = vpack.c.b16 %v273, %v272
      %v280 = vunpack.c.l.b16 %v258
      %v281 = vunpack.c.l.b16 %v259
      %v282 = vunpack.c.l.b16 %v260
      %v283 = vunpack.c.l.b16 %v261
      %v284 = vpack.c.b16 %v281, %v280
      %v285 = vpack.c.b16 %v283, %v282
      %vm286 = vcmask 130048
      %v288 = vsel %vm286, %v274, 0
      %v291 = vsel %vm286, %v275, 0
      %v294 = vsel %vm286, %v284, 0
      %v297 = vsel %vm286, %v285, 0
      %299 = vmatprep.subr.bf16.mxu0 0
      %300 = vmatpush1.bf16.xpose.msra.mxu0 %v294
      %301 = vmatprep.subr.bf16.mxu0 0
      %302 = vmatpush1.bf16.xpose.msra.mxu0 %v297
      %303 = vmatprep.subr.bf16.mxu0 0
      %304 = vmatpush1.bf16.xpose.msra.mxu0 0
      %305 = vmatprep.subr.bf16.mxu0 0
      %306 = vmatpush1.bf16.xpose.msra.mxu0 0
      %307 = vmatprep.subr.bf16.mxu0 0
      %308 = vmatpush1.bf16.xpose.msra.mxu0 0
      %309 = vmatprep.subr.bf16.mxu0 0
      %310 = vmatpush1.bf16.xpose.msra.mxu0 0
      %311 = vmatprep.subr.bf16.mxu0 0
      %312 = vmatpush1.bf16.xpose.msra.mxu0 0
      %313 = vmatprep.subr.bf16.mxu0 0
      %314 = vmatpush1.bf16.xpose.msra.mxu0 0
      %315 = vmatprep.subr.bf16.mxu0 0
      %316 = vmatpush1.bf16.xpose.msra.mxu0 0
      %317 = vmatprep.subr.bf16.mxu0 0
      %318 = vmatpush1.bf16.xpose.msra.mxu0 0
      %319 = vmatprep.subr.bf16.mxu0 0
      %320 = vmatpush1.bf16.xpose.msra.mxu0 0
      %321 = vmatprep.subr.bf16.mxu0 0
      %322 = vmatpush1.bf16.xpose.msra.mxu0 0
      %323 = vmatprep.subr.bf16.mxu0 0
      %324 = vmatpush1.bf16.xpose.msra.mxu0 0
      %325 = vmatprep.subr.bf16.mxu0 0
      %326 = vmatpush1.bf16.xpose.msra.mxu0 0
      %327 = vmatprep.subr.bf16.mxu0 0
      %328 = vmatpush1.bf16.xpose.msra.mxu0 0
      %329 = vmatprep.subr.bf16.mxu0 0
      %330 = vmatpush1.bf16.xpose.msra.mxu0 0
      %331 = vmatprep.mubr.bf16.mxu0 0
      %332 = vmatmul.mubr.bf16.gmra.mrb[0].mxu0 %v288
      %v333 = vpop.f32.mrb[0].mxu0
      %v334 = vadd.f32 0.0, %v333
      %v335 = vpop.f32.mrb[0].mxu0
      %v336 = vpop.f32.mrb[0].mxu0
      %v337 = vadd.f32 0.0, %v336
      %v338 = vpop.f32.mrb[0].mxu0
      %339 = vmatprep.mubr.bf16.mxu0 0
      %340 = vmatmul.mubr.bf16.gmra.mrb[0].mxu0 %v291
      %v341 = vpop.f32.mrb[0].mxu0
      %v342 = vadd.f32 0.0, %v341
      %v343 = vpop.f32.mrb[0].mxu0
      %v344 = vpop.f32.mrb[0].mxu0
      %v345 = vadd.f32 0.0, %v344
      %v346 = vpop.f32.mrb[0].mxu0
      %347 = vdwg.mxu0
      %v348 = vmul.f32 %v334, 0.25
      %v349 = vmul.f32 %v337, 0.25
      %v350 = vmul.f32 %v342, 0.25
      %v351 = vmul.f32 %v345, 0.25
      %v353 = vlaneseq
      %v354 = vshrl.u32 %v353, 7
      %v355 = vsub.s32 0, %v354
      %v356 = vrot.slane %v253, %v355
      %v358 = vadd.f32 %v348, %v356
      %v359 = vadd.f32 %v349, %v356
      %v360 = vadd.f32 %v350, %v356
      %v361 = vadd.f32 %v351, %v356
      %vm362 = vcmask 261120
      %v363 = vsel %vm362, %v358, -inf
      %364 = vmax.xlane.f32.xlu0 %v363
      %v365 = vpop.xlane.xlu0 %364
      %v366 = vsel %vm362, %v359, -inf
      %367 = vmax.xlane.f32.xlu0 %v366
      %v368 = vpop.xlane.xlu0 %367
      %v369 = vsel %vm362, %v360, -inf
      %370 = vmax.xlane.f32.xlu0 %v369
      %v371 = vpop.xlane.xlu0 %370
      %v372 = vsel %vm362, %v361, -inf
      %373 = vmax.xlane.f32.xlu0 %v372
      %v374 = vpop.xlane.xlu0 %373
      %v375 = vsub.f32 %v358, %v365
      %v376 = vsub.f32 %v359, %v368
      %v377 = vsub.f32 %v360, %v371
      %v378 = vsub.f32 %v361, %v374
      %v379 = vmul.f32 %v375, 1.442695
      %v380 = vpow.pop %v379
      %v381 = vmul.f32 %v376, 1.442695
      %v382 = vpow.pop %v381
      %v383 = vmul.f32 %v377, 1.442695
      %v384 = vpow.pop %v383
      %v385 = vmul.f32 %v378, 1.442695
      %v386 = vpow.pop %v385
      %v387 = vsel %vm362, %v380, 0.0
      %388 = vadd.xlane.f32.xlu0 %v387
      %v389 = vpop.xlane.xlu0 %388
      %v390 = vsel %vm362, %v382, 0.0
      %391 = vadd.xlane.f32.xlu0 %v390
      %v392 = vpop.xlane.xlu0 %391
      %v393 = vsel %vm362, %v384, 0.0
      %394 = vadd.xlane.f32.xlu0 %v393
      %v395 = vpop.xlane.xlu0 %394
      %v396 = vsel %vm362, %v386, 0.0
      %397 = vadd.xlane.f32.xlu0 %v396
      %v398 = vpop.xlane.xlu0 %397
      %v399 = vrcp.pop %v389
      %v400 = vrcp.pop %v392
      %v401 = vrcp.pop %v395
      %v402 = vrcp.pop %v398
      %v403 = vmul.f32 %v380, %v399
      %v404 = vmul.f32 %v382, %v400
      %v405 = vmul.f32 %v384, %v401
      %v406 = vmul.f32 %v386, %v402
      %v407 = vpack.c.bf16 %v404, %v403
      %v408 = vpack.c.bf16 %v406, %v405
      %v413 = vunpack.c.l.b16 %v262
      %v414 = vunpack.c.l.b16 %v263
      %v415 = vunpack.c.l.b16 %v264
      %v416 = vunpack.c.l.b16 %v265
      %v417 = vpack.c.b16 %v414, %v413
      %v418 = vpack.c.b16 %v416, %v415
      %v422 = vsel %vm362, %v407, 0
      %v425 = vsel %vm362, %v408, 0
      %427 = vmatprep.subr.bf16.mxu0 0
      %428 = vmatpush1.bf16.msra.mxu0 %v417
      %429 = vmatprep.subr.bf16.mxu0 0
      %430 = vmatpush1.bf16.msra.mxu0 %v418
      %431 = vmatprep.subr.bf16.mxu0 0
      %432 = vmatpush1.bf16.msra.mxu0 0
      %433 = vmatprep.subr.bf16.mxu0 0
      %434 = vmatpush1.bf16.msra.mxu0 0
      %435 = vmatprep.subr.bf16.mxu0 0
      %436 = vmatpush1.bf16.msra.mxu0 0
      %437 = vmatprep.subr.bf16.mxu0 0
      %438 = vmatpush1.bf16.msra.mxu0 0
      %439 = vmatprep.subr.bf16.mxu0 0
      %440 = vmatpush1.bf16.msra.mxu0 0
      %441 = vmatprep.subr.bf16.mxu0 0
      %442 = vmatpush1.bf16.msra.mxu0 0
      %443 = vmatprep.subr.bf16.mxu0 0
      %444 = vmatpush1.bf16.msra.mxu0 0
      %445 = vmatprep.subr.bf16.mxu0 0
      %446 = vmatpush1.bf16.msra.mxu0 0
      %447 = vmatprep.subr.bf16.mxu0 0
      %448 = vmatpush1.bf16.msra.mxu0 0
      %449 = vmatprep.subr.bf16.mxu0 0
      %450 = vmatpush1.bf16.msra.mxu0 0
      %451 = vmatprep.subr.bf16.mxu0 0
      %452 = vmatpush1.bf16.msra.mxu0 0
      %453 = vmatprep.subr.bf16.mxu0 0
      %454 = vmatpush1.bf16.msra.mxu0 0
      %455 = vmatprep.subr.bf16.mxu0 0
      %456 = vmatpush1.bf16.msra.mxu0 0
      %457 = vmatprep.subr.bf16.mxu0 0
      %458 = vmatpush1.bf16.msra.mxu0 0
      %459 = vmatprep.mubr.bf16.mxu0 0
      %460 = vmatmul.mubr.bf16.gmra.mrb[0].mxu0 %v422
      %v461 = vpop.f32.mrb[0].mxu0
      %v462 = vadd.f32 0.0, %v461
      %v463 = vpop.f32.mrb[0].mxu0
      %v464 = vpop.f32.mrb[0].mxu0
      %v465 = vadd.f32 0.0, %v464
      %v466 = vpop.f32.mrb[0].mxu0
      %467 = vmatprep.mubr.bf16.mxu0 0
      %468 = vmatmul.mubr.bf16.gmra.mrb[0].mxu0 %v425
      %v469 = vpop.f32.mrb[0].mxu0
      %v470 = vadd.f32 0.0, %v469
      %v471 = vpop.f32.mrb[0].mxu0
      %v472 = vpop.f32.mrb[0].mxu0
      %v473 = vadd.f32 0.0, %v472
      %v474 = vpop.f32.mrb[0].mxu0
      %475 = vdwg.mxu0
      %476 = vrot.lane.b32.xlu0 %v274, 112
      %v477 = vpop.permute.xlu0 %476
      %478 = vrot.lane.b32.xlu0 %v275, 112
      %v479 = vpop.permute.xlu0 %478
      %480 = vrot.lane.b32.xlu0 %v284, 112
      %v481 = vpop.permute.xlu0 %480
      %482 = vrot.lane.b32.xlu0 %v285, 112
      %v483 = vpop.permute.xlu0 %482
      %v485 = vsel %vm286, %v477, 0
      %v488 = vsel %vm286, %v479, 0
      %v491 = vsel %vm286, %v481, 0
      %v494 = vsel %vm286, %v483, 0
      %496 = vmatprep.subr.bf16.mxu0 0
      %497 = vmatpush1.bf16.xpose.msra.mxu0 %v491
      %498 = vmatprep.subr.bf16.mxu0 0
      %499 = vmatpush1.bf16.xpose.msra.mxu0 %v494
      %500 = vmatprep.subr.bf16.mxu0 0
      %501 = vmatpush1.bf16.xpose.msra.mxu0 0
      %502 = vmatprep.subr.bf16.mxu0 0
      %503 = vmatpush1.bf16.xpose.msra.mxu0 0
      %504 = vmatprep.subr.bf16.mxu0 0
      %505 = vmatpush1.bf16.xpose.msra.mxu0 0
      %506 = vmatprep.subr.bf16.mxu0 0
      %507 = vmatpush1.bf16.xpose.msra.mxu0 0
      %508 = vmatprep.subr.bf16.mxu0 0
      %509 = vmatpush1.bf16.xpose.msra.mxu0 0
      %510 = vmatprep.subr.bf16.mxu0 0
      %511 = vmatpush1.bf16.xpose.msra.mxu0 0
      %512 = vmatprep.subr.bf16.mxu0 0
      %513 = vmatpush1.bf16.xpose.msra.mxu0 0
      %514 = vmatprep.subr.bf16.mxu0 0
      %515 = vmatpush1.bf16.xpose.msra.mxu0 0
      %516 = vmatprep.subr.bf16.mxu0 0
      %517 = vmatpush1.bf16.xpose.msra.mxu0 0
      %518 = vmatprep.subr.bf16.mxu0 0
      %519 = vmatpush1.bf16.xpose.msra.mxu0 0
      %520 = vmatprep.subr.bf16.mxu0 0
      %521 = vmatpush1.bf16.xpose.msra.mxu0 0
      %522 = vmatprep.subr.bf16.mxu0 0
      %523 = vmatpush1.bf16.xpose.msra.mxu0 0
      %524 = vmatprep.subr.bf16.mxu0 0
      %525 = vmatpush1.bf16.xpose.msra.mxu0 0
      %526 = vmatprep.subr.bf16.mxu0 0
      %527 = vmatpush1.bf16.xpose.msra.mxu0 0
      %528 = vmatprep.mubr.bf16.mxu0 0
      %529 = vmatmul.mubr.bf16.gmra.mrb[0].mxu0 %v485
      %v530 = vpop.f32.mrb[0].mxu0
      %v531 = vadd.f32 0.0, %v530
      %v532 = vpop.f32.mrb[0].mxu0
      %v533 = vpop.f32.mrb[0].mxu0
      %v534 = vadd.f32 0.0, %v533
      %v535 = vpop.f32.mrb[0].mxu0
      %536 = vmatprep.mubr.bf16.mxu0 0
      %537 = vmatmul.mubr.bf16.gmra.mrb[0].mxu0 %v488
      %v538 = vpop.f32.mrb[0].mxu0
      %v539 = vadd.f32 0.0, %v538
      %v540 = vpop.f32.mrb[0].mxu0
      %v541 = vpop.f32.mrb[0].mxu0
      %v542 = vadd.f32 0.0, %v541
      %v543 = vpop.f32.mrb[0].mxu0
      %544 = vdwg.mxu0
      %v545 = vmul.f32 %v531, 0.25
      %v546 = vmul.f32 %v534, 0.25
      %v547 = vmul.f32 %v539, 0.25
      %v548 = vmul.f32 %v542, 0.25
      %v549 = vadd.f32 %v545, %v356
      %v550 = vadd.f32 %v546, %v356
      %v551 = vadd.f32 %v547, %v356
      %v552 = vadd.f32 %v548, %v356
      %v553 = vsel %vm362, %v549, -inf
      %554 = vmax.xlane.f32.xlu0 %v553
      %v555 = vpop.xlane.xlu0 %554
      %v556 = vsel %vm362, %v550, -inf
      %557 = vmax.xlane.f32.xlu0 %v556
      %v558 = vpop.xlane.xlu0 %557
      %v559 = vsel %vm362, %v551, -inf
      %560 = vmax.xlane.f32.xlu0 %v559
      %v561 = vpop.xlane.xlu0 %560
      %v562 = vsel %vm362, %v552, -inf
      %563 = vmax.xlane.f32.xlu0 %v562
      %v564 = vpop.xlane.xlu0 %563
      %v565 = vsub.f32 %v549, %v555
      %v566 = vsub.f32 %v550, %v558
      %v567 = vsub.f32 %v551, %v561
      %v568 = vsub.f32 %v552, %v564
      %v569 = vmul.f32 %v565, 1.442695
      %v570 = vpow.pop %v569
      %v571 = vmul.f32 %v566, 1.442695
      %v572 = vpow.pop %v571
      %v573 = vmul.f32 %v567, 1.442695
      %v574 = vpow.pop %v573
      %v575 = vmul.f32 %v568, 1.442695
      %v576 = vpow.pop %v575
      %v577 = vsel %vm362, %v570, 0.0
      %578 = vadd.xlane.f32.xlu0 %v577
      %v579 = vpop.xlane.xlu0 %578
      %v580 = vsel %vm362, %v572, 0.0
      %581 = vadd.xlane.f32.xlu0 %v580
      %v582 = vpop.xlane.xlu0 %581
      %v583 = vsel %vm362, %v574, 0.0
      %584 = vadd.xlane.f32.xlu0 %v583
      %v585 = vpop.xlane.xlu0 %584
      %v586 = vsel %vm362, %v576, 0.0
      %587 = vadd.xlane.f32.xlu0 %v586
      %v588 = vpop.xlane.xlu0 %587
      %v589 = vrcp.pop %v579
      %v590 = vrcp.pop %v582
      %v591 = vrcp.pop %v585
      %v592 = vrcp.pop %v588
      %v593 = vmul.f32 %v570, %v589
      %v594 = vmul.f32 %v572, %v590
      %v595 = vmul.f32 %v574, %v591
      %v596 = vmul.f32 %v576, %v592
      %v597 = vpack.c.bf16 %v594, %v593
      %v598 = vpack.c.bf16 %v596, %v595
      %599 = vrot.lane.b32.xlu0 %v417, 112
      %v600 = vpop.permute.xlu0 %599
      %601 = vrot.lane.b32.xlu0 %v418, 112
      %v602 = vpop.permute.xlu0 %601
      %v606 = vsel %vm362, %v597, 0
      %v609 = vsel %vm362, %v598, 0
      %611 = vmatprep.subr.bf16.mxu0 0
      %612 = vmatpush1.bf16.msra.mxu0 %v600
      %613 = vmatprep.subr.bf16.mxu0 0
      %614 = vmatpush1.bf16.msra.mxu0 %v602
      %615 = vmatprep.subr.bf16.mxu0 0
      %616 = vmatpush1.bf16.msra.mxu0 0
      %617 = vmatprep.subr.bf16.mxu0 0
      %618 = vmatpush1.bf16.msra.mxu0 0
      %619 = vmatprep.subr.bf16.mxu0 0
      %620 = vmatpush1.bf16.msra.mxu0 0
      %621 = vmatprep.subr.bf16.mxu0 0
      %622 = vmatpush1.bf16.msra.mxu0 0
      %623 = vmatprep.subr.bf16.mxu0 0
      %624 = vmatpush1.bf16.msra.mxu0 0
      %625 = vmatprep.subr.bf16.mxu0 0
      %626 = vmatpush1.bf16.msra.mxu0 0
      %627 = vmatprep.subr.bf16.mxu0 0
      %628 = vmatpush1.bf16.msra.mxu0 0
      %629 = vmatprep.subr.bf16.mxu0 0
      %630 = vmatpush1.bf16.msra.mxu0 0
      %631 = vmatprep.subr.bf16.mxu0 0
      %632 = vmatpush1.bf16.msra.mxu0 0
      %633 = vmatprep.subr.bf16.mxu0 0
      %634 = vmatpush1.bf16.msra.mxu0 0
      %635 = vmatprep.subr.bf16.mxu0 0
      %636 = vmatpush1.bf16.msra.mxu0 0
      %637 = vmatprep.subr.bf16.mxu0 0
      %638 = vmatpush1.bf16.msra.mxu0 0
      %639 = vmatprep.subr.bf16.mxu0 0
      %640 = vmatpush1.bf16.msra.mxu0 0
      %641 = vmatprep.subr.bf16.mxu0 0
      %642 = vmatpush1.bf16.msra.mxu0 0
      %643 = vmatprep.mubr.bf16.mxu0 0
      %644 = vmatmul.mubr.bf16.gmra.mrb[0].mxu0 %v606
      %v645 = vpop.f32.mrb[0].mxu0
      %v646 = vadd.f32 0.0, %v645
      %v647 = vpop.f32.mrb[0].mxu0
      %v648 = vpop.f32.mrb[0].mxu0
      %v649 = vadd.f32 0.0, %v648
      %v650 = vpop.f32.mrb[0].mxu0
      %651 = vmatprep.mubr.bf16.mxu0 0
      %652 = vmatmul.mubr.bf16.gmra.mrb[0].mxu0 %v609
      %v653 = vpop.f32.mrb[0].mxu0
      %v654 = vadd.f32 0.0, %v653
      %v655 = vpop.f32.mrb[0].mxu0
      %v656 = vpop.f32.mrb[0].mxu0
      %v657 = vadd.f32 0.0, %v656
      %v658 = vpop.f32.mrb[0].mxu0
      %659 = vdwg.mxu0
      %664 = vrot.lane.b32.xlu0 %v646, 16
      %v665 = vpop.permute.xlu0 %664
      %666 = vrot.lane.b32.xlu0 %v649, 16
      %v667 = vpop.permute.xlu0 %666
      %668 = vrot.lane.b32.xlu0 %v654, 16
      %v669 = vpop.permute.xlu0 %668
      %670 = vrot.lane.b32.xlu0 %v657, 16
      %v671 = vpop.permute.xlu0 %670
      %v676 = vsel %vm286, %v462, %v665
      %v677 = vsel %vm286, %v465, %v667
      %v678 = vsel %vm286, %v470, %v669
      %v679 = vsel %vm286, %v473, %v671
      %v680 = vpack.c.bf16 %v677, %v676
      %v681 = vpack.c.bf16 %v679, %v678
      %v684 = vunpack.c.l.b16 %v680
      %v685 = vunpack.c.h.b16 %v680
      %v686 = vunpack.c.l.b16 %v681
      %v687 = vunpack.c.h.b16 %v681
      %v688 = vpack.c.b16 %v684, %v684
      %v689 = vpack.c.b16 %v685, %v685
      %v690 = vpack.c.b16 %v686, %v686
      %v691 = vpack.c.b16 %v687, %v687
      %vm696 = vcmask 257024
      %697 = vst.msk [vmem:[%s251] sm:$0xf] %vm696, %v688
      %698 = vst.msk [vmem:[%s251 + $0x4] sm:$0xf] %vm696, %v689
      %699 = vst.msk [vmem:[%s251 + $0x8] sm:$0xf] %vm696, %v690
      %700 = vst.msk [vmem:[%s251 + $0xc] sm:$0xf] %vm696, %v691
      %p701 = scmp.lt.s32.totalorder %s15, 1
      %s702 = scalar_select %p701, %s15, 1
      %s703 = smul.addr %s702, 4
      %s704 = smul.addr %s703, 4
      %s705 = scalar_lea.vmem %s4, %s704
      // Predicated region
      $region37: #{_fwd.66} parent=35 // pred_check
        %p706 = pneg %p137
      $region38: #{_fwd.66} parent=35 // pred_check_branch
        %708 = sbr.rel (%p706) target = $region40
      $region39: #{_fwd.66} parent=35 // pred_region
        _
      $region40: #{_fwd.66} parent=35 // pred_fallthru
        _
    $region36: #{_fwd.66} parent=5 // pred_fallthru
      _
    %p709 = scmp.le.s32.totalorder 2, %s10
    // Predicated region
    $region41: #{_fwd.66} parent=5 // pred_check
      %p710 = pneg %p709
    $region42: #{_fwd.66} parent=5 // pred_check_branch
      %712 = sbr.rel (%p710) target = $region44
    $region43: #{_fwd.66} parent=5 // pred_region
      %s713 = ssub.s32 %s10, 2
      // Predicated region
      $region45: #{_fwd.66} parent=43 // pred_check
        %p714 = pneg %p143
      $region46: #{_fwd.66} parent=43 // pred_check_branch
        %716 = sbr.rel (%p714) target = $region48
      $region47: #{_fwd.66} parent=43 // pred_region
        %p717 = scmp.lt.s32.totalorder %s16, 1
        %s718 = scalar_select %p717, %s16, 1
        %s719 = smul.addr %s718, 4
        %s720 = smul.addr %s719, 4
        %s721 = scalar_lea.vmem %s4, %s720
      $region48: #{_fwd.66} parent=43 // pred_fallthru
        _
    $region44: #{_fwd.66} parent=5 // pred_fallthru
      _
  $region6: #{_fwd.66} parent=0 // loop_footer
    %s14 = sadd.s32 1, %s10
  $region7: #{_fwd.66} parent=0 // loop_footer_branch
    %9 = sbr.rel target = $region3
  $region8: #{_fwd.66} parent=0 // loop_exit
    _

// kernel: _fwd.67
$region0: #{_fwd.67}
  #allocation0 [shape = 'u32[]', space=smem, size = 0x4, offset = 0x4, fixed_abs, tag = 'smem constant byte address 0x4 - core index']
  #allocation1 [shape = 'u32[144,128]{1,0:T(1,128)}', space=vmem, size = 0x12000, scoped, tag = 'internal scratch']
  %s0 = inlined_call_operand.vmem [shape: bf16[64,32], index: 0, kind: input, shape index: {}]
  %s1 = inlined_call_operand.vmem [shape: bf16[32,32], index: 1, kind: input, shape index: {}]
  %s2 = inlined_call_operand.vmem [shape: f32[1,32], index: 2, kind: input, shape index: {}, may-alias: {2,5}]
  %s3 = inlined_call_operand.vmem [shape: bf16[64,32], index: 3, kind: input, shape index: {}]
  %s4 = inlined_call_operand.vmem [shape: f32[1,32], index: 4, kind: input, shape index: {}]
  %s5 = inlined_call_operand.vmem [shape: f32[1,32], index: 5, kind: input, shape index: {}, may-alias: {2,5}]
  %s6 = inlined_call_operand.vmem [shape: bf16[64,32], index: 6, kind: output, shape index: {}]
  %s7 = sld [smem:[#allocation0]]
  $region34: #{_fwd.67} parent=0
    _
  %s9 = ssub.s32 1, %s7
  %s10 = scalar_select 0, %s9, %s7
  // Predicated region
  $region2: #{_fwd.67} parent=0 // pred_check
    _
  $region3: #{_fwd.67} parent=0 // pred_check_branch
    %12 = sbr.rel (0) target = $region5
  $region4: #{_fwd.67} parent=0 // pred_region
    _
  $region5: #{_fwd.67} parent=0 // pred_fallthru
    _
  // Predicated region
  $region6: #{_fwd.67} parent=0 // pred_check
    _
  $region7: #{_fwd.67} parent=0 // pred_check_branch
    %14 = sbr.rel (0) target = $region9
  $region8: #{_fwd.67} parent=0 // pred_region
    _
  $region9: #{_fwd.67} parent=0 // pred_fallthru
    _
  // Predicated region
  $region10: #{_fwd.67} parent=0 // pred_check
    _
  $region11: #{_fwd.67} parent=0 // pred_check_branch
    %16 = sbr.rel (0) target = $region13
  $region12: #{_fwd.67} parent=0 // pred_region
    _
  $region13: #{_fwd.67} parent=0 // pred_fallthru
    _
  // Predicated region
  $region14: #{_fwd.67} parent=0 // pred_check
    _
  $region15: #{_fwd.67} parent=0 // pred_check_branch
    %18 = sbr.rel (0) target = $region17
  $region16: #{_fwd.67} parent=0 // pred_region
    _
  $region17: #{_fwd.67} parent=0 // pred_fallthru
    _
  // Predicated region
  $region18: #{_fwd.67} parent=0 // pred_check
    _
  $region19: #{_fwd.67} parent=0 // pred_check_branch
    %20 = sbr.rel (0) target = $region21
  $region20: #{_fwd.67} parent=0 // pred_region
    _
  $region21: #{_fwd.67} parent=0 // pred_fallthru
    _
  // Predicated region
  $region22: #{_fwd.67} parent=0 // pred_check
    _
  $region23: #{_fwd.67} parent=0 // pred_check_branch
    %22 = sbr.rel (0) target = $region25
  $region24: #{_fwd.67} parent=0 // pred_region
    _
  $region25: #{_fwd.67} parent=0 // pred_fallthru
    _
  %v24 = vld [vmem:[%s0] sm:$0xf]
  %v25 = vld [vmem:[%s0 + $0x4] sm:$0xf]
  %v26 = vld [vmem:[%s0 + $0x8] sm:$0xf]
  %v27 = vld [vmem:[%s0 + $0xc] sm:$0xf]
  %v28 = vld [vmem:[%s0 + $0x10] sm:$0xf]
  %v29 = vld [vmem:[%s0 + $0x14] sm:$0xf]
  %v30 = vld [vmem:[%s0 + $0x18] sm:$0xf]
  %v31 = vld [vmem:[%s0 + $0x1c] sm:$0xf]
  %v32 = vld [vmem:[%s1] sm:$0xf]
  %v33 = vld [vmem:[%s1 + $0x4] sm:$0xf]
  %v34 = vld [vmem:[%s1 + $0x8] sm:$0xf]
  %v35 = vld [vmem:[%s1 + $0xc] sm:$0xf]
  %v36 = vld [vmem:[%s2] sm:$0x1]
  %v38 = vlaneseq
  %v39 = vshrl.u32 %v38, 7
  %v40 = vsub.s32 0, %v39
  %v41 = vrot.slane %v36, %v40
  %v51 = vunpack.c.l.b16 %v24
  %v52 = vunpack.c.l.b16 %v25
  %v53 = vunpack.c.l.b16 %v26
  %v54 = vunpack.c.l.b16 %v27
  %v55 = vunpack.c.l.b16 %v28
  %v56 = vunpack.c.l.b16 %v29
  %v57 = vunpack.c.l.b16 %v30
  %v58 = vunpack.c.l.b16 %v31
  %v59 = vpack.c.b16 %v52, %v51
  %v60 = vpack.c.b16 %v54, %v53
  %v61 = vpack.c.b16 %v56, %v55
  %v62 = vpack.c.b16 %v58, %v57
  %v67 = vunpack.c.l.b16 %v32
  %v68 = vunpack.c.l.b16 %v33
  %v69 = vunpack.c.l.b16 %v34
  %v70 = vunpack.c.l.b16 %v35
  %v71 = vpack.c.b16 %v68, %v67
  %v72 = vpack.c.b16 %v70, %v69
  %vm75 = vcmask 261120
  %v77 = vsel %vm75, %v59, 0
  %v80 = vsel %vm75, %v60, 0
  %v83 = vsel %vm75, %v61, 0
  %v86 = vsel %vm75, %v62, 0
  %88 = vmatprep.subr.bf16.mxu0 0
  %89 = vmatpush1.bf16.msra.mxu0 %v71
  %90 = vmatprep.subr.bf16.mxu0 0
  %91 = vmatpush1.bf16.msra.mxu0 %v72
  %92 = vmatprep.subr.bf16.mxu0 0
  %93 = vmatpush1.bf16.msra.mxu0 0
  %94 = vmatprep.subr.bf16.mxu0 0
  %95 = vmatpush1.bf16.msra.mxu0 0
  %96 = vmatprep.subr.bf16.mxu0 0
  %97 = vmatpush1.bf16.msra.mxu0 0
  %98 = vmatprep.subr.bf16.mxu0 0
  %99 = vmatpush1.bf16.msra.mxu0 0
  %100 = vmatprep.subr.bf16.mxu0 0
  %101 = vmatpush1.bf16.msra.mxu0 0
  %102 = vmatprep.subr.bf16.mxu0 0
  %103 = vmatpush1.bf16.msra.mxu0 0
  %104 = vmatprep.subr.bf16.mxu0 0
  %105 = vmatpush1.bf16.msra.mxu0 0
  %106 = vmatprep.subr.bf16.mxu0 0
  %107 = vmatpush1.bf16.msra.mxu0 0
  %108 = vmatprep.subr.bf16.mxu0 0
  %109 = vmatpush1.bf16.msra.mxu0 0
  %110 = vmatprep.subr.bf16.mxu0 0
  %111 = vmatpush1.bf16.msra.mxu0 0
  %112 = vmatprep.subr.bf16.mxu0 0
  %113 = vmatpush1.bf16.msra.mxu0 0
  %114 = vmatprep.subr.bf16.mxu0 0
  %115 = vmatpush1.bf16.msra.mxu0 0
  %116 = vmatprep.subr.bf16.mxu0 0
  %117 = vmatpush1.bf16.msra.mxu0 0
  %118 = vmatprep.subr.bf16.mxu0 0
  %119 = vmatpush1.bf16.msra.mxu0 0
  %120 = vmatprep.mubr.bf16.mxu0 0
  %121 = vmatmul.mubr.bf16.gmra.mrb[0].mxu0 %v77
  %v122 = vpop.f32.mrb[0].mxu0
  %v123 = vadd.f32 %v41, %v122
  %v124 = vpop.f32.mrb[0].mxu0
  %v125 = vpop.f32.mrb[0].mxu0
  %v126 = vadd.f32 %v41, %v125
  %v127 = vpop.f32.mrb[0].mxu0
  %128 = vmatprep.mubr.bf16.mxu0 0
  %129 = vmatmul.mubr.bf16.gmra.mrb[0].mxu0 %v80
  %v130 = vpop.f32.mrb[0].mxu0
  %v131 = vadd.f32 %v41, %v130
  %v132 = vpop.f32.mrb[0].mxu0
  %v133 = vpop.f32.mrb[0].mxu0
  %v134 = vadd.f32 %v41, %v133
  %v135 = vpop.f32.mrb[0].mxu0
  %136 = vmatprep.mubr.bf16.mxu0 0
  %137 = vmatmul.mubr.bf16.gmra.mrb[0].mxu0 %v83
  %v138 = vpop.f32.mrb[0].mxu0
  %v139 = vadd.f32 %v41, %v138
  %v140 = vpop.f32.mrb[0].mxu0
  %v141 = vpop.f32.mrb[0].mxu0
  %v142 = vadd.f32 %v41, %v141
  %v143 = vpop.f32.mrb[0].mxu0
  %144 = vmatprep.mubr.bf16.mxu0 0
  %145 = vmatmul.mubr.bf16.gmra.mrb[0].mxu0 %v86
  %v146 = vpop.f32.mrb[0].mxu0
  %v147 = vadd.f32 %v41, %v146
  %v148 = vpop.f32.mrb[0].mxu0
  %v149 = vpop.f32.mrb[0].mxu0
  %v150 = vadd.f32 %v41, %v149
  %v151 = vpop.f32.mrb[0].mxu0
  %152 = vdwg.mxu0
  %v153 = vld [vmem:[%s3] sm:$0xf]
  %v154 = vld [vmem:[%s3 + $0x4] sm:$0xf]
  %v155 = vld [vmem:[%s3 + $0x8] sm:$0xf]
  %v156 = vld [vmem:[%s3 + $0xc] sm:$0xf]
  %v157 = vld [vmem:[%s3 + $0x10] sm:$0xf]
  %v158 = vld [vmem:[%s3 + $0x14] sm:$0xf]
  %v159 = vld [vmem:[%s3 + $0x18] sm:$0xf]
  %v160 = vld [vmem:[%s3 + $0x1c] sm:$0xf]
  %v161 = vunpack.c.l.bf16 %v153
  %v162 = vunpack.c.l.bf16 %v154
  %v163 = vunpack.c.l.bf16 %v155
  %v164 = vunpack.c.l.bf16 %v156
  %v165 = vunpack.c.l.bf16 %v157
  %v166 = vunpack.c.l.bf16 %v158
  %v167 = vunpack.c.l.bf16 %v159
  %v168 = vunpack.c.l.bf16 %v160
  %v169 = vadd.f32 %v123, %v161
  %v170 = vadd.f32 %v126, %v162
  %v171 = vadd.f32 %v131, %v163
  %v172 = vadd.f32 %v134, %v164
  %v173 = vadd.f32 %v139, %v165
  %v174 = vadd.f32 %v142, %v166
  %v175 = vadd.f32 %v147, %v167
  %v176 = vadd.f32 %v150, %v168
  %v177 = vsel %vm75, %v169, 0.0
  %178 = vadd.xlane.f32.xlu0 %v177
  %v179 = vpop.xlane.xlu0 %178
  %v180 = vsel %vm75, %v170, 0.0
  %181 = vadd.xlane.f32.xlu0 %v180
  %v182 = vpop.xlane.xlu0 %181
  %v183 = vsel %vm75, %v171, 0.0
  %184 = vadd.xlane.f32.xlu0 %v183
  %v185 = vpop.xlane.xlu0 %184
  %v186 = vsel %vm75, %v172, 0.0
  %187 = vadd.xlane.f32.xlu0 %v186
  %v188 = vpop.xlane.xlu0 %187
  %v189 = vsel %vm75, %v173, 0.0
  %190 = vadd.xlane.f32.xlu0 %v189
  %v191 = vpop.xlane.xlu0 %190
  %v192 = vsel %vm75, %v174, 0.0
  %193 = vadd.xlane.f32.xlu0 %v192
  %v194 = vpop.xlane.xlu0 %193
  %v195 = vsel %vm75, %v175, 0.0
  %196 = vadd.xlane.f32.xlu0 %v195
  %v197 = vpop.xlane.xlu0 %196
  %v198 = vsel %vm75, %v176, 0.0
  %199 = vadd.xlane.f32.xlu0 %v198
  %v200 = vpop.xlane.xlu0 %199
  %v201 = vrcp.pop 32.0
  %v202 = vmul.f32 %v179, %v201
  %v203 = vmul.f32 %v182, %v201
  %v204 = vmul.f32 %v185, %v201
  %v205 = vmul.f32 %v188, %v201
  %v206 = vmul.f32 %v191, %v201
  %v207 = vmul.f32 %v194, %v201
  %v208 = vmul.f32 %v197, %v201
  %v209 = vmul.f32 %v200, %v201
  %v210 = vsub.f32 %v169, %v202
  %v211 = vsub.f32 %v170, %v203
  %v212 = vsub.f32 %v171, %v204
  %v213 = vsub.f32 %v172, %v205
  %v214 = vsub.f32 %v173, %v206
  %v215 = vsub.f32 %v174, %v207
  %v216 = vsub.f32 %v175, %v208
  %v217 = vsub.f32 %v176, %v209
  %v218 = vmul.f32 %v210, %v210
  %v219 = vmul.f32 %v211, %v211
  %v220 = vmul.f32 %v212, %v212
  %v221 = vmul.f32 %v213, %v213
  %v222 = vmul.f32 %v214, %v214
  %v223 = vmul.f32 %v215, %v215
  %v224 = vmul.f32 %v216, %v216
  %v225 = vmul.f32 %v217, %v217
  %v226 = vsel %vm75, %v218, 0.0
  %227 = vadd.xlane.f32.xlu0 %v226
  %v228 = vpop.xlane.xlu0 %227
  %v229 = vsel %vm75, %v219, 0.0
  %230 = vadd.xlane.f32.xlu0 %v229
  %v231 = vpop.xlane.xlu0 %230
  %v232 = vsel %vm75, %v220, 0.0
  %233 = vadd.xlane.f32.xlu0 %v232
  %v234 = vpop.xlane.xlu0 %233
  %v235 = vsel %vm75, %v221, 0.0
  %236 = vadd.xlane.f32.xlu0 %v235
  %v237 = vpop.xlane.xlu0 %236
  %v238 = vsel %vm75, %v222, 0.0
  %239 = vadd.xlane.f32.xlu0 %v238
  %v240 = vpop.xlane.xlu0 %239
  %v241 = vsel %vm75, %v223, 0.0
  %242 = vadd.xlane.f32.xlu0 %v241
  %v243 = vpop.xlane.xlu0 %242
  %v244 = vsel %vm75, %v224, 0.0
  %245 = vadd.xlane.f32.xlu0 %v244
  %v246 = vpop.xlane.xlu0 %245
  %v247 = vsel %vm75, %v225, 0.0
  %248 = vadd.xlane.f32.xlu0 %v247
  %v249 = vpop.xlane.xlu0 %248
  %v250 = vmul.f32 %v228, %v201
  %v251 = vmul.f32 %v231, %v201
  %v252 = vmul.f32 %v234, %v201
  %v253 = vmul.f32 %v237, %v201
  %v254 = vmul.f32 %v240, %v201
  %v255 = vmul.f32 %v243, %v201
  %v256 = vmul.f32 %v246, %v201
  %v257 = vmul.f32 %v249, %v201
  %v258 = vadd.f32 %v250, 1e-05
  %v259 = vadd.f32 %v251, 1e-05
  %v260 = vadd.f32 %v252, 1e-05
  %v261 = vadd.f32 %v253, 1e-05
  %v262 = vadd.f32 %v254, 1e-05
  %v263 = vadd.f32 %v255, 1e-05
  %v264 = vadd.f32 %v256, 1e-05
  %v265 = vadd.f32 %v257, 1e-05
  %v266 = vrsqrt.pop %v258
  %v267 = vrsqrt.pop %v259
  %v268 = vrsqrt.pop %v260
  %v269 = vrsqrt.pop %v261
  %v270 = vrsqrt.pop %v262
  %v271 = vrsqrt.pop %v263
  %v272 = vrsqrt.pop %v264
  %v273 = vrsqrt.pop %v265
  %v274 = vmul.f32 %v210, %v266
  %v275 = vmul.f32 %v211, %v267
  %v276 = vmul.f32 %v212, %v268
  %v277 = vmul.f32 %v213, %v269
  %v278 = vmul.f32 %v214, %v270
  %v279 = vmul.f32 %v215, %v271
  %v280 = vmul.f32 %v216, %v272
  %v281 = vmul.f32 %v217, %v273
  %v282 = vld [vmem:[%s4] sm:$0x1]
  %v284 = vlaneseq
  %v285 = vshrl.u32 %v284, 7
  %v286 = vsub.s32 0, %v285
  %v287 = vrot.slane %v282, %v286
  %v289 = vmul.f32 %v274, %v287
  %v290 = vmul.f32 %v275, %v287
  %v291 = vmul.f32 %v276, %v287
  %v292 = vmul.f32 %v277, %v287
  %v293 = vmul.f32 %v278, %v287
  %v294 = vmul.f32 %v279, %v287
  %v295 = vmul.f32 %v280, %v287
  %v296 = vmul.f32 %v281, %v287
  %v297 = vld [vmem:[%s5] sm:$0x1]
  %v299 = vlaneseq
  %v300 = vshrl.u32 %v299, 7
  %v301 = vsub.s32 0, %v300
  %v302 = vrot.slane %v297, %v301
  %v304 = vadd.f32 %v289, %v302
  %v305 = vadd.f32 %v290, %v302
  %v306 = vadd.f32 %v291, %v302
  %v307 = vadd.f32 %v292, %v302
  %v308 = vadd.f32 %v293, %v302
  %v309 = vadd.f32 %v294, %v302
  %v310 = vadd.f32 %v295, %v302
  %v311 = vadd.f32 %v296, %v302
  %v312 = vpack.c.bf16 %v305, %v304
  %v313 = vpack.c.bf16 %v307, %v306
  %v314 = vpack.c.bf16 %v309, %v308
  %v315 = vpack.c.bf16 %v311, %v310
  %v320 = vunpack.c.l.b16 %v312
  %v321 = vunpack.c.h.b16 %v312
  %v322 = vunpack.c.l.b16 %v313
  %v323 = vunpack.c.h.b16 %v313
  %v324 = vunpack.c.l.b16 %v314
  %v325 = vunpack.c.h.b16 %v314
  %v326 = vunpack.c.l.b16 %v315
  %v327 = vunpack.c.h.b16 %v315
  %v328 = vpack.c.b16 %v320, %v320
  %v329 = vpack.c.b16 %v321, %v321
  %v330 = vpack.c.b16 %v322, %v322
  %v331 = vpack.c.b16 %v323, %v323
  %v332 = vpack.c.b16 %v324, %v324
  %v333 = vpack.c.b16 %v325, %v325
  %v334 = vpack.c.b16 %v326, %v326
  %v335 = vpack.c.b16 %v327, %v327
  %vm344 = vcmask 257024
  %345 = vst.msk [vmem:[%s6] sm:$0xf] %vm344, %v328
  %346 = vst.msk [vmem:[%s6 + $0x4] sm:$0xf] %vm344, %v329
  %347 = vst.msk [vmem:[%s6 + $0x8] sm:$0xf] %vm344, %v330
  %348 = vst.msk [vmem:[%s6 + $0xc] sm:$0xf] %vm344, %v331
  %349 = vst.msk [vmem:[%s6 + $0x10] sm:$0xf] %vm344, %v332
  %350 = vst.msk [vmem:[%s6 + $0x14] sm:$0xf] %vm344, %v333
  %351 = vst.msk [vmem:[%s6 + $0x18] sm:$0xf] %vm344, %v334
  %352 = vst.msk [vmem:[%s6 + $0x1c] sm:$0xf] %vm344, %v335
  // Predicated region
  $region26: #{_fwd.67} parent=0 // pred_check
    _
  $region27: #{_fwd.67} parent=0 // pred_check_branch
    %354 = sbr.rel (0) target = $region29
  $region28: #{_fwd.67} parent=0 // pred_region
    _
  $region29: #{_fwd.67} parent=0 // pred_fallthru
    _
  // Predicated region
  $region30: #{_fwd.67} parent=0 // pred_check
    _
  $region31: #{_fwd.67} parent=0 // pred_check_branch
    %356 = sbr.rel (0) target = $region33
  $region32: #{_fwd.67} parent=0 // pred_region
    _
  $region33: #{_fwd.67} parent=0 // pred_fallthru
    _

// kernel: _fwd.68
$region0: #{_fwd.68}
  #allocation0 [shape = 'u32[]', space=smem, size = 0x4, offset = 0x4, fixed_abs, tag = 'smem constant byte address 0x4 - core index']
  #allocation1 [shape = 'u32[144,128]{1,0:T(1,128)}', space=vmem, size = 0x12000, scoped, tag = 'internal scratch']
  %s0 = inlined_call_operand.vmem [shape: bf16[2,34,32], index: 0, kind: input, shape index: {}]
  %s1 = inlined_call_operand.vmem [shape: bf16[3,32,64], index: 1, kind: input, shape index: {}]
  %s2 = inlined_call_operand.vmem [shape: f32[1,64], index: 2, kind: input, shape index: {}]
  %s3 = inlined_call_operand.vmem [shape: bf16[2,32,64], index: 3, kind: output, shape index: {}]
  %s4 = sld [smem:[#allocation0]]
  $region45: #{_fwd.68} parent=0
    _
  %s6 = ssub.s32 1, %s4
  %s7 = scalar_select 0, %s6, %s4
  loop: start=0, step=1, limit=4
  $region2: #{_fwd.68} parent=0 // loop_pre_header
    _
  $region3: #{_fwd.68} parent=0 // loop_header
    %s9 = sphi 0, %s13
    %p10 = scmp.ge.s32.totalorder %s9, 4
    %s19 = sphi 0, %s21
    %s22 = sphi 0, %s19
    %s23 = sphi 0, %s22
    %s39 = sphi 0, %s23
    %s43 = sphi 0, %s43
    %s45 = sphi 0, %s43
    %s46 = sphi 0, %s45
    %s60 = sphi 0, %s46
    %s64 = sphi 0, %s64
    %s66 = sphi 0, %s64
    %s67 = sphi 0, %s66
    %s81 = sphi 0, %s67
    %s87 = sphi 0, %s89
    %s90 = sphi 0, %s87
    %s91 = sphi 0, %s90
    %s107 = sphi 0, %s91
  $region4: #{_fwd.68} parent=0 // loop_header_branch
    %12 = sbr.rel (%p10) target = $region8
  $region5: #{_fwd.68} parent=0 // loop_body
    %s14 = ssub.s32 %s9, 1
    %s15 = ssub.s32 %s9, 2
    %s16 = sadd.s32 %s9, 1
    %s17 = ssub.s32 %s9, %s16
    %p18 = scmp.eq.s32.totalorder %s17, 0
    %s20 = sadd.s32 %s19, 1
    %s21 = scalar_select %p18, %s19, %s20
    %p24 = pneg %p18
    %p25 = scmp.eq.s32.totalorder %s9, 1
    %p26 = por %p24, %p25
    %p27 = scmp.ne.s32.totalorder %s19, %s22
    %p28 = scmp.eq.s32.totalorder %s9, 0
    %p29 = por %p27, %p28
    %p30 = scmp.ne.s32.totalorder %s19, %s22
    %p31 = scmp.eq.s32.totalorder %s14, 1
    %p32 = por %p30, %p31
    %p33 = scmp.ne.s32.totalorder %s22, %s23
    %p34 = scmp.eq.s32.totalorder %s14, 0
    %p35 = por %p33, %p34
    %p36 = scmp.ne.s32.totalorder %s22, %s23
    %p37 = scmp.eq.s32.totalorder %s15, 1
    %p38 = por %p36, %p37
    %p40 = scmp.ne.s32.totalorder %s23, %s39
    %p41 = scmp.eq.s32.totalorder %s15, 0
    %p42 = por %p40, %p41
    %s44 = sadd.s32 %s43, 1
    %p47 = scmp.eq.s32.totalorder %s9, 1
    %p48 = scmp.ne.s32.totalorder %s43, %s45
    %p49 = scmp.eq.s32.totalorder %s9, 0
    %p50 = por %p48, %p49
    %p51 = scmp.ne.s32.totalorder %s43, %s45
    %p52 = scmp.eq.s32.totalorder %s14, 1
    %p53 = por %p51, %p52
    %p54 = scmp.ne.s32.totalorder %s45, %s46
    %p55 = scmp.eq.s32.totalorder %s14, 0
    %p56 = por %p54, %p55
    %p57 = scmp.ne.s32.totalorder %s45, %s46
    %p58 = scmp.eq.s32.totalorder %s15, 1
    %p59 = por %p57, %p58
    %p61 = scmp.ne.s32.totalorder %s46, %s60
    %p62 = scmp.eq.s32.totalorder %s15, 0
    %p63 = por %p61, %p62
    %s65 = sadd.s32 %s64, 1
    %p68 = scmp.eq.s32.totalorder %s9, 1
    %p69 = scmp.ne.s32.totalorder %s64, %s66
    %p70 = scmp.eq.s32.totalorder %s9, 0
    %p71 = por %p69, %p70
    %p72 = scmp.ne.s32.totalorder %s64, %s66
    %p73 = scmp.eq.s32.totalorder %s14, 1
    %p74 = por %p72, %p73
    %p75 = scmp.ne.s32.totalorder %s66, %s67
    %p76 = scmp.eq.s32.totalorder %s14, 0
    %p77 = por %p75, %p76
    %p78 = scmp.ne.s32.totalorder %s66, %s67
    %p79 = scmp.eq.s32.totalorder %s15, 1
    %p80 = por %p78, %p79
    %p82 = scmp.ne.s32.totalorder %s67, %s81
    %p83 = scmp.eq.s32.totalorder %s15, 0
    %p84 = por %p82, %p83
    %s85 = ssub.s32 %s9, %s16
    %p86 = scmp.eq.s32.totalorder %s85, 0
    %s88 = sadd.s32 %s87, 1
    %s89 = scalar_select %p86, %s87, %s88
    %p92 = pneg %p86
    %p93 = scmp.eq.s32.totalorder %s9, 1
    %p94 = por %p92, %p93
    %p95 = scmp.ne.s32.totalorder %s87, %s90
    %p96 = scmp.eq.s32.totalorder %s9, 0
    %p97 = por %p95, %p96
    %p98 = scmp.ne.s32.totalorder %s87, %s90
    %p99 = scmp.eq.s32.totalorder %s14, 1
    %p100 = por %p98, %p99
    %p101 = scmp.ne.s32.totalorder %s90, %s91
    %p102 = scmp.eq.s32.totalorder %s14, 0
    %p103 = por %p101, %p102
    %p104 = scmp.ne.s32.totalorder %s90, %s91
    %p105 = scmp.eq.s32.totalorder %s15, 1
    %p106 = por %p104, %p105
    %p108 = scmp.ne.s32.totalorder %s91, %s107
    %p109 = scmp.eq.s32.totalorder %s15, 0
    %p110 = por %p108, %p109
    %p111 = scmp.le.s32.totalorder 1, %s9
    %p112 = scmp.lt.s32.totalorder %s9, 3
    %p113 = pnand %p111, %p112
    %p114 = pneg %p113
    // Predicated region
    $region9: #{_fwd.68} parent=5 // pred_check
      _
    $region10: #{_fwd.68} parent=5 // pred_check_branch
      %116 = sbr.rel (%p113) target = $region12
    $region11: #{_fwd.68} parent=5 // pred_region
      %s117 = ssub.s32 %s9, 1
      // Predicated region
      $region13: #{_fwd.68} parent=11 // pred_check
        %p118 = pneg %p56
      $region14: #{_fwd.68} parent=11 // pred_check_branch
        %120 = sbr.rel (%p118) target = $region16
      $region15: #{_fwd.68} parent=11 // pred_region
        _
      $region16: #{_fwd.68} parent=11 // pred_fallthru
        _
      // Predicated region
      $region17: #{_fwd.68} parent=11 // pred_check
        %p121 = pneg %p77
      $region18: #{_fwd.68} parent=11 // pred_check_branch
        %123 = sbr.rel (%p121) target = $region20
      $region19: #{_fwd.68} parent=11 // pred_region
        _
      $region20: #{_fwd.68} parent=11 // pred_fallthru
        _
    $region12: #{_fwd.68} parent=5 // pred_fallthru
      _
    %p124 = scmp.lt.s32.totalorder %s9, 2
    // Predicated region
    $region21: #{_fwd.68} parent=5 // pred_check
      %p125 = pneg %p124
    $region22: #{_fwd.68} parent=5 // pred_check_branch
      %127 = sbr.rel (%p125) target = $region24
    $region23: #{_fwd.68} parent=5 // pred_region
      // Predicated region
      $region25: #{_fwd.68} parent=23 // pred_check
        %p128 = pneg %p29
      $region26: #{_fwd.68} parent=23 // pred_check_branch
        %130 = sbr.rel (%p128) target = $region28
      $region27: #{_fwd.68} parent=23 // pred_region
        %p131 = scmp.lt.s32.totalorder %s9, 1
        %s132 = scalar_select %p131, %s9, 1
        %s133 = smul.addr %s132, 5
        %s134 = smul.addr %s133, 4
        %s135 = scalar_lea.vmem %s0, %s134
      $region28: #{_fwd.68} parent=23 // pred_fallthru
        _
    $region24: #{_fwd.68} parent=5 // pred_fallthru
      _
    %p136 = scmp.le.s32.totalorder 1, %s9
    %p137 = scmp.lt.s32.totalorder %s9, 3
    %p138 = pnand %p136, %p137
    %p139 = pneg %p138
    // Predicated region
    $region29: #{_fwd.68} parent=5 // pred_check
      _
    $region30: #{_fwd.68} parent=5 // pred_check_branch
      %141 = sbr.rel (%p138) target = $region32
    $region31: #{_fwd.68} parent=5 // pred_region
      %s142 = ssub.s32 %s9, 1
      %p143 = scmp.lt.s32.totalorder %s14, 1
      %s144 = scalar_select %p143, %s14, 1
      %s145 = smul.addr %s144, 5
      %s146 = smul.addr %s145, 4
      %s147 = scalar_lea.vmem %s0, %s146
      %p148 = pneg %p35
      %p149 = pneg %p32
      %p150 = pneg %p56
      %p151 = pneg %p53
      %p152 = pneg %p77
      %p153 = pneg %p74
      %p154 = pneg %p103
      %p155 = pneg %p100
      %p156 = scmp.lt.s32.totalorder %s14, 1
      %s157 = scalar_select %p156, %s14, 1
      %s158 = smul.addr %s157, 4
      %s159 = smul.addr %s158, 4
      %s160 = scalar_lea.vmem %s3, %s159
      %p161 = scmp.lt.s32.totalorder %s14, 1
      %s162 = scalar_select %p161, %s14, 1
      %s163 = smul.addr %s162, 5
      %s164 = smul.addr %s163, 4
      %s165 = scalar_lea.vmem %s0, %s164
      %p166 = scmp.lt.s32.totalorder %s14, 1
      %s167 = scalar_select %p166, %s14, 1
      %s168 = smul.addr %s167, 4
      %s169 = smul.addr %s168, 4
      %s170 = scalar_lea.vmem %s3, %s169
      %v172 = vld [vmem:[%s165] sm:$0xf]
      %v173 = vld [vmem:[%s165 + $0x4] sm:$0xf]
      %v174 = vld [vmem:[%s165 + $0x8] sm:$0xf]
      %v175 = vld [vmem:[%s165 + $0xc] sm:$0xf]
      %v176 = vld [vmem:[%s1] sm:$0xf]
      %v177 = vld [vmem:[%s1 + $0x4] sm:$0xf]
      %v178 = vld [vmem:[%s1 + $0x8] sm:$0xf]
      %v179 = vld [vmem:[%s1 + $0xc] sm:$0xf]
      %v180 = vld [vmem:[%s165 + $0x10] sm:$0x1]
      %s181 = scalar_lea.vmem %s1, 16
      %v182 = vld [vmem:[%s181] sm:$0xf]
      %v183 = vld [vmem:[%s181 + $0x4] sm:$0xf]
      %v184 = vld [vmem:[%s181 + $0x8] sm:$0xf]
      %v185 = vld [vmem:[%s181 + $0xc] sm:$0xf]
      %v191 = vunpack.c.l.b16 %v172
      %v192 = vunpack.c.l.b16 %v173
      %v193 = vunpack.c.l.b16 %v174
      %v194 = vunpack.c.l.b16 %v175
      %v195 = vunpack.c.l.b16 %v180
      %v196 = vpack.c.b16 %v192, %v191
      %v197 = vpack.c.b16 %v194, %v193
      %v198 = vpack.c.b16 %v195, %v195
      %vm199 = vsmask.f32 7424
      %v201 = vshrl.u32 %v196, 16
      %v203 = vshll.u32 %v196, 16
      %v205 = vrot.slane %v203, 1
      %v206 = vor.u32 %v201, %v205
      %v208 = vshll.u32 %v197, 16
      %v210 = vrot.slane %v208, 1
      %v211 = vsel %vm199, %v206, %v210
      %v212 = vshrl.u32 %v197, 16
      %v214 = vor.u32 %v212, %v210
      %v216 = vshll.u32 %v198, 16
      %v218 = vrot.slane %v216, 1
      %v219 = vsel %vm199, %v214, %v218
      %v224 = vunpack.c.l.b16 %v182
      %v225 = vunpack.c.l.b16 %v183
      %v226 = vunpack.c.l.b16 %v184
      %v227 = vunpack.c.l.b16 %v185
      %v228 = vpack.c.b16 %v225, %v224
      %v229 = vpack.c.b16 %v227, %v226
      %vm232 = vcmask 261120
      %v234 = vsel %vm232, %v211, 0
      %v237 = vsel %vm232, %v219, 0
      %239 = vmatprep.subr.bf16.mxu0 0
      %240 = vmatpush1.bf16.msra.mxu0 %v228
      %241 = vmatprep.subr.bf16.mxu0 0
      %242 = vmatpush1.bf16.msra.mxu0 %v229
      %243 = vmatprep.subr.bf16.mxu0 0
      %244 = vmatpush1.bf16.msra.mxu0 0
      %245 = vmatprep.subr.bf16.mxu0 0
      %246 = vmatpush1.bf16.msra.mxu0 0
      %247 = vmatprep.subr.bf16.mxu0 0
      %248 = vmatpush1.bf16.msra.mxu0 0
      %249 = vmatprep.subr.bf16.mxu0 0
      %250 = vmatpush1.bf16.msra.mxu0 0
      %251 = vmatprep.subr.bf16.mxu0 0
      %252 = vmatpush1.bf16.msra.mxu0 0
      %253 = vmatprep.subr.bf16.mxu0 0
      %254 = vmatpush1.bf16.msra.mxu0 0
      %255 = vmatprep.subr.bf16.mxu0 0
      %256 = vmatpush1.bf16.msra.mxu0 0
      %257 = vmatprep.subr.bf16.mxu0 0
      %258 = vmatpush1.bf16.msra.mxu0 0
      %259 = vmatprep.subr.bf16.mxu0 0
      %260 = vmatpush1.bf16.msra.mxu0 0
      %261 = vmatprep.subr.bf16.mxu0 0
      %262 = vmatpush1.bf16.msra.mxu0 0
      %263 = vmatprep.subr.bf16.mxu0 0
      %264 = vmatpush1.bf16.msra.mxu0 0
      %265 = vmatprep.subr.bf16.mxu0 0
      %266 = vmatpush1.bf16.msra.mxu0 0
      %267 = vmatprep.subr.bf16.mxu0 0
      %268 = vmatpush1.bf16.msra.mxu0 0
      %269 = vmatprep.subr.bf16.mxu0 0
      %270 = vmatpush1.bf16.msra.mxu0 0
      %271 = vmatprep.mubr.bf16.mxu0 0
      %272 = vmatmul.mubr.bf16.gmra.mrb[0].mxu0 %v234
      %v273 = vpop.f32.mrb[0].mxu0
      %v274 = vadd.f32 0.0, %v273
      %v275 = vpop.f32.mrb[0].mxu0
      %v276 = vpop.f32.mrb[0].mxu0
      %v277 = vadd.f32 0.0, %v276
      %v278 = vpop.f32.mrb[0].mxu0
      %279 = vmatprep.mubr.bf16.mxu0 0
      %280 = vmatmul.mubr.bf16.gmra.mrb[0].mxu0 %v237
      %v281 = vpop.f32.mrb[0].mxu0
      %v282 = vadd.f32 0.0, %v281
      %v283 = vpop.f32.mrb[0].mxu0
      %v284 = vpop.f32.mrb[0].mxu0
      %v285 = vadd.f32 0.0, %v284
      %v286 = vpop.f32.mrb[0].mxu0
      %287 = vdwg.mxu0
      %v292 = vunpack.c.l.b16 %v176
      %v293 = vunpack.c.l.b16 %v177
      %v294 = vunpack.c.l.b16 %v178
      %v295 = vunpack.c.l.b16 %v179
      %v296 = vpack.c.b16 %v293, %v292
      %v297 = vpack.c.b16 %v295, %v294
      %v300 = vsel %vm232, %v196, 0
      %v302 = vsel %vm232, %v197, 0
      %304 = vmatprep.subr.bf16.mxu0 0
      %305 = vmatpush1.bf16.msra.mxu0 %v296
      %306 = vmatprep.subr.bf16.mxu0 0
      %307 = vmatpush1.bf16.msra.mxu0 %v297
      %308 = vmatprep.subr.bf16.mxu0 0
      %309 = vmatpush1.bf16.msra.mxu0 0
      %310 = vmatprep.subr.bf16.mxu0 0
      %311 = vmatpush1.bf16.msra.mxu0 0
      %312 = vmatprep.subr.bf16.mxu0 0
      %313 = vmatpush1.bf16.msra.mxu0 0
      %314 = vmatprep.subr.bf16.mxu0 0
      %315 = vmatpush1.bf16.msra.mxu0 0
      %316 = vmatprep.subr.bf16.mxu0 0
      %317 = vmatpush1.bf16.msra.mxu0 0
      %318 = vmatprep.subr.bf16.mxu0 0
      %319 = vmatpush1.bf16.msra.mxu0 0
      %320 = vmatprep.subr.bf16.mxu0 0
      %321 = vmatpush1.bf16.msra.mxu0 0
      %322 = vmatprep.subr.bf16.mxu0 0
      %323 = vmatpush1.bf16.msra.mxu0 0
      %324 = vmatprep.subr.bf16.mxu0 0
      %325 = vmatpush1.bf16.msra.mxu0 0
      %326 = vmatprep.subr.bf16.mxu0 0
      %327 = vmatpush1.bf16.msra.mxu0 0
      %328 = vmatprep.subr.bf16.mxu0 0
      %329 = vmatpush1.bf16.msra.mxu0 0
      %330 = vmatprep.subr.bf16.mxu0 0
      %331 = vmatpush1.bf16.msra.mxu0 0
      %332 = vmatprep.subr.bf16.mxu0 0
      %333 = vmatpush1.bf16.msra.mxu0 0
      %334 = vmatprep.subr.bf16.mxu0 0
      %335 = vmatpush1.bf16.msra.mxu0 0
      %336 = vmatprep.mubr.bf16.mxu0 0
      %337 = vmatmul.mubr.bf16.gmra.mrb[0].mxu0 %v300
      %v338 = vpop.f32.mrb[0].mxu0
      %v339 = vadd.f32 %v274, %v338
      %v340 = vpop.f32.mrb[0].mxu0
      %v341 = vpop.f32.mrb[0].mxu0
      %v342 = vadd.f32 %v277, %v341
      %v343 = vpop.f32.mrb[0].mxu0
      %344 = vmatprep.mubr.bf16.mxu0 0
      %345 = vmatmul.mubr.bf16.gmra.mrb[0].mxu0 %v302
      %v346 = vpop.f32.mrb[0].mxu0
      %v347 = vadd.f32 %v282, %v346
      %v348 = vpop.f32.mrb[0].mxu0
      %v349 = vpop.f32.mrb[0].mxu0
      %v350 = vadd.f32 %v285, %v349
      %v351 = vpop.f32.mrb[0].mxu0
      %352 = vdwg.mxu0
      %v353 = vld [vmem:[%s165] sm:$0xe]
      %s354 = scalar_lea.vmem %s1, 32
      %v355 = vld [vmem:[%s354] sm:$0xf]
      %v356 = vld [vmem:[%s354 + $0x4] sm:$0xf]
      %v357 = vld [vmem:[%s354 + $0x8] sm:$0xf]
      %v358 = vld [vmem:[%s354 + $0xc] sm:$0xf]
      %v360 = vunpack.c.l.b16 %v353
      %v361 = vpack.c.b16 %v192, %v360
      %vm362 = vcmask 1046528
      %v363 = vrot.slane %v361, 1
      %v364 = vrot.slane %v197, 1
      %v365 = vsel %vm362, %v363, %v364
      %v366 = vrot.slane %v198, 1
      %v367 = vsel %vm362, %v364, %v366
      %v372 = vunpack.c.l.b16 %v355
      %v373 = vunpack.c.l.b16 %v356
      %v374 = vunpack.c.l.b16 %v357
      %v375 = vunpack.c.l.b16 %v358
      %v376 = vpack.c.b16 %v373, %v372
      %v377 = vpack.c.b16 %v375, %v374
      %v381 = vsel %vm232, %v365, 0
      %v384 = vsel %vm232, %v367, 0
      %386 = vmatprep.subr.bf16.mxu0 0
      %387 = vmatpush1.bf16.msra.mxu0 %v376
      %388 = vmatprep.subr.bf16.mxu0 0
      %389 = vmatpush1.bf16.msra.mxu0 %v377
      %390 = vmatprep.subr.bf16.mxu0 0
      %391 = vmatpush1.bf16.msra.mxu0 0
      %392 = vmatprep.subr.bf16.mxu0 0
      %393 = vmatpush1.bf16.msra.mxu0 0
      %394 = vmatprep.subr.bf16.mxu0 0
      %395 = vmatpush1.bf16.msra.mxu0 0
      %396 = vmatprep.subr.bf16.mxu0 0
      %397 = vmatpush1.bf16.msra.mxu0 0
      %398 = vmatprep.subr.bf16.mxu0 0
      %399 = vmatpush1.bf16.msra.mxu0 0
      %400 = vmatprep.subr.bf16.mxu0 0
      %401 = vmatpush1.bf16.msra.mxu0 0
      %402 = vmatprep.subr.bf16.mxu0 0
      %403 = vmatpush1.bf16.msra.mxu0 0
      %404 = vmatprep.subr.bf16.mxu0 0
      %405 = vmatpush1.bf16.msra.mxu0 0
      %406 = vmatprep.subr.bf16.mxu0 0
      %407 = vmatpush1.bf16.msra.mxu0 0
      %408 = vmatprep.subr.bf16.mxu0 0
      %409 = vmatpush1.bf16.msra.mxu0 0
      %410 = vmatprep.subr.bf16.mxu0 0
      %411 = vmatpush1.bf16.msra.mxu0 0
      %412 = vmatprep.subr.bf16.mxu0 0
      %413 = vmatpush1.bf16.msra.mxu0 0
      %414 = vmatprep.subr.bf16.mxu0 0
      %415 = vmatpush1.bf16.msra.mxu0 0
      %416 = vmatprep.subr.bf16.mxu0 0
      %417 = vmatpush1.bf16.msra.mxu0 0
      %418 = vmatprep.mubr.bf16.mxu0 0
      %419 = vmatmul.mubr.bf16.gmra.mrb[0].mxu0 %v381
      %v420 = vpop.f32.mrb[0].mxu0
      %v421 = vadd.f32 0.0, %v420
      %v422 = vpop.f32.mrb[0].mxu0
      %v423 = vpop.f32.mrb[0].mxu0
      %v424 = vadd.f32 0.0, %v423
      %v425 = vpop.f32.mrb[0].mxu0
      %426 = vmatprep.mubr.bf16.mxu0 0
      %427 = vmatmul.mubr.bf16.gmra.mrb[0].mxu0 %v384
      %v428 = vpop.f32.mrb[0].mxu0
      %v429 = vadd.f32 0.0, %v428
      %v430 = vpop.f32.mrb[0].mxu0
      %v431 = vpop.f32.mrb[0].mxu0
      %v432 = vadd.f32 0.0, %v431
      %v433 = vpop.f32.mrb[0].mxu0
      %434 = vdwg.mxu0
      %v435 = vadd.f32 %v339, %v421
      %v436 = vadd.f32 %v342, %v424
      %v437 = vadd.f32 %v347, %v429
      %v438 = vadd.f32 %v350, %v432
      %v439 = vld [vmem:[%s2] sm:$0x1]
      %v441 = vlaneseq
      %v442 = vshrl.u32 %v441, 7
      %v443 = vsub.s32 0, %v442
      %v444 = vrot.slane %v439, %v443
      %v446 = vadd.f32 %v435, %v444
      %v447 = vadd.f32 %v436, %v444
      %v448 = vadd.f32 %v437, %v444
      %v449 = vadd.f32 %v438, %v444
      %v450 = vmax.f32 %v446, 0.0
      %v451 = vmax.f32 %v447, 0.0
      %v452 = vmax.f32 %v448, 0.0
      %v453 = vmax.f32 %v449, 0.0
      %v454 = vpack.c.bf16 %v451, %v450
      %v455 = vpack.c.bf16 %v453, %v452
      %v458 = vunpack.c.l.b16 %v454
      %v459 = vunpack.c.h.b16 %v454
      %v460 = vunpack.c.l.b16 %v455
      %v461 = vunpack.c.h.b16 %v455
      %v462 = vpack.c.b16 %v458, %v458
      %v463 = vpack.c.b16 %v459, %v459
      %v464 = vpack.c.b16 %v460, %v460
      %v465 = vpack.c.b16 %v461, %v461
      %vm470 = vcmask 519168
      %471 = vst.msk [vmem:[%s170] sm:$0xf] %vm470, %v462
      %472 = vst.msk [vmem:[%s170 + $0x4] sm:$0xf] %vm470, %v463
      %473 = vst.msk [vmem:[%s170 + $0x8] sm:$0xf] %vm470, %v464
      %474 = vst.msk [vmem:[%s170 + $0xc] sm:$0xf] %vm470, %v465
      %p475 = scmp.lt.s32.totalorder %s14, 1
      %s476 = scalar_select %p475, %s14, 1
      %s477 = smul.addr %s476, 4
      %s478 = smul.addr %s477, 4
      %s479 = scalar_lea.vmem %s3, %s478
      // Predicated region
      $region33: #{_fwd.68} parent=31 // pred_check
        %p480 = pneg %p100
      $region34: #{_fwd.68} parent=31 // pred_check_branch
        %482 = sbr.rel (%p480) target = $region36
      $region35: #{_fwd.68} parent=31 // pred_region
        _
      $region36: #{_fwd.68} parent=31 // pred_fallthru
        _
    $region32: #{_fwd.68} parent=5 // pred_fallthru
      _
    %p483 = scmp.le.s32.totalorder 2, %s9
    // Predicated region
    $region37: #{_fwd.68} parent=5 // pred_check
      %p484 = pneg %p483
    $region38: #{_fwd.68} parent=5 // pred_check_branch
      %486 = sbr.rel (%p484) target = $region40
    $region39: #{_fwd.68} parent=5 // pred_region
      %s487 = ssub.s32 %s9, 2
      // Predicated region
      $region41: #{_fwd.68} parent=39 // pred_check
        %p488 = pneg %p106
      $region42: #{_fwd.68} parent=39 // pred_check_branch
        %490 = sbr.rel (%p488) target = $region44
      $region43: #{_fwd.68} parent=39 // pred_region
        %p491 = scmp.lt.s32.totalorder %s15, 1
        %s492 = scalar_select %p491, %s15, 1
        %s493 = smul.addr %s492, 4
        %s494 = smul.addr %s493, 4
        %s495 = scalar_lea.vmem %s3, %s494
      $region44: #{_fwd.68} parent=39 // pred_fallthru
        _
    $region40: #{_fwd.68} parent=5 // pred_fallthru
      _
  $region6: #{_fwd.68} parent=0 // loop_footer
    %s13 = sadd.s32 1, %s9
  $region7: #{_fwd.68} parent=0 // loop_footer_branch
    %8 = sbr.rel target = $region3
  $region8: #{_fwd.68} parent=0 // loop_exit
    _

// kernel: _fwd.69
$region0: #{_fwd.69}
  #allocation0 [shape = 'u32[]', space=smem, size = 0x4, offset = 0x4, fixed_abs, tag = 'smem constant byte address 0x4 - core index']
  #allocation1 [shape = 'u32[144,128]{1,0:T(1,128)}', space=vmem, size = 0x12000, scoped, tag = 'internal scratch']
  %s0 = inlined_call_operand.vmem [shape: bf16[2,32,64], index: 0, kind: input, shape index: {}]
  %s1 = inlined_call_operand.vmem [shape: bf16[1,64,32], index: 1, kind: input, shape index: {}]
  %s2 = inlined_call_operand.vmem [shape: f32[1,32], index: 2, kind: input, shape index: {}, may-alias: {2,5}]
  %s3 = inlined_call_operand.vmem [shape: bf16[2,32,32], index: 3, kind: input, shape index: {}]
  %s4 = inlined_call_operand.vmem [shape: f32[1,32], index: 4, kind: input, shape index: {}]
  %s5 = inlined_call_operand.vmem [shape: f32[1,32], index: 5, kind: input, shape index: {}, may-alias: {2,5}]
  %s6 = inlined_call_operand.vmem [shape: bf16[2,32,32], index: 6, kind: output, shape index: {}]
  %s7 = sld [smem:[#allocation0]]
  $region57: #{_fwd.69} parent=0
    _
  %s9 = ssub.s32 1, %s7
  %s10 = scalar_select 0, %s9, %s7
  loop: start=0, step=1, limit=4
  $region2: #{_fwd.69} parent=0 // loop_pre_header
    _
  $region3: #{_fwd.69} parent=0 // loop_header
    %s12 = sphi 0, %s16
    %p13 = scmp.ge.s32.totalorder %s12, 4
    %s22 = sphi 0, %s24
    %s25 = sphi 0, %s22
    %s26 = sphi 0, %s25
    %s42 = sphi 0, %s26
    %s46 = sphi 0, %s46
    %s48 = sphi 0, %s46
    %s49 = sphi 0, %s48
    %s63 = sphi 0, %s49
    %s67 = sphi 0, %s67
    %s69 = sphi 0, %s67
    %s70 = sphi 0, %s69
    %s84 = sphi 0, %s70
    %s90 = sphi 0, %s92
    %s93 = sphi 0, %s90
    %s94 = sphi 0, %s93
    %s110 = sphi 0, %s94
    %s114 = sphi 0, %s114
    %s116 = sphi 0, %s114
    %s117 = sphi 0, %s116
    %s131 = sphi 0, %s117
    %s135 = sphi 0, %s135
    %s137 = sphi 0, %s135
    %s138 = sphi 0, %s137
    %s152 = sphi 0, %s138
    %s158 = sphi 0, %s160
    %s161 = sphi 0, %s158
    %s162 = sphi 0, %s161
    %s178 = sphi 0, %s162
  $region4: #{_fwd.69} parent=0 // loop_header_branch
    %15 = sbr.rel (%p13) target = $region8
  $region5: #{_fwd.69} parent=0 // loop_body
    %s17 = ssub.s32 %s12, 1
    %s18 = ssub.s32 %s12, 2
    %s19 = sadd.s32 %s12, 1
    %s20 = ssub.s32 %s12, %s19
    %p21 = scmp.eq.s32.totalorder %s20, 0
    %s23 = sadd.s32 %s22, 1
    %s24 = scalar_select %p21, %s22, %s23
    %p27 = pneg %p21
    %p28 = scmp.eq.s32.totalorder %s12, 1
    %p29 = por %p27, %p28
    %p30 = scmp.ne.s32.totalorder %s22, %s25
    %p31 = scmp.eq.s32.totalorder %s12, 0
    %p32 = por %p30, %p31
    %p33 = scmp.ne.s32.totalorder %s22, %s25
    %p34 = scmp.eq.s32.totalorder %s17, 1
    %p35 = por %p33, %p34
    %p36 = scmp.ne.s32.totalorder %s25, %s26
    %p37 = scmp.eq.s32.totalorder %s17, 0
    %p38 = por %p36, %p37
    %p39 = scmp.ne.s32.totalorder %s25, %s26
    %p40 = scmp.eq.s32.totalorder %s18, 1
    %p41 = por %p39, %p40
    %p43 = scmp.ne.s32.totalorder %s26, %s42
    %p44 = scmp.eq.s32.totalorder %s18, 0
    %p45 = por %p43, %p44
    %s47 = sadd.s32 %s46, 1
    %p50 = scmp.eq.s32.totalorder %s12, 1
    %p51 = scmp.ne.s32.totalorder %s46, %s48
    %p52 = scmp.eq.s32.totalorder %s12, 0
    %p53 = por %p51, %p52
    %p54 = scmp.ne.s32.totalorder %s46, %s48
    %p55 = scmp.eq.s32.totalorder %s17, 1
    %p56 = por %p54, %p55
    %p57 = scmp.ne.s32.totalorder %s48, %s49
    %p58 = scmp.eq.s32.totalorder %s17, 0
    %p59 = por %p57, %p58
    %p60 = scmp.ne.s32.totalorder %s48, %s49
    %p61 = scmp.eq.s32.totalorder %s18, 1
    %p62 = por %p60, %p61
    %p64 = scmp.ne.s32.totalorder %s49, %s63
    %p65 = scmp.eq.s32.totalorder %s18, 0
    %p66 = por %p64, %p65
    %s68 = sadd.s32 %s67, 1
    %p71 = scmp.eq.s32.totalorder %s12, 1
    %p72 = scmp.ne.s32.totalorder %s67, %s69
    %p73 = scmp.eq.s32.totalorder %s12, 0
    %p74 = por %p72, %p73
    %p75 = scmp.ne.s32.totalorder %s67, %s69
    %p76 = scmp.eq.s32.totalorder %s17, 1
    %p77 = por %p75, %p76
    %p78 = scmp.ne.s32.totalorder %s69, %s70
    %p79 = scmp.eq.s32.totalorder %s17, 0
    %p80 = por %p78, %p79
    %p81 = scmp.ne.s32.totalorder %s69, %s70
    %p82 = scmp.eq.s32.totalorder %s18, 1
    %p83 = por %p81, %p82
    %p85 = scmp.ne.s32.totalorder %s70, %s84
    %p86 = scmp.eq.s32.totalorder %s18, 0
    %p87 = por %p85, %p86
    %s88 = ssub.s32 %s12, %s19
    %p89 = scmp.eq.s32.totalorder %s88, 0
    %s91 = sadd.s32 %s90, 1
    %s92 = scalar_select %p89, %s90, %s91
    %p95 = pneg %p89
    %p96 = scmp.eq.s32.totalorder %s12, 1
    %p97 = por %p95, %p96
    %p98 = scmp.ne.s32.totalorder %s90, %s93
    %p99 = scmp.eq.s32.totalorder %s12, 0
    %p100 = por %p98, %p99
    %p101 = scmp.ne.s32.totalorder %s90, %s93
    %p102 = scmp.eq.s32.totalorder %s17, 1
    %p103 = por %p101, %p102
    %p104 = scmp.ne.s32.totalorder %s93, %s94
    %p105 = scmp.eq.s32.totalorder %s17, 0
    %p106 = por %p104, %p105
    %p107 = scmp.ne.s32.totalorder %s93, %s94
    %p108 = scmp.eq.s32.totalorder %s18, 1
    %p109 = por %p107, %p108
    %p111 = scmp.ne.s32.totalorder %s94, %s110
    %p112 = scmp.eq.s32.totalorder %s18, 0
    %p113 = por %p111, %p112
    %s115 = sadd.s32 %s114, 1
    %p118 = scmp.eq.s32.totalorder %s12, 1
    %p119 = scmp.ne.s32.totalorder %s114, %s116
    %p120 = scmp.eq.s32.totalorder %s12, 0
    %p121 = por %p119, %p120
    %p122 = scmp.ne.s32.totalorder %s114, %s116
    %p123 = scmp.eq.s32.totalorder %s17, 1
    %p124 = por %p122, %p123
    %p125 = scmp.ne.s32.totalorder %s116, %s117
    %p126 = scmp.eq.s32.totalorder %s17, 0
    %p127 = por %p125, %p126
    %p128 = scmp.ne.s32.totalorder %s116, %s117
    %p129 = scmp.eq.s32.totalorder %s18, 1
    %p130 = por %p128, %p129
    %p132 = scmp.ne.s32.totalorder %s117, %s131
    %p133 = scmp.eq.s32.totalorder %s18, 0
    %p134 = por %p132, %p133
    %s136 = sadd.s32 %s135, 1
    %p139 = scmp.eq.s32.totalorder %s12, 1
    %p140 = scmp.ne.s32.totalorder %s135, %s137
    %p141 = scmp.eq.s32.totalorder %s12, 0
    %p142 = por %p140, %p141
    %p143 = scmp.ne.s32.totalorder %s135, %s137
    %p144 = scmp.eq.s32.totalorder %s17, 1
    %p145 = por %p143, %p144
    %p146 = scmp.ne.s32.totalorder %s137, %s138
    %p147 = scmp.eq.s32.totalorder %s17, 0
    %p148 = por %p146, %p147
    %p149 = scmp.ne.s32.totalorder %s137, %s138
    %p150 = scmp.eq.s32.totalorder %s18, 1
    %p151 = por %p149, %p150
    %p153 = scmp.ne.s32.totalorder %s138, %s152
    %p154 = scmp.eq.s32.totalorder %s18, 0
    %p155 = por %p153, %p154
    %s156 = ssub.s32 %s12, %s19
    %p157 = scmp.eq.s32.totalorder %s156, 0
    %s159 = sadd.s32 %s158, 1
    %s160 = scalar_select %p157, %s158, %s159
    %p163 = pneg %p157
    %p164 = scmp.eq.s32.totalorder %s12, 1
    %p165 = por %p163, %p164
    %p166 = scmp.ne.s32.totalorder %s158, %s161
    %p167 = scmp.eq.s32.totalorder %s12, 0
    %p168 = por %p166, %p167
    %p169 = scmp.ne.s32.totalorder %s158, %s161
    %p170 = scmp.eq.s32.totalorder %s17, 1
    %p171 = por %p169, %p170
    %p172 = scmp.ne.s32.totalorder %s161, %s162
    %p173 = scmp.eq.s32.totalorder %s17, 0
    %p174 = por %p172, %p173
    %p175 = scmp.ne.s32.totalorder %s161, %s162
    %p176 = scmp.eq.s32.totalorder %s18, 1
    %p177 = por %p175, %p176
    %p179 = scmp.ne.s32.totalorder %s162, %s178
    %p180 = scmp.eq.s32.totalorder %s18, 0
    %p181 = por %p179, %p180
    %p182 = scmp.le.s32.totalorder 1, %s12
    %p183 = scmp.lt.s32.totalorder %s12, 3
    %p184 = pnand %p182, %p183
    %p185 = pneg %p184
    // Predicated region
    $region9: #{_fwd.69} parent=5 // pred_check
      _
    $region10: #{_fwd.69} parent=5 // pred_check_branch
      %187 = sbr.rel (%p184) target = $region12
    $region11: #{_fwd.69} parent=5 // pred_region
      %s188 = ssub.s32 %s12, 1
      // Predicated region
      $region13: #{_fwd.69} parent=11 // pred_check
        %p189 = pneg %p59
      $region14: #{_fwd.69} parent=11 // pred_check_branch
        %191 = sbr.rel (%p189) target = $region16
      $region15: #{_fwd.69} parent=11 // pred_region
        _
      $region16: #{_fwd.69} parent=11 // pred_fallthru
        _
      // Predicated region
      $region17: #{_fwd.69} parent=11 // pred_check
        %p192 = pneg %p80
      $region18: #{_fwd.69} parent=11 // pred_check_branch
        %194 = sbr.rel (%p192) target = $region20
      $region19: #{_fwd.69} parent=11 // pred_region
        _
      $region20: #{_fwd.69} parent=11 // pred_fallthru
        _
      // Predicated region
      $region21: #{_fwd.69} parent=11 // pred_check
        %p195 = pneg %p127
      $region22: #{_fwd.69} parent=11 // pred_check_branch
        %197 = sbr.rel (%p195) target = $region24
      $region23: #{_fwd.69} parent=11 // pred_region
        _
      $region24: #{_fwd.69} parent=11 // pred_fallthru
        _
      // Predicated region
      $region25: #{_fwd.69} parent=11 // pred_check
        %p198 = pneg %p148
      $region26: #{_fwd.69} parent=11 // pred_check_branch
        %200 = sbr.rel (%p198) target = $region28
      $region27: #{_fwd.69} parent=11 // pred_region
        _
      $region28: #{_fwd.69} parent=11 // pred_fallthru
        _
    $region12: #{_fwd.69} parent=5 // pred_fallthru
      _
    %p201 = scmp.lt.s32.totalorder %s12, 2
    // Predicated region
    $region29: #{_fwd.69} parent=5 // pred_check
      %p202 = pneg %p201
    $region30: #{_fwd.69} parent=5 // pred_check_branch
      %204 = sbr.rel (%p202) target = $region32
    $region31: #{_fwd.69} parent=5 // pred_region
      // Predicated region
      $region33: #{_fwd.69} parent=31 // pred_check
        %p205 = pneg %p32
      $region34: #{_fwd.69} parent=31 // pred_check_branch
        %207 = sbr.rel (%p205) target = $region36
      $region35: #{_fwd.69} parent=31 // pred_region
        %p208 = scmp.lt.s32.totalorder %s12, 1
        %s209 = scalar_select %p208, %s12, 1
        %s210 = smul.addr %s209, 4
        %s211 = smul.addr %s210, 4
        %s212 = scalar_lea.vmem %s0, %s211
      $region36: #{_fwd.69} parent=31 // pred_fallthru
        _
      // Predicated region
      $region37: #{_fwd.69} parent=31 // pred_check
        %p213 = pneg %p100
      $region38: #{_fwd.69} parent=31 // pred_check_branch
        %215 = sbr.rel (%p213) target = $region40
      $region39: #{_fwd.69} parent=31 // pred_region
        %p216 = scmp.lt.s32.totalorder %s12, 1
        %s217 = scalar_select %p216, %s12, 1
        %s218 = smul.addr %s217, 4
        %s219 = smul.addr %s218, 4
        %s220 = scalar_lea.vmem %s3, %s219
      $region40: #{_fwd.69} parent=31 // pred_fallthru
        _
    $region32: #{_fwd.69} parent=5 // pred_fallthru
      _
    %p221 = scmp.le.s32.totalorder 1, %s12
    %p222 = scmp.lt.s32.totalorder %s12, 3
    %p223 = pnand %p221, %p222
    %p224 = pneg %p223
    // Predicated region
    $region41: #{_fwd.69} parent=5 // pred_check
      _
    $region42: #{_fwd.69} parent=5 // pred_check_branch
      %226 = sbr.rel (%p223) target = $region44
    $region43: #{_fwd.69} parent=5 // pred_region
      %s227 = ssub.s32 %s12, 1
      %p228 = scmp.lt.s32.totalorder %s17, 1
      %s229 = scalar_select %p228, %s17, 1
      %s230 = smul.addr %s229, 4
      %s231 = smul.addr %s230, 4
      %s232 = scalar_lea.vmem %s0, %s231
      %p233 = pneg %p38
      %p234 = pneg %p35
      %p235 = pneg %p59
      %p236 = pneg %p56
      %p237 = pneg %p80
      %p238 = pneg %p77
      %p239 = scmp.lt.s32.totalorder %s17, 1
      %s240 = scalar_select %p239, %s17, 1
      %s241 = smul.addr %s240, 4
      %s242 = smul.addr %s241, 4
      %s243 = scalar_lea.vmem %s3, %s242
      %p244 = pneg %p106
      %p245 = pneg %p103
      %p246 = pneg %p127
      %p247 = pneg %p124
      %p248 = pneg %p148
      %p249 = pneg %p145
      %p250 = pneg %p174
      %p251 = pneg %p171
      %p252 = scmp.lt.s32.totalorder %s17, 1
      %s253 = scalar_select %p252, %s17, 1
      %s254 = smul.addr %s253, 4
      %s255 = smul.addr %s254, 4
      %s256 = scalar_lea.vmem %s6, %s255
      %p257 = scmp.lt.s32.totalorder %s17, 1
      %s258 = scalar_select %p257, %s17, 1
      %s259 = smul.addr %s258, 4
      %s260 = smul.addr %s259, 4
      %s261 = scalar_lea.vmem %s0, %s260
      %p262 = scmp.lt.s32.totalorder %s17, 1
      %s263 = scalar_select %p262, %s17, 1
      %s264 = smul.addr %s263, 4
      %s265 = smul.addr %s264, 4
      %s266 = scalar_lea.vmem %s3, %s265
      %p267 = scmp.lt.s32.totalorder %s17, 1
      %s268 = scalar_select %p267, %s17, 1
      %s269 = smul.addr %s268, 4
      %s270 = smul.addr %s269, 4
      %s271 = scalar_lea.vmem %s6, %s270
      %v273 = vld [vmem:[%s261] sm:$0xf]
      %v274 = vld [vmem:[%s261 + $0x4] sm:$0xf]
      %v275 = vld [vmem:[%s261 + $0x8] sm:$0xf]
      %v276 = vld [vmem:[%s261 + $0xc] sm:$0xf]
      %v277 = vld [vmem:[%s1] sm:$0xf]
      %v278 = vld [vmem:[%s1 + $0x4] sm:$0xf]
      %v279 = vld [vmem:[%s1 + $0x8] sm:$0xf]
      %v280 = vld [vmem:[%s1 + $0xc] sm:$0xf]
      %v281 = vld [vmem:[%s1 + $0x10] sm:$0xf]
      %v282 = vld [vmem:[%s1 + $0x14] sm:$0xf]
      %v283 = vld [vmem:[%s1 + $0x18] sm:$0xf]
      %v284 = vld [vmem:[%s1 + $0x1c] sm:$0xf]
      %v285 = vld [vmem:[%s2] sm:$0x1]
      %v287 = vlaneseq
      %v288 = vshrl.u32 %v287, 7
      %v289 = vsub.s32 0, %v288
      %v290 = vrot.slane %v285, %v289
      %v296 = vunpack.c.l.b16 %v273
      %v297 = vunpack.c.l.b16 %v274
      %v298 = vunpack.c.l.b16 %v275
      %v299 = vunpack.c.l.b16 %v276
      %v300 = vpack.c.b16 %v297, %v296
      %v301 = vpack.c.b16 %v299, %v298
      %v310 = vunpack.c.l.b16 %v277
      %v311 = vunpack.c.l.b16 %v278
      %v312 = vunpack.c.l.b16 %v279
      %v313 = vunpack.c.l.b16 %v280
      %v314 = vunpack.c.l.b16 %v281
      %v315 = vunpack.c.l.b16 %v282
      %v316 = vunpack.c.l.b16 %v283
      %v317 = vunpack.c.l.b16 %v284
      %v318 = vpack.c.b16 %v311, %v310
      %v319 = vpack.c.b16 %v313, %v312
      %v320 = vpack.c.b16 %v315, %v314
      %v321 = vpack.c.b16 %v317, %v316
      %vm326 = vcmask 523264
      %v328 = vsel %vm326, %v300, 0
      %v331 = vsel %vm326, %v301, 0
      %333 = vmatprep.subr.bf16.mxu0 0
      %334 = vmatpush1.bf16.msra.mxu0 %v318
      %335 = vmatprep.subr.bf16.mxu0 0
      %336 = vmatpush1.bf16.msra.mxu0 %v319
      %337 = vmatprep.subr.bf16.mxu0 0
      %338 = vmatpush1.bf16.msra.mxu0 %v320
      %339 = vmatprep.subr.bf16.mxu0 0
      %340 = vmatpush1.bf16.msra.mxu0 %v321
      %341 = vmatprep.subr.bf16.mxu0 0
      %342 = vmatpush1.bf16.msra.mxu0 0
      %343 = vmatprep.subr.bf16.mxu0 0
      %344 = vmatpush1.bf16.msra.mxu0 0
      %345 = vmatprep.subr.bf16.mxu0 0
      %346 = vmatpush1.bf16.msra.mxu0 0
      %347 = vmatprep.subr.bf16.mxu0 0
      %348 = vmatpush1.bf16.msra.mxu0 0
      %349 = vmatprep.subr.bf16.mxu0 0
      %350 = vmatpush1.bf16.msra.mxu0 0
      %351 = vmatprep.subr.bf16.mxu0 0
      %352 = vmatpush1.bf16.msra.mxu0 0
      %353 = vmatprep.subr.bf16.mxu0 0
      %354 = vmatpush1.bf16.msra.mxu0 0
      %355 = vmatprep.subr.bf16.mxu0 0
      %356 = vmatpush1.bf16.msra.mxu0 0
      %357 = vmatprep.subr.bf16.mxu0 0
      %358 = vmatpush1.bf16.msra.mxu0 0
      %359 = vmatprep.subr.bf16.mxu0 0
      %360 = vmatpush1.bf16.msra.mxu0 0
      %361 = vmatprep.subr.bf16.mxu0 0
      %362 = vmatpush1.bf16.msra.mxu0 0
      %363 = vmatprep.subr.bf16.mxu0 0
      %364 = vmatpush1.bf16.msra.mxu0 0
      %365 = vmatprep.mubr.bf16.mxu0 0
      %366 = vmatmul.mubr.bf16.gmra.mrb[0].mxu0 %v328
      %v367 = vpop.f32.mrb[0].mxu0
      %v368 = vadd.f32 %v290, %v367
      %v369 = vpop.f32.mrb[0].mxu0
      %v370 = vpop.f32.mrb[0].mxu0
      %v371 = vadd.f32 %v290, %v370
      %v372 = vpop.f32.mrb[0].mxu0
      %373 = vmatprep.mubr.bf16.mxu0 0
      %374 = vmatmul.mubr.bf16.gmra.mrb[0].mxu0 %v331
      %v375 = vpop.f32.mrb[0].mxu0
      %v376 = vadd.f32 %v290, %v375
      %v377 = vpop.f32.mrb[0].mxu0
      %v378 = vpop.f32.mrb[0].mxu0
      %v379 = vadd.f32 %v290, %v378
      %v380 = vpop.f32.mrb[0].mxu0
      %381 = vdwg.mxu0
      %v382 = vld [vmem:[%s266] sm:$0xf]
      %v383 = vld [vmem:[%s266 + $0x4] sm:$0xf]
      %v384 = vld [vmem:[%s266 + $0x8] sm:$0xf]
      %v385 = vld [vmem:[%s266 + $0xc] sm:$0xf]
      %v386 = vunpack.c.l.bf16 %v382
      %v387 = vunpack.c.l.bf16 %v383
      %v388 = vunpack.c.l.bf16 %v384
      %v389 = vunpack.c.l.bf16 %v385
      %v390 = vadd.f32 %v368, %v386
      %v391 = vadd.f32 %v371, %v387
      %v392 = vadd.f32 %v376, %v388
      %v393 = vadd.f32 %v379, %v389
      %vm394 = vcmask 261120
      %v395 = vsel %vm394, %v390, 0.0
      %396 = vadd.xlane.f32.xlu0 %v395
      %v397 = vpop.xlane.xlu0 %396
      %v398 = vsel %vm394, %v391, 0.0
      %399 = vadd.xlane.f32.xlu0 %v398
      %v400 = vpop.xlane.xlu0 %399
      %v401 = vsel %vm394, %v392, 0.0
      %402 = vadd.xlane.f32.xlu0 %v401
      %v403 = vpop.xlane.xlu0 %402
      %v404 = vsel %vm394, %v393, 0.0
      %405 = vadd.xlane.f32.xlu0 %v404
      %v406 = vpop.xlane.xlu0 %405
      %v407 = vrcp.pop 32.0
      %v408 = vmul.f32 %v397, %v407
      %v409 = vmul.f32 %v400, %v407
      %v410 = vmul.f32 %v403, %v407
      %v411 = vmul.f32 %v406, %v407
      %v412 = vsub.f32 %v390, %v408
      %v413 = vsub.f32 %v391, %v409
      %v414 = vsub.f32 %v392, %v410
      %v415 = vsub.f32 %v393, %v411
      %v416 = vmul.f32 %v412, %v412
      %v417 = vmul.f32 %v413, %v413
      %v418 = vmul.f32 %v414, %v414
      %v419 = vmul.f32 %v415, %v415
      %v420 = vsel %vm394, %v416, 0.0
      %421 = vadd.xlane.f32.xlu0 %v420
      %v422 = vpop.xlane.xlu0 %421
      %v423 = vsel %vm394, %v417, 0.0
      %424 = vadd.xlane.f32.xlu0 %v423
      %v425 = vpop.xlane.xlu0 %424
      %v426 = vsel %vm394, %v418, 0.0
      %427 = vadd.xlane.f32.xlu0 %v426
      %v428 = vpop.xlane.xlu0 %427
      %v429 = vsel %vm394, %v419, 0.0
      %430 = vadd.xlane.f32.xlu0 %v429
      %v431 = vpop.xlane.xlu0 %430
      %v432 = vmul.f32 %v422, %v407
      %v433 = vmul.f32 %v425, %v407
      %v434 = vmul.f32 %v428, %v407
      %v435 = vmul.f32 %v431, %v407
      %v436 = vadd.f32 %v432, 1e-05
      %v437 = vadd.f32 %v433, 1e-05
      %v438 = vadd.f32 %v434, 1e-05
      %v439 = vadd.f32 %v435, 1e-05
      %v440 = vrsqrt.pop %v436
      %v441 = vrsqrt.pop %v437
      %v442 = vrsqrt.pop %v438
      %v443 = vrsqrt.pop %v439
      %v444 = vmul.f32 %v412, %v440
      %v445 = vmul.f32 %v413, %v441
      %v446 = vmul.f32 %v414, %v442
      %v447 = vmul.f32 %v415, %v443
      %v448 = vld [vmem:[%s4] sm:$0x1]
      %v450 = vlaneseq
      %v451 = vshrl.u32 %v450, 7
      %v452 = vsub.s32 0, %v451
      %v453 = vrot.slane %v448, %v452
      %v455 = vmul.f32 %v444, %v453
      %v456 = vmul.f32 %v445, %v453
      %v457 = vmul.f32 %v446, %v453
      %v458 = vmul.f32 %v447, %v453
      %v459 = vld [vmem:[%s5] sm:$0x1]
      %v461 = vlaneseq
      %v462 = vshrl.u32 %v461, 7
      %v463 = vsub.s32 0, %v462
      %v464 = vrot.slane %v459, %v463
      %v466 = vadd.f32 %v455, %v464
      %v467 = vadd.f32 %v456, %v464
      %v468 = vadd.f32 %v457, %v464
      %v469 = vadd.f32 %v458, %v464
      %v470 = vpack.c.bf16 %v467, %v466
      %v471 = vpack.c.bf16 %v469, %v468
      %v474 = vunpack.c.l.b16 %v470
      %v475 = vunpack.c.h.b16 %v470
      %v476 = vunpack.c.l.b16 %v471
      %v477 = vunpack.c.h.b16 %v471
      %v478 = vpack.c.b16 %v474, %v474
      %v479 = vpack.c.b16 %v475, %v475
      %v480 = vpack.c.b16 %v476, %v476
      %v481 = vpack.c.b16 %v477, %v477
      %vm486 = vcmask 257024
      %487 = vst.msk [vmem:[%s271] sm:$0xf] %vm486, %v478
      %488 = vst.msk [vmem:[%s271 + $0x4] sm:$0xf] %vm486, %v479
      %489 = vst.msk [vmem:[%s271 + $0x8] sm:$0xf] %vm486, %v480
      %490 = vst.msk [vmem:[%s271 + $0xc] sm:$0xf] %vm486, %v481
      %p491 = scmp.lt.s32.totalorder %s17, 1
      %s492 = scalar_select %p491, %s17, 1
      %s493 = smul.addr %s492, 4
      %s494 = smul.addr %s493, 4
      %s495 = scalar_lea.vmem %s6, %s494
      // Predicated region
      $region45: #{_fwd.69} parent=43 // pred_check
        %p496 = pneg %p171
      $region46: #{_fwd.69} parent=43 // pred_check_branch
        %498 = sbr.rel (%p496) target = $region48
      $region47: #{_fwd.69} parent=43 // pred_region
        _
      $region48: #{_fwd.69} parent=43 // pred_fallthru
        _
    $region44: #{_fwd.69} parent=5 // pred_fallthru
      _
    %p499 = scmp.le.s32.totalorder 2, %s12
    // Predicated region
    $region49: #{_fwd.69} parent=5 // pred_check
      %p500 = pneg %p499
    $region50: #{_fwd.69} parent=5 // pred_check_branch
      %502 = sbr.rel (%p500) target = $region52
    $region51: #{_fwd.69} parent=5 // pred_region
      %s503 = ssub.s32 %s12, 2
      // Predicated region
      $region53: #{_fwd.69} parent=51 // pred_check
        %p504 = pneg %p177
      $region54: #{_fwd.69} parent=51 // pred_check_branch
        %506 = sbr.rel (%p504) target = $region56
      $region55: #{_fwd.69} parent=51 // pred_region
        %p507 = scmp.lt.s32.totalorder %s18, 1
        %s508 = scalar_select %p507, %s18, 1
        %s509 = smul.addr %s508, 4
        %s510 = smul.addr %s509, 4
        %s511 = scalar_lea.vmem %s6, %s510
      $region56: #{_fwd.69} parent=51 // pred_fallthru
        _
    $region52: #{_fwd.69} parent=5 // pred_fallthru
      _
  $region6: #{_fwd.69} parent=0 // loop_footer
    %s16 = sadd.s32 1, %s12
  $region7: #{_fwd.69} parent=0 // loop_footer_branch
    %11 = sbr.rel target = $region3
  $region8: #{_fwd.69} parent=0 // loop_exit
    _

// kernel: _fwd.70
$region0: #{_fwd.70}
  #allocation0 [shape = 'u32[]', space=smem, size = 0x4, offset = 0x4, fixed_abs, tag = 'smem constant byte address 0x4 - core index']
  #allocation1 [shape = 'u32[144,128]{1,0:T(1,128)}', space=vmem, size = 0x12000, scoped, tag = 'internal scratch']
  %s0 = inlined_call_operand.vmem [shape: bf16[64,32], index: 0, kind: input, shape index: {}]
  %s1 = inlined_call_operand.vmem [shape: f32[1,32], index: 1, kind: input, shape index: {}]
  %s2 = inlined_call_operand.vmem [shape: f32[1,32], index: 2, kind: input, shape index: {}]
  %s3 = inlined_call_operand.vmem [shape: bf16[64,32], index: 3, kind: output, shape index: {}]
  %s4 = sld [smem:[#allocation0]]
  $region22: #{_fwd.70} parent=0
    _
  %s6 = ssub.s32 1, %s4
  %s7 = scalar_select 0, %s6, %s4
  // Predicated region
  $region2: #{_fwd.70} parent=0 // pred_check
    _
  $region3: #{_fwd.70} parent=0 // pred_check_branch
    %9 = sbr.rel (0) target = $region5
  $region4: #{_fwd.70} parent=0 // pred_region
    _
  $region5: #{_fwd.70} parent=0 // pred_fallthru
    _
  // Predicated region
  $region6: #{_fwd.70} parent=0 // pred_check
    _
  $region7: #{_fwd.70} parent=0 // pred_check_branch
    %11 = sbr.rel (0) target = $region9
  $region8: #{_fwd.70} parent=0 // pred_region
    _
  $region9: #{_fwd.70} parent=0 // pred_fallthru
    _
  // Predicated region
  $region10: #{_fwd.70} parent=0 // pred_check
    _
  $region11: #{_fwd.70} parent=0 // pred_check_branch
    %13 = sbr.rel (0) target = $region13
  $region12: #{_fwd.70} parent=0 // pred_region
    _
  $region13: #{_fwd.70} parent=0 // pred_fallthru
    _
  %v14 = vld [vmem:[%s0] sm:$0xf]
  %v15 = vld [vmem:[%s0 + $0x4] sm:$0xf]
  %v16 = vld [vmem:[%s0 + $0x8] sm:$0xf]
  %v17 = vld [vmem:[%s0 + $0xc] sm:$0xf]
  %v18 = vld [vmem:[%s0 + $0x10] sm:$0xf]
  %v19 = vld [vmem:[%s0 + $0x14] sm:$0xf]
  %v20 = vld [vmem:[%s0 + $0x18] sm:$0xf]
  %v21 = vld [vmem:[%s0 + $0x1c] sm:$0xf]
  %v22 = vunpack.c.l.bf16 %v14
  %v23 = vunpack.c.l.bf16 %v15
  %v24 = vunpack.c.l.bf16 %v16
  %v25 = vunpack.c.l.bf16 %v17
  %v26 = vunpack.c.l.bf16 %v18
  %v27 = vunpack.c.l.bf16 %v19
  %v28 = vunpack.c.l.bf16 %v20
  %v29 = vunpack.c.l.bf16 %v21
  %vm30 = vcmask 261120
  %v31 = vsel %vm30, %v22, 0.0
  %32 = vadd.xlane.f32.xlu0 %v31
  %v33 = vpop.xlane.xlu0 %32
  %v34 = vsel %vm30, %v23, 0.0
  %35 = vadd.xlane.f32.xlu0 %v34
  %v36 = vpop.xlane.xlu0 %35
  %v37 = vsel %vm30, %v24, 0.0
  %38 = vadd.xlane.f32.xlu0 %v37
  %v39 = vpop.xlane.xlu0 %38
  %v40 = vsel %vm30, %v25, 0.0
  %41 = vadd.xlane.f32.xlu0 %v40
  %v42 = vpop.xlane.xlu0 %41
  %v43 = vsel %vm30, %v26, 0.0
  %44 = vadd.xlane.f32.xlu0 %v43
  %v45 = vpop.xlane.xlu0 %44
  %v46 = vsel %vm30, %v27, 0.0
  %47 = vadd.xlane.f32.xlu0 %v46
  %v48 = vpop.xlane.xlu0 %47
  %v49 = vsel %vm30, %v28, 0.0
  %50 = vadd.xlane.f32.xlu0 %v49
  %v51 = vpop.xlane.xlu0 %50
  %v52 = vsel %vm30, %v29, 0.0
  %53 = vadd.xlane.f32.xlu0 %v52
  %v54 = vpop.xlane.xlu0 %53
  %v55 = vrcp.pop 32.0
  %v56 = vmul.f32 %v33, %v55
  %v57 = vmul.f32 %v36, %v55
  %v58 = vmul.f32 %v39, %v55
  %v59 = vmul.f32 %v42, %v55
  %v60 = vmul.f32 %v45, %v55
  %v61 = vmul.f32 %v48, %v55
  %v62 = vmul.f32 %v51, %v55
  %v63 = vmul.f32 %v54, %v55
  %v64 = vsub.f32 %v22, %v56
  %v65 = vsub.f32 %v23, %v57
  %v66 = vsub.f32 %v24, %v58
  %v67 = vsub.f32 %v25, %v59
  %v68 = vsub.f32 %v26, %v60
  %v69 = vsub.f32 %v27, %v61
  %v70 = vsub.f32 %v28, %v62
  %v71 = vsub.f32 %v29, %v63
  %v72 = vmul.f32 %v64, %v64
  %v73 = vmul.f32 %v65, %v65
  %v74 = vmul.f32 %v66, %v66
  %v75 = vmul.f32 %v67, %v67
  %v76 = vmul.f32 %v68, %v68
  %v77 = vmul.f32 %v69, %v69
  %v78 = vmul.f32 %v70, %v70
  %v79 = vmul.f32 %v71, %v71
  %v80 = vsel %vm30, %v72, 0.0
  %81 = vadd.xlane.f32.xlu0 %v80
  %v82 = vpop.xlane.xlu0 %81
  %v83 = vsel %vm30, %v73, 0.0
  %84 = vadd.xlane.f32.xlu0 %v83
  %v85 = vpop.xlane.xlu0 %84
  %v86 = vsel %vm30, %v74, 0.0
  %87 = vadd.xlane.f32.xlu0 %v86
  %v88 = vpop.xlane.xlu0 %87
  %v89 = vsel %vm30, %v75, 0.0
  %90 = vadd.xlane.f32.xlu0 %v89
  %v91 = vpop.xlane.xlu0 %90
  %v92 = vsel %vm30, %v76, 0.0
  %93 = vadd.xlane.f32.xlu0 %v92
  %v94 = vpop.xlane.xlu0 %93
  %v95 = vsel %vm30, %v77, 0.0
  %96 = vadd.xlane.f32.xlu0 %v95
  %v97 = vpop.xlane.xlu0 %96
  %v98 = vsel %vm30, %v78, 0.0
  %99 = vadd.xlane.f32.xlu0 %v98
  %v100 = vpop.xlane.xlu0 %99
  %v101 = vsel %vm30, %v79, 0.0
  %102 = vadd.xlane.f32.xlu0 %v101
  %v103 = vpop.xlane.xlu0 %102
  %v104 = vmul.f32 %v82, %v55
  %v105 = vmul.f32 %v85, %v55
  %v106 = vmul.f32 %v88, %v55
  %v107 = vmul.f32 %v91, %v55
  %v108 = vmul.f32 %v94, %v55
  %v109 = vmul.f32 %v97, %v55
  %v110 = vmul.f32 %v100, %v55
  %v111 = vmul.f32 %v103, %v55
  %v112 = vadd.f32 %v104, 1e-05
  %v113 = vadd.f32 %v105, 1e-05
  %v114 = vadd.f32 %v106, 1e-05
  %v115 = vadd.f32 %v107, 1e-05
  %v116 = vadd.f32 %v108, 1e-05
  %v117 = vadd.f32 %v109, 1e-05
  %v118 = vadd.f32 %v110, 1e-05
  %v119 = vadd.f32 %v111, 1e-05
  %v120 = vrsqrt.pop %v112
  %v121 = vrsqrt.pop %v113
  %v122 = vrsqrt.pop %v114
  %v123 = vrsqrt.pop %v115
  %v124 = vrsqrt.pop %v116
  %v125 = vrsqrt.pop %v117
  %v126 = vrsqrt.pop %v118
  %v127 = vrsqrt.pop %v119
  %v128 = vmul.f32 %v64, %v120
  %v129 = vmul.f32 %v65, %v121
  %v130 = vmul.f32 %v66, %v122
  %v131 = vmul.f32 %v67, %v123
  %v132 = vmul.f32 %v68, %v124
  %v133 = vmul.f32 %v69, %v125
  %v134 = vmul.f32 %v70, %v126
  %v135 = vmul.f32 %v71, %v127
  %v136 = vld [vmem:[%s1] sm:$0x1]
  %v138 = vlaneseq
  %v139 = vshrl.u32 %v138, 7
  %v140 = vsub.s32 0, %v139
  %v141 = vrot.slane %v136, %v140
  %v143 = vmul.f32 %v128, %v141
  %v144 = vmul.f32 %v129, %v141
  %v145 = vmul.f32 %v130, %v141
  %v146 = vmul.f32 %v131, %v141
  %v147 = vmul.f32 %v132, %v141
  %v148 = vmul.f32 %v133, %v141
  %v149 = vmul.f32 %v134, %v141
  %v150 = vmul.f32 %v135, %v141
  %v151 = vld [vmem:[%s2] sm:$0x1]
  %v153 = vlaneseq
  %v154 = vshrl.u32 %v153, 7
  %v155 = vsub.s32 0, %v154
  %v156 = vrot.slane %v151, %v155
  %v158 = vadd.f32 %v143, %v156
  %v159 = vadd.f32 %v144, %v156
  %v160 = vadd.f32 %v145, %v156
  %v161 = vadd.f32 %v146, %v156
  %v162 = vadd.f32 %v147, %v156
  %v163 = vadd.f32 %v148, %v156
  %v164 = vadd.f32 %v149, %v156
  %v165 = vadd.f32 %v150, %v156
  %v166 = vpack.c.bf16 %v159, %v158
  %v167 = vpack.c.bf16 %v161, %v160
  %v168 = vpack.c.bf16 %v163, %v162
  %v169 = vpack.c.bf16 %v165, %v164
  %v174 = vunpack.c.l.b16 %v166
  %v175 = vunpack.c.h.b16 %v166
  %v176 = vunpack.c.l.b16 %v167
  %v177 = vunpack.c.h.b16 %v167
  %v178 = vunpack.c.l.b16 %v168
  %v179 = vunpack.c.h.b16 %v168
  %v180 = vunpack.c.l.b16 %v169
  %v181 = vunpack.c.h.b16 %v169
  %v182 = vpack.c.b16 %v174, %v174
  %v183 = vpack.c.b16 %v175, %v175
  %v184 = vpack.c.b16 %v176, %v176
  %v185 = vpack.c.b16 %v177, %v177
  %v186 = vpack.c.b16 %v178, %v178
  %v187 = vpack.c.b16 %v179, %v179
  %v188 = vpack.c.b16 %v180, %v180
  %v189 = vpack.c.b16 %v181, %v181
  %vm198 = vcmask 257024
  %199 = vst.msk [vmem:[%s3] sm:$0xf] %vm198, %v182
  %200 = vst.msk [vmem:[%s3 + $0x4] sm:$0xf] %vm198, %v183
  %201 = vst.msk [vmem:[%s3 + $0x8] sm:$0xf] %vm198, %v184
  %202 = vst.msk [vmem:[%s3 + $0xc] sm:$0xf] %vm198, %v185
  %203 = vst.msk [vmem:[%s3 + $0x10] sm:$0xf] %vm198, %v186
  %204 = vst.msk [vmem:[%s3 + $0x14] sm:$0xf] %vm198, %v187
  %205 = vst.msk [vmem:[%s3 + $0x18] sm:$0xf] %vm198, %v188
  %206 = vst.msk [vmem:[%s3 + $0x1c] sm:$0xf] %vm198, %v189
  // Predicated region
  $region14: #{_fwd.70} parent=0 // pred_check
    _
  $region15: #{_fwd.70} parent=0 // pred_check_branch
    %208 = sbr.rel (0) target = $region17
  $region16: #{_fwd.70} parent=0 // pred_region
    _
  $region17: #{_fwd.70} parent=0 // pred_fallthru
    _
  // Predicated region
  $region18: #{_fwd.70} parent=0 // pred_check
    _
  $region19: #{_fwd.70} parent=0 // pred_check_branch
    %210 = sbr.rel (0) target = $region21
  $region20: #{_fwd.70} parent=0 // pred_region
    _
  $region21: #{_fwd.70} parent=0 // pred_fallthru
    _

// kernel: _fwd.71
$region0: #{_fwd.71}
  #allocation0 [shape = 'u32[]', space=smem, size = 0x4, offset = 0x4, fixed_abs, tag = 'smem constant byte address 0x4 - core index']
  #allocation1 [shape = 'u32[144,128]{1,0:T(1,128)}', space=vmem, size = 0x12000, scoped, tag = 'internal scratch']
  %s0 = inlined_call_operand.vmem [shape: bf16[64,32], index: 0, kind: input, shape index: {}]
  %s1 = inlined_call_operand.vmem [shape: bf16[32,128], index: 1, kind: input, shape index: {}]
  %s2 = inlined_call_operand.vmem [shape: f32[1,128], index: 2, kind: input, shape index: {}]
  %s3 = inlined_call_operand.vmem [shape: bf16[64,128], index: 3, kind: output, shape index: {}]
  %s4 = sld [smem:[#allocation0]]
  $region22: #{_fwd.71} parent=0
    _
  %s6 = ssub.s32 1, %s4
  %s7 = scalar_select 0, %s6, %s4
  // Predicated region
  $region2: #{_fwd.71} parent=0 // pred_check
    _
  $region3: #{_fwd.71} parent=0 // pred_check_branch
    %9 = sbr.rel (0) target = $region5
  $region4: #{_fwd.71} parent=0 // pred_region
    _
  $region5: #{_fwd.71} parent=0 // pred_fallthru
    _
  // Predicated region
  $region6: #{_fwd.71} parent=0 // pred_check
    _
  $region7: #{_fwd.71} parent=0 // pred_check_branch
    %11 = sbr.rel (0) target = $region9
  $region8: #{_fwd.71} parent=0 // pred_region
    _
  $region9: #{_fwd.71} parent=0 // pred_fallthru
    _
  // Predicated region
  $region10: #{_fwd.71} parent=0 // pred_check
    _
  $region11: #{_fwd.71} parent=0 // pred_check_branch
    %13 = sbr.rel (0) target = $region13
  $region12: #{_fwd.71} parent=0 // pred_region
    _
  $region13: #{_fwd.71} parent=0 // pred_fallthru
    _
  %v15 = vld [vmem:[%s0] sm:$0xf]
  %v16 = vld [vmem:[%s0 + $0x4] sm:$0xf]
  %v17 = vld [vmem:[%s0 + $0x8] sm:$0xf]
  %v18 = vld [vmem:[%s0 + $0xc] sm:$0xf]
  %v19 = vld [vmem:[%s0 + $0x10] sm:$0xf]
  %v20 = vld [vmem:[%s0 + $0x14] sm:$0xf]
  %v21 = vld [vmem:[%s0 + $0x18] sm:$0xf]
  %v22 = vld [vmem:[%s0 + $0x1c] sm:$0xf]
  %v23 = vld [vmem:[%s1] sm:$0xf]
  %v24 = vld [vmem:[%s1 + $0x4] sm:$0xf]
  %v25 = vld [vmem:[%s1 + $0x8] sm:$0xf]
  %v26 = vld [vmem:[%s1 + $0xc] sm:$0xf]
  %v27 = vld [vmem:[%s2] sm:$0x1]
  %v29 = vlaneseq
  %v30 = vshrl.u32 %v29, 7
  %v31 = vsub.s32 0, %v30
  %v32 = vrot.slane %v27, %v31
  %v42 = vunpack.c.l.b16 %v15
  %v43 = vunpack.c.l.b16 %v16
  %v44 = vunpack.c.l.b16 %v17
  %v45 = vunpack.c.l.b16 %v18
  %v46 = vunpack.c.l.b16 %v19
  %v47 = vunpack.c.l.b16 %v20
  %v48 = vunpack.c.l.b16 %v21
  %v49 = vunpack.c.l.b16 %v22
  %v50 = vpack.c.b16 %v43, %v42
  %v51 = vpack.c.b16 %v45, %v44
  %v52 = vpack.c.b16 %v47, %v46
  %v53 = vpack.c.b16 %v49, %v48
  %v58 = vunpack.c.l.b16 %v23
  %v59 = vunpack.c.l.b16 %v24
  %v60 = vunpack.c.l.b16 %v25
  %v61 = vunpack.c.l.b16 %v26
  %v62 = vpack.c.b16 %v59, %v58
  %v63 = vpack.c.b16 %v61, %v60
  %vm66 = vcmask 261120
  %v68 = vsel %vm66, %v50, 0
  %v71 = vsel %vm66, %v51, 0
  %v74 = vsel %vm66, %v52, 0
  %v77 = vsel %vm66, %v53, 0
  %79 = vmatprep.subr.bf16.mxu0 0
  %80 = vmatpush1.bf16.msra.mxu0 %v62
  %81 = vmatprep.subr.bf16.mxu0 0
  %82 = vmatpush1.bf16.msra.mxu0 %v63
  %83 = vmatprep.subr.bf16.mxu0 0
  %84 = vmatpush1.bf16.msra.mxu0 0
  %85 = vmatprep.subr.bf16.mxu0 0
  %86 = vmatpush1.bf16.msra.mxu0 0
  %87 = vmatprep.subr.bf16.mxu0 0
  %88 = vmatpush1.bf16.msra.mxu0 0
  %89 = vmatprep.subr.bf16.mxu0 0
  %90 = vmatpush1.bf16.msra.mxu0 0
  %91 = vmatprep.subr.bf16.mxu0 0
  %92 = vmatpush1.bf16.msra.mxu0 0
  %93 = vmatprep.subr.bf16.mxu0 0
  %94 = vmatpush1.bf16.msra.mxu0 0
  %95 = vmatprep.subr.bf16.mxu0 0
  %96 = vmatpush1.bf16.msra.mxu0 0
  %97 = vmatprep.subr.bf16.mxu0 0
  %98 = vmatpush1.bf16.msra.mxu0 0
  %99 = vmatprep.subr.bf16.mxu0 0
  %100 = vmatpush1.bf16.msra.mxu0 0
  %101 = vmatprep.subr.bf16.mxu0 0
  %102 = vmatpush1.bf16.msra.mxu0 0
  %103 = vmatprep.subr.bf16.mxu0 0
  %104 = vmatpush1.bf16.msra.mxu0 0
  %105 = vmatprep.subr.bf16.mxu0 0
  %106 = vmatpush1.bf16.msra.mxu0 0
  %107 = vmatprep.subr.bf16.mxu0 0
  %108 = vmatpush1.bf16.msra.mxu0 0
  %109 = vmatprep.subr.bf16.mxu0 0
  %110 = vmatpush1.bf16.msra.mxu0 0
  %111 = vmatprep.mubr.bf16.mxu0 0
  %112 = vmatmul.mubr.bf16.gmra.mrb[0].mxu0 %v68
  %v113 = vpop.f32.mrb[0].mxu0
  %v114 = vadd.f32 %v32, %v113
  %v115 = vpop.f32.mrb[0].mxu0
  %v116 = vpop.f32.mrb[0].mxu0
  %v117 = vadd.f32 %v32, %v116
  %v118 = vpop.f32.mrb[0].mxu0
  %119 = vmatprep.mubr.bf16.mxu0 0
  %120 = vmatmul.mubr.bf16.gmra.mrb[0].mxu0 %v71
  %v121 = vpop.f32.mrb[0].mxu0
  %v122 = vadd.f32 %v32, %v121
  %v123 = vpop.f32.mrb[0].mxu0
  %v124 = vpop.f32.mrb[0].mxu0
  %v125 = vadd.f32 %v32, %v124
  %v126 = vpop.f32.mrb[0].mxu0
  %127 = vmatprep.mubr.bf16.mxu0 0
  %128 = vmatmul.mubr.bf16.gmra.mrb[0].mxu0 %v74
  %v129 = vpop.f32.mrb[0].mxu0
  %v130 = vadd.f32 %v32, %v129
  %v131 = vpop.f32.mrb[0].mxu0
  %v132 = vpop.f32.mrb[0].mxu0
  %v133 = vadd.f32 %v32, %v132
  %v134 = vpop.f32.mrb[0].mxu0
  %135 = vmatprep.mubr.bf16.mxu0 0
  %136 = vmatmul.mubr.bf16.gmra.mrb[0].mxu0 %v77
  %v137 = vpop.f32.mrb[0].mxu0
  %v138 = vadd.f32 %v32, %v137
  %v139 = vpop.f32.mrb[0].mxu0
  %v140 = vpop.f32.mrb[0].mxu0
  %v141 = vadd.f32 %v32, %v140
  %v142 = vpop.f32.mrb[0].mxu0
  %143 = vdwg.mxu0
  %v144 = vpack.c.bf16 %v117, %v114
  %v145 = vpack.c.bf16 %v125, %v122
  %v146 = vpack.c.bf16 %v133, %v130
  %v147 = vpack.c.bf16 %v141, %v138
  %v152 = vunpack.c.l.b16 %v144
  %v153 = vunpack.c.h.b16 %v144
  %v154 = vunpack.c.l.b16 %v145
  %v155 = vunpack.c.h.b16 %v145
  %v156 = vunpack.c.l.b16 %v146
  %v157 = vunpack.c.h.b16 %v146
  %v158 = vunpack.c.l.b16 %v147
  %v159 = vunpack.c.h.b16 %v147
  %v160 = vpack.c.b16 %v152, %v152
  %v161 = vpack.c.b16 %v153, %v153
  %v162 = vpack.c.b16 %v154, %v154
  %v163 = vpack.c.b16 %v155, %v155
  %v164 = vpack.c.b16 %v156, %v156
  %v165 = vpack.c.b16 %v157, %v157
  %v166 = vpack.c.b16 %v158, %v158
  %v167 = vpack.c.b16 %v159, %v159
  %176 = vst [vmem:[%s3] sm:$0xf] %v160
  %177 = vst [vmem:[%s3 + $0x4] sm:$0xf] %v161
  %178 = vst [vmem:[%s3 + $0x8] sm:$0xf] %v162
  %179 = vst [vmem:[%s3 + $0xc] sm:$0xf] %v163
  %180 = vst [vmem:[%s3 + $0x10] sm:$0xf] %v164
  %181 = vst [vmem:[%s3 + $0x14] sm:$0xf] %v165
  %182 = vst [vmem:[%s3 + $0x18] sm:$0xf] %v166
  %183 = vst [vmem:[%s3 + $0x1c] sm:$0xf] %v167
  // Predicated region
  $region14: #{_fwd.71} parent=0 // pred_check
    _
  $region15: #{_fwd.71} parent=0 // pred_check_branch
    %185 = sbr.rel (0) target = $region17
  $region16: #{_fwd.71} parent=0 // pred_region
    _
  $region17: #{_fwd.71} parent=0 // pred_fallthru
    _
  // Predicated region
  $region18: #{_fwd.71} parent=0 // pred_check
    _
  $region19: #{_fwd.71} parent=0 // pred_check_branch
    %187 = sbr.rel (0) target = $region21
  $region20: #{_fwd.71} parent=0 // pred_region
    _
  $region21: #{_fwd.71} parent=0 // pred_fallthru
    _

</llo_original>
